<compile_context>
chip_gen: v7x
topology: tpu7x:2x2x1
jax: 0.10.0
libtpu: 0.0.40
codegen_flags: <defaults>
</compile_context>

<pallas_src>
import functools
import math

import jax
import jax.numpy as jnp
from jax.experimental import pallas as pl
from jax.experimental.pallas import tpu as pltpu


def _col_shift(x, dx, col_first, col_last):
    """out[:, h*W+w] = x[:, h*W + (w+dx)], zero where w+dx leaves [0, W)."""
    c = x.shape[0]
    if dx == 0:
        return x
    if dx == 1:
        xs = jnp.concatenate([x[:, 1:], jnp.zeros((c, 1), jnp.float32)], axis=1)
        return jnp.where(col_last, 0.0, xs)
    xs = jnp.concatenate([jnp.zeros((c, 1), jnp.float32), x[:, :-1]], axis=1)
    return jnp.where(col_first, 0.0, xs)


def _row_shift(x, dy, W):
    """out[:, h*W+w] = x[:, (h+dy)*W + w]; rows falling off the top/bottom of
    the image end up in the zero fill of the lane-axis concat, so no explicit
    mask is needed here."""
    if dy == 0:
        return x
    c = x.shape[0]
    s = dy * W
    if s > 0:
        return jnp.concatenate([x[:, s:], jnp.zeros((c, s), jnp.float32)],
                               axis=1)
    return jnp.concatenate([jnp.zeros((c, -s), jnp.float32), x[:, :s]], axis=1)


def _conv3x3_bn_relu(inputs, weights, b_col, W, col_first, col_last):
    """3x3 SAME conv + folded BN + ReLU on lane-dense (C, H*W) activations.

    inputs:  list of (Cin_i, H*W) f32 activations (a 2C-input conv is passed
             as two C-channel inputs so no channel concat is materialized).
    weights: matching list of (9, Cout, Cin_i) arrays, BN scale pre-folded,
             tap index t = (dy+1)*3 + (dx+1).
    b_col:   (Cout, 1) folded BN shift.
    """
    hw = inputs[0].shape[1]
    cout = weights[0].shape[1]
    acc = jnp.broadcast_to(b_col, (cout, hw)).astype(jnp.float32)
    for x, w in zip(inputs, weights):
        cin = x.shape[0]
        # Column-shifted variants computed (and border-masked) once per input.
        cols = {dx: _col_shift(x, dx, col_first, col_last) for dx in (-1, 0, 1)}
        for dy in (-1, 0, 1):
            for dx in (-1, 0, 1):
                t = (dy + 1) * 3 + (dx + 1)
                xs = _row_shift(cols[dx], dy, W)
                wt = w[t]                              # (Cout, Cin)
                for ci in range(cin):                  # VPU broadcast-FMA
                    acc = acc + wt[:, ci:ci + 1] * xs[ci:ci + 1, :]
    return jnp.maximum(acc, 0.0)                       # ReLU


def _inference_module_kernel(x_ref, w0_ref, we_ref, wm1_ref, wm23_ref, b_ref,
                             out_ref, *, W):
    hw = x_ref.shape[-1]
    col = jax.lax.broadcasted_iota(jnp.int32, (1, hw), 1) % W
    col_first = col == 0
    col_last = col == (W - 1)

    conv = functools.partial(_conv3x3_bn_relu, W=W,
                             col_first=col_first, col_last=col_last)
    bias = lambda l: b_ref[:, l:l + 1]                 # (C, 1)

    x = x_ref[0].astype(jnp.float32)                   # (Cin, H*W)

    h = conv([x], [w0_ref[...]], bias(0))              # conv_block
    e = h
    for i in range(3):                                 # edge_conv (3 layers)
        e = conv([e], [we_ref[i]], bias(1 + i))
    # mask_conv[0] consumes torch.cat([edge_feature, x], 1); the concat is
    # expressed by splitting its weight over the two inputs.
    m = conv([e, h], [wm1_ref[0], wm1_ref[1]], bias(4))
    m = conv([m], [wm23_ref[0]], bias(5))              # mask_conv[1]
    m = conv([m], [wm23_ref[1]], bias(6))              # mask_conv[2]

    out_ref[0] = m.astype(out_ref.dtype)


def _full_spec(a):
    zeros = (0,) * a.ndim
    return pl.BlockSpec(a.shape, lambda n, _z=zeros: _z)


def inference_module_forward(x_nchw, params):
    N, Cin, H, W = x_nchw.shape
    HW = H * W
    C = params['b'].shape[0]
    x = x_nchw.reshape(N, Cin, HW)                     # lane-dense, no transpose

    out = pl.pallas_call(
        functools.partial(_inference_module_kernel, W=W),
        out_shape=jax.ShapeDtypeStruct((N, C, HW), x_nchw.dtype),
        grid=(N,),
        in_specs=[
            pl.BlockSpec((1, Cin, HW), lambda n: (n, 0, 0)),
            _full_spec(params['w0']),
            _full_spec(params['we']),
            _full_spec(params['wm1']),
            _full_spec(params['wm23']),
            _full_spec(params['b']),
        ],
        out_specs=pl.BlockSpec((1, C, HW), lambda n: (n, 0, 0)),
        compiler_params=pltpu.CompilerParams(
            dimension_semantics=("parallel",)),        # batch across cores
    )(x, params['w0'], params['we'], params['wm1'], params['wm23'],
      params['b'])
    return out.reshape(N, C, H, W)


def init_params(key, indim, outdim):
    C = outdim
    eps = 1e-5
    # Freshly initialized BatchNorm2d, inference statistics: gamma=1, beta=0,
    # running_mean=0, running_var=1  =>  scale = 1/sqrt(1+eps), shift = 0.
    # TODO(synk): training-mode batch statistics are not reproduced; when
    #             porting trained weights fold the real running stats here.
    bn_scale = 1.0 / math.sqrt(1.0 + eps)
    bn_shift = 0.0

    def conv_w(k, cout, cin):
        # nn.init.kaiming_uniform_(w, a=1) on a torch (cout, cin, 3, 3) weight,
        # stored as (9, cout, cin) with tap t = (dy+1)*3 + (dx+1)
        # (== torch_w.permute(2, 3, 0, 1).reshape(9, cout, cin)).
        fan_in = cin * 9
        bound = math.sqrt(3.0 / fan_in)                # gain(a=1) = 1
        w = jax.random.uniform(k, (9, cout, cin), jnp.float32, -bound, bound)
        return w * bn_scale                            # fold BN scale in

    keys = jax.random.split(key, 7)
    wm1_full = conv_w(keys[4], C, 2 * C)               # mask_conv[0]: 2C -> C
    return {
        'w0': conv_w(keys[0], C, indim),                               # conv_block
        'we': jnp.stack([conv_w(keys[1 + i], C, C) for i in range(3)]),  # edge_conv
        # split over [edge_feature, x] so the kernel never concatenates:
        'wm1': jnp.stack([wm1_full[:, :, :C], wm1_full[:, :, C:]]),
        'wm23': jnp.stack([conv_w(keys[5], C, C), conv_w(keys[6], C, C)]),
        'b': jnp.full((C, 7), bn_shift, jnp.float32),  # folded BN shifts (7 layers)
    }


def _reference_forward(x, params):
    """Pure-JAX (XLA conv) reference on the same folded-BN parameters."""
    def conv(inp, w9, b):
        cout, cin = w9.shape[1], w9.shape[2]
        w = w9.reshape(3, 3, cout, cin).transpose(2, 3, 0, 1)  # OIHW
        y = jax.lax.conv_general_dilated(
            inp, w, window_strides=(1, 1), padding="SAME",
            dimension_numbers=("NCHW", "OIHW", "NCHW"),
            precision=jax.lax.Precision.HIGHEST)
        return jnp.maximum(y + b.reshape(1, -1, 1, 1), 0.0)

    b = params['b']
    h = conv(x, params['w0'], b[:, 0])
    e = h
    for i in range(3):
        e = conv(e, params['we'][i], b[:, 1 + i])
    wm1 = jnp.concatenate([params['wm1'][0], params['wm1'][1]], axis=2)
    m = conv(jnp.concatenate([e, h], axis=1), wm1, b[:, 4])
    m = conv(m, params['wm23'][0], b[:, 5])
    m = conv(m, params['wm23'][1], b[:, 6])
    return m


if __name__ == "__main__":
    key = jax.random.PRNGKey(0)
    kx, kp = jax.random.split(key)
    N, INDIM, OUTDIM, H, W = 2, 4, 4, 16, 16
    x = jax.random.normal(kx, (N, INDIM, H, W), jnp.float32)
    params = init_params(kp, INDIM, OUTDIM)

    out = jax.jit(inference_module_forward)(x, params)
    jax.block_until_ready(out)
    assert out.shape == (N, OUTDIM, H, W)
    assert bool(jnp.all(jnp.isfinite(out)))

    ref = _reference_forward(x, params)
    err = float(jnp.max(jnp.abs(out - ref)))
    assert err < 1e-3, f"max|pallas - ref| = {err}"
    print("KERNEL_OK")
</pallas_src>

<mosaic_0001>
module attributes {stable_mosaic.version = 11 : i64} {
  func.func @_inference_module_kernel(%arg0: i32, %arg1: memref<1x4x256xf32, #tpu.memory_space<vmem>>, %arg2: memref<9x4x4xf32, #tpu.memory_space<vmem>>, %arg3: memref<3x9x4x4xf32, #tpu.memory_space<vmem>>, %arg4: memref<2x9x4x4xf32, #tpu.memory_space<vmem>>, %arg5: memref<2x9x4x4xf32, #tpu.memory_space<vmem>>, %arg6: memref<4x7xf32, #tpu.memory_space<vmem>>, %arg7: memref<1x4x256xf32, #tpu.memory_space<vmem>>) attributes {dimension_semantics = [#tpu.dimension_semantics<parallel>], iteration_bounds = array<i64: 2>, scalar_prefetch = 0 : i64, scratch_operands = 0 : i64, tpu.core_type = #tpu.core_type<tc>, window_params = [{transform_indices = @transform_0, window_bounds = array<i64: 1, 4, 256>}, {pipeline_mode = #tpu.pipeline_mode<synchronous>, transform_indices = @transform_1, window_bounds = array<i64: 9, 4, 4>}, {pipeline_mode = #tpu.pipeline_mode<synchronous>, transform_indices = @transform_2, window_bounds = array<i64: 3, 9, 4, 4>}, {pipeline_mode = #tpu.pipeline_mode<synchronous>, transform_indices = @transform_3, window_bounds = array<i64: 2, 9, 4, 4>}, {pipeline_mode = #tpu.pipeline_mode<synchronous>, transform_indices = @transform_4, window_bounds = array<i64: 2, 9, 4, 4>}, {pipeline_mode = #tpu.pipeline_mode<synchronous>, transform_indices = @transform_5, window_bounds = array<i64: 4, 7>}, {transform_indices = @transform_6, window_bounds = array<i64: 1, 4, 256>}]} {
    %0 = tpu.iota {dimensions = array<i32: 1>} : vector<1x256xi32>
    %c16_i32 = arith.constant 16 : i32
    %c0_i32 = arith.constant 0 : i32
    %1 = arith.cmpi eq, %c16_i32, %c0_i32 : i32
    %c1_i32 = arith.constant 1 : i32
    %2 = arith.select %1, %c1_i32, %c16_i32 : i32
    %3 = vector.broadcast %2 : i32 to vector<1x256xi32>
    %4 = arith.remsi %0, %3 : vector<1x256xi32>
    %c0_i32_0 = arith.constant 0 : i32
    %5 = vector.broadcast %c0_i32_0 : i32 to vector<1x256xi32>
    %6 = arith.cmpi ne, %4, %5 : vector<1x256xi32>
    %c0_i32_1 = arith.constant 0 : i32
    %7 = vector.broadcast %c0_i32_1 : i32 to vector<1x256xi32>
    %8 = arith.cmpi slt, %4, %7 : vector<1x256xi32>
    %c0_i32_2 = arith.constant 0 : i32
    %9 = arith.cmpi slt, %2, %c0_i32_2 : i32
    %10 = vector.broadcast %9 : i1 to vector<1x256xi1>
    %11 = vector.broadcast %10 : vector<1x256xi1> to vector<1x256xi1>
    %12 = arith.xori %8, %11 : vector<1x256xi1>
    %13 = arith.andi %12, %6 : vector<1x256xi1>
    %14 = vector.broadcast %2 : i32 to vector<1x256xi32>
    %15 = arith.addi %4, %14 : vector<1x256xi32>
    %16 = arith.select %13, %15, %4 : vector<1x256xi1>, vector<1x256xi32>
    %c0_i32_3 = arith.constant 0 : i32
    %17 = vector.broadcast %c0_i32_3 : i32 to vector<1x256xi32>
    %18 = arith.cmpi eq, %16, %17 : vector<1x256xi32>
    %c15_i32 = arith.constant 15 : i32
    %19 = vector.broadcast %c15_i32 : i32 to vector<1x256xi32>
    %20 = arith.cmpi eq, %16, %19 : vector<1x256xi32>
    %c0 = arith.constant 0 : index
    %c0_4 = arith.constant 0 : index
    %c0_5 = arith.constant 0 : index
    %21 = vector.load %arg1[%c0, %c0_4, %c0_5] : memref<1x4x256xf32, #tpu.memory_space<vmem>>, vector<1x4x256xf32>
    %22 = vector.shape_cast %21 : vector<1x4x256xf32> to vector<4x256xf32>
    %c0_6 = arith.constant 0 : index
    %c0_7 = arith.constant 0 : index
    %c0_8 = arith.constant 0 : index
    %23 = vector.load %arg2[%c0_6, %c0_7, %c0_8] : memref<9x4x4xf32, #tpu.memory_space<vmem>>, vector<9x4x4xf32>
    %c0_9 = arith.constant 0 : index
    %c0_10 = arith.constant 0 : index
    %24 = vector.load %arg6[%c0_9, %c0_10] : memref<4x7xf32, #tpu.memory_space<vmem>>, vector<4x1xf32>
    %25 = vector.shape_cast %24 : vector<4x1xf32> to vector<4x1xf32>
    %26 = vector.broadcast %25 : vector<4x1xf32> to vector<4x256xf32>
    %cst = arith.constant 0.000000e+00 : f32
    %27 = vector.broadcast %cst : f32 to vector<4x1xf32>
    %28 = vector.extract_strided_slice %22 {offsets = [0, 0], sizes = [4, 255], strides = [1, 1]} : vector<4x256xf32> to vector<4x255xf32>
    %29 = tpu.concatenate %27, %28 in 1 : vector<4x1xf32>, vector<4x255xf32> -> vector<4x256xf32>
    %cst_11 = arith.constant 0.000000e+00 : f32
    %30 = vector.shape_cast %18 : vector<1x256xi1> to vector<1x256xi1>
    %31 = vector.broadcast %30 : vector<1x256xi1> to vector<4x256xi1>
    %32 = vector.broadcast %cst_11 : f32 to vector<4x256xf32>
    %33 = arith.select %31, %32, %29 : vector<4x256xi1>, vector<4x256xf32>
    %34 = vector.extract_strided_slice %22 {offsets = [0, 1], sizes = [4, 255], strides = [1, 1]} : vector<4x256xf32> to vector<4x255xf32>
    %cst_12 = arith.constant 0.000000e+00 : f32
    %35 = vector.broadcast %cst_12 : f32 to vector<4x1xf32>
    %36 = tpu.concatenate %34, %35 in 1 : vector<4x255xf32>, vector<4x1xf32> -> vector<4x256xf32>
    %cst_13 = arith.constant 0.000000e+00 : f32
    %37 = vector.shape_cast %20 : vector<1x256xi1> to vector<1x256xi1>
    %38 = vector.broadcast %37 : vector<1x256xi1> to vector<4x256xi1>
    %39 = vector.broadcast %cst_13 : f32 to vector<4x256xf32>
    %40 = arith.select %38, %39, %36 : vector<4x256xi1>, vector<4x256xf32>
    %cst_14 = arith.constant 0.000000e+00 : f32
    %41 = vector.broadcast %cst_14 : f32 to vector<4x16xf32>
    %42 = vector.extract_strided_slice %33 {offsets = [0, 0], sizes = [4, 240], strides = [1, 1]} : vector<4x256xf32> to vector<4x240xf32>
    %43 = tpu.concatenate %41, %42 in 1 : vector<4x16xf32>, vector<4x240xf32> -> vector<4x256xf32>
    %44 = vector.extract_strided_slice %23 {offsets = [0, 0, 0], sizes = [1, 4, 4], strides = [1, 1, 1]} : vector<9x4x4xf32> to vector<1x4x4xf32>
    %45 = vector.shape_cast %44 : vector<1x4x4xf32> to vector<4x4xf32>
    %46 = vector.extract_strided_slice %45 {offsets = [0, 0], sizes = [4, 1], strides = [1, 1]} : vector<4x4xf32> to vector<4x1xf32>
    %47 = vector.extract_strided_slice %43 {offsets = [0, 0], sizes = [1, 256], strides = [1, 1]} : vector<4x256xf32> to vector<1x256xf32>
    %48 = vector.broadcast %46 : vector<4x1xf32> to vector<4x256xf32>
    %49 = vector.broadcast %47 : vector<1x256xf32> to vector<4x256xf32>
    %50 = arith.mulf %48, %49 : vector<4x256xf32>
    %51 = arith.addf %26, %50 : vector<4x256xf32>
    %52 = vector.extract_strided_slice %45 {offsets = [0, 1], sizes = [4, 1], strides = [1, 1]} : vector<4x4xf32> to vector<4x1xf32>
    %53 = vector.extract_strided_slice %43 {offsets = [1, 0], sizes = [1, 256], strides = [1, 1]} : vector<4x256xf32> to vector<1x256xf32>
    %54 = vector.broadcast %52 : vector<4x1xf32> to vector<4x256xf32>
    %55 = vector.broadcast %53 : vector<1x256xf32> to vector<4x256xf32>
    %56 = arith.mulf %54, %55 : vector<4x256xf32>
    %57 = arith.addf %51, %56 : vector<4x256xf32>
    %58 = vector.extract_strided_slice %45 {offsets = [0, 2], sizes = [4, 1], strides = [1, 1]} : vector<4x4xf32> to vector<4x1xf32>
    %59 = vector.extract_strided_slice %43 {offsets = [2, 0], sizes = [1, 256], strides = [1, 1]} : vector<4x256xf32> to vector<1x256xf32>
    %60 = vector.broadcast %58 : vector<4x1xf32> to vector<4x256xf32>
    %61 = vector.broadcast %59 : vector<1x256xf32> to vector<4x256xf32>
    %62 = arith.mulf %60, %61 : vector<4x256xf32>
    %63 = arith.addf %57, %62 : vector<4x256xf32>
    %64 = vector.extract_strided_slice %45 {offsets = [0, 3], sizes = [4, 1], strides = [1, 1]} : vector<4x4xf32> to vector<4x1xf32>
    %65 = vector.extract_strided_slice %43 {offsets = [3, 0], sizes = [1, 256], strides = [1, 1]} : vector<4x256xf32> to vector<1x256xf32>
    %66 = vector.broadcast %64 : vector<4x1xf32> to vector<4x256xf32>
    %67 = vector.broadcast %65 : vector<1x256xf32> to vector<4x256xf32>
    %68 = arith.mulf %66, %67 : vector<4x256xf32>
    %69 = arith.addf %63, %68 : vector<4x256xf32>
    %cst_15 = arith.constant 0.000000e+00 : f32
    %70 = vector.broadcast %cst_15 : f32 to vector<4x16xf32>
    %71 = vector.extract_strided_slice %22 {offsets = [0, 0], sizes = [4, 240], strides = [1, 1]} : vector<4x256xf32> to vector<4x240xf32>
    %72 = tpu.concatenate %70, %71 in 1 : vector<4x16xf32>, vector<4x240xf32> -> vector<4x256xf32>
    %73 = vector.extract_strided_slice %23 {offsets = [1, 0, 0], sizes = [1, 4, 4], strides = [1, 1, 1]} : vector<9x4x4xf32> to vector<1x4x4xf32>
    %74 = vector.shape_cast %73 : vector<1x4x4xf32> to vector<4x4xf32>
    %75 = vector.extract_strided_slice %74 {offsets = [0, 0], sizes = [4, 1], strides = [1, 1]} : vector<4x4xf32> to vector<4x1xf32>
    %76 = vector.extract_strided_slice %72 {offsets = [0, 0], sizes = [1, 256], strides = [1, 1]} : vector<4x256xf32> to vector<1x256xf32>
    %77 = vector.broadcast %75 : vector<4x1xf32> to vector<4x256xf32>
    %78 = vector.broadcast %76 : vector<1x256xf32> to vector<4x256xf32>
    %79 = arith.mulf %77, %78 : vector<4x256xf32>
    %80 = arith.addf %69, %79 : vector<4x256xf32>
    %81 = vector.extract_strided_slice %74 {offsets = [0, 1], sizes = [4, 1], strides = [1, 1]} : vector<4x4xf32> to vector<4x1xf32>
    %82 = vector.extract_strided_slice %72 {offsets = [1, 0], sizes = [1, 256], strides = [1, 1]} : vector<4x256xf32> to vector<1x256xf32>
    %83 = vector.broadcast %81 : vector<4x1xf32> to vector<4x256xf32>
    %84 = vector.broadcast %82 : vector<1x256xf32> to vector<4x256xf32>
    %85 = arith.mulf %83, %84 : vector<4x256xf32>
    %86 = arith.addf %80, %85 : vector<4x256xf32>
    %87 = vector.extract_strided_slice %74 {offsets = [0, 2], sizes = [4, 1], strides = [1, 1]} : vector<4x4xf32> to vector<4x1xf32>
    %88 = vector.extract_strided_slice %72 {offsets = [2, 0], sizes = [1, 256], strides = [1, 1]} : vector<4x256xf32> to vector<1x256xf32>
    %89 = vector.broadcast %87 : vector<4x1xf32> to vector<4x256xf32>
    %90 = vector.broadcast %88 : vector<1x256xf32> to vector<4x256xf32>
    %91 = arith.mulf %89, %90 : vector<4x256xf32>
    %92 = arith.addf %86, %91 : vector<4x256xf32>
    %93 = vector.extract_strided_slice %74 {offsets = [0, 3], sizes = [4, 1], strides = [1, 1]} : vector<4x4xf32> to vector<4x1xf32>
    %94 = vector.extract_strided_slice %72 {offsets = [3, 0], sizes = [1, 256], strides = [1, 1]} : vector<4x256xf32> to vector<1x256xf32>
    %95 = vector.broadcast %93 : vector<4x1xf32> to vector<4x256xf32>
    %96 = vector.broadcast %94 : vector<1x256xf32> to vector<4x256xf32>
    %97 = arith.mulf %95, %96 : vector<4x256xf32>
    %98 = arith.addf %92, %97 : vector<4x256xf32>
    %cst_16 = arith.constant 0.000000e+00 : f32
    %99 = vector.broadcast %cst_16 : f32 to vector<4x16xf32>
    %100 = vector.extract_strided_slice %40 {offsets = [0, 0], sizes = [4, 240], strides = [1, 1]} : vector<4x256xf32> to vector<4x240xf32>
    %101 = tpu.concatenate %99, %100 in 1 : vector<4x16xf32>, vector<4x240xf32> -> vector<4x256xf32>
    %102 = vector.extract_strided_slice %23 {offsets = [2, 0, 0], sizes = [1, 4, 4], strides = [1, 1, 1]} : vector<9x4x4xf32> to vector<1x4x4xf32>
    %103 = vector.shape_cast %102 : vector<1x4x4xf32> to vector<4x4xf32>
    %104 = vector.extract_strided_slice %103 {offsets = [0, 0], sizes = [4, 1], strides = [1, 1]} : vector<4x4xf32> to vector<4x1xf32>
    %105 = vector.extract_strided_slice %101 {offsets = [0, 0], sizes = [1, 256], strides = [1, 1]} : vector<4x256xf32> to vector<1x256xf32>
    %106 = vector.broadcast %104 : vector<4x1xf32> to vector<4x256xf32>
    %107 = vector.broadcast %105 : vector<1x256xf32> to vector<4x256xf32>
    %108 = arith.mulf %106, %107 : vector<4x256xf32>
    %109 = arith.addf %98, %108 : vector<4x256xf32>
    %110 = vector.extract_strided_slice %103 {offsets = [0, 1], sizes = [4, 1], strides = [1, 1]} : vector<4x4xf32> to vector<4x1xf32>
    %111 = vector.extract_strided_slice %101 {offsets = [1, 0], sizes = [1, 256], strides = [1, 1]} : vector<4x256xf32> to vector<1x256xf32>
    %112 = vector.broadcast %110 : vector<4x1xf32> to vector<4x256xf32>
    %113 = vector.broadcast %111 : vector<1x256xf32> to vector<4x256xf32>
    %114 = arith.mulf %112, %113 : vector<4x256xf32>
    %115 = arith.addf %109, %114 : vector<4x256xf32>
    %116 = vector.extract_strided_slice %103 {offsets = [0, 2], sizes = [4, 1], strides = [1, 1]} : vector<4x4xf32> to vector<4x1xf32>
    %117 = vector.extract_strided_slice %101 {offsets = [2, 0], sizes = [1, 256], strides = [1, 1]} : vector<4x256xf32> to vector<1x256xf32>
    %118 = vector.broadcast %116 : vector<4x1xf32> to vector<4x256xf32>
    %119 = vector.broadcast %117 : vector<1x256xf32> to vector<4x256xf32>
    %120 = arith.mulf %118, %119 : vector<4x256xf32>
    %121 = arith.addf %115, %120 : vector<4x256xf32>
    %122 = vector.extract_strided_slice %103 {offsets = [0, 3], sizes = [4, 1], strides = [1, 1]} : vector<4x4xf32> to vector<4x1xf32>
    %123 = vector.extract_strided_slice %101 {offsets = [3, 0], sizes = [1, 256], strides = [1, 1]} : vector<4x256xf32> to vector<1x256xf32>
    %124 = vector.broadcast %122 : vector<4x1xf32> to vector<4x256xf32>
    %125 = vector.broadcast %123 : vector<1x256xf32> to vector<4x256xf32>
    %126 = arith.mulf %124, %125 : vector<4x256xf32>
    %127 = arith.addf %121, %126 : vector<4x256xf32>
    %128 = vector.extract_strided_slice %23 {offsets = [3, 0, 0], sizes = [1, 4, 4], strides = [1, 1, 1]} : vector<9x4x4xf32> to vector<1x4x4xf32>
    %129 = vector.shape_cast %128 : vector<1x4x4xf32> to vector<4x4xf32>
    %130 = vector.extract_strided_slice %129 {offsets = [0, 0], sizes = [4, 1], strides = [1, 1]} : vector<4x4xf32> to vector<4x1xf32>
    %131 = vector.extract_strided_slice %33 {offsets = [0, 0], sizes = [1, 256], strides = [1, 1]} : vector<4x256xf32> to vector<1x256xf32>
    %132 = vector.broadcast %130 : vector<4x1xf32> to vector<4x256xf32>
    %133 = vector.broadcast %131 : vector<1x256xf32> to vector<4x256xf32>
    %134 = arith.mulf %132, %133 : vector<4x256xf32>
    %135 = arith.addf %127, %134 : vector<4x256xf32>
    %136 = vector.extract_strided_slice %129 {offsets = [0, 1], sizes = [4, 1], strides = [1, 1]} : vector<4x4xf32> to vector<4x1xf32>
    %137 = vector.extract_strided_slice %33 {offsets = [1, 0], sizes = [1, 256], strides = [1, 1]} : vector<4x256xf32> to vector<1x256xf32>
    %138 = vector.broadcast %136 : vector<4x1xf32> to vector<4x256xf32>
    %139 = vector.broadcast %137 : vector<1x256xf32> to vector<4x256xf32>
    %140 = arith.mulf %138, %139 : vector<4x256xf32>
    %141 = arith.addf %135, %140 : vector<4x256xf32>
    %142 = vector.extract_strided_slice %129 {offsets = [0, 2], sizes = [4, 1], strides = [1, 1]} : vector<4x4xf32> to vector<4x1xf32>
    %143 = vector.extract_strided_slice %33 {offsets = [2, 0], sizes = [1, 256], strides = [1, 1]} : vector<4x256xf32> to vector<1x256xf32>
    %144 = vector.broadcast %142 : vector<4x1xf32> to vector<4x256xf32>
    %145 = vector.broadcast %143 : vector<1x256xf32> to vector<4x256xf32>
    %146 = arith.mulf %144, %145 : vector<4x256xf32>
    %147 = arith.addf %141, %146 : vector<4x256xf32>
    %148 = vector.extract_strided_slice %129 {offsets = [0, 3], sizes = [4, 1], strides = [1, 1]} : vector<4x4xf32> to vector<4x1xf32>
    %149 = vector.extract_strided_slice %33 {offsets = [3, 0], sizes = [1, 256], strides = [1, 1]} : vector<4x256xf32> to vector<1x256xf32>
    %150 = vector.broadcast %148 : vector<4x1xf32> to vector<4x256xf32>
    %151 = vector.broadcast %149 : vector<1x256xf32> to vector<4x256xf32>
    %152 = arith.mulf %150, %151 : vector<4x256xf32>
    %153 = arith.addf %147, %152 : vector<4x256xf32>
    %154 = vector.extract_strided_slice %23 {offsets = [4, 0, 0], sizes = [1, 4, 4], strides = [1, 1, 1]} : vector<9x4x4xf32> to vector<1x4x4xf32>
    %155 = vector.shape_cast %154 : vector<1x4x4xf32> to vector<4x4xf32>
    %156 = vector.extract_strided_slice %155 {offsets = [0, 0], sizes = [4, 1], strides = [1, 1]} : vector<4x4xf32> to vector<4x1xf32>
    %157 = vector.extract_strided_slice %22 {offsets = [0, 0], sizes = [1, 256], strides = [1, 1]} : vector<4x256xf32> to vector<1x256xf32>
    %158 = vector.broadcast %156 : vector<4x1xf32> to vector<4x256xf32>
    %159 = vector.broadcast %157 : vector<1x256xf32> to vector<4x256xf32>
    %160 = arith.mulf %158, %159 : vector<4x256xf32>
    %161 = arith.addf %153, %160 : vector<4x256xf32>
    %162 = vector.extract_strided_slice %155 {offsets = [0, 1], sizes = [4, 1], strides = [1, 1]} : vector<4x4xf32> to vector<4x1xf32>
    %163 = vector.extract_strided_slice %22 {offsets = [1, 0], sizes = [1, 256], strides = [1, 1]} : vector<4x256xf32> to vector<1x256xf32>
    %164 = vector.broadcast %162 : vector<4x1xf32> to vector<4x256xf32>
    %165 = vector.broadcast %163 : vector<1x256xf32> to vector<4x256xf32>
    %166 = arith.mulf %164, %165 : vector<4x256xf32>
    %167 = arith.addf %161, %166 : vector<4x256xf32>
    %168 = vector.extract_strided_slice %155 {offsets = [0, 2], sizes = [4, 1], strides = [1, 1]} : vector<4x4xf32> to vector<4x1xf32>
    %169 = vector.extract_strided_slice %22 {offsets = [2, 0], sizes = [1, 256], strides = [1, 1]} : vector<4x256xf32> to vector<1x256xf32>
    %170 = vector.broadcast %168 : vector<4x1xf32> to vector<4x256xf32>
    %171 = vector.broadcast %169 : vector<1x256xf32> to vector<4x256xf32>
    %172 = arith.mulf %170, %171 : vector<4x256xf32>
    %173 = arith.addf %167, %172 : vector<4x256xf32>
    %174 = vector.extract_strided_slice %155 {offsets = [0, 3], sizes = [4, 1], strides = [1, 1]} : vector<4x4xf32> to vector<4x1xf32>
    %175 = vector.extract_strided_slice %22 {offsets = [3, 0], sizes = [1, 256], strides = [1, 1]} : vector<4x256xf32> to vector<1x256xf32>
    %176 = vector.broadcast %174 : vector<4x1xf32> to vector<4x256xf32>
    %177 = vector.broadcast %175 : vector<1x256xf32> to vector<4x256xf32>
    %178 = arith.mulf %176, %177 : vector<4x256xf32>
    %179 = arith.addf %173, %178 : vector<4x256xf32>
    %180 = vector.extract_strided_slice %23 {offsets = [5, 0, 0], sizes = [1, 4, 4], strides = [1, 1, 1]} : vector<9x4x4xf32> to vector<1x4x4xf32>
    %181 = vector.shape_cast %180 : vector<1x4x4xf32> to vector<4x4xf32>
    %182 = vector.extract_strided_slice %181 {offsets = [0, 0], sizes = [4, 1], strides = [1, 1]} : vector<4x4xf32> to vector<4x1xf32>
    %183 = vector.extract_strided_slice %40 {offsets = [0, 0], sizes = [1, 256], strides = [1, 1]} : vector<4x256xf32> to vector<1x256xf32>
    %184 = vector.broadcast %182 : vector<4x1xf32> to vector<4x256xf32>
    %185 = vector.broadcast %183 : vector<1x256xf32> to vector<4x256xf32>
    %186 = arith.mulf %184, %185 : vector<4x256xf32>
    %187 = arith.addf %179, %186 : vector<4x256xf32>
    %188 = vector.extract_strided_slice %181 {offsets = [0, 1], sizes = [4, 1], strides = [1, 1]} : vector<4x4xf32> to vector<4x1xf32>
    %189 = vector.extract_strided_slice %40 {offsets = [1, 0], sizes = [1, 256], strides = [1, 1]} : vector<4x256xf32> to vector<1x256xf32>
    %190 = vector.broadcast %188 : vector<4x1xf32> to vector<4x256xf32>
    %191 = vector.broadcast %189 : vector<1x256xf32> to vector<4x256xf32>
    %192 = arith.mulf %190, %191 : vector<4x256xf32>
    %193 = arith.addf %187, %192 : vector<4x256xf32>
    %194 = vector.extract_strided_slice %181 {offsets = [0, 2], sizes = [4, 1], strides = [1, 1]} : vector<4x4xf32> to vector<4x1xf32>
    %195 = vector.extract_strided_slice %40 {offsets = [2, 0], sizes = [1, 256], strides = [1, 1]} : vector<4x256xf32> to vector<1x256xf32>
    %196 = vector.broadcast %194 : vector<4x1xf32> to vector<4x256xf32>
    %197 = vector.broadcast %195 : vector<1x256xf32> to vector<4x256xf32>
    %198 = arith.mulf %196, %197 : vector<4x256xf32>
    %199 = arith.addf %193, %198 : vector<4x256xf32>
    %200 = vector.extract_strided_slice %181 {offsets = [0, 3], sizes = [4, 1], strides = [1, 1]} : vector<4x4xf32> to vector<4x1xf32>
    %201 = vector.extract_strided_slice %40 {offsets = [3, 0], sizes = [1, 256], strides = [1, 1]} : vector<4x256xf32> to vector<1x256xf32>
    %202 = vector.broadcast %200 : vector<4x1xf32> to vector<4x256xf32>
    %203 = vector.broadcast %201 : vector<1x256xf32> to vector<4x256xf32>
    %204 = arith.mulf %202, %203 : vector<4x256xf32>
    %205 = arith.addf %199, %204 : vector<4x256xf32>
    %206 = vector.extract_strided_slice %33 {offsets = [0, 16], sizes = [4, 240], strides = [1, 1]} : vector<4x256xf32> to vector<4x240xf32>
    %cst_17 = arith.constant 0.000000e+00 : f32
    %207 = vector.broadcast %cst_17 : f32 to vector<4x16xf32>
    %208 = tpu.concatenate %206, %207 in 1 : vector<4x240xf32>, vector<4x16xf32> -> vector<4x256xf32>
    %209 = vector.extract_strided_slice %23 {offsets = [6, 0, 0], sizes = [1, 4, 4], strides = [1, 1, 1]} : vector<9x4x4xf32> to vector<1x4x4xf32>
    %210 = vector.shape_cast %209 : vector<1x4x4xf32> to vector<4x4xf32>
    %211 = vector.extract_strided_slice %210 {offsets = [0, 0], sizes = [4, 1], strides = [1, 1]} : vector<4x4xf32> to vector<4x1xf32>
    %212 = vector.extract_strided_slice %208 {offsets = [0, 0], sizes = [1, 256], strides = [1, 1]} : vector<4x256xf32> to vector<1x256xf32>
    %213 = vector.broadcast %211 : vector<4x1xf32> to vector<4x256xf32>
    %214 = vector.broadcast %212 : vector<1x256xf32> to vector<4x256xf32>
    %215 = arith.mulf %213, %214 : vector<4x256xf32>
    %216 = arith.addf %205, %215 : vector<4x256xf32>
    %217 = vector.extract_strided_slice %210 {offsets = [0, 1], sizes = [4, 1], strides = [1, 1]} : vector<4x4xf32> to vector<4x1xf32>
    %218 = vector.extract_strided_slice %208 {offsets = [1, 0], sizes = [1, 256], strides = [1, 1]} : vector<4x256xf32> to vector<1x256xf32>
    %219 = vector.broadcast %217 : vector<4x1xf32> to vector<4x256xf32>
    %220 = vector.broadcast %218 : vector<1x256xf32> to vector<4x256xf32>
    %221 = arith.mulf %219, %220 : vector<4x256xf32>
    %222 = arith.addf %216, %221 : vector<4x256xf32>
    %223 = vector.extract_strided_slice %210 {offsets = [0, 2], sizes = [4, 1], strides = [1, 1]} : vector<4x4xf32> to vector<4x1xf32>
    %224 = vector.extract_strided_slice %208 {offsets = [2, 0], sizes = [1, 256], strides = [1, 1]} : vector<4x256xf32> to vector<1x256xf32>
    %225 = vector.broadcast %223 : vector<4x1xf32> to vector<4x256xf32>
    %226 = vector.broadcast %224 : vector<1x256xf32> to vector<4x256xf32>
    %227 = arith.mulf %225, %226 : vector<4x256xf32>
    %228 = arith.addf %222, %227 : vector<4x256xf32>
    %229 = vector.extract_strided_slice %210 {offsets = [0, 3], sizes = [4, 1], strides = [1, 1]} : vector<4x4xf32> to vector<4x1xf32>
    %230 = vector.extract_strided_slice %208 {offsets = [3, 0], sizes = [1, 256], strides = [1, 1]} : vector<4x256xf32> to vector<1x256xf32>
    %231 = vector.broadcast %229 : vector<4x1xf32> to vector<4x256xf32>
    %232 = vector.broadcast %230 : vector<1x256xf32> to vector<4x256xf32>
    %233 = arith.mulf %231, %232 : vector<4x256xf32>
    %234 = arith.addf %228, %233 : vector<4x256xf32>
    %235 = vector.extract_strided_slice %22 {offsets = [0, 16], sizes = [4, 240], strides = [1, 1]} : vector<4x256xf32> to vector<4x240xf32>
    %cst_18 = arith.constant 0.000000e+00 : f32
    %236 = vector.broadcast %cst_18 : f32 to vector<4x16xf32>
    %237 = tpu.concatenate %235, %236 in 1 : vector<4x240xf32>, vector<4x16xf32> -> vector<4x256xf32>
    %238 = vector.extract_strided_slice %23 {offsets = [7, 0, 0], sizes = [1, 4, 4], strides = [1, 1, 1]} : vector<9x4x4xf32> to vector<1x4x4xf32>
    %239 = vector.shape_cast %238 : vector<1x4x4xf32> to vector<4x4xf32>
    %240 = vector.extract_strided_slice %239 {offsets = [0, 0], sizes = [4, 1], strides = [1, 1]} : vector<4x4xf32> to vector<4x1xf32>
    %241 = vector.extract_strided_slice %237 {offsets = [0, 0], sizes = [1, 256], strides = [1, 1]} : vector<4x256xf32> to vector<1x256xf32>
    %242 = vector.broadcast %240 : vector<4x1xf32> to vector<4x256xf32>
    %243 = vector.broadcast %241 : vector<1x256xf32> to vector<4x256xf32>
    %244 = arith.mulf %242, %243 : vector<4x256xf32>
    %245 = arith.addf %234, %244 : vector<4x256xf32>
    %246 = vector.extract_strided_slice %239 {offsets = [0, 1], sizes = [4, 1], strides = [1, 1]} : vector<4x4xf32> to vector<4x1xf32>
    %247 = vector.extract_strided_slice %237 {offsets = [1, 0], sizes = [1, 256], strides = [1, 1]} : vector<4x256xf32> to vector<1x256xf32>
    %248 = vector.broadcast %246 : vector<4x1xf32> to vector<4x256xf32>
    %249 = vector.broadcast %247 : vector<1x256xf32> to vector<4x256xf32>
    %250 = arith.mulf %248, %249 : vector<4x256xf32>
    %251 = arith.addf %245, %250 : vector<4x256xf32>
    %252 = vector.extract_strided_slice %239 {offsets = [0, 2], sizes = [4, 1], strides = [1, 1]} : vector<4x4xf32> to vector<4x1xf32>
    %253 = vector.extract_strided_slice %237 {offsets = [2, 0], sizes = [1, 256], strides = [1, 1]} : vector<4x256xf32> to vector<1x256xf32>
    %254 = vector.broadcast %252 : vector<4x1xf32> to vector<4x256xf32>
    %255 = vector.broadcast %253 : vector<1x256xf32> to vector<4x256xf32>
    %256 = arith.mulf %254, %255 : vector<4x256xf32>
    %257 = arith.addf %251, %256 : vector<4x256xf32>
    %258 = vector.extract_strided_slice %239 {offsets = [0, 3], sizes = [4, 1], strides = [1, 1]} : vector<4x4xf32> to vector<4x1xf32>
    %259 = vector.extract_strided_slice %237 {offsets = [3, 0], sizes = [1, 256], strides = [1, 1]} : vector<4x256xf32> to vector<1x256xf32>
    %260 = vector.broadcast %258 : vector<4x1xf32> to vector<4x256xf32>
    %261 = vector.broadcast %259 : vector<1x256xf32> to vector<4x256xf32>
    %262 = arith.mulf %260, %261 : vector<4x256xf32>
    %263 = arith.addf %257, %262 : vector<4x256xf32>
    %264 = vector.extract_strided_slice %40 {offsets = [0, 16], sizes = [4, 240], strides = [1, 1]} : vector<4x256xf32> to vector<4x240xf32>
    %cst_19 = arith.constant 0.000000e+00 : f32
    %265 = vector.broadcast %cst_19 : f32 to vector<4x16xf32>
    %266 = tpu.concatenate %264, %265 in 1 : vector<4x240xf32>, vector<4x16xf32> -> vector<4x256xf32>
    %267 = vector.extract_strided_slice %23 {offsets = [8, 0, 0], sizes = [1, 4, 4], strides = [1, 1, 1]} : vector<9x4x4xf32> to vector<1x4x4xf32>
    %268 = vector.shape_cast %267 : vector<1x4x4xf32> to vector<4x4xf32>
    %269 = vector.extract_strided_slice %268 {offsets = [0, 0], sizes = [4, 1], strides = [1, 1]} : vector<4x4xf32> to vector<4x1xf32>
    %270 = vector.extract_strided_slice %266 {offsets = [0, 0], sizes = [1, 256], strides = [1, 1]} : vector<4x256xf32> to vector<1x256xf32>
    %271 = vector.broadcast %269 : vector<4x1xf32> to vector<4x256xf32>
    %272 = vector.broadcast %270 : vector<1x256xf32> to vector<4x256xf32>
    %273 = arith.mulf %271, %272 : vector<4x256xf32>
    %274 = arith.addf %263, %273 : vector<4x256xf32>
    %275 = vector.extract_strided_slice %268 {offsets = [0, 1], sizes = [4, 1], strides = [1, 1]} : vector<4x4xf32> to vector<4x1xf32>
    %276 = vector.extract_strided_slice %266 {offsets = [1, 0], sizes = [1, 256], strides = [1, 1]} : vector<4x256xf32> to vector<1x256xf32>
    %277 = vector.broadcast %275 : vector<4x1xf32> to vector<4x256xf32>
    %278 = vector.broadcast %276 : vector<1x256xf32> to vector<4x256xf32>
    %279 = arith.mulf %277, %278 : vector<4x256xf32>
    %280 = arith.addf %274, %279 : vector<4x256xf32>
    %281 = vector.extract_strided_slice %268 {offsets = [0, 2], sizes = [4, 1], strides = [1, 1]} : vector<4x4xf32> to vector<4x1xf32>
    %282 = vector.extract_strided_slice %266 {offsets = [2, 0], sizes = [1, 256], strides = [1, 1]} : vector<4x256xf32> to vector<1x256xf32>
    %283 = vector.broadcast %281 : vector<4x1xf32> to vector<4x256xf32>
    %284 = vector.broadcast %282 : vector<1x256xf32> to vector<4x256xf32>
    %285 = arith.mulf %283, %284 : vector<4x256xf32>
    %286 = arith.addf %280, %285 : vector<4x256xf32>
    %287 = vector.extract_strided_slice %268 {offsets = [0, 3], sizes = [4, 1], strides = [1, 1]} : vector<4x4xf32> to vector<4x1xf32>
    %288 = vector.extract_strided_slice %266 {offsets = [3, 0], sizes = [1, 256], strides = [1, 1]} : vector<4x256xf32> to vector<1x256xf32>
    %289 = vector.broadcast %287 : vector<4x1xf32> to vector<4x256xf32>
    %290 = vector.broadcast %288 : vector<1x256xf32> to vector<4x256xf32>
    %291 = arith.mulf %289, %290 : vector<4x256xf32>
    %292 = arith.addf %286, %291 : vector<4x256xf32>
    %cst_20 = arith.constant 0.000000e+00 : f32
    %293 = vector.broadcast %cst_20 : f32 to vector<4x256xf32>
    %294 = arith.maximumf %292, %293 : vector<4x256xf32>
    %c0_21 = arith.constant 0 : index
    %c0_22 = arith.constant 0 : index
    %c0_23 = arith.constant 0 : index
    %c0_24 = arith.constant 0 : index
    %295 = vector.load %arg3[%c0_21, %c0_22, %c0_23, %c0_24] : memref<3x9x4x4xf32, #tpu.memory_space<vmem>>, vector<1x9x4x4xf32>
    %296 = vector.shape_cast %295 : vector<1x9x4x4xf32> to vector<9x4x4xf32>
    %c0_25 = arith.constant 0 : index
    %c1 = arith.constant 1 : index
    %297 = vector.load %arg6[%c0_25, %c1] : memref<4x7xf32, #tpu.memory_space<vmem>>, vector<4x1xf32>
    %298 = vector.shape_cast %297 : vector<4x1xf32> to vector<4x1xf32>
    %299 = vector.broadcast %298 : vector<4x1xf32> to vector<4x256xf32>
    %cst_26 = arith.constant 0.000000e+00 : f32
    %300 = vector.broadcast %cst_26 : f32 to vector<4x1xf32>
    %301 = vector.extract_strided_slice %294 {offsets = [0, 0], sizes = [4, 255], strides = [1, 1]} : vector<4x256xf32> to vector<4x255xf32>
    %302 = tpu.concatenate %300, %301 in 1 : vector<4x1xf32>, vector<4x255xf32> -> vector<4x256xf32>
    %cst_27 = arith.constant 0.000000e+00 : f32
    %303 = vector.shape_cast %18 : vector<1x256xi1> to vector<1x256xi1>
    %304 = vector.broadcast %303 : vector<1x256xi1> to vector<4x256xi1>
    %305 = vector.broadcast %cst_27 : f32 to vector<4x256xf32>
    %306 = arith.select %304, %305, %302 : vector<4x256xi1>, vector<4x256xf32>
    %307 = vector.extract_strided_slice %294 {offsets = [0, 1], sizes = [4, 255], strides = [1, 1]} : vector<4x256xf32> to vector<4x255xf32>
    %cst_28 = arith.constant 0.000000e+00 : f32
    %308 = vector.broadcast %cst_28 : f32 to vector<4x1xf32>
    %309 = tpu.concatenate %307, %308 in 1 : vector<4x255xf32>, vector<4x1xf32> -> vector<4x256xf32>
    %cst_29 = arith.constant 0.000000e+00 : f32
    %310 = vector.shape_cast %20 : vector<1x256xi1> to vector<1x256xi1>
    %311 = vector.broadcast %310 : vector<1x256xi1> to vector<4x256xi1>
    %312 = vector.broadcast %cst_29 : f32 to vector<4x256xf32>
    %313 = arith.select %311, %312, %309 : vector<4x256xi1>, vector<4x256xf32>
    %cst_30 = arith.constant 0.000000e+00 : f32
    %314 = vector.broadcast %cst_30 : f32 to vector<4x16xf32>
    %315 = vector.extract_strided_slice %306 {offsets = [0, 0], sizes = [4, 240], strides = [1, 1]} : vector<4x256xf32> to vector<4x240xf32>
    %316 = tpu.concatenate %314, %315 in 1 : vector<4x16xf32>, vector<4x240xf32> -> vector<4x256xf32>
    %317 = vector.extract_strided_slice %296 {offsets = [0, 0, 0], sizes = [1, 4, 4], strides = [1, 1, 1]} : vector<9x4x4xf32> to vector<1x4x4xf32>
    %318 = vector.shape_cast %317 : vector<1x4x4xf32> to vector<4x4xf32>
    %319 = vector.extract_strided_slice %318 {offsets = [0, 0], sizes = [4, 1], strides = [1, 1]} : vector<4x4xf32> to vector<4x1xf32>
    %320 = vector.extract_strided_slice %316 {offsets = [0, 0], sizes = [1, 256], strides = [1, 1]} : vector<4x256xf32> to vector<1x256xf32>
    %321 = vector.broadcast %319 : vector<4x1xf32> to vector<4x256xf32>
    %322 = vector.broadcast %320 : vector<1x256xf32> to vector<4x256xf32>
    %323 = arith.mulf %321, %322 : vector<4x256xf32>
    %324 = arith.addf %299, %323 : vector<4x256xf32>
    %325 = vector.extract_strided_slice %318 {offsets = [0, 1], sizes = [4, 1], strides = [1, 1]} : vector<4x4xf32> to vector<4x1xf32>
    %326 = vector.extract_strided_slice %316 {offsets = [1, 0], sizes = [1, 256], strides = [1, 1]} : vector<4x256xf32> to vector<1x256xf32>
    %327 = vector.broadcast %325 : vector<4x1xf32> to vector<4x256xf32>
    %328 = vector.broadcast %326 : vector<1x256xf32> to vector<4x256xf32>
    %329 = arith.mulf %327, %328 : vector<4x256xf32>
    %330 = arith.addf %324, %329 : vector<4x256xf32>
    %331 = vector.extract_strided_slice %318 {offsets = [0, 2], sizes = [4, 1], strides = [1, 1]} : vector<4x4xf32> to vector<4x1xf32>
    %332 = vector.extract_strided_slice %316 {offsets = [2, 0], sizes = [1, 256], strides = [1, 1]} : vector<4x256xf32> to vector<1x256xf32>
    %333 = vector.broadcast %331 : vector<4x1xf32> to vector<4x256xf32>
    %334 = vector.broadcast %332 : vector<1x256xf32> to vector<4x256xf32>
    %335 = arith.mulf %333, %334 : vector<4x256xf32>
    %336 = arith.addf %330, %335 : vector<4x256xf32>
    %337 = vector.extract_strided_slice %318 {offsets = [0, 3], sizes = [4, 1], strides = [1, 1]} : vector<4x4xf32> to vector<4x1xf32>
    %338 = vector.extract_strided_slice %316 {offsets = [3, 0], sizes = [1, 256], strides = [1, 1]} : vector<4x256xf32> to vector<1x256xf32>
    %339 = vector.broadcast %337 : vector<4x1xf32> to vector<4x256xf32>
    %340 = vector.broadcast %338 : vector<1x256xf32> to vector<4x256xf32>
    %341 = arith.mulf %339, %340 : vector<4x256xf32>
    %342 = arith.addf %336, %341 : vector<4x256xf32>
    %cst_31 = arith.constant 0.000000e+00 : f32
    %343 = vector.broadcast %cst_31 : f32 to vector<4x16xf32>
    %344 = vector.extract_strided_slice %294 {offsets = [0, 0], sizes = [4, 240], strides = [1, 1]} : vector<4x256xf32> to vector<4x240xf32>
    %345 = tpu.concatenate %343, %344 in 1 : vector<4x16xf32>, vector<4x240xf32> -> vector<4x256xf32>
    %346 = vector.extract_strided_slice %296 {offsets = [1, 0, 0], sizes = [1, 4, 4], strides = [1, 1, 1]} : vector<9x4x4xf32> to vector<1x4x4xf32>
    %347 = vector.shape_cast %346 : vector<1x4x4xf32> to vector<4x4xf32>
    %348 = vector.extract_strided_slice %347 {offsets = [0, 0], sizes = [4, 1], strides = [1, 1]} : vector<4x4xf32> to vector<4x1xf32>
    %349 = vector.extract_strided_slice %345 {offsets = [0, 0], sizes = [1, 256], strides = [1, 1]} : vector<4x256xf32> to vector<1x256xf32>
    %350 = vector.broadcast %348 : vector<4x1xf32> to vector<4x256xf32>
    %351 = vector.broadcast %349 : vector<1x256xf32> to vector<4x256xf32>
    %352 = arith.mulf %350, %351 : vector<4x256xf32>
    %353 = arith.addf %342, %352 : vector<4x256xf32>
    %354 = vector.extract_strided_slice %347 {offsets = [0, 1], sizes = [4, 1], strides = [1, 1]} : vector<4x4xf32> to vector<4x1xf32>
    %355 = vector.extract_strided_slice %345 {offsets = [1, 0], sizes = [1, 256], strides = [1, 1]} : vector<4x256xf32> to vector<1x256xf32>
    %356 = vector.broadcast %354 : vector<4x1xf32> to vector<4x256xf32>
    %357 = vector.broadcast %355 : vector<1x256xf32> to vector<4x256xf32>
    %358 = arith.mulf %356, %357 : vector<4x256xf32>
    %359 = arith.addf %353, %358 : vector<4x256xf32>
    %360 = vector.extract_strided_slice %347 {offsets = [0, 2], sizes = [4, 1], strides = [1, 1]} : vector<4x4xf32> to vector<4x1xf32>
    %361 = vector.extract_strided_slice %345 {offsets = [2, 0], sizes = [1, 256], strides = [1, 1]} : vector<4x256xf32> to vector<1x256xf32>
    %362 = vector.broadcast %360 : vector<4x1xf32> to vector<4x256xf32>
    %363 = vector.broadcast %361 : vector<1x256xf32> to vector<4x256xf32>
    %364 = arith.mulf %362, %363 : vector<4x256xf32>
    %365 = arith.addf %359, %364 : vector<4x256xf32>
    %366 = vector.extract_strided_slice %347 {offsets = [0, 3], sizes = [4, 1], strides = [1, 1]} : vector<4x4xf32> to vector<4x1xf32>
    %367 = vector.extract_strided_slice %345 {offsets = [3, 0], sizes = [1, 256], strides = [1, 1]} : vector<4x256xf32> to vector<1x256xf32>
    %368 = vector.broadcast %366 : vector<4x1xf32> to vector<4x256xf32>
    %369 = vector.broadcast %367 : vector<1x256xf32> to vector<4x256xf32>
    %370 = arith.mulf %368, %369 : vector<4x256xf32>
    %371 = arith.addf %365, %370 : vector<4x256xf32>
    %cst_32 = arith.constant 0.000000e+00 : f32
    %372 = vector.broadcast %cst_32 : f32 to vector<4x16xf32>
    %373 = vector.extract_strided_slice %313 {offsets = [0, 0], sizes = [4, 240], strides = [1, 1]} : vector<4x256xf32> to vector<4x240xf32>
    %374 = tpu.concatenate %372, %373 in 1 : vector<4x16xf32>, vector<4x240xf32> -> vector<4x256xf32>
    %375 = vector.extract_strided_slice %296 {offsets = [2, 0, 0], sizes = [1, 4, 4], strides = [1, 1, 1]} : vector<9x4x4xf32> to vector<1x4x4xf32>
    %376 = vector.shape_cast %375 : vector<1x4x4xf32> to vector<4x4xf32>
    %377 = vector.extract_strided_slice %376 {offsets = [0, 0], sizes = [4, 1], strides = [1, 1]} : vector<4x4xf32> to vector<4x1xf32>
    %378 = vector.extract_strided_slice %374 {offsets = [0, 0], sizes = [1, 256], strides = [1, 1]} : vector<4x256xf32> to vector<1x256xf32>
    %379 = vector.broadcast %377 : vector<4x1xf32> to vector<4x256xf32>
    %380 = vector.broadcast %378 : vector<1x256xf32> to vector<4x256xf32>
    %381 = arith.mulf %379, %380 : vector<4x256xf32>
    %382 = arith.addf %371, %381 : vector<4x256xf32>
    %383 = vector.extract_strided_slice %376 {offsets = [0, 1], sizes = [4, 1], strides = [1, 1]} : vector<4x4xf32> to vector<4x1xf32>
    %384 = vector.extract_strided_slice %374 {offsets = [1, 0], sizes = [1, 256], strides = [1, 1]} : vector<4x256xf32> to vector<1x256xf32>
    %385 = vector.broadcast %383 : vector<4x1xf32> to vector<4x256xf32>
    %386 = vector.broadcast %384 : vector<1x256xf32> to vector<4x256xf32>
    %387 = arith.mulf %385, %386 : vector<4x256xf32>
    %388 = arith.addf %382, %387 : vector<4x256xf32>
    %389 = vector.extract_strided_slice %376 {offsets = [0, 2], sizes = [4, 1], strides = [1, 1]} : vector<4x4xf32> to vector<4x1xf32>
    %390 = vector.extract_strided_slice %374 {offsets = [2, 0], sizes = [1, 256], strides = [1, 1]} : vector<4x256xf32> to vector<1x256xf32>
    %391 = vector.broadcast %389 : vector<4x1xf32> to vector<4x256xf32>
    %392 = vector.broadcast %390 : vector<1x256xf32> to vector<4x256xf32>
    %393 = arith.mulf %391, %392 : vector<4x256xf32>
    %394 = arith.addf %388, %393 : vector<4x256xf32>
    %395 = vector.extract_strided_slice %376 {offsets = [0, 3], sizes = [4, 1], strides = [1, 1]} : vector<4x4xf32> to vector<4x1xf32>
    %396 = vector.extract_strided_slice %374 {offsets = [3, 0], sizes = [1, 256], strides = [1, 1]} : vector<4x256xf32> to vector<1x256xf32>
    %397 = vector.broadcast %395 : vector<4x1xf32> to vector<4x256xf32>
    %398 = vector.broadcast %396 : vector<1x256xf32> to vector<4x256xf32>
    %399 = arith.mulf %397, %398 : vector<4x256xf32>
    %400 = arith.addf %394, %399 : vector<4x256xf32>
    %401 = vector.extract_strided_slice %296 {offsets = [3, 0, 0], sizes = [1, 4, 4], strides = [1, 1, 1]} : vector<9x4x4xf32> to vector<1x4x4xf32>
    %402 = vector.shape_cast %401 : vector<1x4x4xf32> to vector<4x4xf32>
    %403 = vector.extract_strided_slice %402 {offsets = [0, 0], sizes = [4, 1], strides = [1, 1]} : vector<4x4xf32> to vector<4x1xf32>
    %404 = vector.extract_strided_slice %306 {offsets = [0, 0], sizes = [1, 256], strides = [1, 1]} : vector<4x256xf32> to vector<1x256xf32>
    %405 = vector.broadcast %403 : vector<4x1xf32> to vector<4x256xf32>
    %406 = vector.broadcast %404 : vector<1x256xf32> to vector<4x256xf32>
    %407 = arith.mulf %405, %406 : vector<4x256xf32>
    %408 = arith.addf %400, %407 : vector<4x256xf32>
    %409 = vector.extract_strided_slice %402 {offsets = [0, 1], sizes = [4, 1], strides = [1, 1]} : vector<4x4xf32> to vector<4x1xf32>
    %410 = vector.extract_strided_slice %306 {offsets = [1, 0], sizes = [1, 256], strides = [1, 1]} : vector<4x256xf32> to vector<1x256xf32>
    %411 = vector.broadcast %409 : vector<4x1xf32> to vector<4x256xf32>
    %412 = vector.broadcast %410 : vector<1x256xf32> to vector<4x256xf32>
    %413 = arith.mulf %411, %412 : vector<4x256xf32>
    %414 = arith.addf %408, %413 : vector<4x256xf32>
    %415 = vector.extract_strided_slice %402 {offsets = [0, 2], sizes = [4, 1], strides = [1, 1]} : vector<4x4xf32> to vector<4x1xf32>
    %416 = vector.extract_strided_slice %306 {offsets = [2, 0], sizes = [1, 256], strides = [1, 1]} : vector<4x256xf32> to vector<1x256xf32>
    %417 = vector.broadcast %415 : vector<4x1xf32> to vector<4x256xf32>
    %418 = vector.broadcast %416 : vector<1x256xf32> to vector<4x256xf32>
    %419 = arith.mulf %417, %418 : vector<4x256xf32>
    %420 = arith.addf %414, %419 : vector<4x256xf32>
    %421 = vector.extract_strided_slice %402 {offsets = [0, 3], sizes = [4, 1], strides = [1, 1]} : vector<4x4xf32> to vector<4x1xf32>
    %422 = vector.extract_strided_slice %306 {offsets = [3, 0], sizes = [1, 256], strides = [1, 1]} : vector<4x256xf32> to vector<1x256xf32>
    %423 = vector.broadcast %421 : vector<4x1xf32> to vector<4x256xf32>
    %424 = vector.broadcast %422 : vector<1x256xf32> to vector<4x256xf32>
    %425 = arith.mulf %423, %424 : vector<4x256xf32>
    %426 = arith.addf %420, %425 : vector<4x256xf32>
    %427 = vector.extract_strided_slice %296 {offsets = [4, 0, 0], sizes = [1, 4, 4], strides = [1, 1, 1]} : vector<9x4x4xf32> to vector<1x4x4xf32>
    %428 = vector.shape_cast %427 : vector<1x4x4xf32> to vector<4x4xf32>
    %429 = vector.extract_strided_slice %428 {offsets = [0, 0], sizes = [4, 1], strides = [1, 1]} : vector<4x4xf32> to vector<4x1xf32>
    %430 = vector.extract_strided_slice %294 {offsets = [0, 0], sizes = [1, 256], strides = [1, 1]} : vector<4x256xf32> to vector<1x256xf32>
    %431 = vector.broadcast %429 : vector<4x1xf32> to vector<4x256xf32>
    %432 = vector.broadcast %430 : vector<1x256xf32> to vector<4x256xf32>
    %433 = arith.mulf %431, %432 : vector<4x256xf32>
    %434 = arith.addf %426, %433 : vector<4x256xf32>
    %435 = vector.extract_strided_slice %428 {offsets = [0, 1], sizes = [4, 1], strides = [1, 1]} : vector<4x4xf32> to vector<4x1xf32>
    %436 = vector.extract_strided_slice %294 {offsets = [1, 0], sizes = [1, 256], strides = [1, 1]} : vector<4x256xf32> to vector<1x256xf32>
    %437 = vector.broadcast %435 : vector<4x1xf32> to vector<4x256xf32>
    %438 = vector.broadcast %436 : vector<1x256xf32> to vector<4x256xf32>
    %439 = arith.mulf %437, %438 : vector<4x256xf32>
    %440 = arith.addf %434, %439 : vector<4x256xf32>
    %441 = vector.extract_strided_slice %428 {offsets = [0, 2], sizes = [4, 1], strides = [1, 1]} : vector<4x4xf32> to vector<4x1xf32>
    %442 = vector.extract_strided_slice %294 {offsets = [2, 0], sizes = [1, 256], strides = [1, 1]} : vector<4x256xf32> to vector<1x256xf32>
    %443 = vector.broadcast %441 : vector<4x1xf32> to vector<4x256xf32>
    %444 = vector.broadcast %442 : vector<1x256xf32> to vector<4x256xf32>
    %445 = arith.mulf %443, %444 : vector<4x256xf32>
    %446 = arith.addf %440, %445 : vector<4x256xf32>
    %447 = vector.extract_strided_slice %428 {offsets = [0, 3], sizes = [4, 1], strides = [1, 1]} : vector<4x4xf32> to vector<4x1xf32>
    %448 = vector.extract_strided_slice %294 {offsets = [3, 0], sizes = [1, 256], strides = [1, 1]} : vector<4x256xf32> to vector<1x256xf32>
    %449 = vector.broadcast %447 : vector<4x1xf32> to vector<4x256xf32>
    %450 = vector.broadcast %448 : vector<1x256xf32> to vector<4x256xf32>
    %451 = arith.mulf %449, %450 : vector<4x256xf32>
    %452 = arith.addf %446, %451 : vector<4x256xf32>
    %453 = vector.extract_strided_slice %296 {offsets = [5, 0, 0], sizes = [1, 4, 4], strides = [1, 1, 1]} : vector<9x4x4xf32> to vector<1x4x4xf32>
    %454 = vector.shape_cast %453 : vector<1x4x4xf32> to vector<4x4xf32>
    %455 = vector.extract_strided_slice %454 {offsets = [0, 0], sizes = [4, 1], strides = [1, 1]} : vector<4x4xf32> to vector<4x1xf32>
    %456 = vector.extract_strided_slice %313 {offsets = [0, 0], sizes = [1, 256], strides = [1, 1]} : vector<4x256xf32> to vector<1x256xf32>
    %457 = vector.broadcast %455 : vector<4x1xf32> to vector<4x256xf32>
    %458 = vector.broadcast %456 : vector<1x256xf32> to vector<4x256xf32>
    %459 = arith.mulf %457, %458 : vector<4x256xf32>
    %460 = arith.addf %452, %459 : vector<4x256xf32>
    %461 = vector.extract_strided_slice %454 {offsets = [0, 1], sizes = [4, 1], strides = [1, 1]} : vector<4x4xf32> to vector<4x1xf32>
    %462 = vector.extract_strided_slice %313 {offsets = [1, 0], sizes = [1, 256], strides = [1, 1]} : vector<4x256xf32> to vector<1x256xf32>
    %463 = vector.broadcast %461 : vector<4x1xf32> to vector<4x256xf32>
    %464 = vector.broadcast %462 : vector<1x256xf32> to vector<4x256xf32>
    %465 = arith.mulf %463, %464 : vector<4x256xf32>
    %466 = arith.addf %460, %465 : vector<4x256xf32>
    %467 = vector.extract_strided_slice %454 {offsets = [0, 2], sizes = [4, 1], strides = [1, 1]} : vector<4x4xf32> to vector<4x1xf32>
    %468 = vector.extract_strided_slice %313 {offsets = [2, 0], sizes = [1, 256], strides = [1, 1]} : vector<4x256xf32> to vector<1x256xf32>
    %469 = vector.broadcast %467 : vector<4x1xf32> to vector<4x256xf32>
    %470 = vector.broadcast %468 : vector<1x256xf32> to vector<4x256xf32>
    %471 = arith.mulf %469, %470 : vector<4x256xf32>
    %472 = arith.addf %466, %471 : vector<4x256xf32>
    %473 = vector.extract_strided_slice %454 {offsets = [0, 3], sizes = [4, 1], strides = [1, 1]} : vector<4x4xf32> to vector<4x1xf32>
    %474 = vector.extract_strided_slice %313 {offsets = [3, 0], sizes = [1, 256], strides = [1, 1]} : vector<4x256xf32> to vector<1x256xf32>
    %475 = vector.broadcast %473 : vector<4x1xf32> to vector<4x256xf32>
    %476 = vector.broadcast %474 : vector<1x256xf32> to vector<4x256xf32>
    %477 = arith.mulf %475, %476 : vector<4x256xf32>
    %478 = arith.addf %472, %477 : vector<4x256xf32>
    %479 = vector.extract_strided_slice %306 {offsets = [0, 16], sizes = [4, 240], strides = [1, 1]} : vector<4x256xf32> to vector<4x240xf32>
    %cst_33 = arith.constant 0.000000e+00 : f32
    %480 = vector.broadcast %cst_33 : f32 to vector<4x16xf32>
    %481 = tpu.concatenate %479, %480 in 1 : vector<4x240xf32>, vector<4x16xf32> -> vector<4x256xf32>
    %482 = vector.extract_strided_slice %296 {offsets = [6, 0, 0], sizes = [1, 4, 4], strides = [1, 1, 1]} : vector<9x4x4xf32> to vector<1x4x4xf32>
    %483 = vector.shape_cast %482 : vector<1x4x4xf32> to vector<4x4xf32>
    %484 = vector.extract_strided_slice %483 {offsets = [0, 0], sizes = [4, 1], strides = [1, 1]} : vector<4x4xf32> to vector<4x1xf32>
    %485 = vector.extract_strided_slice %481 {offsets = [0, 0], sizes = [1, 256], strides = [1, 1]} : vector<4x256xf32> to vector<1x256xf32>
    %486 = vector.broadcast %484 : vector<4x1xf32> to vector<4x256xf32>
    %487 = vector.broadcast %485 : vector<1x256xf32> to vector<4x256xf32>
    %488 = arith.mulf %486, %487 : vector<4x256xf32>
    %489 = arith.addf %478, %488 : vector<4x256xf32>
    %490 = vector.extract_strided_slice %483 {offsets = [0, 1], sizes = [4, 1], strides = [1, 1]} : vector<4x4xf32> to vector<4x1xf32>
    %491 = vector.extract_strided_slice %481 {offsets = [1, 0], sizes = [1, 256], strides = [1, 1]} : vector<4x256xf32> to vector<1x256xf32>
    %492 = vector.broadcast %490 : vector<4x1xf32> to vector<4x256xf32>
    %493 = vector.broadcast %491 : vector<1x256xf32> to vector<4x256xf32>
    %494 = arith.mulf %492, %493 : vector<4x256xf32>
    %495 = arith.addf %489, %494 : vector<4x256xf32>
    %496 = vector.extract_strided_slice %483 {offsets = [0, 2], sizes = [4, 1], strides = [1, 1]} : vector<4x4xf32> to vector<4x1xf32>
    %497 = vector.extract_strided_slice %481 {offsets = [2, 0], sizes = [1, 256], strides = [1, 1]} : vector<4x256xf32> to vector<1x256xf32>
    %498 = vector.broadcast %496 : vector<4x1xf32> to vector<4x256xf32>
    %499 = vector.broadcast %497 : vector<1x256xf32> to vector<4x256xf32>
    %500 = arith.mulf %498, %499 : vector<4x256xf32>
    %501 = arith.addf %495, %500 : vector<4x256xf32>
    %502 = vector.extract_strided_slice %483 {offsets = [0, 3], sizes = [4, 1], strides = [1, 1]} : vector<4x4xf32> to vector<4x1xf32>
    %503 = vector.extract_strided_slice %481 {offsets = [3, 0], sizes = [1, 256], strides = [1, 1]} : vector<4x256xf32> to vector<1x256xf32>
    %504 = vector.broadcast %502 : vector<4x1xf32> to vector<4x256xf32>
    %505 = vector.broadcast %503 : vector<1x256xf32> to vector<4x256xf32>
    %506 = arith.mulf %504, %505 : vector<4x256xf32>
    %507 = arith.addf %501, %506 : vector<4x256xf32>
    %508 = vector.extract_strided_slice %294 {offsets = [0, 16], sizes = [4, 240], strides = [1, 1]} : vector<4x256xf32> to vector<4x240xf32>
    %cst_34 = arith.constant 0.000000e+00 : f32
    %509 = vector.broadcast %cst_34 : f32 to vector<4x16xf32>
    %510 = tpu.concatenate %508, %509 in 1 : vector<4x240xf32>, vector<4x16xf32> -> vector<4x256xf32>
    %511 = vector.extract_strided_slice %296 {offsets = [7, 0, 0], sizes = [1, 4, 4], strides = [1, 1, 1]} : vector<9x4x4xf32> to vector<1x4x4xf32>
    %512 = vector.shape_cast %511 : vector<1x4x4xf32> to vector<4x4xf32>
    %513 = vector.extract_strided_slice %512 {offsets = [0, 0], sizes = [4, 1], strides = [1, 1]} : vector<4x4xf32> to vector<4x1xf32>
    %514 = vector.extract_strided_slice %510 {offsets = [0, 0], sizes = [1, 256], strides = [1, 1]} : vector<4x256xf32> to vector<1x256xf32>
    %515 = vector.broadcast %513 : vector<4x1xf32> to vector<4x256xf32>
    %516 = vector.broadcast %514 : vector<1x256xf32> to vector<4x256xf32>
    %517 = arith.mulf %515, %516 : vector<4x256xf32>
    %518 = arith.addf %507, %517 : vector<4x256xf32>
    %519 = vector.extract_strided_slice %512 {offsets = [0, 1], sizes = [4, 1], strides = [1, 1]} : vector<4x4xf32> to vector<4x1xf32>
    %520 = vector.extract_strided_slice %510 {offsets = [1, 0], sizes = [1, 256], strides = [1, 1]} : vector<4x256xf32> to vector<1x256xf32>
    %521 = vector.broadcast %519 : vector<4x1xf32> to vector<4x256xf32>
    %522 = vector.broadcast %520 : vector<1x256xf32> to vector<4x256xf32>
    %523 = arith.mulf %521, %522 : vector<4x256xf32>
    %524 = arith.addf %518, %523 : vector<4x256xf32>
    %525 = vector.extract_strided_slice %512 {offsets = [0, 2], sizes = [4, 1], strides = [1, 1]} : vector<4x4xf32> to vector<4x1xf32>
    %526 = vector.extract_strided_slice %510 {offsets = [2, 0], sizes = [1, 256], strides = [1, 1]} : vector<4x256xf32> to vector<1x256xf32>
    %527 = vector.broadcast %525 : vector<4x1xf32> to vector<4x256xf32>
    %528 = vector.broadcast %526 : vector<1x256xf32> to vector<4x256xf32>
    %529 = arith.mulf %527, %528 : vector<4x256xf32>
    %530 = arith.addf %524, %529 : vector<4x256xf32>
    %531 = vector.extract_strided_slice %512 {offsets = [0, 3], sizes = [4, 1], strides = [1, 1]} : vector<4x4xf32> to vector<4x1xf32>
    %532 = vector.extract_strided_slice %510 {offsets = [3, 0], sizes = [1, 256], strides = [1, 1]} : vector<4x256xf32> to vector<1x256xf32>
    %533 = vector.broadcast %531 : vector<4x1xf32> to vector<4x256xf32>
    %534 = vector.broadcast %532 : vector<1x256xf32> to vector<4x256xf32>
    %535 = arith.mulf %533, %534 : vector<4x256xf32>
    %536 = arith.addf %530, %535 : vector<4x256xf32>
    %537 = vector.extract_strided_slice %313 {offsets = [0, 16], sizes = [4, 240], strides = [1, 1]} : vector<4x256xf32> to vector<4x240xf32>
    %cst_35 = arith.constant 0.000000e+00 : f32
    %538 = vector.broadcast %cst_35 : f32 to vector<4x16xf32>
    %539 = tpu.concatenate %537, %538 in 1 : vector<4x240xf32>, vector<4x16xf32> -> vector<4x256xf32>
    %540 = vector.extract_strided_slice %296 {offsets = [8, 0, 0], sizes = [1, 4, 4], strides = [1, 1, 1]} : vector<9x4x4xf32> to vector<1x4x4xf32>
    %541 = vector.shape_cast %540 : vector<1x4x4xf32> to vector<4x4xf32>
    %542 = vector.extract_strided_slice %541 {offsets = [0, 0], sizes = [4, 1], strides = [1, 1]} : vector<4x4xf32> to vector<4x1xf32>
    %543 = vector.extract_strided_slice %539 {offsets = [0, 0], sizes = [1, 256], strides = [1, 1]} : vector<4x256xf32> to vector<1x256xf32>
    %544 = vector.broadcast %542 : vector<4x1xf32> to vector<4x256xf32>
    %545 = vector.broadcast %543 : vector<1x256xf32> to vector<4x256xf32>
    %546 = arith.mulf %544, %545 : vector<4x256xf32>
    %547 = arith.addf %536, %546 : vector<4x256xf32>
    %548 = vector.extract_strided_slice %541 {offsets = [0, 1], sizes = [4, 1], strides = [1, 1]} : vector<4x4xf32> to vector<4x1xf32>
    %549 = vector.extract_strided_slice %539 {offsets = [1, 0], sizes = [1, 256], strides = [1, 1]} : vector<4x256xf32> to vector<1x256xf32>
    %550 = vector.broadcast %548 : vector<4x1xf32> to vector<4x256xf32>
    %551 = vector.broadcast %549 : vector<1x256xf32> to vector<4x256xf32>
    %552 = arith.mulf %550, %551 : vector<4x256xf32>
    %553 = arith.addf %547, %552 : vector<4x256xf32>
    %554 = vector.extract_strided_slice %541 {offsets = [0, 2], sizes = [4, 1], strides = [1, 1]} : vector<4x4xf32> to vector<4x1xf32>
    %555 = vector.extract_strided_slice %539 {offsets = [2, 0], sizes = [1, 256], strides = [1, 1]} : vector<4x256xf32> to vector<1x256xf32>
    %556 = vector.broadcast %554 : vector<4x1xf32> to vector<4x256xf32>
    %557 = vector.broadcast %555 : vector<1x256xf32> to vector<4x256xf32>
    %558 = arith.mulf %556, %557 : vector<4x256xf32>
    %559 = arith.addf %553, %558 : vector<4x256xf32>
    %560 = vector.extract_strided_slice %541 {offsets = [0, 3], sizes = [4, 1], strides = [1, 1]} : vector<4x4xf32> to vector<4x1xf32>
    %561 = vector.extract_strided_slice %539 {offsets = [3, 0], sizes = [1, 256], strides = [1, 1]} : vector<4x256xf32> to vector<1x256xf32>
    %562 = vector.broadcast %560 : vector<4x1xf32> to vector<4x256xf32>
    %563 = vector.broadcast %561 : vector<1x256xf32> to vector<4x256xf32>
    %564 = arith.mulf %562, %563 : vector<4x256xf32>
    %565 = arith.addf %559, %564 : vector<4x256xf32>
    %cst_36 = arith.constant 0.000000e+00 : f32
    %566 = vector.broadcast %cst_36 : f32 to vector<4x256xf32>
    %567 = arith.maximumf %565, %566 : vector<4x256xf32>
    %c1_37 = arith.constant 1 : index
    %c0_38 = arith.constant 0 : index
    %c0_39 = arith.constant 0 : index
    %c0_40 = arith.constant 0 : index
    %568 = vector.load %arg3[%c1_37, %c0_38, %c0_39, %c0_40] : memref<3x9x4x4xf32, #tpu.memory_space<vmem>>, vector<1x9x4x4xf32>
    %569 = vector.shape_cast %568 : vector<1x9x4x4xf32> to vector<9x4x4xf32>
    %c0_41 = arith.constant 0 : index
    %c2 = arith.constant 2 : index
    %570 = vector.load %arg6[%c0_41, %c2] : memref<4x7xf32, #tpu.memory_space<vmem>>, vector<4x1xf32>
    %571 = vector.shape_cast %570 : vector<4x1xf32> to vector<4x1xf32>
    %572 = vector.broadcast %571 : vector<4x1xf32> to vector<4x256xf32>
    %cst_42 = arith.constant 0.000000e+00 : f32
    %573 = vector.broadcast %cst_42 : f32 to vector<4x1xf32>
    %574 = vector.extract_strided_slice %567 {offsets = [0, 0], sizes = [4, 255], strides = [1, 1]} : vector<4x256xf32> to vector<4x255xf32>
    %575 = tpu.concatenate %573, %574 in 1 : vector<4x1xf32>, vector<4x255xf32> -> vector<4x256xf32>
    %cst_43 = arith.constant 0.000000e+00 : f32
    %576 = vector.shape_cast %18 : vector<1x256xi1> to vector<1x256xi1>
    %577 = vector.broadcast %576 : vector<1x256xi1> to vector<4x256xi1>
    %578 = vector.broadcast %cst_43 : f32 to vector<4x256xf32>
    %579 = arith.select %577, %578, %575 : vector<4x256xi1>, vector<4x256xf32>
    %580 = vector.extract_strided_slice %567 {offsets = [0, 1], sizes = [4, 255], strides = [1, 1]} : vector<4x256xf32> to vector<4x255xf32>
    %cst_44 = arith.constant 0.000000e+00 : f32
    %581 = vector.broadcast %cst_44 : f32 to vector<4x1xf32>
    %582 = tpu.concatenate %580, %581 in 1 : vector<4x255xf32>, vector<4x1xf32> -> vector<4x256xf32>
    %cst_45 = arith.constant 0.000000e+00 : f32
    %583 = vector.shape_cast %20 : vector<1x256xi1> to vector<1x256xi1>
    %584 = vector.broadcast %583 : vector<1x256xi1> to vector<4x256xi1>
    %585 = vector.broadcast %cst_45 : f32 to vector<4x256xf32>
    %586 = arith.select %584, %585, %582 : vector<4x256xi1>, vector<4x256xf32>
    %cst_46 = arith.constant 0.000000e+00 : f32
    %587 = vector.broadcast %cst_46 : f32 to vector<4x16xf32>
    %588 = vector.extract_strided_slice %579 {offsets = [0, 0], sizes = [4, 240], strides = [1, 1]} : vector<4x256xf32> to vector<4x240xf32>
    %589 = tpu.concatenate %587, %588 in 1 : vector<4x16xf32>, vector<4x240xf32> -> vector<4x256xf32>
    %590 = vector.extract_strided_slice %569 {offsets = [0, 0, 0], sizes = [1, 4, 4], strides = [1, 1, 1]} : vector<9x4x4xf32> to vector<1x4x4xf32>
    %591 = vector.shape_cast %590 : vector<1x4x4xf32> to vector<4x4xf32>
    %592 = vector.extract_strided_slice %591 {offsets = [0, 0], sizes = [4, 1], strides = [1, 1]} : vector<4x4xf32> to vector<4x1xf32>
    %593 = vector.extract_strided_slice %589 {offsets = [0, 0], sizes = [1, 256], strides = [1, 1]} : vector<4x256xf32> to vector<1x256xf32>
    %594 = vector.broadcast %592 : vector<4x1xf32> to vector<4x256xf32>
    %595 = vector.broadcast %593 : vector<1x256xf32> to vector<4x256xf32>
    %596 = arith.mulf %594, %595 : vector<4x256xf32>
    %597 = arith.addf %572, %596 : vector<4x256xf32>
    %598 = vector.extract_strided_slice %591 {offsets = [0, 1], sizes = [4, 1], strides = [1, 1]} : vector<4x4xf32> to vector<4x1xf32>
    %599 = vector.extract_strided_slice %589 {offsets = [1, 0], sizes = [1, 256], strides = [1, 1]} : vector<4x256xf32> to vector<1x256xf32>
    %600 = vector.broadcast %598 : vector<4x1xf32> to vector<4x256xf32>
    %601 = vector.broadcast %599 : vector<1x256xf32> to vector<4x256xf32>
    %602 = arith.mulf %600, %601 : vector<4x256xf32>
    %603 = arith.addf %597, %602 : vector<4x256xf32>
    %604 = vector.extract_strided_slice %591 {offsets = [0, 2], sizes = [4, 1], strides = [1, 1]} : vector<4x4xf32> to vector<4x1xf32>
    %605 = vector.extract_strided_slice %589 {offsets = [2, 0], sizes = [1, 256], strides = [1, 1]} : vector<4x256xf32> to vector<1x256xf32>
    %606 = vector.broadcast %604 : vector<4x1xf32> to vector<4x256xf32>
    %607 = vector.broadcast %605 : vector<1x256xf32> to vector<4x256xf32>
    %608 = arith.mulf %606, %607 : vector<4x256xf32>
    %609 = arith.addf %603, %608 : vector<4x256xf32>
    %610 = vector.extract_strided_slice %591 {offsets = [0, 3], sizes = [4, 1], strides = [1, 1]} : vector<4x4xf32> to vector<4x1xf32>
    %611 = vector.extract_strided_slice %589 {offsets = [3, 0], sizes = [1, 256], strides = [1, 1]} : vector<4x256xf32> to vector<1x256xf32>
    %612 = vector.broadcast %610 : vector<4x1xf32> to vector<4x256xf32>
    %613 = vector.broadcast %611 : vector<1x256xf32> to vector<4x256xf32>
    %614 = arith.mulf %612, %613 : vector<4x256xf32>
    %615 = arith.addf %609, %614 : vector<4x256xf32>
    %cst_47 = arith.constant 0.000000e+00 : f32
    %616 = vector.broadcast %cst_47 : f32 to vector<4x16xf32>
    %617 = vector.extract_strided_slice %567 {offsets = [0, 0], sizes = [4, 240], strides = [1, 1]} : vector<4x256xf32> to vector<4x240xf32>
    %618 = tpu.concatenate %616, %617 in 1 : vector<4x16xf32>, vector<4x240xf32> -> vector<4x256xf32>
    %619 = vector.extract_strided_slice %569 {offsets = [1, 0, 0], sizes = [1, 4, 4], strides = [1, 1, 1]} : vector<9x4x4xf32> to vector<1x4x4xf32>
    %620 = vector.shape_cast %619 : vector<1x4x4xf32> to vector<4x4xf32>
    %621 = vector.extract_strided_slice %620 {offsets = [0, 0], sizes = [4, 1], strides = [1, 1]} : vector<4x4xf32> to vector<4x1xf32>
    %622 = vector.extract_strided_slice %618 {offsets = [0, 0], sizes = [1, 256], strides = [1, 1]} : vector<4x256xf32> to vector<1x256xf32>
    %623 = vector.broadcast %621 : vector<4x1xf32> to vector<4x256xf32>
    %624 = vector.broadcast %622 : vector<1x256xf32> to vector<4x256xf32>
    %625 = arith.mulf %623, %624 : vector<4x256xf32>
    %626 = arith.addf %615, %625 : vector<4x256xf32>
    %627 = vector.extract_strided_slice %620 {offsets = [0, 1], sizes = [4, 1], strides = [1, 1]} : vector<4x4xf32> to vector<4x1xf32>
    %628 = vector.extract_strided_slice %618 {offsets = [1, 0], sizes = [1, 256], strides = [1, 1]} : vector<4x256xf32> to vector<1x256xf32>
    %629 = vector.broadcast %627 : vector<4x1xf32> to vector<4x256xf32>
    %630 = vector.broadcast %628 : vector<1x256xf32> to vector<4x256xf32>
    %631 = arith.mulf %629, %630 : vector<4x256xf32>
    %632 = arith.addf %626, %631 : vector<4x256xf32>
    %633 = vector.extract_strided_slice %620 {offsets = [0, 2], sizes = [4, 1], strides = [1, 1]} : vector<4x4xf32> to vector<4x1xf32>
    %634 = vector.extract_strided_slice %618 {offsets = [2, 0], sizes = [1, 256], strides = [1, 1]} : vector<4x256xf32> to vector<1x256xf32>
    %635 = vector.broadcast %633 : vector<4x1xf32> to vector<4x256xf32>
    %636 = vector.broadcast %634 : vector<1x256xf32> to vector<4x256xf32>
    %637 = arith.mulf %635, %636 : vector<4x256xf32>
    %638 = arith.addf %632, %637 : vector<4x256xf32>
    %639 = vector.extract_strided_slice %620 {offsets = [0, 3], sizes = [4, 1], strides = [1, 1]} : vector<4x4xf32> to vector<4x1xf32>
    %640 = vector.extract_strided_slice %618 {offsets = [3, 0], sizes = [1, 256], strides = [1, 1]} : vector<4x256xf32> to vector<1x256xf32>
    %641 = vector.broadcast %639 : vector<4x1xf32> to vector<4x256xf32>
    %642 = vector.broadcast %640 : vector<1x256xf32> to vector<4x256xf32>
    %643 = arith.mulf %641, %642 : vector<4x256xf32>
    %644 = arith.addf %638, %643 : vector<4x256xf32>
    %cst_48 = arith.constant 0.000000e+00 : f32
    %645 = vector.broadcast %cst_48 : f32 to vector<4x16xf32>
    %646 = vector.extract_strided_slice %586 {offsets = [0, 0], sizes = [4, 240], strides = [1, 1]} : vector<4x256xf32> to vector<4x240xf32>
    %647 = tpu.concatenate %645, %646 in 1 : vector<4x16xf32>, vector<4x240xf32> -> vector<4x256xf32>
    %648 = vector.extract_strided_slice %569 {offsets = [2, 0, 0], sizes = [1, 4, 4], strides = [1, 1, 1]} : vector<9x4x4xf32> to vector<1x4x4xf32>
    %649 = vector.shape_cast %648 : vector<1x4x4xf32> to vector<4x4xf32>
    %650 = vector.extract_strided_slice %649 {offsets = [0, 0], sizes = [4, 1], strides = [1, 1]} : vector<4x4xf32> to vector<4x1xf32>
    %651 = vector.extract_strided_slice %647 {offsets = [0, 0], sizes = [1, 256], strides = [1, 1]} : vector<4x256xf32> to vector<1x256xf32>
    %652 = vector.broadcast %650 : vector<4x1xf32> to vector<4x256xf32>
    %653 = vector.broadcast %651 : vector<1x256xf32> to vector<4x256xf32>
    %654 = arith.mulf %652, %653 : vector<4x256xf32>
    %655 = arith.addf %644, %654 : vector<4x256xf32>
    %656 = vector.extract_strided_slice %649 {offsets = [0, 1], sizes = [4, 1], strides = [1, 1]} : vector<4x4xf32> to vector<4x1xf32>
    %657 = vector.extract_strided_slice %647 {offsets = [1, 0], sizes = [1, 256], strides = [1, 1]} : vector<4x256xf32> to vector<1x256xf32>
    %658 = vector.broadcast %656 : vector<4x1xf32> to vector<4x256xf32>
    %659 = vector.broadcast %657 : vector<1x256xf32> to vector<4x256xf32>
    %660 = arith.mulf %658, %659 : vector<4x256xf32>
    %661 = arith.addf %655, %660 : vector<4x256xf32>
    %662 = vector.extract_strided_slice %649 {offsets = [0, 2], sizes = [4, 1], strides = [1, 1]} : vector<4x4xf32> to vector<4x1xf32>
    %663 = vector.extract_strided_slice %647 {offsets = [2, 0], sizes = [1, 256], strides = [1, 1]} : vector<4x256xf32> to vector<1x256xf32>
    %664 = vector.broadcast %662 : vector<4x1xf32> to vector<4x256xf32>
    %665 = vector.broadcast %663 : vector<1x256xf32> to vector<4x256xf32>
    %666 = arith.mulf %664, %665 : vector<4x256xf32>
    %667 = arith.addf %661, %666 : vector<4x256xf32>
    %668 = vector.extract_strided_slice %649 {offsets = [0, 3], sizes = [4, 1], strides = [1, 1]} : vector<4x4xf32> to vector<4x1xf32>
    %669 = vector.extract_strided_slice %647 {offsets = [3, 0], sizes = [1, 256], strides = [1, 1]} : vector<4x256xf32> to vector<1x256xf32>
    %670 = vector.broadcast %668 : vector<4x1xf32> to vector<4x256xf32>
    %671 = vector.broadcast %669 : vector<1x256xf32> to vector<4x256xf32>
    %672 = arith.mulf %670, %671 : vector<4x256xf32>
    %673 = arith.addf %667, %672 : vector<4x256xf32>
    %674 = vector.extract_strided_slice %569 {offsets = [3, 0, 0], sizes = [1, 4, 4], strides = [1, 1, 1]} : vector<9x4x4xf32> to vector<1x4x4xf32>
    %675 = vector.shape_cast %674 : vector<1x4x4xf32> to vector<4x4xf32>
    %676 = vector.extract_strided_slice %675 {offsets = [0, 0], sizes = [4, 1], strides = [1, 1]} : vector<4x4xf32> to vector<4x1xf32>
    %677 = vector.extract_strided_slice %579 {offsets = [0, 0], sizes = [1, 256], strides = [1, 1]} : vector<4x256xf32> to vector<1x256xf32>
    %678 = vector.broadcast %676 : vector<4x1xf32> to vector<4x256xf32>
    %679 = vector.broadcast %677 : vector<1x256xf32> to vector<4x256xf32>
    %680 = arith.mulf %678, %679 : vector<4x256xf32>
    %681 = arith.addf %673, %680 : vector<4x256xf32>
    %682 = vector.extract_strided_slice %675 {offsets = [0, 1], sizes = [4, 1], strides = [1, 1]} : vector<4x4xf32> to vector<4x1xf32>
    %683 = vector.extract_strided_slice %579 {offsets = [1, 0], sizes = [1, 256], strides = [1, 1]} : vector<4x256xf32> to vector<1x256xf32>
    %684 = vector.broadcast %682 : vector<4x1xf32> to vector<4x256xf32>
    %685 = vector.broadcast %683 : vector<1x256xf32> to vector<4x256xf32>
    %686 = arith.mulf %684, %685 : vector<4x256xf32>
    %687 = arith.addf %681, %686 : vector<4x256xf32>
    %688 = vector.extract_strided_slice %675 {offsets = [0, 2], sizes = [4, 1], strides = [1, 1]} : vector<4x4xf32> to vector<4x1xf32>
    %689 = vector.extract_strided_slice %579 {offsets = [2, 0], sizes = [1, 256], strides = [1, 1]} : vector<4x256xf32> to vector<1x256xf32>
    %690 = vector.broadcast %688 : vector<4x1xf32> to vector<4x256xf32>
    %691 = vector.broadcast %689 : vector<1x256xf32> to vector<4x256xf32>
    %692 = arith.mulf %690, %691 : vector<4x256xf32>
    %693 = arith.addf %687, %692 : vector<4x256xf32>
    %694 = vector.extract_strided_slice %675 {offsets = [0, 3], sizes = [4, 1], strides = [1, 1]} : vector<4x4xf32> to vector<4x1xf32>
    %695 = vector.extract_strided_slice %579 {offsets = [3, 0], sizes = [1, 256], strides = [1, 1]} : vector<4x256xf32> to vector<1x256xf32>
    %696 = vector.broadcast %694 : vector<4x1xf32> to vector<4x256xf32>
    %697 = vector.broadcast %695 : vector<1x256xf32> to vector<4x256xf32>
    %698 = arith.mulf %696, %697 : vector<4x256xf32>
    %699 = arith.addf %693, %698 : vector<4x256xf32>
    %700 = vector.extract_strided_slice %569 {offsets = [4, 0, 0], sizes = [1, 4, 4], strides = [1, 1, 1]} : vector<9x4x4xf32> to vector<1x4x4xf32>
    %701 = vector.shape_cast %700 : vector<1x4x4xf32> to vector<4x4xf32>
    %702 = vector.extract_strided_slice %701 {offsets = [0, 0], sizes = [4, 1], strides = [1, 1]} : vector<4x4xf32> to vector<4x1xf32>
    %703 = vector.extract_strided_slice %567 {offsets = [0, 0], sizes = [1, 256], strides = [1, 1]} : vector<4x256xf32> to vector<1x256xf32>
    %704 = vector.broadcast %702 : vector<4x1xf32> to vector<4x256xf32>
    %705 = vector.broadcast %703 : vector<1x256xf32> to vector<4x256xf32>
    %706 = arith.mulf %704, %705 : vector<4x256xf32>
    %707 = arith.addf %699, %706 : vector<4x256xf32>
    %708 = vector.extract_strided_slice %701 {offsets = [0, 1], sizes = [4, 1], strides = [1, 1]} : vector<4x4xf32> to vector<4x1xf32>
    %709 = vector.extract_strided_slice %567 {offsets = [1, 0], sizes = [1, 256], strides = [1, 1]} : vector<4x256xf32> to vector<1x256xf32>
    %710 = vector.broadcast %708 : vector<4x1xf32> to vector<4x256xf32>
    %711 = vector.broadcast %709 : vector<1x256xf32> to vector<4x256xf32>
    %712 = arith.mulf %710, %711 : vector<4x256xf32>
    %713 = arith.addf %707, %712 : vector<4x256xf32>
    %714 = vector.extract_strided_slice %701 {offsets = [0, 2], sizes = [4, 1], strides = [1, 1]} : vector<4x4xf32> to vector<4x1xf32>
    %715 = vector.extract_strided_slice %567 {offsets = [2, 0], sizes = [1, 256], strides = [1, 1]} : vector<4x256xf32> to vector<1x256xf32>
    %716 = vector.broadcast %714 : vector<4x1xf32> to vector<4x256xf32>
    %717 = vector.broadcast %715 : vector<1x256xf32> to vector<4x256xf32>
    %718 = arith.mulf %716, %717 : vector<4x256xf32>
    %719 = arith.addf %713, %718 : vector<4x256xf32>
    %720 = vector.extract_strided_slice %701 {offsets = [0, 3], sizes = [4, 1], strides = [1, 1]} : vector<4x4xf32> to vector<4x1xf32>
    %721 = vector.extract_strided_slice %567 {offsets = [3, 0], sizes = [1, 256], strides = [1, 1]} : vector<4x256xf32> to vector<1x256xf32>
    %722 = vector.broadcast %720 : vector<4x1xf32> to vector<4x256xf32>
    %723 = vector.broadcast %721 : vector<1x256xf32> to vector<4x256xf32>
    %724 = arith.mulf %722, %723 : vector<4x256xf32>
    %725 = arith.addf %719, %724 : vector<4x256xf32>
    %726 = vector.extract_strided_slice %569 {offsets = [5, 0, 0], sizes = [1, 4, 4], strides = [1, 1, 1]} : vector<9x4x4xf32> to vector<1x4x4xf32>
    %727 = vector.shape_cast %726 : vector<1x4x4xf32> to vector<4x4xf32>
    %728 = vector.extract_strided_slice %727 {offsets = [0, 0], sizes = [4, 1], strides = [1, 1]} : vector<4x4xf32> to vector<4x1xf32>
    %729 = vector.extract_strided_slice %586 {offsets = [0, 0], sizes = [1, 256], strides = [1, 1]} : vector<4x256xf32> to vector<1x256xf32>
    %730 = vector.broadcast %728 : vector<4x1xf32> to vector<4x256xf32>
    %731 = vector.broadcast %729 : vector<1x256xf32> to vector<4x256xf32>
    %732 = arith.mulf %730, %731 : vector<4x256xf32>
    %733 = arith.addf %725, %732 : vector<4x256xf32>
    %734 = vector.extract_strided_slice %727 {offsets = [0, 1], sizes = [4, 1], strides = [1, 1]} : vector<4x4xf32> to vector<4x1xf32>
    %735 = vector.extract_strided_slice %586 {offsets = [1, 0], sizes = [1, 256], strides = [1, 1]} : vector<4x256xf32> to vector<1x256xf32>
    %736 = vector.broadcast %734 : vector<4x1xf32> to vector<4x256xf32>
    %737 = vector.broadcast %735 : vector<1x256xf32> to vector<4x256xf32>
    %738 = arith.mulf %736, %737 : vector<4x256xf32>
    %739 = arith.addf %733, %738 : vector<4x256xf32>
    %740 = vector.extract_strided_slice %727 {offsets = [0, 2], sizes = [4, 1], strides = [1, 1]} : vector<4x4xf32> to vector<4x1xf32>
    %741 = vector.extract_strided_slice %586 {offsets = [2, 0], sizes = [1, 256], strides = [1, 1]} : vector<4x256xf32> to vector<1x256xf32>
    %742 = vector.broadcast %740 : vector<4x1xf32> to vector<4x256xf32>
    %743 = vector.broadcast %741 : vector<1x256xf32> to vector<4x256xf32>
    %744 = arith.mulf %742, %743 : vector<4x256xf32>
    %745 = arith.addf %739, %744 : vector<4x256xf32>
    %746 = vector.extract_strided_slice %727 {offsets = [0, 3], sizes = [4, 1], strides = [1, 1]} : vector<4x4xf32> to vector<4x1xf32>
    %747 = vector.extract_strided_slice %586 {offsets = [3, 0], sizes = [1, 256], strides = [1, 1]} : vector<4x256xf32> to vector<1x256xf32>
    %748 = vector.broadcast %746 : vector<4x1xf32> to vector<4x256xf32>
    %749 = vector.broadcast %747 : vector<1x256xf32> to vector<4x256xf32>
    %750 = arith.mulf %748, %749 : vector<4x256xf32>
    %751 = arith.addf %745, %750 : vector<4x256xf32>
    %752 = vector.extract_strided_slice %579 {offsets = [0, 16], sizes = [4, 240], strides = [1, 1]} : vector<4x256xf32> to vector<4x240xf32>
    %cst_49 = arith.constant 0.000000e+00 : f32
    %753 = vector.broadcast %cst_49 : f32 to vector<4x16xf32>
    %754 = tpu.concatenate %752, %753 in 1 : vector<4x240xf32>, vector<4x16xf32> -> vector<4x256xf32>
    %755 = vector.extract_strided_slice %569 {offsets = [6, 0, 0], sizes = [1, 4, 4], strides = [1, 1, 1]} : vector<9x4x4xf32> to vector<1x4x4xf32>
    %756 = vector.shape_cast %755 : vector<1x4x4xf32> to vector<4x4xf32>
    %757 = vector.extract_strided_slice %756 {offsets = [0, 0], sizes = [4, 1], strides = [1, 1]} : vector<4x4xf32> to vector<4x1xf32>
    %758 = vector.extract_strided_slice %754 {offsets = [0, 0], sizes = [1, 256], strides = [1, 1]} : vector<4x256xf32> to vector<1x256xf32>
    %759 = vector.broadcast %757 : vector<4x1xf32> to vector<4x256xf32>
    %760 = vector.broadcast %758 : vector<1x256xf32> to vector<4x256xf32>
    %761 = arith.mulf %759, %760 : vector<4x256xf32>
    %762 = arith.addf %751, %761 : vector<4x256xf32>
    %763 = vector.extract_strided_slice %756 {offsets = [0, 1], sizes = [4, 1], strides = [1, 1]} : vector<4x4xf32> to vector<4x1xf32>
    %764 = vector.extract_strided_slice %754 {offsets = [1, 0], sizes = [1, 256], strides = [1, 1]} : vector<4x256xf32> to vector<1x256xf32>
    %765 = vector.broadcast %763 : vector<4x1xf32> to vector<4x256xf32>
    %766 = vector.broadcast %764 : vector<1x256xf32> to vector<4x256xf32>
    %767 = arith.mulf %765, %766 : vector<4x256xf32>
    %768 = arith.addf %762, %767 : vector<4x256xf32>
    %769 = vector.extract_strided_slice %756 {offsets = [0, 2], sizes = [4, 1], strides = [1, 1]} : vector<4x4xf32> to vector<4x1xf32>
    %770 = vector.extract_strided_slice %754 {offsets = [2, 0], sizes = [1, 256], strides = [1, 1]} : vector<4x256xf32> to vector<1x256xf32>
    %771 = vector.broadcast %769 : vector<4x1xf32> to vector<4x256xf32>
    %772 = vector.broadcast %770 : vector<1x256xf32> to vector<4x256xf32>
    %773 = arith.mulf %771, %772 : vector<4x256xf32>
    %774 = arith.addf %768, %773 : vector<4x256xf32>
    %775 = vector.extract_strided_slice %756 {offsets = [0, 3], sizes = [4, 1], strides = [1, 1]} : vector<4x4xf32> to vector<4x1xf32>
    %776 = vector.extract_strided_slice %754 {offsets = [3, 0], sizes = [1, 256], strides = [1, 1]} : vector<4x256xf32> to vector<1x256xf32>
    %777 = vector.broadcast %775 : vector<4x1xf32> to vector<4x256xf32>
    %778 = vector.broadcast %776 : vector<1x256xf32> to vector<4x256xf32>
    %779 = arith.mulf %777, %778 : vector<4x256xf32>
    %780 = arith.addf %774, %779 : vector<4x256xf32>
    %781 = vector.extract_strided_slice %567 {offsets = [0, 16], sizes = [4, 240], strides = [1, 1]} : vector<4x256xf32> to vector<4x240xf32>
    %cst_50 = arith.constant 0.000000e+00 : f32
    %782 = vector.broadcast %cst_50 : f32 to vector<4x16xf32>
    %783 = tpu.concatenate %781, %782 in 1 : vector<4x240xf32>, vector<4x16xf32> -> vector<4x256xf32>
    %784 = vector.extract_strided_slice %569 {offsets = [7, 0, 0], sizes = [1, 4, 4], strides = [1, 1, 1]} : vector<9x4x4xf32> to vector<1x4x4xf32>
    %785 = vector.shape_cast %784 : vector<1x4x4xf32> to vector<4x4xf32>
    %786 = vector.extract_strided_slice %785 {offsets = [0, 0], sizes = [4, 1], strides = [1, 1]} : vector<4x4xf32> to vector<4x1xf32>
    %787 = vector.extract_strided_slice %783 {offsets = [0, 0], sizes = [1, 256], strides = [1, 1]} : vector<4x256xf32> to vector<1x256xf32>
    %788 = vector.broadcast %786 : vector<4x1xf32> to vector<4x256xf32>
    %789 = vector.broadcast %787 : vector<1x256xf32> to vector<4x256xf32>
    %790 = arith.mulf %788, %789 : vector<4x256xf32>
    %791 = arith.addf %780, %790 : vector<4x256xf32>
    %792 = vector.extract_strided_slice %785 {offsets = [0, 1], sizes = [4, 1], strides = [1, 1]} : vector<4x4xf32> to vector<4x1xf32>
    %793 = vector.extract_strided_slice %783 {offsets = [1, 0], sizes = [1, 256], strides = [1, 1]} : vector<4x256xf32> to vector<1x256xf32>
    %794 = vector.broadcast %792 : vector<4x1xf32> to vector<4x256xf32>
    %795 = vector.broadcast %793 : vector<1x256xf32> to vector<4x256xf32>
    %796 = arith.mulf %794, %795 : vector<4x256xf32>
    %797 = arith.addf %791, %796 : vector<4x256xf32>
    %798 = vector.extract_strided_slice %785 {offsets = [0, 2], sizes = [4, 1], strides = [1, 1]} : vector<4x4xf32> to vector<4x1xf32>
    %799 = vector.extract_strided_slice %783 {offsets = [2, 0], sizes = [1, 256], strides = [1, 1]} : vector<4x256xf32> to vector<1x256xf32>
    %800 = vector.broadcast %798 : vector<4x1xf32> to vector<4x256xf32>
    %801 = vector.broadcast %799 : vector<1x256xf32> to vector<4x256xf32>
    %802 = arith.mulf %800, %801 : vector<4x256xf32>
    %803 = arith.addf %797, %802 : vector<4x256xf32>
    %804 = vector.extract_strided_slice %785 {offsets = [0, 3], sizes = [4, 1], strides = [1, 1]} : vector<4x4xf32> to vector<4x1xf32>
    %805 = vector.extract_strided_slice %783 {offsets = [3, 0], sizes = [1, 256], strides = [1, 1]} : vector<4x256xf32> to vector<1x256xf32>
    %806 = vector.broadcast %804 : vector<4x1xf32> to vector<4x256xf32>
    %807 = vector.broadcast %805 : vector<1x256xf32> to vector<4x256xf32>
    %808 = arith.mulf %806, %807 : vector<4x256xf32>
    %809 = arith.addf %803, %808 : vector<4x256xf32>
    %810 = vector.extract_strided_slice %586 {offsets = [0, 16], sizes = [4, 240], strides = [1, 1]} : vector<4x256xf32> to vector<4x240xf32>
    %cst_51 = arith.constant 0.000000e+00 : f32
    %811 = vector.broadcast %cst_51 : f32 to vector<4x16xf32>
    %812 = tpu.concatenate %810, %811 in 1 : vector<4x240xf32>, vector<4x16xf32> -> vector<4x256xf32>
    %813 = vector.extract_strided_slice %569 {offsets = [8, 0, 0], sizes = [1, 4, 4], strides = [1, 1, 1]} : vector<9x4x4xf32> to vector<1x4x4xf32>
    %814 = vector.shape_cast %813 : vector<1x4x4xf32> to vector<4x4xf32>
    %815 = vector.extract_strided_slice %814 {offsets = [0, 0], sizes = [4, 1], strides = [1, 1]} : vector<4x4xf32> to vector<4x1xf32>
    %816 = vector.extract_strided_slice %812 {offsets = [0, 0], sizes = [1, 256], strides = [1, 1]} : vector<4x256xf32> to vector<1x256xf32>
    %817 = vector.broadcast %815 : vector<4x1xf32> to vector<4x256xf32>
    %818 = vector.broadcast %816 : vector<1x256xf32> to vector<4x256xf32>
    %819 = arith.mulf %817, %818 : vector<4x256xf32>
    %820 = arith.addf %809, %819 : vector<4x256xf32>
    %821 = vector.extract_strided_slice %814 {offsets = [0, 1], sizes = [4, 1], strides = [1, 1]} : vector<4x4xf32> to vector<4x1xf32>
    %822 = vector.extract_strided_slice %812 {offsets = [1, 0], sizes = [1, 256], strides = [1, 1]} : vector<4x256xf32> to vector<1x256xf32>
    %823 = vector.broadcast %821 : vector<4x1xf32> to vector<4x256xf32>
    %824 = vector.broadcast %822 : vector<1x256xf32> to vector<4x256xf32>
    %825 = arith.mulf %823, %824 : vector<4x256xf32>
    %826 = arith.addf %820, %825 : vector<4x256xf32>
    %827 = vector.extract_strided_slice %814 {offsets = [0, 2], sizes = [4, 1], strides = [1, 1]} : vector<4x4xf32> to vector<4x1xf32>
    %828 = vector.extract_strided_slice %812 {offsets = [2, 0], sizes = [1, 256], strides = [1, 1]} : vector<4x256xf32> to vector<1x256xf32>
    %829 = vector.broadcast %827 : vector<4x1xf32> to vector<4x256xf32>
    %830 = vector.broadcast %828 : vector<1x256xf32> to vector<4x256xf32>
    %831 = arith.mulf %829, %830 : vector<4x256xf32>
    %832 = arith.addf %826, %831 : vector<4x256xf32>
    %833 = vector.extract_strided_slice %814 {offsets = [0, 3], sizes = [4, 1], strides = [1, 1]} : vector<4x4xf32> to vector<4x1xf32>
    %834 = vector.extract_strided_slice %812 {offsets = [3, 0], sizes = [1, 256], strides = [1, 1]} : vector<4x256xf32> to vector<1x256xf32>
    %835 = vector.broadcast %833 : vector<4x1xf32> to vector<4x256xf32>
    %836 = vector.broadcast %834 : vector<1x256xf32> to vector<4x256xf32>
    %837 = arith.mulf %835, %836 : vector<4x256xf32>
    %838 = arith.addf %832, %837 : vector<4x256xf32>
    %cst_52 = arith.constant 0.000000e+00 : f32
    %839 = vector.broadcast %cst_52 : f32 to vector<4x256xf32>
    %840 = arith.maximumf %838, %839 : vector<4x256xf32>
    %c2_53 = arith.constant 2 : index
    %c0_54 = arith.constant 0 : index
    %c0_55 = arith.constant 0 : index
    %c0_56 = arith.constant 0 : index
    %841 = vector.load %arg3[%c2_53, %c0_54, %c0_55, %c0_56] : memref<3x9x4x4xf32, #tpu.memory_space<vmem>>, vector<1x9x4x4xf32>
    %842 = vector.shape_cast %841 : vector<1x9x4x4xf32> to vector<9x4x4xf32>
    %c0_57 = arith.constant 0 : index
    %c3 = arith.constant 3 : index
    %843 = vector.load %arg6[%c0_57, %c3] : memref<4x7xf32, #tpu.memory_space<vmem>>, vector<4x1xf32>
    %844 = vector.shape_cast %843 : vector<4x1xf32> to vector<4x1xf32>
    %845 = vector.broadcast %844 : vector<4x1xf32> to vector<4x256xf32>
    %cst_58 = arith.constant 0.000000e+00 : f32
    %846 = vector.broadcast %cst_58 : f32 to vector<4x1xf32>
    %847 = vector.extract_strided_slice %840 {offsets = [0, 0], sizes = [4, 255], strides = [1, 1]} : vector<4x256xf32> to vector<4x255xf32>
    %848 = tpu.concatenate %846, %847 in 1 : vector<4x1xf32>, vector<4x255xf32> -> vector<4x256xf32>
    %cst_59 = arith.constant 0.000000e+00 : f32
    %849 = vector.shape_cast %18 : vector<1x256xi1> to vector<1x256xi1>
    %850 = vector.broadcast %849 : vector<1x256xi1> to vector<4x256xi1>
    %851 = vector.broadcast %cst_59 : f32 to vector<4x256xf32>
    %852 = arith.select %850, %851, %848 : vector<4x256xi1>, vector<4x256xf32>
    %853 = vector.extract_strided_slice %840 {offsets = [0, 1], sizes = [4, 255], strides = [1, 1]} : vector<4x256xf32> to vector<4x255xf32>
    %cst_60 = arith.constant 0.000000e+00 : f32
    %854 = vector.broadcast %cst_60 : f32 to vector<4x1xf32>
    %855 = tpu.concatenate %853, %854 in 1 : vector<4x255xf32>, vector<4x1xf32> -> vector<4x256xf32>
    %cst_61 = arith.constant 0.000000e+00 : f32
    %856 = vector.shape_cast %20 : vector<1x256xi1> to vector<1x256xi1>
    %857 = vector.broadcast %856 : vector<1x256xi1> to vector<4x256xi1>
    %858 = vector.broadcast %cst_61 : f32 to vector<4x256xf32>
    %859 = arith.select %857, %858, %855 : vector<4x256xi1>, vector<4x256xf32>
    %cst_62 = arith.constant 0.000000e+00 : f32
    %860 = vector.broadcast %cst_62 : f32 to vector<4x16xf32>
    %861 = vector.extract_strided_slice %852 {offsets = [0, 0], sizes = [4, 240], strides = [1, 1]} : vector<4x256xf32> to vector<4x240xf32>
    %862 = tpu.concatenate %860, %861 in 1 : vector<4x16xf32>, vector<4x240xf32> -> vector<4x256xf32>
    %863 = vector.extract_strided_slice %842 {offsets = [0, 0, 0], sizes = [1, 4, 4], strides = [1, 1, 1]} : vector<9x4x4xf32> to vector<1x4x4xf32>
    %864 = vector.shape_cast %863 : vector<1x4x4xf32> to vector<4x4xf32>
    %865 = vector.extract_strided_slice %864 {offsets = [0, 0], sizes = [4, 1], strides = [1, 1]} : vector<4x4xf32> to vector<4x1xf32>
    %866 = vector.extract_strided_slice %862 {offsets = [0, 0], sizes = [1, 256], strides = [1, 1]} : vector<4x256xf32> to vector<1x256xf32>
    %867 = vector.broadcast %865 : vector<4x1xf32> to vector<4x256xf32>
    %868 = vector.broadcast %866 : vector<1x256xf32> to vector<4x256xf32>
    %869 = arith.mulf %867, %868 : vector<4x256xf32>
    %870 = arith.addf %845, %869 : vector<4x256xf32>
    %871 = vector.extract_strided_slice %864 {offsets = [0, 1], sizes = [4, 1], strides = [1, 1]} : vector<4x4xf32> to vector<4x1xf32>
    %872 = vector.extract_strided_slice %862 {offsets = [1, 0], sizes = [1, 256], strides = [1, 1]} : vector<4x256xf32> to vector<1x256xf32>
    %873 = vector.broadcast %871 : vector<4x1xf32> to vector<4x256xf32>
    %874 = vector.broadcast %872 : vector<1x256xf32> to vector<4x256xf32>
    %875 = arith.mulf %873, %874 : vector<4x256xf32>
    %876 = arith.addf %870, %875 : vector<4x256xf32>
    %877 = vector.extract_strided_slice %864 {offsets = [0, 2], sizes = [4, 1], strides = [1, 1]} : vector<4x4xf32> to vector<4x1xf32>
    %878 = vector.extract_strided_slice %862 {offsets = [2, 0], sizes = [1, 256], strides = [1, 1]} : vector<4x256xf32> to vector<1x256xf32>
    %879 = vector.broadcast %877 : vector<4x1xf32> to vector<4x256xf32>
    %880 = vector.broadcast %878 : vector<1x256xf32> to vector<4x256xf32>
    %881 = arith.mulf %879, %880 : vector<4x256xf32>
    %882 = arith.addf %876, %881 : vector<4x256xf32>
    %883 = vector.extract_strided_slice %864 {offsets = [0, 3], sizes = [4, 1], strides = [1, 1]} : vector<4x4xf32> to vector<4x1xf32>
    %884 = vector.extract_strided_slice %862 {offsets = [3, 0], sizes = [1, 256], strides = [1, 1]} : vector<4x256xf32> to vector<1x256xf32>
    %885 = vector.broadcast %883 : vector<4x1xf32> to vector<4x256xf32>
    %886 = vector.broadcast %884 : vector<1x256xf32> to vector<4x256xf32>
    %887 = arith.mulf %885, %886 : vector<4x256xf32>
    %888 = arith.addf %882, %887 : vector<4x256xf32>
    %cst_63 = arith.constant 0.000000e+00 : f32
    %889 = vector.broadcast %cst_63 : f32 to vector<4x16xf32>
    %890 = vector.extract_strided_slice %840 {offsets = [0, 0], sizes = [4, 240], strides = [1, 1]} : vector<4x256xf32> to vector<4x240xf32>
    %891 = tpu.concatenate %889, %890 in 1 : vector<4x16xf32>, vector<4x240xf32> -> vector<4x256xf32>
    %892 = vector.extract_strided_slice %842 {offsets = [1, 0, 0], sizes = [1, 4, 4], strides = [1, 1, 1]} : vector<9x4x4xf32> to vector<1x4x4xf32>
    %893 = vector.shape_cast %892 : vector<1x4x4xf32> to vector<4x4xf32>
    %894 = vector.extract_strided_slice %893 {offsets = [0, 0], sizes = [4, 1], strides = [1, 1]} : vector<4x4xf32> to vector<4x1xf32>
    %895 = vector.extract_strided_slice %891 {offsets = [0, 0], sizes = [1, 256], strides = [1, 1]} : vector<4x256xf32> to vector<1x256xf32>
    %896 = vector.broadcast %894 : vector<4x1xf32> to vector<4x256xf32>
    %897 = vector.broadcast %895 : vector<1x256xf32> to vector<4x256xf32>
    %898 = arith.mulf %896, %897 : vector<4x256xf32>
    %899 = arith.addf %888, %898 : vector<4x256xf32>
    %900 = vector.extract_strided_slice %893 {offsets = [0, 1], sizes = [4, 1], strides = [1, 1]} : vector<4x4xf32> to vector<4x1xf32>
    %901 = vector.extract_strided_slice %891 {offsets = [1, 0], sizes = [1, 256], strides = [1, 1]} : vector<4x256xf32> to vector<1x256xf32>
    %902 = vector.broadcast %900 : vector<4x1xf32> to vector<4x256xf32>
    %903 = vector.broadcast %901 : vector<1x256xf32> to vector<4x256xf32>
    %904 = arith.mulf %902, %903 : vector<4x256xf32>
    %905 = arith.addf %899, %904 : vector<4x256xf32>
    %906 = vector.extract_strided_slice %893 {offsets = [0, 2], sizes = [4, 1], strides = [1, 1]} : vector<4x4xf32> to vector<4x1xf32>
    %907 = vector.extract_strided_slice %891 {offsets = [2, 0], sizes = [1, 256], strides = [1, 1]} : vector<4x256xf32> to vector<1x256xf32>
    %908 = vector.broadcast %906 : vector<4x1xf32> to vector<4x256xf32>
    %909 = vector.broadcast %907 : vector<1x256xf32> to vector<4x256xf32>
    %910 = arith.mulf %908, %909 : vector<4x256xf32>
    %911 = arith.addf %905, %910 : vector<4x256xf32>
    %912 = vector.extract_strided_slice %893 {offsets = [0, 3], sizes = [4, 1], strides = [1, 1]} : vector<4x4xf32> to vector<4x1xf32>
    %913 = vector.extract_strided_slice %891 {offsets = [3, 0], sizes = [1, 256], strides = [1, 1]} : vector<4x256xf32> to vector<1x256xf32>
    %914 = vector.broadcast %912 : vector<4x1xf32> to vector<4x256xf32>
    %915 = vector.broadcast %913 : vector<1x256xf32> to vector<4x256xf32>
    %916 = arith.mulf %914, %915 : vector<4x256xf32>
    %917 = arith.addf %911, %916 : vector<4x256xf32>
    %cst_64 = arith.constant 0.000000e+00 : f32
    %918 = vector.broadcast %cst_64 : f32 to vector<4x16xf32>
    %919 = vector.extract_strided_slice %859 {offsets = [0, 0], sizes = [4, 240], strides = [1, 1]} : vector<4x256xf32> to vector<4x240xf32>
    %920 = tpu.concatenate %918, %919 in 1 : vector<4x16xf32>, vector<4x240xf32> -> vector<4x256xf32>
    %921 = vector.extract_strided_slice %842 {offsets = [2, 0, 0], sizes = [1, 4, 4], strides = [1, 1, 1]} : vector<9x4x4xf32> to vector<1x4x4xf32>
    %922 = vector.shape_cast %921 : vector<1x4x4xf32> to vector<4x4xf32>
    %923 = vector.extract_strided_slice %922 {offsets = [0, 0], sizes = [4, 1], strides = [1, 1]} : vector<4x4xf32> to vector<4x1xf32>
    %924 = vector.extract_strided_slice %920 {offsets = [0, 0], sizes = [1, 256], strides = [1, 1]} : vector<4x256xf32> to vector<1x256xf32>
    %925 = vector.broadcast %923 : vector<4x1xf32> to vector<4x256xf32>
    %926 = vector.broadcast %924 : vector<1x256xf32> to vector<4x256xf32>
    %927 = arith.mulf %925, %926 : vector<4x256xf32>
    %928 = arith.addf %917, %927 : vector<4x256xf32>
    %929 = vector.extract_strided_slice %922 {offsets = [0, 1], sizes = [4, 1], strides = [1, 1]} : vector<4x4xf32> to vector<4x1xf32>
    %930 = vector.extract_strided_slice %920 {offsets = [1, 0], sizes = [1, 256], strides = [1, 1]} : vector<4x256xf32> to vector<1x256xf32>
    %931 = vector.broadcast %929 : vector<4x1xf32> to vector<4x256xf32>
    %932 = vector.broadcast %930 : vector<1x256xf32> to vector<4x256xf32>
    %933 = arith.mulf %931, %932 : vector<4x256xf32>
    %934 = arith.addf %928, %933 : vector<4x256xf32>
    %935 = vector.extract_strided_slice %922 {offsets = [0, 2], sizes = [4, 1], strides = [1, 1]} : vector<4x4xf32> to vector<4x1xf32>
    %936 = vector.extract_strided_slice %920 {offsets = [2, 0], sizes = [1, 256], strides = [1, 1]} : vector<4x256xf32> to vector<1x256xf32>
    %937 = vector.broadcast %935 : vector<4x1xf32> to vector<4x256xf32>
    %938 = vector.broadcast %936 : vector<1x256xf32> to vector<4x256xf32>
    %939 = arith.mulf %937, %938 : vector<4x256xf32>
    %940 = arith.addf %934, %939 : vector<4x256xf32>
    %941 = vector.extract_strided_slice %922 {offsets = [0, 3], sizes = [4, 1], strides = [1, 1]} : vector<4x4xf32> to vector<4x1xf32>
    %942 = vector.extract_strided_slice %920 {offsets = [3, 0], sizes = [1, 256], strides = [1, 1]} : vector<4x256xf32> to vector<1x256xf32>
    %943 = vector.broadcast %941 : vector<4x1xf32> to vector<4x256xf32>
    %944 = vector.broadcast %942 : vector<1x256xf32> to vector<4x256xf32>
    %945 = arith.mulf %943, %944 : vector<4x256xf32>
    %946 = arith.addf %940, %945 : vector<4x256xf32>
    %947 = vector.extract_strided_slice %842 {offsets = [3, 0, 0], sizes = [1, 4, 4], strides = [1, 1, 1]} : vector<9x4x4xf32> to vector<1x4x4xf32>
    %948 = vector.shape_cast %947 : vector<1x4x4xf32> to vector<4x4xf32>
    %949 = vector.extract_strided_slice %948 {offsets = [0, 0], sizes = [4, 1], strides = [1, 1]} : vector<4x4xf32> to vector<4x1xf32>
    %950 = vector.extract_strided_slice %852 {offsets = [0, 0], sizes = [1, 256], strides = [1, 1]} : vector<4x256xf32> to vector<1x256xf32>
    %951 = vector.broadcast %949 : vector<4x1xf32> to vector<4x256xf32>
    %952 = vector.broadcast %950 : vector<1x256xf32> to vector<4x256xf32>
    %953 = arith.mulf %951, %952 : vector<4x256xf32>
    %954 = arith.addf %946, %953 : vector<4x256xf32>
    %955 = vector.extract_strided_slice %948 {offsets = [0, 1], sizes = [4, 1], strides = [1, 1]} : vector<4x4xf32> to vector<4x1xf32>
    %956 = vector.extract_strided_slice %852 {offsets = [1, 0], sizes = [1, 256], strides = [1, 1]} : vector<4x256xf32> to vector<1x256xf32>
    %957 = vector.broadcast %955 : vector<4x1xf32> to vector<4x256xf32>
    %958 = vector.broadcast %956 : vector<1x256xf32> to vector<4x256xf32>
    %959 = arith.mulf %957, %958 : vector<4x256xf32>
    %960 = arith.addf %954, %959 : vector<4x256xf32>
    %961 = vector.extract_strided_slice %948 {offsets = [0, 2], sizes = [4, 1], strides = [1, 1]} : vector<4x4xf32> to vector<4x1xf32>
    %962 = vector.extract_strided_slice %852 {offsets = [2, 0], sizes = [1, 256], strides = [1, 1]} : vector<4x256xf32> to vector<1x256xf32>
    %963 = vector.broadcast %961 : vector<4x1xf32> to vector<4x256xf32>
    %964 = vector.broadcast %962 : vector<1x256xf32> to vector<4x256xf32>
    %965 = arith.mulf %963, %964 : vector<4x256xf32>
    %966 = arith.addf %960, %965 : vector<4x256xf32>
    %967 = vector.extract_strided_slice %948 {offsets = [0, 3], sizes = [4, 1], strides = [1, 1]} : vector<4x4xf32> to vector<4x1xf32>
    %968 = vector.extract_strided_slice %852 {offsets = [3, 0], sizes = [1, 256], strides = [1, 1]} : vector<4x256xf32> to vector<1x256xf32>
    %969 = vector.broadcast %967 : vector<4x1xf32> to vector<4x256xf32>
    %970 = vector.broadcast %968 : vector<1x256xf32> to vector<4x256xf32>
    %971 = arith.mulf %969, %970 : vector<4x256xf32>
    %972 = arith.addf %966, %971 : vector<4x256xf32>
    %973 = vector.extract_strided_slice %842 {offsets = [4, 0, 0], sizes = [1, 4, 4], strides = [1, 1, 1]} : vector<9x4x4xf32> to vector<1x4x4xf32>
    %974 = vector.shape_cast %973 : vector<1x4x4xf32> to vector<4x4xf32>
    %975 = vector.extract_strided_slice %974 {offsets = [0, 0], sizes = [4, 1], strides = [1, 1]} : vector<4x4xf32> to vector<4x1xf32>
    %976 = vector.extract_strided_slice %840 {offsets = [0, 0], sizes = [1, 256], strides = [1, 1]} : vector<4x256xf32> to vector<1x256xf32>
    %977 = vector.broadcast %975 : vector<4x1xf32> to vector<4x256xf32>
    %978 = vector.broadcast %976 : vector<1x256xf32> to vector<4x256xf32>
    %979 = arith.mulf %977, %978 : vector<4x256xf32>
    %980 = arith.addf %972, %979 : vector<4x256xf32>
    %981 = vector.extract_strided_slice %974 {offsets = [0, 1], sizes = [4, 1], strides = [1, 1]} : vector<4x4xf32> to vector<4x1xf32>
    %982 = vector.extract_strided_slice %840 {offsets = [1, 0], sizes = [1, 256], strides = [1, 1]} : vector<4x256xf32> to vector<1x256xf32>
    %983 = vector.broadcast %981 : vector<4x1xf32> to vector<4x256xf32>
    %984 = vector.broadcast %982 : vector<1x256xf32> to vector<4x256xf32>
    %985 = arith.mulf %983, %984 : vector<4x256xf32>
    %986 = arith.addf %980, %985 : vector<4x256xf32>
    %987 = vector.extract_strided_slice %974 {offsets = [0, 2], sizes = [4, 1], strides = [1, 1]} : vector<4x4xf32> to vector<4x1xf32>
    %988 = vector.extract_strided_slice %840 {offsets = [2, 0], sizes = [1, 256], strides = [1, 1]} : vector<4x256xf32> to vector<1x256xf32>
    %989 = vector.broadcast %987 : vector<4x1xf32> to vector<4x256xf32>
    %990 = vector.broadcast %988 : vector<1x256xf32> to vector<4x256xf32>
    %991 = arith.mulf %989, %990 : vector<4x256xf32>
    %992 = arith.addf %986, %991 : vector<4x256xf32>
    %993 = vector.extract_strided_slice %974 {offsets = [0, 3], sizes = [4, 1], strides = [1, 1]} : vector<4x4xf32> to vector<4x1xf32>
    %994 = vector.extract_strided_slice %840 {offsets = [3, 0], sizes = [1, 256], strides = [1, 1]} : vector<4x256xf32> to vector<1x256xf32>
    %995 = vector.broadcast %993 : vector<4x1xf32> to vector<4x256xf32>
    %996 = vector.broadcast %994 : vector<1x256xf32> to vector<4x256xf32>
    %997 = arith.mulf %995, %996 : vector<4x256xf32>
    %998 = arith.addf %992, %997 : vector<4x256xf32>
    %999 = vector.extract_strided_slice %842 {offsets = [5, 0, 0], sizes = [1, 4, 4], strides = [1, 1, 1]} : vector<9x4x4xf32> to vector<1x4x4xf32>
    %1000 = vector.shape_cast %999 : vector<1x4x4xf32> to vector<4x4xf32>
    %1001 = vector.extract_strided_slice %1000 {offsets = [0, 0], sizes = [4, 1], strides = [1, 1]} : vector<4x4xf32> to vector<4x1xf32>
    %1002 = vector.extract_strided_slice %859 {offsets = [0, 0], sizes = [1, 256], strides = [1, 1]} : vector<4x256xf32> to vector<1x256xf32>
    %1003 = vector.broadcast %1001 : vector<4x1xf32> to vector<4x256xf32>
    %1004 = vector.broadcast %1002 : vector<1x256xf32> to vector<4x256xf32>
    %1005 = arith.mulf %1003, %1004 : vector<4x256xf32>
    %1006 = arith.addf %998, %1005 : vector<4x256xf32>
    %1007 = vector.extract_strided_slice %1000 {offsets = [0, 1], sizes = [4, 1], strides = [1, 1]} : vector<4x4xf32> to vector<4x1xf32>
    %1008 = vector.extract_strided_slice %859 {offsets = [1, 0], sizes = [1, 256], strides = [1, 1]} : vector<4x256xf32> to vector<1x256xf32>
    %1009 = vector.broadcast %1007 : vector<4x1xf32> to vector<4x256xf32>
    %1010 = vector.broadcast %1008 : vector<1x256xf32> to vector<4x256xf32>
    %1011 = arith.mulf %1009, %1010 : vector<4x256xf32>
    %1012 = arith.addf %1006, %1011 : vector<4x256xf32>
    %1013 = vector.extract_strided_slice %1000 {offsets = [0, 2], sizes = [4, 1], strides = [1, 1]} : vector<4x4xf32> to vector<4x1xf32>
    %1014 = vector.extract_strided_slice %859 {offsets = [2, 0], sizes = [1, 256], strides = [1, 1]} : vector<4x256xf32> to vector<1x256xf32>
    %1015 = vector.broadcast %1013 : vector<4x1xf32> to vector<4x256xf32>
    %1016 = vector.broadcast %1014 : vector<1x256xf32> to vector<4x256xf32>
    %1017 = arith.mulf %1015, %1016 : vector<4x256xf32>
    %1018 = arith.addf %1012, %1017 : vector<4x256xf32>
    %1019 = vector.extract_strided_slice %1000 {offsets = [0, 3], sizes = [4, 1], strides = [1, 1]} : vector<4x4xf32> to vector<4x1xf32>
    %1020 = vector.extract_strided_slice %859 {offsets = [3, 0], sizes = [1, 256], strides = [1, 1]} : vector<4x256xf32> to vector<1x256xf32>
    %1021 = vector.broadcast %1019 : vector<4x1xf32> to vector<4x256xf32>
    %1022 = vector.broadcast %1020 : vector<1x256xf32> to vector<4x256xf32>
    %1023 = arith.mulf %1021, %1022 : vector<4x256xf32>
    %1024 = arith.addf %1018, %1023 : vector<4x256xf32>
    %1025 = vector.extract_strided_slice %852 {offsets = [0, 16], sizes = [4, 240], strides = [1, 1]} : vector<4x256xf32> to vector<4x240xf32>
    %cst_65 = arith.constant 0.000000e+00 : f32
    %1026 = vector.broadcast %cst_65 : f32 to vector<4x16xf32>
    %1027 = tpu.concatenate %1025, %1026 in 1 : vector<4x240xf32>, vector<4x16xf32> -> vector<4x256xf32>
    %1028 = vector.extract_strided_slice %842 {offsets = [6, 0, 0], sizes = [1, 4, 4], strides = [1, 1, 1]} : vector<9x4x4xf32> to vector<1x4x4xf32>
    %1029 = vector.shape_cast %1028 : vector<1x4x4xf32> to vector<4x4xf32>
    %1030 = vector.extract_strided_slice %1029 {offsets = [0, 0], sizes = [4, 1], strides = [1, 1]} : vector<4x4xf32> to vector<4x1xf32>
    %1031 = vector.extract_strided_slice %1027 {offsets = [0, 0], sizes = [1, 256], strides = [1, 1]} : vector<4x256xf32> to vector<1x256xf32>
    %1032 = vector.broadcast %1030 : vector<4x1xf32> to vector<4x256xf32>
    %1033 = vector.broadcast %1031 : vector<1x256xf32> to vector<4x256xf32>
    %1034 = arith.mulf %1032, %1033 : vector<4x256xf32>
    %1035 = arith.addf %1024, %1034 : vector<4x256xf32>
    %1036 = vector.extract_strided_slice %1029 {offsets = [0, 1], sizes = [4, 1], strides = [1, 1]} : vector<4x4xf32> to vector<4x1xf32>
    %1037 = vector.extract_strided_slice %1027 {offsets = [1, 0], sizes = [1, 256], strides = [1, 1]} : vector<4x256xf32> to vector<1x256xf32>
    %1038 = vector.broadcast %1036 : vector<4x1xf32> to vector<4x256xf32>
    %1039 = vector.broadcast %1037 : vector<1x256xf32> to vector<4x256xf32>
    %1040 = arith.mulf %1038, %1039 : vector<4x256xf32>
    %1041 = arith.addf %1035, %1040 : vector<4x256xf32>
    %1042 = vector.extract_strided_slice %1029 {offsets = [0, 2], sizes = [4, 1], strides = [1, 1]} : vector<4x4xf32> to vector<4x1xf32>
    %1043 = vector.extract_strided_slice %1027 {offsets = [2, 0], sizes = [1, 256], strides = [1, 1]} : vector<4x256xf32> to vector<1x256xf32>
    %1044 = vector.broadcast %1042 : vector<4x1xf32> to vector<4x256xf32>
    %1045 = vector.broadcast %1043 : vector<1x256xf32> to vector<4x256xf32>
    %1046 = arith.mulf %1044, %1045 : vector<4x256xf32>
    %1047 = arith.addf %1041, %1046 : vector<4x256xf32>
    %1048 = vector.extract_strided_slice %1029 {offsets = [0, 3], sizes = [4, 1], strides = [1, 1]} : vector<4x4xf32> to vector<4x1xf32>
    %1049 = vector.extract_strided_slice %1027 {offsets = [3, 0], sizes = [1, 256], strides = [1, 1]} : vector<4x256xf32> to vector<1x256xf32>
    %1050 = vector.broadcast %1048 : vector<4x1xf32> to vector<4x256xf32>
    %1051 = vector.broadcast %1049 : vector<1x256xf32> to vector<4x256xf32>
    %1052 = arith.mulf %1050, %1051 : vector<4x256xf32>
    %1053 = arith.addf %1047, %1052 : vector<4x256xf32>
    %1054 = vector.extract_strided_slice %840 {offsets = [0, 16], sizes = [4, 240], strides = [1, 1]} : vector<4x256xf32> to vector<4x240xf32>
    %cst_66 = arith.constant 0.000000e+00 : f32
    %1055 = vector.broadcast %cst_66 : f32 to vector<4x16xf32>
    %1056 = tpu.concatenate %1054, %1055 in 1 : vector<4x240xf32>, vector<4x16xf32> -> vector<4x256xf32>
    %1057 = vector.extract_strided_slice %842 {offsets = [7, 0, 0], sizes = [1, 4, 4], strides = [1, 1, 1]} : vector<9x4x4xf32> to vector<1x4x4xf32>
    %1058 = vector.shape_cast %1057 : vector<1x4x4xf32> to vector<4x4xf32>
    %1059 = vector.extract_strided_slice %1058 {offsets = [0, 0], sizes = [4, 1], strides = [1, 1]} : vector<4x4xf32> to vector<4x1xf32>
    %1060 = vector.extract_strided_slice %1056 {offsets = [0, 0], sizes = [1, 256], strides = [1, 1]} : vector<4x256xf32> to vector<1x256xf32>
    %1061 = vector.broadcast %1059 : vector<4x1xf32> to vector<4x256xf32>
    %1062 = vector.broadcast %1060 : vector<1x256xf32> to vector<4x256xf32>
    %1063 = arith.mulf %1061, %1062 : vector<4x256xf32>
    %1064 = arith.addf %1053, %1063 : vector<4x256xf32>
    %1065 = vector.extract_strided_slice %1058 {offsets = [0, 1], sizes = [4, 1], strides = [1, 1]} : vector<4x4xf32> to vector<4x1xf32>
    %1066 = vector.extract_strided_slice %1056 {offsets = [1, 0], sizes = [1, 256], strides = [1, 1]} : vector<4x256xf32> to vector<1x256xf32>
    %1067 = vector.broadcast %1065 : vector<4x1xf32> to vector<4x256xf32>
    %1068 = vector.broadcast %1066 : vector<1x256xf32> to vector<4x256xf32>
    %1069 = arith.mulf %1067, %1068 : vector<4x256xf32>
    %1070 = arith.addf %1064, %1069 : vector<4x256xf32>
    %1071 = vector.extract_strided_slice %1058 {offsets = [0, 2], sizes = [4, 1], strides = [1, 1]} : vector<4x4xf32> to vector<4x1xf32>
    %1072 = vector.extract_strided_slice %1056 {offsets = [2, 0], sizes = [1, 256], strides = [1, 1]} : vector<4x256xf32> to vector<1x256xf32>
    %1073 = vector.broadcast %1071 : vector<4x1xf32> to vector<4x256xf32>
    %1074 = vector.broadcast %1072 : vector<1x256xf32> to vector<4x256xf32>
    %1075 = arith.mulf %1073, %1074 : vector<4x256xf32>
    %1076 = arith.addf %1070, %1075 : vector<4x256xf32>
    %1077 = vector.extract_strided_slice %1058 {offsets = [0, 3], sizes = [4, 1], strides = [1, 1]} : vector<4x4xf32> to vector<4x1xf32>
    %1078 = vector.extract_strided_slice %1056 {offsets = [3, 0], sizes = [1, 256], strides = [1, 1]} : vector<4x256xf32> to vector<1x256xf32>
    %1079 = vector.broadcast %1077 : vector<4x1xf32> to vector<4x256xf32>
    %1080 = vector.broadcast %1078 : vector<1x256xf32> to vector<4x256xf32>
    %1081 = arith.mulf %1079, %1080 : vector<4x256xf32>
    %1082 = arith.addf %1076, %1081 : vector<4x256xf32>
    %1083 = vector.extract_strided_slice %859 {offsets = [0, 16], sizes = [4, 240], strides = [1, 1]} : vector<4x256xf32> to vector<4x240xf32>
    %cst_67 = arith.constant 0.000000e+00 : f32
    %1084 = vector.broadcast %cst_67 : f32 to vector<4x16xf32>
    %1085 = tpu.concatenate %1083, %1084 in 1 : vector<4x240xf32>, vector<4x16xf32> -> vector<4x256xf32>
    %1086 = vector.extract_strided_slice %842 {offsets = [8, 0, 0], sizes = [1, 4, 4], strides = [1, 1, 1]} : vector<9x4x4xf32> to vector<1x4x4xf32>
    %1087 = vector.shape_cast %1086 : vector<1x4x4xf32> to vector<4x4xf32>
    %1088 = vector.extract_strided_slice %1087 {offsets = [0, 0], sizes = [4, 1], strides = [1, 1]} : vector<4x4xf32> to vector<4x1xf32>
    %1089 = vector.extract_strided_slice %1085 {offsets = [0, 0], sizes = [1, 256], strides = [1, 1]} : vector<4x256xf32> to vector<1x256xf32>
    %1090 = vector.broadcast %1088 : vector<4x1xf32> to vector<4x256xf32>
    %1091 = vector.broadcast %1089 : vector<1x256xf32> to vector<4x256xf32>
    %1092 = arith.mulf %1090, %1091 : vector<4x256xf32>
    %1093 = arith.addf %1082, %1092 : vector<4x256xf32>
    %1094 = vector.extract_strided_slice %1087 {offsets = [0, 1], sizes = [4, 1], strides = [1, 1]} : vector<4x4xf32> to vector<4x1xf32>
    %1095 = vector.extract_strided_slice %1085 {offsets = [1, 0], sizes = [1, 256], strides = [1, 1]} : vector<4x256xf32> to vector<1x256xf32>
    %1096 = vector.broadcast %1094 : vector<4x1xf32> to vector<4x256xf32>
    %1097 = vector.broadcast %1095 : vector<1x256xf32> to vector<4x256xf32>
    %1098 = arith.mulf %1096, %1097 : vector<4x256xf32>
    %1099 = arith.addf %1093, %1098 : vector<4x256xf32>
    %1100 = vector.extract_strided_slice %1087 {offsets = [0, 2], sizes = [4, 1], strides = [1, 1]} : vector<4x4xf32> to vector<4x1xf32>
    %1101 = vector.extract_strided_slice %1085 {offsets = [2, 0], sizes = [1, 256], strides = [1, 1]} : vector<4x256xf32> to vector<1x256xf32>
    %1102 = vector.broadcast %1100 : vector<4x1xf32> to vector<4x256xf32>
    %1103 = vector.broadcast %1101 : vector<1x256xf32> to vector<4x256xf32>
    %1104 = arith.mulf %1102, %1103 : vector<4x256xf32>
    %1105 = arith.addf %1099, %1104 : vector<4x256xf32>
    %1106 = vector.extract_strided_slice %1087 {offsets = [0, 3], sizes = [4, 1], strides = [1, 1]} : vector<4x4xf32> to vector<4x1xf32>
    %1107 = vector.extract_strided_slice %1085 {offsets = [3, 0], sizes = [1, 256], strides = [1, 1]} : vector<4x256xf32> to vector<1x256xf32>
    %1108 = vector.broadcast %1106 : vector<4x1xf32> to vector<4x256xf32>
    %1109 = vector.broadcast %1107 : vector<1x256xf32> to vector<4x256xf32>
    %1110 = arith.mulf %1108, %1109 : vector<4x256xf32>
    %1111 = arith.addf %1105, %1110 : vector<4x256xf32>
    %cst_68 = arith.constant 0.000000e+00 : f32
    %1112 = vector.broadcast %cst_68 : f32 to vector<4x256xf32>
    %1113 = arith.maximumf %1111, %1112 : vector<4x256xf32>
    %c0_69 = arith.constant 0 : index
    %c0_70 = arith.constant 0 : index
    %c0_71 = arith.constant 0 : index
    %c0_72 = arith.constant 0 : index
    %1114 = vector.load %arg4[%c0_69, %c0_70, %c0_71, %c0_72] : memref<2x9x4x4xf32, #tpu.memory_space<vmem>>, vector<1x9x4x4xf32>
    %1115 = vector.shape_cast %1114 : vector<1x9x4x4xf32> to vector<9x4x4xf32>
    %c1_73 = arith.constant 1 : index
    %c0_74 = arith.constant 0 : index
    %c0_75 = arith.constant 0 : index
    %c0_76 = arith.constant 0 : index
    %1116 = vector.load %arg4[%c1_73, %c0_74, %c0_75, %c0_76] : memref<2x9x4x4xf32, #tpu.memory_space<vmem>>, vector<1x9x4x4xf32>
    %1117 = vector.shape_cast %1116 : vector<1x9x4x4xf32> to vector<9x4x4xf32>
    %c0_77 = arith.constant 0 : index
    %c4 = arith.constant 4 : index
    %1118 = vector.load %arg6[%c0_77, %c4] : memref<4x7xf32, #tpu.memory_space<vmem>>, vector<4x1xf32>
    %1119 = vector.shape_cast %1118 : vector<4x1xf32> to vector<4x1xf32>
    %1120 = vector.broadcast %1119 : vector<4x1xf32> to vector<4x256xf32>
    %cst_78 = arith.constant 0.000000e+00 : f32
    %1121 = vector.broadcast %cst_78 : f32 to vector<4x1xf32>
    %1122 = vector.extract_strided_slice %1113 {offsets = [0, 0], sizes = [4, 255], strides = [1, 1]} : vector<4x256xf32> to vector<4x255xf32>
    %1123 = tpu.concatenate %1121, %1122 in 1 : vector<4x1xf32>, vector<4x255xf32> -> vector<4x256xf32>
    %cst_79 = arith.constant 0.000000e+00 : f32
    %1124 = vector.shape_cast %18 : vector<1x256xi1> to vector<1x256xi1>
    %1125 = vector.broadcast %1124 : vector<1x256xi1> to vector<4x256xi1>
    %1126 = vector.broadcast %cst_79 : f32 to vector<4x256xf32>
    %1127 = arith.select %1125, %1126, %1123 : vector<4x256xi1>, vector<4x256xf32>
    %1128 = vector.extract_strided_slice %1113 {offsets = [0, 1], sizes = [4, 255], strides = [1, 1]} : vector<4x256xf32> to vector<4x255xf32>
    %cst_80 = arith.constant 0.000000e+00 : f32
    %1129 = vector.broadcast %cst_80 : f32 to vector<4x1xf32>
    %1130 = tpu.concatenate %1128, %1129 in 1 : vector<4x255xf32>, vector<4x1xf32> -> vector<4x256xf32>
    %cst_81 = arith.constant 0.000000e+00 : f32
    %1131 = vector.shape_cast %20 : vector<1x256xi1> to vector<1x256xi1>
    %1132 = vector.broadcast %1131 : vector<1x256xi1> to vector<4x256xi1>
    %1133 = vector.broadcast %cst_81 : f32 to vector<4x256xf32>
    %1134 = arith.select %1132, %1133, %1130 : vector<4x256xi1>, vector<4x256xf32>
    %cst_82 = arith.constant 0.000000e+00 : f32
    %1135 = vector.broadcast %cst_82 : f32 to vector<4x16xf32>
    %1136 = vector.extract_strided_slice %1127 {offsets = [0, 0], sizes = [4, 240], strides = [1, 1]} : vector<4x256xf32> to vector<4x240xf32>
    %1137 = tpu.concatenate %1135, %1136 in 1 : vector<4x16xf32>, vector<4x240xf32> -> vector<4x256xf32>
    %1138 = vector.extract_strided_slice %1115 {offsets = [0, 0, 0], sizes = [1, 4, 4], strides = [1, 1, 1]} : vector<9x4x4xf32> to vector<1x4x4xf32>
    %1139 = vector.shape_cast %1138 : vector<1x4x4xf32> to vector<4x4xf32>
    %1140 = vector.extract_strided_slice %1139 {offsets = [0, 0], sizes = [4, 1], strides = [1, 1]} : vector<4x4xf32> to vector<4x1xf32>
    %1141 = vector.extract_strided_slice %1137 {offsets = [0, 0], sizes = [1, 256], strides = [1, 1]} : vector<4x256xf32> to vector<1x256xf32>
    %1142 = vector.broadcast %1140 : vector<4x1xf32> to vector<4x256xf32>
    %1143 = vector.broadcast %1141 : vector<1x256xf32> to vector<4x256xf32>
    %1144 = arith.mulf %1142, %1143 : vector<4x256xf32>
    %1145 = arith.addf %1120, %1144 : vector<4x256xf32>
    %1146 = vector.extract_strided_slice %1139 {offsets = [0, 1], sizes = [4, 1], strides = [1, 1]} : vector<4x4xf32> to vector<4x1xf32>
    %1147 = vector.extract_strided_slice %1137 {offsets = [1, 0], sizes = [1, 256], strides = [1, 1]} : vector<4x256xf32> to vector<1x256xf32>
    %1148 = vector.broadcast %1146 : vector<4x1xf32> to vector<4x256xf32>
    %1149 = vector.broadcast %1147 : vector<1x256xf32> to vector<4x256xf32>
    %1150 = arith.mulf %1148, %1149 : vector<4x256xf32>
    %1151 = arith.addf %1145, %1150 : vector<4x256xf32>
    %1152 = vector.extract_strided_slice %1139 {offsets = [0, 2], sizes = [4, 1], strides = [1, 1]} : vector<4x4xf32> to vector<4x1xf32>
    %1153 = vector.extract_strided_slice %1137 {offsets = [2, 0], sizes = [1, 256], strides = [1, 1]} : vector<4x256xf32> to vector<1x256xf32>
    %1154 = vector.broadcast %1152 : vector<4x1xf32> to vector<4x256xf32>
    %1155 = vector.broadcast %1153 : vector<1x256xf32> to vector<4x256xf32>
    %1156 = arith.mulf %1154, %1155 : vector<4x256xf32>
    %1157 = arith.addf %1151, %1156 : vector<4x256xf32>
    %1158 = vector.extract_strided_slice %1139 {offsets = [0, 3], sizes = [4, 1], strides = [1, 1]} : vector<4x4xf32> to vector<4x1xf32>
    %1159 = vector.extract_strided_slice %1137 {offsets = [3, 0], sizes = [1, 256], strides = [1, 1]} : vector<4x256xf32> to vector<1x256xf32>
    %1160 = vector.broadcast %1158 : vector<4x1xf32> to vector<4x256xf32>
    %1161 = vector.broadcast %1159 : vector<1x256xf32> to vector<4x256xf32>
    %1162 = arith.mulf %1160, %1161 : vector<4x256xf32>
    %1163 = arith.addf %1157, %1162 : vector<4x256xf32>
    %cst_83 = arith.constant 0.000000e+00 : f32
    %1164 = vector.broadcast %cst_83 : f32 to vector<4x16xf32>
    %1165 = vector.extract_strided_slice %1113 {offsets = [0, 0], sizes = [4, 240], strides = [1, 1]} : vector<4x256xf32> to vector<4x240xf32>
    %1166 = tpu.concatenate %1164, %1165 in 1 : vector<4x16xf32>, vector<4x240xf32> -> vector<4x256xf32>
    %1167 = vector.extract_strided_slice %1115 {offsets = [1, 0, 0], sizes = [1, 4, 4], strides = [1, 1, 1]} : vector<9x4x4xf32> to vector<1x4x4xf32>
    %1168 = vector.shape_cast %1167 : vector<1x4x4xf32> to vector<4x4xf32>
    %1169 = vector.extract_strided_slice %1168 {offsets = [0, 0], sizes = [4, 1], strides = [1, 1]} : vector<4x4xf32> to vector<4x1xf32>
    %1170 = vector.extract_strided_slice %1166 {offsets = [0, 0], sizes = [1, 256], strides = [1, 1]} : vector<4x256xf32> to vector<1x256xf32>
    %1171 = vector.broadcast %1169 : vector<4x1xf32> to vector<4x256xf32>
    %1172 = vector.broadcast %1170 : vector<1x256xf32> to vector<4x256xf32>
    %1173 = arith.mulf %1171, %1172 : vector<4x256xf32>
    %1174 = arith.addf %1163, %1173 : vector<4x256xf32>
    %1175 = vector.extract_strided_slice %1168 {offsets = [0, 1], sizes = [4, 1], strides = [1, 1]} : vector<4x4xf32> to vector<4x1xf32>
    %1176 = vector.extract_strided_slice %1166 {offsets = [1, 0], sizes = [1, 256], strides = [1, 1]} : vector<4x256xf32> to vector<1x256xf32>
    %1177 = vector.broadcast %1175 : vector<4x1xf32> to vector<4x256xf32>
    %1178 = vector.broadcast %1176 : vector<1x256xf32> to vector<4x256xf32>
    %1179 = arith.mulf %1177, %1178 : vector<4x256xf32>
    %1180 = arith.addf %1174, %1179 : vector<4x256xf32>
    %1181 = vector.extract_strided_slice %1168 {offsets = [0, 2], sizes = [4, 1], strides = [1, 1]} : vector<4x4xf32> to vector<4x1xf32>
    %1182 = vector.extract_strided_slice %1166 {offsets = [2, 0], sizes = [1, 256], strides = [1, 1]} : vector<4x256xf32> to vector<1x256xf32>
    %1183 = vector.broadcast %1181 : vector<4x1xf32> to vector<4x256xf32>
    %1184 = vector.broadcast %1182 : vector<1x256xf32> to vector<4x256xf32>
    %1185 = arith.mulf %1183, %1184 : vector<4x256xf32>
    %1186 = arith.addf %1180, %1185 : vector<4x256xf32>
    %1187 = vector.extract_strided_slice %1168 {offsets = [0, 3], sizes = [4, 1], strides = [1, 1]} : vector<4x4xf32> to vector<4x1xf32>
    %1188 = vector.extract_strided_slice %1166 {offsets = [3, 0], sizes = [1, 256], strides = [1, 1]} : vector<4x256xf32> to vector<1x256xf32>
    %1189 = vector.broadcast %1187 : vector<4x1xf32> to vector<4x256xf32>
    %1190 = vector.broadcast %1188 : vector<1x256xf32> to vector<4x256xf32>
    %1191 = arith.mulf %1189, %1190 : vector<4x256xf32>
    %1192 = arith.addf %1186, %1191 : vector<4x256xf32>
    %cst_84 = arith.constant 0.000000e+00 : f32
    %1193 = vector.broadcast %cst_84 : f32 to vector<4x16xf32>
    %1194 = vector.extract_strided_slice %1134 {offsets = [0, 0], sizes = [4, 240], strides = [1, 1]} : vector<4x256xf32> to vector<4x240xf32>
    %1195 = tpu.concatenate %1193, %1194 in 1 : vector<4x16xf32>, vector<4x240xf32> -> vector<4x256xf32>
    %1196 = vector.extract_strided_slice %1115 {offsets = [2, 0, 0], sizes = [1, 4, 4], strides = [1, 1, 1]} : vector<9x4x4xf32> to vector<1x4x4xf32>
    %1197 = vector.shape_cast %1196 : vector<1x4x4xf32> to vector<4x4xf32>
    %1198 = vector.extract_strided_slice %1197 {offsets = [0, 0], sizes = [4, 1], strides = [1, 1]} : vector<4x4xf32> to vector<4x1xf32>
    %1199 = vector.extract_strided_slice %1195 {offsets = [0, 0], sizes = [1, 256], strides = [1, 1]} : vector<4x256xf32> to vector<1x256xf32>
    %1200 = vector.broadcast %1198 : vector<4x1xf32> to vector<4x256xf32>
    %1201 = vector.broadcast %1199 : vector<1x256xf32> to vector<4x256xf32>
    %1202 = arith.mulf %1200, %1201 : vector<4x256xf32>
    %1203 = arith.addf %1192, %1202 : vector<4x256xf32>
    %1204 = vector.extract_strided_slice %1197 {offsets = [0, 1], sizes = [4, 1], strides = [1, 1]} : vector<4x4xf32> to vector<4x1xf32>
    %1205 = vector.extract_strided_slice %1195 {offsets = [1, 0], sizes = [1, 256], strides = [1, 1]} : vector<4x256xf32> to vector<1x256xf32>
    %1206 = vector.broadcast %1204 : vector<4x1xf32> to vector<4x256xf32>
    %1207 = vector.broadcast %1205 : vector<1x256xf32> to vector<4x256xf32>
    %1208 = arith.mulf %1206, %1207 : vector<4x256xf32>
    %1209 = arith.addf %1203, %1208 : vector<4x256xf32>
    %1210 = vector.extract_strided_slice %1197 {offsets = [0, 2], sizes = [4, 1], strides = [1, 1]} : vector<4x4xf32> to vector<4x1xf32>
    %1211 = vector.extract_strided_slice %1195 {offsets = [2, 0], sizes = [1, 256], strides = [1, 1]} : vector<4x256xf32> to vector<1x256xf32>
    %1212 = vector.broadcast %1210 : vector<4x1xf32> to vector<4x256xf32>
    %1213 = vector.broadcast %1211 : vector<1x256xf32> to vector<4x256xf32>
    %1214 = arith.mulf %1212, %1213 : vector<4x256xf32>
    %1215 = arith.addf %1209, %1214 : vector<4x256xf32>
    %1216 = vector.extract_strided_slice %1197 {offsets = [0, 3], sizes = [4, 1], strides = [1, 1]} : vector<4x4xf32> to vector<4x1xf32>
    %1217 = vector.extract_strided_slice %1195 {offsets = [3, 0], sizes = [1, 256], strides = [1, 1]} : vector<4x256xf32> to vector<1x256xf32>
    %1218 = vector.broadcast %1216 : vector<4x1xf32> to vector<4x256xf32>
    %1219 = vector.broadcast %1217 : vector<1x256xf32> to vector<4x256xf32>
    %1220 = arith.mulf %1218, %1219 : vector<4x256xf32>
    %1221 = arith.addf %1215, %1220 : vector<4x256xf32>
    %1222 = vector.extract_strided_slice %1115 {offsets = [3, 0, 0], sizes = [1, 4, 4], strides = [1, 1, 1]} : vector<9x4x4xf32> to vector<1x4x4xf32>
    %1223 = vector.shape_cast %1222 : vector<1x4x4xf32> to vector<4x4xf32>
    %1224 = vector.extract_strided_slice %1223 {offsets = [0, 0], sizes = [4, 1], strides = [1, 1]} : vector<4x4xf32> to vector<4x1xf32>
    %1225 = vector.extract_strided_slice %1127 {offsets = [0, 0], sizes = [1, 256], strides = [1, 1]} : vector<4x256xf32> to vector<1x256xf32>
    %1226 = vector.broadcast %1224 : vector<4x1xf32> to vector<4x256xf32>
    %1227 = vector.broadcast %1225 : vector<1x256xf32> to vector<4x256xf32>
    %1228 = arith.mulf %1226, %1227 : vector<4x256xf32>
    %1229 = arith.addf %1221, %1228 : vector<4x256xf32>
    %1230 = vector.extract_strided_slice %1223 {offsets = [0, 1], sizes = [4, 1], strides = [1, 1]} : vector<4x4xf32> to vector<4x1xf32>
    %1231 = vector.extract_strided_slice %1127 {offsets = [1, 0], sizes = [1, 256], strides = [1, 1]} : vector<4x256xf32> to vector<1x256xf32>
    %1232 = vector.broadcast %1230 : vector<4x1xf32> to vector<4x256xf32>
    %1233 = vector.broadcast %1231 : vector<1x256xf32> to vector<4x256xf32>
    %1234 = arith.mulf %1232, %1233 : vector<4x256xf32>
    %1235 = arith.addf %1229, %1234 : vector<4x256xf32>
    %1236 = vector.extract_strided_slice %1223 {offsets = [0, 2], sizes = [4, 1], strides = [1, 1]} : vector<4x4xf32> to vector<4x1xf32>
    %1237 = vector.extract_strided_slice %1127 {offsets = [2, 0], sizes = [1, 256], strides = [1, 1]} : vector<4x256xf32> to vector<1x256xf32>
    %1238 = vector.broadcast %1236 : vector<4x1xf32> to vector<4x256xf32>
    %1239 = vector.broadcast %1237 : vector<1x256xf32> to vector<4x256xf32>
    %1240 = arith.mulf %1238, %1239 : vector<4x256xf32>
    %1241 = arith.addf %1235, %1240 : vector<4x256xf32>
    %1242 = vector.extract_strided_slice %1223 {offsets = [0, 3], sizes = [4, 1], strides = [1, 1]} : vector<4x4xf32> to vector<4x1xf32>
    %1243 = vector.extract_strided_slice %1127 {offsets = [3, 0], sizes = [1, 256], strides = [1, 1]} : vector<4x256xf32> to vector<1x256xf32>
    %1244 = vector.broadcast %1242 : vector<4x1xf32> to vector<4x256xf32>
    %1245 = vector.broadcast %1243 : vector<1x256xf32> to vector<4x256xf32>
    %1246 = arith.mulf %1244, %1245 : vector<4x256xf32>
    %1247 = arith.addf %1241, %1246 : vector<4x256xf32>
    %1248 = vector.extract_strided_slice %1115 {offsets = [4, 0, 0], sizes = [1, 4, 4], strides = [1, 1, 1]} : vector<9x4x4xf32> to vector<1x4x4xf32>
    %1249 = vector.shape_cast %1248 : vector<1x4x4xf32> to vector<4x4xf32>
    %1250 = vector.extract_strided_slice %1249 {offsets = [0, 0], sizes = [4, 1], strides = [1, 1]} : vector<4x4xf32> to vector<4x1xf32>
    %1251 = vector.extract_strided_slice %1113 {offsets = [0, 0], sizes = [1, 256], strides = [1, 1]} : vector<4x256xf32> to vector<1x256xf32>
    %1252 = vector.broadcast %1250 : vector<4x1xf32> to vector<4x256xf32>
    %1253 = vector.broadcast %1251 : vector<1x256xf32> to vector<4x256xf32>
    %1254 = arith.mulf %1252, %1253 : vector<4x256xf32>
    %1255 = arith.addf %1247, %1254 : vector<4x256xf32>
    %1256 = vector.extract_strided_slice %1249 {offsets = [0, 1], sizes = [4, 1], strides = [1, 1]} : vector<4x4xf32> to vector<4x1xf32>
    %1257 = vector.extract_strided_slice %1113 {offsets = [1, 0], sizes = [1, 256], strides = [1, 1]} : vector<4x256xf32> to vector<1x256xf32>
    %1258 = vector.broadcast %1256 : vector<4x1xf32> to vector<4x256xf32>
    %1259 = vector.broadcast %1257 : vector<1x256xf32> to vector<4x256xf32>
    %1260 = arith.mulf %1258, %1259 : vector<4x256xf32>
    %1261 = arith.addf %1255, %1260 : vector<4x256xf32>
    %1262 = vector.extract_strided_slice %1249 {offsets = [0, 2], sizes = [4, 1], strides = [1, 1]} : vector<4x4xf32> to vector<4x1xf32>
    %1263 = vector.extract_strided_slice %1113 {offsets = [2, 0], sizes = [1, 256], strides = [1, 1]} : vector<4x256xf32> to vector<1x256xf32>
    %1264 = vector.broadcast %1262 : vector<4x1xf32> to vector<4x256xf32>
    %1265 = vector.broadcast %1263 : vector<1x256xf32> to vector<4x256xf32>
    %1266 = arith.mulf %1264, %1265 : vector<4x256xf32>
    %1267 = arith.addf %1261, %1266 : vector<4x256xf32>
    %1268 = vector.extract_strided_slice %1249 {offsets = [0, 3], sizes = [4, 1], strides = [1, 1]} : vector<4x4xf32> to vector<4x1xf32>
    %1269 = vector.extract_strided_slice %1113 {offsets = [3, 0], sizes = [1, 256], strides = [1, 1]} : vector<4x256xf32> to vector<1x256xf32>
    %1270 = vector.broadcast %1268 : vector<4x1xf32> to vector<4x256xf32>
    %1271 = vector.broadcast %1269 : vector<1x256xf32> to vector<4x256xf32>
    %1272 = arith.mulf %1270, %1271 : vector<4x256xf32>
    %1273 = arith.addf %1267, %1272 : vector<4x256xf32>
    %1274 = vector.extract_strided_slice %1115 {offsets = [5, 0, 0], sizes = [1, 4, 4], strides = [1, 1, 1]} : vector<9x4x4xf32> to vector<1x4x4xf32>
    %1275 = vector.shape_cast %1274 : vector<1x4x4xf32> to vector<4x4xf32>
    %1276 = vector.extract_strided_slice %1275 {offsets = [0, 0], sizes = [4, 1], strides = [1, 1]} : vector<4x4xf32> to vector<4x1xf32>
    %1277 = vector.extract_strided_slice %1134 {offsets = [0, 0], sizes = [1, 256], strides = [1, 1]} : vector<4x256xf32> to vector<1x256xf32>
    %1278 = vector.broadcast %1276 : vector<4x1xf32> to vector<4x256xf32>
    %1279 = vector.broadcast %1277 : vector<1x256xf32> to vector<4x256xf32>
    %1280 = arith.mulf %1278, %1279 : vector<4x256xf32>
    %1281 = arith.addf %1273, %1280 : vector<4x256xf32>
    %1282 = vector.extract_strided_slice %1275 {offsets = [0, 1], sizes = [4, 1], strides = [1, 1]} : vector<4x4xf32> to vector<4x1xf32>
    %1283 = vector.extract_strided_slice %1134 {offsets = [1, 0], sizes = [1, 256], strides = [1, 1]} : vector<4x256xf32> to vector<1x256xf32>
    %1284 = vector.broadcast %1282 : vector<4x1xf32> to vector<4x256xf32>
    %1285 = vector.broadcast %1283 : vector<1x256xf32> to vector<4x256xf32>
    %1286 = arith.mulf %1284, %1285 : vector<4x256xf32>
    %1287 = arith.addf %1281, %1286 : vector<4x256xf32>
    %1288 = vector.extract_strided_slice %1275 {offsets = [0, 2], sizes = [4, 1], strides = [1, 1]} : vector<4x4xf32> to vector<4x1xf32>
    %1289 = vector.extract_strided_slice %1134 {offsets = [2, 0], sizes = [1, 256], strides = [1, 1]} : vector<4x256xf32> to vector<1x256xf32>
    %1290 = vector.broadcast %1288 : vector<4x1xf32> to vector<4x256xf32>
    %1291 = vector.broadcast %1289 : vector<1x256xf32> to vector<4x256xf32>
    %1292 = arith.mulf %1290, %1291 : vector<4x256xf32>
    %1293 = arith.addf %1287, %1292 : vector<4x256xf32>
    %1294 = vector.extract_strided_slice %1275 {offsets = [0, 3], sizes = [4, 1], strides = [1, 1]} : vector<4x4xf32> to vector<4x1xf32>
    %1295 = vector.extract_strided_slice %1134 {offsets = [3, 0], sizes = [1, 256], strides = [1, 1]} : vector<4x256xf32> to vector<1x256xf32>
    %1296 = vector.broadcast %1294 : vector<4x1xf32> to vector<4x256xf32>
    %1297 = vector.broadcast %1295 : vector<1x256xf32> to vector<4x256xf32>
    %1298 = arith.mulf %1296, %1297 : vector<4x256xf32>
    %1299 = arith.addf %1293, %1298 : vector<4x256xf32>
    %1300 = vector.extract_strided_slice %1127 {offsets = [0, 16], sizes = [4, 240], strides = [1, 1]} : vector<4x256xf32> to vector<4x240xf32>
    %cst_85 = arith.constant 0.000000e+00 : f32
    %1301 = vector.broadcast %cst_85 : f32 to vector<4x16xf32>
    %1302 = tpu.concatenate %1300, %1301 in 1 : vector<4x240xf32>, vector<4x16xf32> -> vector<4x256xf32>
    %1303 = vector.extract_strided_slice %1115 {offsets = [6, 0, 0], sizes = [1, 4, 4], strides = [1, 1, 1]} : vector<9x4x4xf32> to vector<1x4x4xf32>
    %1304 = vector.shape_cast %1303 : vector<1x4x4xf32> to vector<4x4xf32>
    %1305 = vector.extract_strided_slice %1304 {offsets = [0, 0], sizes = [4, 1], strides = [1, 1]} : vector<4x4xf32> to vector<4x1xf32>
    %1306 = vector.extract_strided_slice %1302 {offsets = [0, 0], sizes = [1, 256], strides = [1, 1]} : vector<4x256xf32> to vector<1x256xf32>
    %1307 = vector.broadcast %1305 : vector<4x1xf32> to vector<4x256xf32>
    %1308 = vector.broadcast %1306 : vector<1x256xf32> to vector<4x256xf32>
    %1309 = arith.mulf %1307, %1308 : vector<4x256xf32>
    %1310 = arith.addf %1299, %1309 : vector<4x256xf32>
    %1311 = vector.extract_strided_slice %1304 {offsets = [0, 1], sizes = [4, 1], strides = [1, 1]} : vector<4x4xf32> to vector<4x1xf32>
    %1312 = vector.extract_strided_slice %1302 {offsets = [1, 0], sizes = [1, 256], strides = [1, 1]} : vector<4x256xf32> to vector<1x256xf32>
    %1313 = vector.broadcast %1311 : vector<4x1xf32> to vector<4x256xf32>
    %1314 = vector.broadcast %1312 : vector<1x256xf32> to vector<4x256xf32>
    %1315 = arith.mulf %1313, %1314 : vector<4x256xf32>
    %1316 = arith.addf %1310, %1315 : vector<4x256xf32>
    %1317 = vector.extract_strided_slice %1304 {offsets = [0, 2], sizes = [4, 1], strides = [1, 1]} : vector<4x4xf32> to vector<4x1xf32>
    %1318 = vector.extract_strided_slice %1302 {offsets = [2, 0], sizes = [1, 256], strides = [1, 1]} : vector<4x256xf32> to vector<1x256xf32>
    %1319 = vector.broadcast %1317 : vector<4x1xf32> to vector<4x256xf32>
    %1320 = vector.broadcast %1318 : vector<1x256xf32> to vector<4x256xf32>
    %1321 = arith.mulf %1319, %1320 : vector<4x256xf32>
    %1322 = arith.addf %1316, %1321 : vector<4x256xf32>
    %1323 = vector.extract_strided_slice %1304 {offsets = [0, 3], sizes = [4, 1], strides = [1, 1]} : vector<4x4xf32> to vector<4x1xf32>
    %1324 = vector.extract_strided_slice %1302 {offsets = [3, 0], sizes = [1, 256], strides = [1, 1]} : vector<4x256xf32> to vector<1x256xf32>
    %1325 = vector.broadcast %1323 : vector<4x1xf32> to vector<4x256xf32>
    %1326 = vector.broadcast %1324 : vector<1x256xf32> to vector<4x256xf32>
    %1327 = arith.mulf %1325, %1326 : vector<4x256xf32>
    %1328 = arith.addf %1322, %1327 : vector<4x256xf32>
    %1329 = vector.extract_strided_slice %1113 {offsets = [0, 16], sizes = [4, 240], strides = [1, 1]} : vector<4x256xf32> to vector<4x240xf32>
    %cst_86 = arith.constant 0.000000e+00 : f32
    %1330 = vector.broadcast %cst_86 : f32 to vector<4x16xf32>
    %1331 = tpu.concatenate %1329, %1330 in 1 : vector<4x240xf32>, vector<4x16xf32> -> vector<4x256xf32>
    %1332 = vector.extract_strided_slice %1115 {offsets = [7, 0, 0], sizes = [1, 4, 4], strides = [1, 1, 1]} : vector<9x4x4xf32> to vector<1x4x4xf32>
    %1333 = vector.shape_cast %1332 : vector<1x4x4xf32> to vector<4x4xf32>
    %1334 = vector.extract_strided_slice %1333 {offsets = [0, 0], sizes = [4, 1], strides = [1, 1]} : vector<4x4xf32> to vector<4x1xf32>
    %1335 = vector.extract_strided_slice %1331 {offsets = [0, 0], sizes = [1, 256], strides = [1, 1]} : vector<4x256xf32> to vector<1x256xf32>
    %1336 = vector.broadcast %1334 : vector<4x1xf32> to vector<4x256xf32>
    %1337 = vector.broadcast %1335 : vector<1x256xf32> to vector<4x256xf32>
    %1338 = arith.mulf %1336, %1337 : vector<4x256xf32>
    %1339 = arith.addf %1328, %1338 : vector<4x256xf32>
    %1340 = vector.extract_strided_slice %1333 {offsets = [0, 1], sizes = [4, 1], strides = [1, 1]} : vector<4x4xf32> to vector<4x1xf32>
    %1341 = vector.extract_strided_slice %1331 {offsets = [1, 0], sizes = [1, 256], strides = [1, 1]} : vector<4x256xf32> to vector<1x256xf32>
    %1342 = vector.broadcast %1340 : vector<4x1xf32> to vector<4x256xf32>
    %1343 = vector.broadcast %1341 : vector<1x256xf32> to vector<4x256xf32>
    %1344 = arith.mulf %1342, %1343 : vector<4x256xf32>
    %1345 = arith.addf %1339, %1344 : vector<4x256xf32>
    %1346 = vector.extract_strided_slice %1333 {offsets = [0, 2], sizes = [4, 1], strides = [1, 1]} : vector<4x4xf32> to vector<4x1xf32>
    %1347 = vector.extract_strided_slice %1331 {offsets = [2, 0], sizes = [1, 256], strides = [1, 1]} : vector<4x256xf32> to vector<1x256xf32>
    %1348 = vector.broadcast %1346 : vector<4x1xf32> to vector<4x256xf32>
    %1349 = vector.broadcast %1347 : vector<1x256xf32> to vector<4x256xf32>
    %1350 = arith.mulf %1348, %1349 : vector<4x256xf32>
    %1351 = arith.addf %1345, %1350 : vector<4x256xf32>
    %1352 = vector.extract_strided_slice %1333 {offsets = [0, 3], sizes = [4, 1], strides = [1, 1]} : vector<4x4xf32> to vector<4x1xf32>
    %1353 = vector.extract_strided_slice %1331 {offsets = [3, 0], sizes = [1, 256], strides = [1, 1]} : vector<4x256xf32> to vector<1x256xf32>
    %1354 = vector.broadcast %1352 : vector<4x1xf32> to vector<4x256xf32>
    %1355 = vector.broadcast %1353 : vector<1x256xf32> to vector<4x256xf32>
    %1356 = arith.mulf %1354, %1355 : vector<4x256xf32>
    %1357 = arith.addf %1351, %1356 : vector<4x256xf32>
    %1358 = vector.extract_strided_slice %1134 {offsets = [0, 16], sizes = [4, 240], strides = [1, 1]} : vector<4x256xf32> to vector<4x240xf32>
    %cst_87 = arith.constant 0.000000e+00 : f32
    %1359 = vector.broadcast %cst_87 : f32 to vector<4x16xf32>
    %1360 = tpu.concatenate %1358, %1359 in 1 : vector<4x240xf32>, vector<4x16xf32> -> vector<4x256xf32>
    %1361 = vector.extract_strided_slice %1115 {offsets = [8, 0, 0], sizes = [1, 4, 4], strides = [1, 1, 1]} : vector<9x4x4xf32> to vector<1x4x4xf32>
    %1362 = vector.shape_cast %1361 : vector<1x4x4xf32> to vector<4x4xf32>
    %1363 = vector.extract_strided_slice %1362 {offsets = [0, 0], sizes = [4, 1], strides = [1, 1]} : vector<4x4xf32> to vector<4x1xf32>
    %1364 = vector.extract_strided_slice %1360 {offsets = [0, 0], sizes = [1, 256], strides = [1, 1]} : vector<4x256xf32> to vector<1x256xf32>
    %1365 = vector.broadcast %1363 : vector<4x1xf32> to vector<4x256xf32>
    %1366 = vector.broadcast %1364 : vector<1x256xf32> to vector<4x256xf32>
    %1367 = arith.mulf %1365, %1366 : vector<4x256xf32>
    %1368 = arith.addf %1357, %1367 : vector<4x256xf32>
    %1369 = vector.extract_strided_slice %1362 {offsets = [0, 1], sizes = [4, 1], strides = [1, 1]} : vector<4x4xf32> to vector<4x1xf32>
    %1370 = vector.extract_strided_slice %1360 {offsets = [1, 0], sizes = [1, 256], strides = [1, 1]} : vector<4x256xf32> to vector<1x256xf32>
    %1371 = vector.broadcast %1369 : vector<4x1xf32> to vector<4x256xf32>
    %1372 = vector.broadcast %1370 : vector<1x256xf32> to vector<4x256xf32>
    %1373 = arith.mulf %1371, %1372 : vector<4x256xf32>
    %1374 = arith.addf %1368, %1373 : vector<4x256xf32>
    %1375 = vector.extract_strided_slice %1362 {offsets = [0, 2], sizes = [4, 1], strides = [1, 1]} : vector<4x4xf32> to vector<4x1xf32>
    %1376 = vector.extract_strided_slice %1360 {offsets = [2, 0], sizes = [1, 256], strides = [1, 1]} : vector<4x256xf32> to vector<1x256xf32>
    %1377 = vector.broadcast %1375 : vector<4x1xf32> to vector<4x256xf32>
    %1378 = vector.broadcast %1376 : vector<1x256xf32> to vector<4x256xf32>
    %1379 = arith.mulf %1377, %1378 : vector<4x256xf32>
    %1380 = arith.addf %1374, %1379 : vector<4x256xf32>
    %1381 = vector.extract_strided_slice %1362 {offsets = [0, 3], sizes = [4, 1], strides = [1, 1]} : vector<4x4xf32> to vector<4x1xf32>
    %1382 = vector.extract_strided_slice %1360 {offsets = [3, 0], sizes = [1, 256], strides = [1, 1]} : vector<4x256xf32> to vector<1x256xf32>
    %1383 = vector.broadcast %1381 : vector<4x1xf32> to vector<4x256xf32>
    %1384 = vector.broadcast %1382 : vector<1x256xf32> to vector<4x256xf32>
    %1385 = arith.mulf %1383, %1384 : vector<4x256xf32>
    %1386 = arith.addf %1380, %1385 : vector<4x256xf32>
    %cst_88 = arith.constant 0.000000e+00 : f32
    %1387 = vector.broadcast %cst_88 : f32 to vector<4x1xf32>
    %1388 = vector.extract_strided_slice %294 {offsets = [0, 0], sizes = [4, 255], strides = [1, 1]} : vector<4x256xf32> to vector<4x255xf32>
    %1389 = tpu.concatenate %1387, %1388 in 1 : vector<4x1xf32>, vector<4x255xf32> -> vector<4x256xf32>
    %cst_89 = arith.constant 0.000000e+00 : f32
    %1390 = vector.shape_cast %18 : vector<1x256xi1> to vector<1x256xi1>
    %1391 = vector.broadcast %1390 : vector<1x256xi1> to vector<4x256xi1>
    %1392 = vector.broadcast %cst_89 : f32 to vector<4x256xf32>
    %1393 = arith.select %1391, %1392, %1389 : vector<4x256xi1>, vector<4x256xf32>
    %1394 = vector.extract_strided_slice %294 {offsets = [0, 1], sizes = [4, 255], strides = [1, 1]} : vector<4x256xf32> to vector<4x255xf32>
    %cst_90 = arith.constant 0.000000e+00 : f32
    %1395 = vector.broadcast %cst_90 : f32 to vector<4x1xf32>
    %1396 = tpu.concatenate %1394, %1395 in 1 : vector<4x255xf32>, vector<4x1xf32> -> vector<4x256xf32>
    %cst_91 = arith.constant 0.000000e+00 : f32
    %1397 = vector.shape_cast %20 : vector<1x256xi1> to vector<1x256xi1>
    %1398 = vector.broadcast %1397 : vector<1x256xi1> to vector<4x256xi1>
    %1399 = vector.broadcast %cst_91 : f32 to vector<4x256xf32>
    %1400 = arith.select %1398, %1399, %1396 : vector<4x256xi1>, vector<4x256xf32>
    %cst_92 = arith.constant 0.000000e+00 : f32
    %1401 = vector.broadcast %cst_92 : f32 to vector<4x16xf32>
    %1402 = vector.extract_strided_slice %1393 {offsets = [0, 0], sizes = [4, 240], strides = [1, 1]} : vector<4x256xf32> to vector<4x240xf32>
    %1403 = tpu.concatenate %1401, %1402 in 1 : vector<4x16xf32>, vector<4x240xf32> -> vector<4x256xf32>
    %1404 = vector.extract_strided_slice %1117 {offsets = [0, 0, 0], sizes = [1, 4, 4], strides = [1, 1, 1]} : vector<9x4x4xf32> to vector<1x4x4xf32>
    %1405 = vector.shape_cast %1404 : vector<1x4x4xf32> to vector<4x4xf32>
    %1406 = vector.extract_strided_slice %1405 {offsets = [0, 0], sizes = [4, 1], strides = [1, 1]} : vector<4x4xf32> to vector<4x1xf32>
    %1407 = vector.extract_strided_slice %1403 {offsets = [0, 0], sizes = [1, 256], strides = [1, 1]} : vector<4x256xf32> to vector<1x256xf32>
    %1408 = vector.broadcast %1406 : vector<4x1xf32> to vector<4x256xf32>
    %1409 = vector.broadcast %1407 : vector<1x256xf32> to vector<4x256xf32>
    %1410 = arith.mulf %1408, %1409 : vector<4x256xf32>
    %1411 = arith.addf %1386, %1410 : vector<4x256xf32>
    %1412 = vector.extract_strided_slice %1405 {offsets = [0, 1], sizes = [4, 1], strides = [1, 1]} : vector<4x4xf32> to vector<4x1xf32>
    %1413 = vector.extract_strided_slice %1403 {offsets = [1, 0], sizes = [1, 256], strides = [1, 1]} : vector<4x256xf32> to vector<1x256xf32>
    %1414 = vector.broadcast %1412 : vector<4x1xf32> to vector<4x256xf32>
    %1415 = vector.broadcast %1413 : vector<1x256xf32> to vector<4x256xf32>
    %1416 = arith.mulf %1414, %1415 : vector<4x256xf32>
    %1417 = arith.addf %1411, %1416 : vector<4x256xf32>
    %1418 = vector.extract_strided_slice %1405 {offsets = [0, 2], sizes = [4, 1], strides = [1, 1]} : vector<4x4xf32> to vector<4x1xf32>
    %1419 = vector.extract_strided_slice %1403 {offsets = [2, 0], sizes = [1, 256], strides = [1, 1]} : vector<4x256xf32> to vector<1x256xf32>
    %1420 = vector.broadcast %1418 : vector<4x1xf32> to vector<4x256xf32>
    %1421 = vector.broadcast %1419 : vector<1x256xf32> to vector<4x256xf32>
    %1422 = arith.mulf %1420, %1421 : vector<4x256xf32>
    %1423 = arith.addf %1417, %1422 : vector<4x256xf32>
    %1424 = vector.extract_strided_slice %1405 {offsets = [0, 3], sizes = [4, 1], strides = [1, 1]} : vector<4x4xf32> to vector<4x1xf32>
    %1425 = vector.extract_strided_slice %1403 {offsets = [3, 0], sizes = [1, 256], strides = [1, 1]} : vector<4x256xf32> to vector<1x256xf32>
    %1426 = vector.broadcast %1424 : vector<4x1xf32> to vector<4x256xf32>
    %1427 = vector.broadcast %1425 : vector<1x256xf32> to vector<4x256xf32>
    %1428 = arith.mulf %1426, %1427 : vector<4x256xf32>
    %1429 = arith.addf %1423, %1428 : vector<4x256xf32>
    %cst_93 = arith.constant 0.000000e+00 : f32
    %1430 = vector.broadcast %cst_93 : f32 to vector<4x16xf32>
    %1431 = vector.extract_strided_slice %294 {offsets = [0, 0], sizes = [4, 240], strides = [1, 1]} : vector<4x256xf32> to vector<4x240xf32>
    %1432 = tpu.concatenate %1430, %1431 in 1 : vector<4x16xf32>, vector<4x240xf32> -> vector<4x256xf32>
    %1433 = vector.extract_strided_slice %1117 {offsets = [1, 0, 0], sizes = [1, 4, 4], strides = [1, 1, 1]} : vector<9x4x4xf32> to vector<1x4x4xf32>
    %1434 = vector.shape_cast %1433 : vector<1x4x4xf32> to vector<4x4xf32>
    %1435 = vector.extract_strided_slice %1434 {offsets = [0, 0], sizes = [4, 1], strides = [1, 1]} : vector<4x4xf32> to vector<4x1xf32>
    %1436 = vector.extract_strided_slice %1432 {offsets = [0, 0], sizes = [1, 256], strides = [1, 1]} : vector<4x256xf32> to vector<1x256xf32>
    %1437 = vector.broadcast %1435 : vector<4x1xf32> to vector<4x256xf32>
    %1438 = vector.broadcast %1436 : vector<1x256xf32> to vector<4x256xf32>
    %1439 = arith.mulf %1437, %1438 : vector<4x256xf32>
    %1440 = arith.addf %1429, %1439 : vector<4x256xf32>
    %1441 = vector.extract_strided_slice %1434 {offsets = [0, 1], sizes = [4, 1], strides = [1, 1]} : vector<4x4xf32> to vector<4x1xf32>
    %1442 = vector.extract_strided_slice %1432 {offsets = [1, 0], sizes = [1, 256], strides = [1, 1]} : vector<4x256xf32> to vector<1x256xf32>
    %1443 = vector.broadcast %1441 : vector<4x1xf32> to vector<4x256xf32>
    %1444 = vector.broadcast %1442 : vector<1x256xf32> to vector<4x256xf32>
    %1445 = arith.mulf %1443, %1444 : vector<4x256xf32>
    %1446 = arith.addf %1440, %1445 : vector<4x256xf32>
    %1447 = vector.extract_strided_slice %1434 {offsets = [0, 2], sizes = [4, 1], strides = [1, 1]} : vector<4x4xf32> to vector<4x1xf32>
    %1448 = vector.extract_strided_slice %1432 {offsets = [2, 0], sizes = [1, 256], strides = [1, 1]} : vector<4x256xf32> to vector<1x256xf32>
    %1449 = vector.broadcast %1447 : vector<4x1xf32> to vector<4x256xf32>
    %1450 = vector.broadcast %1448 : vector<1x256xf32> to vector<4x256xf32>
    %1451 = arith.mulf %1449, %1450 : vector<4x256xf32>
    %1452 = arith.addf %1446, %1451 : vector<4x256xf32>
    %1453 = vector.extract_strided_slice %1434 {offsets = [0, 3], sizes = [4, 1], strides = [1, 1]} : vector<4x4xf32> to vector<4x1xf32>
    %1454 = vector.extract_strided_slice %1432 {offsets = [3, 0], sizes = [1, 256], strides = [1, 1]} : vector<4x256xf32> to vector<1x256xf32>
    %1455 = vector.broadcast %1453 : vector<4x1xf32> to vector<4x256xf32>
    %1456 = vector.broadcast %1454 : vector<1x256xf32> to vector<4x256xf32>
    %1457 = arith.mulf %1455, %1456 : vector<4x256xf32>
    %1458 = arith.addf %1452, %1457 : vector<4x256xf32>
    %cst_94 = arith.constant 0.000000e+00 : f32
    %1459 = vector.broadcast %cst_94 : f32 to vector<4x16xf32>
    %1460 = vector.extract_strided_slice %1400 {offsets = [0, 0], sizes = [4, 240], strides = [1, 1]} : vector<4x256xf32> to vector<4x240xf32>
    %1461 = tpu.concatenate %1459, %1460 in 1 : vector<4x16xf32>, vector<4x240xf32> -> vector<4x256xf32>
    %1462 = vector.extract_strided_slice %1117 {offsets = [2, 0, 0], sizes = [1, 4, 4], strides = [1, 1, 1]} : vector<9x4x4xf32> to vector<1x4x4xf32>
    %1463 = vector.shape_cast %1462 : vector<1x4x4xf32> to vector<4x4xf32>
    %1464 = vector.extract_strided_slice %1463 {offsets = [0, 0], sizes = [4, 1], strides = [1, 1]} : vector<4x4xf32> to vector<4x1xf32>
    %1465 = vector.extract_strided_slice %1461 {offsets = [0, 0], sizes = [1, 256], strides = [1, 1]} : vector<4x256xf32> to vector<1x256xf32>
    %1466 = vector.broadcast %1464 : vector<4x1xf32> to vector<4x256xf32>
    %1467 = vector.broadcast %1465 : vector<1x256xf32> to vector<4x256xf32>
    %1468 = arith.mulf %1466, %1467 : vector<4x256xf32>
    %1469 = arith.addf %1458, %1468 : vector<4x256xf32>
    %1470 = vector.extract_strided_slice %1463 {offsets = [0, 1], sizes = [4, 1], strides = [1, 1]} : vector<4x4xf32> to vector<4x1xf32>
    %1471 = vector.extract_strided_slice %1461 {offsets = [1, 0], sizes = [1, 256], strides = [1, 1]} : vector<4x256xf32> to vector<1x256xf32>
    %1472 = vector.broadcast %1470 : vector<4x1xf32> to vector<4x256xf32>
    %1473 = vector.broadcast %1471 : vector<1x256xf32> to vector<4x256xf32>
    %1474 = arith.mulf %1472, %1473 : vector<4x256xf32>
    %1475 = arith.addf %1469, %1474 : vector<4x256xf32>
    %1476 = vector.extract_strided_slice %1463 {offsets = [0, 2], sizes = [4, 1], strides = [1, 1]} : vector<4x4xf32> to vector<4x1xf32>
    %1477 = vector.extract_strided_slice %1461 {offsets = [2, 0], sizes = [1, 256], strides = [1, 1]} : vector<4x256xf32> to vector<1x256xf32>
    %1478 = vector.broadcast %1476 : vector<4x1xf32> to vector<4x256xf32>
    %1479 = vector.broadcast %1477 : vector<1x256xf32> to vector<4x256xf32>
    %1480 = arith.mulf %1478, %1479 : vector<4x256xf32>
    %1481 = arith.addf %1475, %1480 : vector<4x256xf32>
    %1482 = vector.extract_strided_slice %1463 {offsets = [0, 3], sizes = [4, 1], strides = [1, 1]} : vector<4x4xf32> to vector<4x1xf32>
    %1483 = vector.extract_strided_slice %1461 {offsets = [3, 0], sizes = [1, 256], strides = [1, 1]} : vector<4x256xf32> to vector<1x256xf32>
    %1484 = vector.broadcast %1482 : vector<4x1xf32> to vector<4x256xf32>
    %1485 = vector.broadcast %1483 : vector<1x256xf32> to vector<4x256xf32>
    %1486 = arith.mulf %1484, %1485 : vector<4x256xf32>
    %1487 = arith.addf %1481, %1486 : vector<4x256xf32>
    %1488 = vector.extract_strided_slice %1117 {offsets = [3, 0, 0], sizes = [1, 4, 4], strides = [1, 1, 1]} : vector<9x4x4xf32> to vector<1x4x4xf32>
    %1489 = vector.shape_cast %1488 : vector<1x4x4xf32> to vector<4x4xf32>
    %1490 = vector.extract_strided_slice %1489 {offsets = [0, 0], sizes = [4, 1], strides = [1, 1]} : vector<4x4xf32> to vector<4x1xf32>
    %1491 = vector.extract_strided_slice %1393 {offsets = [0, 0], sizes = [1, 256], strides = [1, 1]} : vector<4x256xf32> to vector<1x256xf32>
    %1492 = vector.broadcast %1490 : vector<4x1xf32> to vector<4x256xf32>
    %1493 = vector.broadcast %1491 : vector<1x256xf32> to vector<4x256xf32>
    %1494 = arith.mulf %1492, %1493 : vector<4x256xf32>
    %1495 = arith.addf %1487, %1494 : vector<4x256xf32>
    %1496 = vector.extract_strided_slice %1489 {offsets = [0, 1], sizes = [4, 1], strides = [1, 1]} : vector<4x4xf32> to vector<4x1xf32>
    %1497 = vector.extract_strided_slice %1393 {offsets = [1, 0], sizes = [1, 256], strides = [1, 1]} : vector<4x256xf32> to vector<1x256xf32>
    %1498 = vector.broadcast %1496 : vector<4x1xf32> to vector<4x256xf32>
    %1499 = vector.broadcast %1497 : vector<1x256xf32> to vector<4x256xf32>
    %1500 = arith.mulf %1498, %1499 : vector<4x256xf32>
    %1501 = arith.addf %1495, %1500 : vector<4x256xf32>
    %1502 = vector.extract_strided_slice %1489 {offsets = [0, 2], sizes = [4, 1], strides = [1, 1]} : vector<4x4xf32> to vector<4x1xf32>
    %1503 = vector.extract_strided_slice %1393 {offsets = [2, 0], sizes = [1, 256], strides = [1, 1]} : vector<4x256xf32> to vector<1x256xf32>
    %1504 = vector.broadcast %1502 : vector<4x1xf32> to vector<4x256xf32>
    %1505 = vector.broadcast %1503 : vector<1x256xf32> to vector<4x256xf32>
    %1506 = arith.mulf %1504, %1505 : vector<4x256xf32>
    %1507 = arith.addf %1501, %1506 : vector<4x256xf32>
    %1508 = vector.extract_strided_slice %1489 {offsets = [0, 3], sizes = [4, 1], strides = [1, 1]} : vector<4x4xf32> to vector<4x1xf32>
    %1509 = vector.extract_strided_slice %1393 {offsets = [3, 0], sizes = [1, 256], strides = [1, 1]} : vector<4x256xf32> to vector<1x256xf32>
    %1510 = vector.broadcast %1508 : vector<4x1xf32> to vector<4x256xf32>
    %1511 = vector.broadcast %1509 : vector<1x256xf32> to vector<4x256xf32>
    %1512 = arith.mulf %1510, %1511 : vector<4x256xf32>
    %1513 = arith.addf %1507, %1512 : vector<4x256xf32>
    %1514 = vector.extract_strided_slice %1117 {offsets = [4, 0, 0], sizes = [1, 4, 4], strides = [1, 1, 1]} : vector<9x4x4xf32> to vector<1x4x4xf32>
    %1515 = vector.shape_cast %1514 : vector<1x4x4xf32> to vector<4x4xf32>
    %1516 = vector.extract_strided_slice %1515 {offsets = [0, 0], sizes = [4, 1], strides = [1, 1]} : vector<4x4xf32> to vector<4x1xf32>
    %1517 = vector.extract_strided_slice %294 {offsets = [0, 0], sizes = [1, 256], strides = [1, 1]} : vector<4x256xf32> to vector<1x256xf32>
    %1518 = vector.broadcast %1516 : vector<4x1xf32> to vector<4x256xf32>
    %1519 = vector.broadcast %1517 : vector<1x256xf32> to vector<4x256xf32>
    %1520 = arith.mulf %1518, %1519 : vector<4x256xf32>
    %1521 = arith.addf %1513, %1520 : vector<4x256xf32>
    %1522 = vector.extract_strided_slice %1515 {offsets = [0, 1], sizes = [4, 1], strides = [1, 1]} : vector<4x4xf32> to vector<4x1xf32>
    %1523 = vector.extract_strided_slice %294 {offsets = [1, 0], sizes = [1, 256], strides = [1, 1]} : vector<4x256xf32> to vector<1x256xf32>
    %1524 = vector.broadcast %1522 : vector<4x1xf32> to vector<4x256xf32>
    %1525 = vector.broadcast %1523 : vector<1x256xf32> to vector<4x256xf32>
    %1526 = arith.mulf %1524, %1525 : vector<4x256xf32>
    %1527 = arith.addf %1521, %1526 : vector<4x256xf32>
    %1528 = vector.extract_strided_slice %1515 {offsets = [0, 2], sizes = [4, 1], strides = [1, 1]} : vector<4x4xf32> to vector<4x1xf32>
    %1529 = vector.extract_strided_slice %294 {offsets = [2, 0], sizes = [1, 256], strides = [1, 1]} : vector<4x256xf32> to vector<1x256xf32>
    %1530 = vector.broadcast %1528 : vector<4x1xf32> to vector<4x256xf32>
    %1531 = vector.broadcast %1529 : vector<1x256xf32> to vector<4x256xf32>
    %1532 = arith.mulf %1530, %1531 : vector<4x256xf32>
    %1533 = arith.addf %1527, %1532 : vector<4x256xf32>
    %1534 = vector.extract_strided_slice %1515 {offsets = [0, 3], sizes = [4, 1], strides = [1, 1]} : vector<4x4xf32> to vector<4x1xf32>
    %1535 = vector.extract_strided_slice %294 {offsets = [3, 0], sizes = [1, 256], strides = [1, 1]} : vector<4x256xf32> to vector<1x256xf32>
    %1536 = vector.broadcast %1534 : vector<4x1xf32> to vector<4x256xf32>
    %1537 = vector.broadcast %1535 : vector<1x256xf32> to vector<4x256xf32>
    %1538 = arith.mulf %1536, %1537 : vector<4x256xf32>
    %1539 = arith.addf %1533, %1538 : vector<4x256xf32>
    %1540 = vector.extract_strided_slice %1117 {offsets = [5, 0, 0], sizes = [1, 4, 4], strides = [1, 1, 1]} : vector<9x4x4xf32> to vector<1x4x4xf32>
    %1541 = vector.shape_cast %1540 : vector<1x4x4xf32> to vector<4x4xf32>
    %1542 = vector.extract_strided_slice %1541 {offsets = [0, 0], sizes = [4, 1], strides = [1, 1]} : vector<4x4xf32> to vector<4x1xf32>
    %1543 = vector.extract_strided_slice %1400 {offsets = [0, 0], sizes = [1, 256], strides = [1, 1]} : vector<4x256xf32> to vector<1x256xf32>
    %1544 = vector.broadcast %1542 : vector<4x1xf32> to vector<4x256xf32>
    %1545 = vector.broadcast %1543 : vector<1x256xf32> to vector<4x256xf32>
    %1546 = arith.mulf %1544, %1545 : vector<4x256xf32>
    %1547 = arith.addf %1539, %1546 : vector<4x256xf32>
    %1548 = vector.extract_strided_slice %1541 {offsets = [0, 1], sizes = [4, 1], strides = [1, 1]} : vector<4x4xf32> to vector<4x1xf32>
    %1549 = vector.extract_strided_slice %1400 {offsets = [1, 0], sizes = [1, 256], strides = [1, 1]} : vector<4x256xf32> to vector<1x256xf32>
    %1550 = vector.broadcast %1548 : vector<4x1xf32> to vector<4x256xf32>
    %1551 = vector.broadcast %1549 : vector<1x256xf32> to vector<4x256xf32>
    %1552 = arith.mulf %1550, %1551 : vector<4x256xf32>
    %1553 = arith.addf %1547, %1552 : vector<4x256xf32>
    %1554 = vector.extract_strided_slice %1541 {offsets = [0, 2], sizes = [4, 1], strides = [1, 1]} : vector<4x4xf32> to vector<4x1xf32>
    %1555 = vector.extract_strided_slice %1400 {offsets = [2, 0], sizes = [1, 256], strides = [1, 1]} : vector<4x256xf32> to vector<1x256xf32>
    %1556 = vector.broadcast %1554 : vector<4x1xf32> to vector<4x256xf32>
    %1557 = vector.broadcast %1555 : vector<1x256xf32> to vector<4x256xf32>
    %1558 = arith.mulf %1556, %1557 : vector<4x256xf32>
    %1559 = arith.addf %1553, %1558 : vector<4x256xf32>
    %1560 = vector.extract_strided_slice %1541 {offsets = [0, 3], sizes = [4, 1], strides = [1, 1]} : vector<4x4xf32> to vector<4x1xf32>
    %1561 = vector.extract_strided_slice %1400 {offsets = [3, 0], sizes = [1, 256], strides = [1, 1]} : vector<4x256xf32> to vector<1x256xf32>
    %1562 = vector.broadcast %1560 : vector<4x1xf32> to vector<4x256xf32>
    %1563 = vector.broadcast %1561 : vector<1x256xf32> to vector<4x256xf32>
    %1564 = arith.mulf %1562, %1563 : vector<4x256xf32>
    %1565 = arith.addf %1559, %1564 : vector<4x256xf32>
    %1566 = vector.extract_strided_slice %1393 {offsets = [0, 16], sizes = [4, 240], strides = [1, 1]} : vector<4x256xf32> to vector<4x240xf32>
    %cst_95 = arith.constant 0.000000e+00 : f32
    %1567 = vector.broadcast %cst_95 : f32 to vector<4x16xf32>
    %1568 = tpu.concatenate %1566, %1567 in 1 : vector<4x240xf32>, vector<4x16xf32> -> vector<4x256xf32>
    %1569 = vector.extract_strided_slice %1117 {offsets = [6, 0, 0], sizes = [1, 4, 4], strides = [1, 1, 1]} : vector<9x4x4xf32> to vector<1x4x4xf32>
    %1570 = vector.shape_cast %1569 : vector<1x4x4xf32> to vector<4x4xf32>
    %1571 = vector.extract_strided_slice %1570 {offsets = [0, 0], sizes = [4, 1], strides = [1, 1]} : vector<4x4xf32> to vector<4x1xf32>
    %1572 = vector.extract_strided_slice %1568 {offsets = [0, 0], sizes = [1, 256], strides = [1, 1]} : vector<4x256xf32> to vector<1x256xf32>
    %1573 = vector.broadcast %1571 : vector<4x1xf32> to vector<4x256xf32>
    %1574 = vector.broadcast %1572 : vector<1x256xf32> to vector<4x256xf32>
    %1575 = arith.mulf %1573, %1574 : vector<4x256xf32>
    %1576 = arith.addf %1565, %1575 : vector<4x256xf32>
    %1577 = vector.extract_strided_slice %1570 {offsets = [0, 1], sizes = [4, 1], strides = [1, 1]} : vector<4x4xf32> to vector<4x1xf32>
    %1578 = vector.extract_strided_slice %1568 {offsets = [1, 0], sizes = [1, 256], strides = [1, 1]} : vector<4x256xf32> to vector<1x256xf32>
    %1579 = vector.broadcast %1577 : vector<4x1xf32> to vector<4x256xf32>
    %1580 = vector.broadcast %1578 : vector<1x256xf32> to vector<4x256xf32>
    %1581 = arith.mulf %1579, %1580 : vector<4x256xf32>
    %1582 = arith.addf %1576, %1581 : vector<4x256xf32>
    %1583 = vector.extract_strided_slice %1570 {offsets = [0, 2], sizes = [4, 1], strides = [1, 1]} : vector<4x4xf32> to vector<4x1xf32>
    %1584 = vector.extract_strided_slice %1568 {offsets = [2, 0], sizes = [1, 256], strides = [1, 1]} : vector<4x256xf32> to vector<1x256xf32>
    %1585 = vector.broadcast %1583 : vector<4x1xf32> to vector<4x256xf32>
    %1586 = vector.broadcast %1584 : vector<1x256xf32> to vector<4x256xf32>
    %1587 = arith.mulf %1585, %1586 : vector<4x256xf32>
    %1588 = arith.addf %1582, %1587 : vector<4x256xf32>
    %1589 = vector.extract_strided_slice %1570 {offsets = [0, 3], sizes = [4, 1], strides = [1, 1]} : vector<4x4xf32> to vector<4x1xf32>
    %1590 = vector.extract_strided_slice %1568 {offsets = [3, 0], sizes = [1, 256], strides = [1, 1]} : vector<4x256xf32> to vector<1x256xf32>
    %1591 = vector.broadcast %1589 : vector<4x1xf32> to vector<4x256xf32>
    %1592 = vector.broadcast %1590 : vector<1x256xf32> to vector<4x256xf32>
    %1593 = arith.mulf %1591, %1592 : vector<4x256xf32>
    %1594 = arith.addf %1588, %1593 : vector<4x256xf32>
    %1595 = vector.extract_strided_slice %294 {offsets = [0, 16], sizes = [4, 240], strides = [1, 1]} : vector<4x256xf32> to vector<4x240xf32>
    %cst_96 = arith.constant 0.000000e+00 : f32
    %1596 = vector.broadcast %cst_96 : f32 to vector<4x16xf32>
    %1597 = tpu.concatenate %1595, %1596 in 1 : vector<4x240xf32>, vector<4x16xf32> -> vector<4x256xf32>
    %1598 = vector.extract_strided_slice %1117 {offsets = [7, 0, 0], sizes = [1, 4, 4], strides = [1, 1, 1]} : vector<9x4x4xf32> to vector<1x4x4xf32>
    %1599 = vector.shape_cast %1598 : vector<1x4x4xf32> to vector<4x4xf32>
    %1600 = vector.extract_strided_slice %1599 {offsets = [0, 0], sizes = [4, 1], strides = [1, 1]} : vector<4x4xf32> to vector<4x1xf32>
    %1601 = vector.extract_strided_slice %1597 {offsets = [0, 0], sizes = [1, 256], strides = [1, 1]} : vector<4x256xf32> to vector<1x256xf32>
    %1602 = vector.broadcast %1600 : vector<4x1xf32> to vector<4x256xf32>
    %1603 = vector.broadcast %1601 : vector<1x256xf32> to vector<4x256xf32>
    %1604 = arith.mulf %1602, %1603 : vector<4x256xf32>
    %1605 = arith.addf %1594, %1604 : vector<4x256xf32>
    %1606 = vector.extract_strided_slice %1599 {offsets = [0, 1], sizes = [4, 1], strides = [1, 1]} : vector<4x4xf32> to vector<4x1xf32>
    %1607 = vector.extract_strided_slice %1597 {offsets = [1, 0], sizes = [1, 256], strides = [1, 1]} : vector<4x256xf32> to vector<1x256xf32>
    %1608 = vector.broadcast %1606 : vector<4x1xf32> to vector<4x256xf32>
    %1609 = vector.broadcast %1607 : vector<1x256xf32> to vector<4x256xf32>
    %1610 = arith.mulf %1608, %1609 : vector<4x256xf32>
    %1611 = arith.addf %1605, %1610 : vector<4x256xf32>
    %1612 = vector.extract_strided_slice %1599 {offsets = [0, 2], sizes = [4, 1], strides = [1, 1]} : vector<4x4xf32> to vector<4x1xf32>
    %1613 = vector.extract_strided_slice %1597 {offsets = [2, 0], sizes = [1, 256], strides = [1, 1]} : vector<4x256xf32> to vector<1x256xf32>
    %1614 = vector.broadcast %1612 : vector<4x1xf32> to vector<4x256xf32>
    %1615 = vector.broadcast %1613 : vector<1x256xf32> to vector<4x256xf32>
    %1616 = arith.mulf %1614, %1615 : vector<4x256xf32>
    %1617 = arith.addf %1611, %1616 : vector<4x256xf32>
    %1618 = vector.extract_strided_slice %1599 {offsets = [0, 3], sizes = [4, 1], strides = [1, 1]} : vector<4x4xf32> to vector<4x1xf32>
    %1619 = vector.extract_strided_slice %1597 {offsets = [3, 0], sizes = [1, 256], strides = [1, 1]} : vector<4x256xf32> to vector<1x256xf32>
    %1620 = vector.broadcast %1618 : vector<4x1xf32> to vector<4x256xf32>
    %1621 = vector.broadcast %1619 : vector<1x256xf32> to vector<4x256xf32>
    %1622 = arith.mulf %1620, %1621 : vector<4x256xf32>
    %1623 = arith.addf %1617, %1622 : vector<4x256xf32>
    %1624 = vector.extract_strided_slice %1400 {offsets = [0, 16], sizes = [4, 240], strides = [1, 1]} : vector<4x256xf32> to vector<4x240xf32>
    %cst_97 = arith.constant 0.000000e+00 : f32
    %1625 = vector.broadcast %cst_97 : f32 to vector<4x16xf32>
    %1626 = tpu.concatenate %1624, %1625 in 1 : vector<4x240xf32>, vector<4x16xf32> -> vector<4x256xf32>
    %1627 = vector.extract_strided_slice %1117 {offsets = [8, 0, 0], sizes = [1, 4, 4], strides = [1, 1, 1]} : vector<9x4x4xf32> to vector<1x4x4xf32>
    %1628 = vector.shape_cast %1627 : vector<1x4x4xf32> to vector<4x4xf32>
    %1629 = vector.extract_strided_slice %1628 {offsets = [0, 0], sizes = [4, 1], strides = [1, 1]} : vector<4x4xf32> to vector<4x1xf32>
    %1630 = vector.extract_strided_slice %1626 {offsets = [0, 0], sizes = [1, 256], strides = [1, 1]} : vector<4x256xf32> to vector<1x256xf32>
    %1631 = vector.broadcast %1629 : vector<4x1xf32> to vector<4x256xf32>
    %1632 = vector.broadcast %1630 : vector<1x256xf32> to vector<4x256xf32>
    %1633 = arith.mulf %1631, %1632 : vector<4x256xf32>
    %1634 = arith.addf %1623, %1633 : vector<4x256xf32>
    %1635 = vector.extract_strided_slice %1628 {offsets = [0, 1], sizes = [4, 1], strides = [1, 1]} : vector<4x4xf32> to vector<4x1xf32>
    %1636 = vector.extract_strided_slice %1626 {offsets = [1, 0], sizes = [1, 256], strides = [1, 1]} : vector<4x256xf32> to vector<1x256xf32>
    %1637 = vector.broadcast %1635 : vector<4x1xf32> to vector<4x256xf32>
    %1638 = vector.broadcast %1636 : vector<1x256xf32> to vector<4x256xf32>
    %1639 = arith.mulf %1637, %1638 : vector<4x256xf32>
    %1640 = arith.addf %1634, %1639 : vector<4x256xf32>
    %1641 = vector.extract_strided_slice %1628 {offsets = [0, 2], sizes = [4, 1], strides = [1, 1]} : vector<4x4xf32> to vector<4x1xf32>
    %1642 = vector.extract_strided_slice %1626 {offsets = [2, 0], sizes = [1, 256], strides = [1, 1]} : vector<4x256xf32> to vector<1x256xf32>
    %1643 = vector.broadcast %1641 : vector<4x1xf32> to vector<4x256xf32>
    %1644 = vector.broadcast %1642 : vector<1x256xf32> to vector<4x256xf32>
    %1645 = arith.mulf %1643, %1644 : vector<4x256xf32>
    %1646 = arith.addf %1640, %1645 : vector<4x256xf32>
    %1647 = vector.extract_strided_slice %1628 {offsets = [0, 3], sizes = [4, 1], strides = [1, 1]} : vector<4x4xf32> to vector<4x1xf32>
    %1648 = vector.extract_strided_slice %1626 {offsets = [3, 0], sizes = [1, 256], strides = [1, 1]} : vector<4x256xf32> to vector<1x256xf32>
    %1649 = vector.broadcast %1647 : vector<4x1xf32> to vector<4x256xf32>
    %1650 = vector.broadcast %1648 : vector<1x256xf32> to vector<4x256xf32>
    %1651 = arith.mulf %1649, %1650 : vector<4x256xf32>
    %1652 = arith.addf %1646, %1651 : vector<4x256xf32>
    %cst_98 = arith.constant 0.000000e+00 : f32
    %1653 = vector.broadcast %cst_98 : f32 to vector<4x256xf32>
    %1654 = arith.maximumf %1652, %1653 : vector<4x256xf32>
    %c0_99 = arith.constant 0 : index
    %c0_100 = arith.constant 0 : index
    %c0_101 = arith.constant 0 : index
    %c0_102 = arith.constant 0 : index
    %1655 = vector.load %arg5[%c0_99, %c0_100, %c0_101, %c0_102] : memref<2x9x4x4xf32, #tpu.memory_space<vmem>>, vector<1x9x4x4xf32>
    %1656 = vector.shape_cast %1655 : vector<1x9x4x4xf32> to vector<9x4x4xf32>
    %c0_103 = arith.constant 0 : index
    %c5 = arith.constant 5 : index
    %1657 = vector.load %arg6[%c0_103, %c5] : memref<4x7xf32, #tpu.memory_space<vmem>>, vector<4x1xf32>
    %1658 = vector.shape_cast %1657 : vector<4x1xf32> to vector<4x1xf32>
    %1659 = vector.broadcast %1658 : vector<4x1xf32> to vector<4x256xf32>
    %cst_104 = arith.constant 0.000000e+00 : f32
    %1660 = vector.broadcast %cst_104 : f32 to vector<4x1xf32>
    %1661 = vector.extract_strided_slice %1654 {offsets = [0, 0], sizes = [4, 255], strides = [1, 1]} : vector<4x256xf32> to vector<4x255xf32>
    %1662 = tpu.concatenate %1660, %1661 in 1 : vector<4x1xf32>, vector<4x255xf32> -> vector<4x256xf32>
    %cst_105 = arith.constant 0.000000e+00 : f32
    %1663 = vector.shape_cast %18 : vector<1x256xi1> to vector<1x256xi1>
    %1664 = vector.broadcast %1663 : vector<1x256xi1> to vector<4x256xi1>
    %1665 = vector.broadcast %cst_105 : f32 to vector<4x256xf32>
    %1666 = arith.select %1664, %1665, %1662 : vector<4x256xi1>, vector<4x256xf32>
    %1667 = vector.extract_strided_slice %1654 {offsets = [0, 1], sizes = [4, 255], strides = [1, 1]} : vector<4x256xf32> to vector<4x255xf32>
    %cst_106 = arith.constant 0.000000e+00 : f32
    %1668 = vector.broadcast %cst_106 : f32 to vector<4x1xf32>
    %1669 = tpu.concatenate %1667, %1668 in 1 : vector<4x255xf32>, vector<4x1xf32> -> vector<4x256xf32>
    %cst_107 = arith.constant 0.000000e+00 : f32
    %1670 = vector.shape_cast %20 : vector<1x256xi1> to vector<1x256xi1>
    %1671 = vector.broadcast %1670 : vector<1x256xi1> to vector<4x256xi1>
    %1672 = vector.broadcast %cst_107 : f32 to vector<4x256xf32>
    %1673 = arith.select %1671, %1672, %1669 : vector<4x256xi1>, vector<4x256xf32>
    %cst_108 = arith.constant 0.000000e+00 : f32
    %1674 = vector.broadcast %cst_108 : f32 to vector<4x16xf32>
    %1675 = vector.extract_strided_slice %1666 {offsets = [0, 0], sizes = [4, 240], strides = [1, 1]} : vector<4x256xf32> to vector<4x240xf32>
    %1676 = tpu.concatenate %1674, %1675 in 1 : vector<4x16xf32>, vector<4x240xf32> -> vector<4x256xf32>
    %1677 = vector.extract_strided_slice %1656 {offsets = [0, 0, 0], sizes = [1, 4, 4], strides = [1, 1, 1]} : vector<9x4x4xf32> to vector<1x4x4xf32>
    %1678 = vector.shape_cast %1677 : vector<1x4x4xf32> to vector<4x4xf32>
    %1679 = vector.extract_strided_slice %1678 {offsets = [0, 0], sizes = [4, 1], strides = [1, 1]} : vector<4x4xf32> to vector<4x1xf32>
    %1680 = vector.extract_strided_slice %1676 {offsets = [0, 0], sizes = [1, 256], strides = [1, 1]} : vector<4x256xf32> to vector<1x256xf32>
    %1681 = vector.broadcast %1679 : vector<4x1xf32> to vector<4x256xf32>
    %1682 = vector.broadcast %1680 : vector<1x256xf32> to vector<4x256xf32>
    %1683 = arith.mulf %1681, %1682 : vector<4x256xf32>
    %1684 = arith.addf %1659, %1683 : vector<4x256xf32>
    %1685 = vector.extract_strided_slice %1678 {offsets = [0, 1], sizes = [4, 1], strides = [1, 1]} : vector<4x4xf32> to vector<4x1xf32>
    %1686 = vector.extract_strided_slice %1676 {offsets = [1, 0], sizes = [1, 256], strides = [1, 1]} : vector<4x256xf32> to vector<1x256xf32>
    %1687 = vector.broadcast %1685 : vector<4x1xf32> to vector<4x256xf32>
    %1688 = vector.broadcast %1686 : vector<1x256xf32> to vector<4x256xf32>
    %1689 = arith.mulf %1687, %1688 : vector<4x256xf32>
    %1690 = arith.addf %1684, %1689 : vector<4x256xf32>
    %1691 = vector.extract_strided_slice %1678 {offsets = [0, 2], sizes = [4, 1], strides = [1, 1]} : vector<4x4xf32> to vector<4x1xf32>
    %1692 = vector.extract_strided_slice %1676 {offsets = [2, 0], sizes = [1, 256], strides = [1, 1]} : vector<4x256xf32> to vector<1x256xf32>
    %1693 = vector.broadcast %1691 : vector<4x1xf32> to vector<4x256xf32>
    %1694 = vector.broadcast %1692 : vector<1x256xf32> to vector<4x256xf32>
    %1695 = arith.mulf %1693, %1694 : vector<4x256xf32>
    %1696 = arith.addf %1690, %1695 : vector<4x256xf32>
    %1697 = vector.extract_strided_slice %1678 {offsets = [0, 3], sizes = [4, 1], strides = [1, 1]} : vector<4x4xf32> to vector<4x1xf32>
    %1698 = vector.extract_strided_slice %1676 {offsets = [3, 0], sizes = [1, 256], strides = [1, 1]} : vector<4x256xf32> to vector<1x256xf32>
    %1699 = vector.broadcast %1697 : vector<4x1xf32> to vector<4x256xf32>
    %1700 = vector.broadcast %1698 : vector<1x256xf32> to vector<4x256xf32>
    %1701 = arith.mulf %1699, %1700 : vector<4x256xf32>
    %1702 = arith.addf %1696, %1701 : vector<4x256xf32>
    %cst_109 = arith.constant 0.000000e+00 : f32
    %1703 = vector.broadcast %cst_109 : f32 to vector<4x16xf32>
    %1704 = vector.extract_strided_slice %1654 {offsets = [0, 0], sizes = [4, 240], strides = [1, 1]} : vector<4x256xf32> to vector<4x240xf32>
    %1705 = tpu.concatenate %1703, %1704 in 1 : vector<4x16xf32>, vector<4x240xf32> -> vector<4x256xf32>
    %1706 = vector.extract_strided_slice %1656 {offsets = [1, 0, 0], sizes = [1, 4, 4], strides = [1, 1, 1]} : vector<9x4x4xf32> to vector<1x4x4xf32>
    %1707 = vector.shape_cast %1706 : vector<1x4x4xf32> to vector<4x4xf32>
    %1708 = vector.extract_strided_slice %1707 {offsets = [0, 0], sizes = [4, 1], strides = [1, 1]} : vector<4x4xf32> to vector<4x1xf32>
    %1709 = vector.extract_strided_slice %1705 {offsets = [0, 0], sizes = [1, 256], strides = [1, 1]} : vector<4x256xf32> to vector<1x256xf32>
    %1710 = vector.broadcast %1708 : vector<4x1xf32> to vector<4x256xf32>
    %1711 = vector.broadcast %1709 : vector<1x256xf32> to vector<4x256xf32>
    %1712 = arith.mulf %1710, %1711 : vector<4x256xf32>
    %1713 = arith.addf %1702, %1712 : vector<4x256xf32>
    %1714 = vector.extract_strided_slice %1707 {offsets = [0, 1], sizes = [4, 1], strides = [1, 1]} : vector<4x4xf32> to vector<4x1xf32>
    %1715 = vector.extract_strided_slice %1705 {offsets = [1, 0], sizes = [1, 256], strides = [1, 1]} : vector<4x256xf32> to vector<1x256xf32>
    %1716 = vector.broadcast %1714 : vector<4x1xf32> to vector<4x256xf32>
    %1717 = vector.broadcast %1715 : vector<1x256xf32> to vector<4x256xf32>
    %1718 = arith.mulf %1716, %1717 : vector<4x256xf32>
    %1719 = arith.addf %1713, %1718 : vector<4x256xf32>
    %1720 = vector.extract_strided_slice %1707 {offsets = [0, 2], sizes = [4, 1], strides = [1, 1]} : vector<4x4xf32> to vector<4x1xf32>
    %1721 = vector.extract_strided_slice %1705 {offsets = [2, 0], sizes = [1, 256], strides = [1, 1]} : vector<4x256xf32> to vector<1x256xf32>
    %1722 = vector.broadcast %1720 : vector<4x1xf32> to vector<4x256xf32>
    %1723 = vector.broadcast %1721 : vector<1x256xf32> to vector<4x256xf32>
    %1724 = arith.mulf %1722, %1723 : vector<4x256xf32>
    %1725 = arith.addf %1719, %1724 : vector<4x256xf32>
    %1726 = vector.extract_strided_slice %1707 {offsets = [0, 3], sizes = [4, 1], strides = [1, 1]} : vector<4x4xf32> to vector<4x1xf32>
    %1727 = vector.extract_strided_slice %1705 {offsets = [3, 0], sizes = [1, 256], strides = [1, 1]} : vector<4x256xf32> to vector<1x256xf32>
    %1728 = vector.broadcast %1726 : vector<4x1xf32> to vector<4x256xf32>
    %1729 = vector.broadcast %1727 : vector<1x256xf32> to vector<4x256xf32>
    %1730 = arith.mulf %1728, %1729 : vector<4x256xf32>
    %1731 = arith.addf %1725, %1730 : vector<4x256xf32>
    %cst_110 = arith.constant 0.000000e+00 : f32
    %1732 = vector.broadcast %cst_110 : f32 to vector<4x16xf32>
    %1733 = vector.extract_strided_slice %1673 {offsets = [0, 0], sizes = [4, 240], strides = [1, 1]} : vector<4x256xf32> to vector<4x240xf32>
    %1734 = tpu.concatenate %1732, %1733 in 1 : vector<4x16xf32>, vector<4x240xf32> -> vector<4x256xf32>
    %1735 = vector.extract_strided_slice %1656 {offsets = [2, 0, 0], sizes = [1, 4, 4], strides = [1, 1, 1]} : vector<9x4x4xf32> to vector<1x4x4xf32>
    %1736 = vector.shape_cast %1735 : vector<1x4x4xf32> to vector<4x4xf32>
    %1737 = vector.extract_strided_slice %1736 {offsets = [0, 0], sizes = [4, 1], strides = [1, 1]} : vector<4x4xf32> to vector<4x1xf32>
    %1738 = vector.extract_strided_slice %1734 {offsets = [0, 0], sizes = [1, 256], strides = [1, 1]} : vector<4x256xf32> to vector<1x256xf32>
    %1739 = vector.broadcast %1737 : vector<4x1xf32> to vector<4x256xf32>
    %1740 = vector.broadcast %1738 : vector<1x256xf32> to vector<4x256xf32>
    %1741 = arith.mulf %1739, %1740 : vector<4x256xf32>
    %1742 = arith.addf %1731, %1741 : vector<4x256xf32>
    %1743 = vector.extract_strided_slice %1736 {offsets = [0, 1], sizes = [4, 1], strides = [1, 1]} : vector<4x4xf32> to vector<4x1xf32>
    %1744 = vector.extract_strided_slice %1734 {offsets = [1, 0], sizes = [1, 256], strides = [1, 1]} : vector<4x256xf32> to vector<1x256xf32>
    %1745 = vector.broadcast %1743 : vector<4x1xf32> to vector<4x256xf32>
    %1746 = vector.broadcast %1744 : vector<1x256xf32> to vector<4x256xf32>
    %1747 = arith.mulf %1745, %1746 : vector<4x256xf32>
    %1748 = arith.addf %1742, %1747 : vector<4x256xf32>
    %1749 = vector.extract_strided_slice %1736 {offsets = [0, 2], sizes = [4, 1], strides = [1, 1]} : vector<4x4xf32> to vector<4x1xf32>
    %1750 = vector.extract_strided_slice %1734 {offsets = [2, 0], sizes = [1, 256], strides = [1, 1]} : vector<4x256xf32> to vector<1x256xf32>
    %1751 = vector.broadcast %1749 : vector<4x1xf32> to vector<4x256xf32>
    %1752 = vector.broadcast %1750 : vector<1x256xf32> to vector<4x256xf32>
    %1753 = arith.mulf %1751, %1752 : vector<4x256xf32>
    %1754 = arith.addf %1748, %1753 : vector<4x256xf32>
    %1755 = vector.extract_strided_slice %1736 {offsets = [0, 3], sizes = [4, 1], strides = [1, 1]} : vector<4x4xf32> to vector<4x1xf32>
    %1756 = vector.extract_strided_slice %1734 {offsets = [3, 0], sizes = [1, 256], strides = [1, 1]} : vector<4x256xf32> to vector<1x256xf32>
    %1757 = vector.broadcast %1755 : vector<4x1xf32> to vector<4x256xf32>
    %1758 = vector.broadcast %1756 : vector<1x256xf32> to vector<4x256xf32>
    %1759 = arith.mulf %1757, %1758 : vector<4x256xf32>
    %1760 = arith.addf %1754, %1759 : vector<4x256xf32>
    %1761 = vector.extract_strided_slice %1656 {offsets = [3, 0, 0], sizes = [1, 4, 4], strides = [1, 1, 1]} : vector<9x4x4xf32> to vector<1x4x4xf32>
    %1762 = vector.shape_cast %1761 : vector<1x4x4xf32> to vector<4x4xf32>
    %1763 = vector.extract_strided_slice %1762 {offsets = [0, 0], sizes = [4, 1], strides = [1, 1]} : vector<4x4xf32> to vector<4x1xf32>
    %1764 = vector.extract_strided_slice %1666 {offsets = [0, 0], sizes = [1, 256], strides = [1, 1]} : vector<4x256xf32> to vector<1x256xf32>
    %1765 = vector.broadcast %1763 : vector<4x1xf32> to vector<4x256xf32>
    %1766 = vector.broadcast %1764 : vector<1x256xf32> to vector<4x256xf32>
    %1767 = arith.mulf %1765, %1766 : vector<4x256xf32>
    %1768 = arith.addf %1760, %1767 : vector<4x256xf32>
    %1769 = vector.extract_strided_slice %1762 {offsets = [0, 1], sizes = [4, 1], strides = [1, 1]} : vector<4x4xf32> to vector<4x1xf32>
    %1770 = vector.extract_strided_slice %1666 {offsets = [1, 0], sizes = [1, 256], strides = [1, 1]} : vector<4x256xf32> to vector<1x256xf32>
    %1771 = vector.broadcast %1769 : vector<4x1xf32> to vector<4x256xf32>
    %1772 = vector.broadcast %1770 : vector<1x256xf32> to vector<4x256xf32>
    %1773 = arith.mulf %1771, %1772 : vector<4x256xf32>
    %1774 = arith.addf %1768, %1773 : vector<4x256xf32>
    %1775 = vector.extract_strided_slice %1762 {offsets = [0, 2], sizes = [4, 1], strides = [1, 1]} : vector<4x4xf32> to vector<4x1xf32>
    %1776 = vector.extract_strided_slice %1666 {offsets = [2, 0], sizes = [1, 256], strides = [1, 1]} : vector<4x256xf32> to vector<1x256xf32>
    %1777 = vector.broadcast %1775 : vector<4x1xf32> to vector<4x256xf32>
    %1778 = vector.broadcast %1776 : vector<1x256xf32> to vector<4x256xf32>
    %1779 = arith.mulf %1777, %1778 : vector<4x256xf32>
    %1780 = arith.addf %1774, %1779 : vector<4x256xf32>
    %1781 = vector.extract_strided_slice %1762 {offsets = [0, 3], sizes = [4, 1], strides = [1, 1]} : vector<4x4xf32> to vector<4x1xf32>
    %1782 = vector.extract_strided_slice %1666 {offsets = [3, 0], sizes = [1, 256], strides = [1, 1]} : vector<4x256xf32> to vector<1x256xf32>
    %1783 = vector.broadcast %1781 : vector<4x1xf32> to vector<4x256xf32>
    %1784 = vector.broadcast %1782 : vector<1x256xf32> to vector<4x256xf32>
    %1785 = arith.mulf %1783, %1784 : vector<4x256xf32>
    %1786 = arith.addf %1780, %1785 : vector<4x256xf32>
    %1787 = vector.extract_strided_slice %1656 {offsets = [4, 0, 0], sizes = [1, 4, 4], strides = [1, 1, 1]} : vector<9x4x4xf32> to vector<1x4x4xf32>
    %1788 = vector.shape_cast %1787 : vector<1x4x4xf32> to vector<4x4xf32>
    %1789 = vector.extract_strided_slice %1788 {offsets = [0, 0], sizes = [4, 1], strides = [1, 1]} : vector<4x4xf32> to vector<4x1xf32>
    %1790 = vector.extract_strided_slice %1654 {offsets = [0, 0], sizes = [1, 256], strides = [1, 1]} : vector<4x256xf32> to vector<1x256xf32>
    %1791 = vector.broadcast %1789 : vector<4x1xf32> to vector<4x256xf32>
    %1792 = vector.broadcast %1790 : vector<1x256xf32> to vector<4x256xf32>
    %1793 = arith.mulf %1791, %1792 : vector<4x256xf32>
    %1794 = arith.addf %1786, %1793 : vector<4x256xf32>
    %1795 = vector.extract_strided_slice %1788 {offsets = [0, 1], sizes = [4, 1], strides = [1, 1]} : vector<4x4xf32> to vector<4x1xf32>
    %1796 = vector.extract_strided_slice %1654 {offsets = [1, 0], sizes = [1, 256], strides = [1, 1]} : vector<4x256xf32> to vector<1x256xf32>
    %1797 = vector.broadcast %1795 : vector<4x1xf32> to vector<4x256xf32>
    %1798 = vector.broadcast %1796 : vector<1x256xf32> to vector<4x256xf32>
    %1799 = arith.mulf %1797, %1798 : vector<4x256xf32>
    %1800 = arith.addf %1794, %1799 : vector<4x256xf32>
    %1801 = vector.extract_strided_slice %1788 {offsets = [0, 2], sizes = [4, 1], strides = [1, 1]} : vector<4x4xf32> to vector<4x1xf32>
    %1802 = vector.extract_strided_slice %1654 {offsets = [2, 0], sizes = [1, 256], strides = [1, 1]} : vector<4x256xf32> to vector<1x256xf32>
    %1803 = vector.broadcast %1801 : vector<4x1xf32> to vector<4x256xf32>
    %1804 = vector.broadcast %1802 : vector<1x256xf32> to vector<4x256xf32>
    %1805 = arith.mulf %1803, %1804 : vector<4x256xf32>
    %1806 = arith.addf %1800, %1805 : vector<4x256xf32>
    %1807 = vector.extract_strided_slice %1788 {offsets = [0, 3], sizes = [4, 1], strides = [1, 1]} : vector<4x4xf32> to vector<4x1xf32>
    %1808 = vector.extract_strided_slice %1654 {offsets = [3, 0], sizes = [1, 256], strides = [1, 1]} : vector<4x256xf32> to vector<1x256xf32>
    %1809 = vector.broadcast %1807 : vector<4x1xf32> to vector<4x256xf32>
    %1810 = vector.broadcast %1808 : vector<1x256xf32> to vector<4x256xf32>
    %1811 = arith.mulf %1809, %1810 : vector<4x256xf32>
    %1812 = arith.addf %1806, %1811 : vector<4x256xf32>
    %1813 = vector.extract_strided_slice %1656 {offsets = [5, 0, 0], sizes = [1, 4, 4], strides = [1, 1, 1]} : vector<9x4x4xf32> to vector<1x4x4xf32>
    %1814 = vector.shape_cast %1813 : vector<1x4x4xf32> to vector<4x4xf32>
    %1815 = vector.extract_strided_slice %1814 {offsets = [0, 0], sizes = [4, 1], strides = [1, 1]} : vector<4x4xf32> to vector<4x1xf32>
    %1816 = vector.extract_strided_slice %1673 {offsets = [0, 0], sizes = [1, 256], strides = [1, 1]} : vector<4x256xf32> to vector<1x256xf32>
    %1817 = vector.broadcast %1815 : vector<4x1xf32> to vector<4x256xf32>
    %1818 = vector.broadcast %1816 : vector<1x256xf32> to vector<4x256xf32>
    %1819 = arith.mulf %1817, %1818 : vector<4x256xf32>
    %1820 = arith.addf %1812, %1819 : vector<4x256xf32>
    %1821 = vector.extract_strided_slice %1814 {offsets = [0, 1], sizes = [4, 1], strides = [1, 1]} : vector<4x4xf32> to vector<4x1xf32>
    %1822 = vector.extract_strided_slice %1673 {offsets = [1, 0], sizes = [1, 256], strides = [1, 1]} : vector<4x256xf32> to vector<1x256xf32>
    %1823 = vector.broadcast %1821 : vector<4x1xf32> to vector<4x256xf32>
    %1824 = vector.broadcast %1822 : vector<1x256xf32> to vector<4x256xf32>
    %1825 = arith.mulf %1823, %1824 : vector<4x256xf32>
    %1826 = arith.addf %1820, %1825 : vector<4x256xf32>
    %1827 = vector.extract_strided_slice %1814 {offsets = [0, 2], sizes = [4, 1], strides = [1, 1]} : vector<4x4xf32> to vector<4x1xf32>
    %1828 = vector.extract_strided_slice %1673 {offsets = [2, 0], sizes = [1, 256], strides = [1, 1]} : vector<4x256xf32> to vector<1x256xf32>
    %1829 = vector.broadcast %1827 : vector<4x1xf32> to vector<4x256xf32>
    %1830 = vector.broadcast %1828 : vector<1x256xf32> to vector<4x256xf32>
    %1831 = arith.mulf %1829, %1830 : vector<4x256xf32>
    %1832 = arith.addf %1826, %1831 : vector<4x256xf32>
    %1833 = vector.extract_strided_slice %1814 {offsets = [0, 3], sizes = [4, 1], strides = [1, 1]} : vector<4x4xf32> to vector<4x1xf32>
    %1834 = vector.extract_strided_slice %1673 {offsets = [3, 0], sizes = [1, 256], strides = [1, 1]} : vector<4x256xf32> to vector<1x256xf32>
    %1835 = vector.broadcast %1833 : vector<4x1xf32> to vector<4x256xf32>
    %1836 = vector.broadcast %1834 : vector<1x256xf32> to vector<4x256xf32>
    %1837 = arith.mulf %1835, %1836 : vector<4x256xf32>
    %1838 = arith.addf %1832, %1837 : vector<4x256xf32>
    %1839 = vector.extract_strided_slice %1666 {offsets = [0, 16], sizes = [4, 240], strides = [1, 1]} : vector<4x256xf32> to vector<4x240xf32>
    %cst_111 = arith.constant 0.000000e+00 : f32
    %1840 = vector.broadcast %cst_111 : f32 to vector<4x16xf32>
    %1841 = tpu.concatenate %1839, %1840 in 1 : vector<4x240xf32>, vector<4x16xf32> -> vector<4x256xf32>
    %1842 = vector.extract_strided_slice %1656 {offsets = [6, 0, 0], sizes = [1, 4, 4], strides = [1, 1, 1]} : vector<9x4x4xf32> to vector<1x4x4xf32>
    %1843 = vector.shape_cast %1842 : vector<1x4x4xf32> to vector<4x4xf32>
    %1844 = vector.extract_strided_slice %1843 {offsets = [0, 0], sizes = [4, 1], strides = [1, 1]} : vector<4x4xf32> to vector<4x1xf32>
    %1845 = vector.extract_strided_slice %1841 {offsets = [0, 0], sizes = [1, 256], strides = [1, 1]} : vector<4x256xf32> to vector<1x256xf32>
    %1846 = vector.broadcast %1844 : vector<4x1xf32> to vector<4x256xf32>
    %1847 = vector.broadcast %1845 : vector<1x256xf32> to vector<4x256xf32>
    %1848 = arith.mulf %1846, %1847 : vector<4x256xf32>
    %1849 = arith.addf %1838, %1848 : vector<4x256xf32>
    %1850 = vector.extract_strided_slice %1843 {offsets = [0, 1], sizes = [4, 1], strides = [1, 1]} : vector<4x4xf32> to vector<4x1xf32>
    %1851 = vector.extract_strided_slice %1841 {offsets = [1, 0], sizes = [1, 256], strides = [1, 1]} : vector<4x256xf32> to vector<1x256xf32>
    %1852 = vector.broadcast %1850 : vector<4x1xf32> to vector<4x256xf32>
    %1853 = vector.broadcast %1851 : vector<1x256xf32> to vector<4x256xf32>
    %1854 = arith.mulf %1852, %1853 : vector<4x256xf32>
    %1855 = arith.addf %1849, %1854 : vector<4x256xf32>
    %1856 = vector.extract_strided_slice %1843 {offsets = [0, 2], sizes = [4, 1], strides = [1, 1]} : vector<4x4xf32> to vector<4x1xf32>
    %1857 = vector.extract_strided_slice %1841 {offsets = [2, 0], sizes = [1, 256], strides = [1, 1]} : vector<4x256xf32> to vector<1x256xf32>
    %1858 = vector.broadcast %1856 : vector<4x1xf32> to vector<4x256xf32>
    %1859 = vector.broadcast %1857 : vector<1x256xf32> to vector<4x256xf32>
    %1860 = arith.mulf %1858, %1859 : vector<4x256xf32>
    %1861 = arith.addf %1855, %1860 : vector<4x256xf32>
    %1862 = vector.extract_strided_slice %1843 {offsets = [0, 3], sizes = [4, 1], strides = [1, 1]} : vector<4x4xf32> to vector<4x1xf32>
    %1863 = vector.extract_strided_slice %1841 {offsets = [3, 0], sizes = [1, 256], strides = [1, 1]} : vector<4x256xf32> to vector<1x256xf32>
    %1864 = vector.broadcast %1862 : vector<4x1xf32> to vector<4x256xf32>
    %1865 = vector.broadcast %1863 : vector<1x256xf32> to vector<4x256xf32>
    %1866 = arith.mulf %1864, %1865 : vector<4x256xf32>
    %1867 = arith.addf %1861, %1866 : vector<4x256xf32>
    %1868 = vector.extract_strided_slice %1654 {offsets = [0, 16], sizes = [4, 240], strides = [1, 1]} : vector<4x256xf32> to vector<4x240xf32>
    %cst_112 = arith.constant 0.000000e+00 : f32
    %1869 = vector.broadcast %cst_112 : f32 to vector<4x16xf32>
    %1870 = tpu.concatenate %1868, %1869 in 1 : vector<4x240xf32>, vector<4x16xf32> -> vector<4x256xf32>
    %1871 = vector.extract_strided_slice %1656 {offsets = [7, 0, 0], sizes = [1, 4, 4], strides = [1, 1, 1]} : vector<9x4x4xf32> to vector<1x4x4xf32>
    %1872 = vector.shape_cast %1871 : vector<1x4x4xf32> to vector<4x4xf32>
    %1873 = vector.extract_strided_slice %1872 {offsets = [0, 0], sizes = [4, 1], strides = [1, 1]} : vector<4x4xf32> to vector<4x1xf32>
    %1874 = vector.extract_strided_slice %1870 {offsets = [0, 0], sizes = [1, 256], strides = [1, 1]} : vector<4x256xf32> to vector<1x256xf32>
    %1875 = vector.broadcast %1873 : vector<4x1xf32> to vector<4x256xf32>
    %1876 = vector.broadcast %1874 : vector<1x256xf32> to vector<4x256xf32>
    %1877 = arith.mulf %1875, %1876 : vector<4x256xf32>
    %1878 = arith.addf %1867, %1877 : vector<4x256xf32>
    %1879 = vector.extract_strided_slice %1872 {offsets = [0, 1], sizes = [4, 1], strides = [1, 1]} : vector<4x4xf32> to vector<4x1xf32>
    %1880 = vector.extract_strided_slice %1870 {offsets = [1, 0], sizes = [1, 256], strides = [1, 1]} : vector<4x256xf32> to vector<1x256xf32>
    %1881 = vector.broadcast %1879 : vector<4x1xf32> to vector<4x256xf32>
    %1882 = vector.broadcast %1880 : vector<1x256xf32> to vector<4x256xf32>
    %1883 = arith.mulf %1881, %1882 : vector<4x256xf32>
    %1884 = arith.addf %1878, %1883 : vector<4x256xf32>
    %1885 = vector.extract_strided_slice %1872 {offsets = [0, 2], sizes = [4, 1], strides = [1, 1]} : vector<4x4xf32> to vector<4x1xf32>
    %1886 = vector.extract_strided_slice %1870 {offsets = [2, 0], sizes = [1, 256], strides = [1, 1]} : vector<4x256xf32> to vector<1x256xf32>
    %1887 = vector.broadcast %1885 : vector<4x1xf32> to vector<4x256xf32>
    %1888 = vector.broadcast %1886 : vector<1x256xf32> to vector<4x256xf32>
    %1889 = arith.mulf %1887, %1888 : vector<4x256xf32>
    %1890 = arith.addf %1884, %1889 : vector<4x256xf32>
    %1891 = vector.extract_strided_slice %1872 {offsets = [0, 3], sizes = [4, 1], strides = [1, 1]} : vector<4x4xf32> to vector<4x1xf32>
    %1892 = vector.extract_strided_slice %1870 {offsets = [3, 0], sizes = [1, 256], strides = [1, 1]} : vector<4x256xf32> to vector<1x256xf32>
    %1893 = vector.broadcast %1891 : vector<4x1xf32> to vector<4x256xf32>
    %1894 = vector.broadcast %1892 : vector<1x256xf32> to vector<4x256xf32>
    %1895 = arith.mulf %1893, %1894 : vector<4x256xf32>
    %1896 = arith.addf %1890, %1895 : vector<4x256xf32>
    %1897 = vector.extract_strided_slice %1673 {offsets = [0, 16], sizes = [4, 240], strides = [1, 1]} : vector<4x256xf32> to vector<4x240xf32>
    %cst_113 = arith.constant 0.000000e+00 : f32
    %1898 = vector.broadcast %cst_113 : f32 to vector<4x16xf32>
    %1899 = tpu.concatenate %1897, %1898 in 1 : vector<4x240xf32>, vector<4x16xf32> -> vector<4x256xf32>
    %1900 = vector.extract_strided_slice %1656 {offsets = [8, 0, 0], sizes = [1, 4, 4], strides = [1, 1, 1]} : vector<9x4x4xf32> to vector<1x4x4xf32>
    %1901 = vector.shape_cast %1900 : vector<1x4x4xf32> to vector<4x4xf32>
    %1902 = vector.extract_strided_slice %1901 {offsets = [0, 0], sizes = [4, 1], strides = [1, 1]} : vector<4x4xf32> to vector<4x1xf32>
    %1903 = vector.extract_strided_slice %1899 {offsets = [0, 0], sizes = [1, 256], strides = [1, 1]} : vector<4x256xf32> to vector<1x256xf32>
    %1904 = vector.broadcast %1902 : vector<4x1xf32> to vector<4x256xf32>
    %1905 = vector.broadcast %1903 : vector<1x256xf32> to vector<4x256xf32>
    %1906 = arith.mulf %1904, %1905 : vector<4x256xf32>
    %1907 = arith.addf %1896, %1906 : vector<4x256xf32>
    %1908 = vector.extract_strided_slice %1901 {offsets = [0, 1], sizes = [4, 1], strides = [1, 1]} : vector<4x4xf32> to vector<4x1xf32>
    %1909 = vector.extract_strided_slice %1899 {offsets = [1, 0], sizes = [1, 256], strides = [1, 1]} : vector<4x256xf32> to vector<1x256xf32>
    %1910 = vector.broadcast %1908 : vector<4x1xf32> to vector<4x256xf32>
    %1911 = vector.broadcast %1909 : vector<1x256xf32> to vector<4x256xf32>
    %1912 = arith.mulf %1910, %1911 : vector<4x256xf32>
    %1913 = arith.addf %1907, %1912 : vector<4x256xf32>
    %1914 = vector.extract_strided_slice %1901 {offsets = [0, 2], sizes = [4, 1], strides = [1, 1]} : vector<4x4xf32> to vector<4x1xf32>
    %1915 = vector.extract_strided_slice %1899 {offsets = [2, 0], sizes = [1, 256], strides = [1, 1]} : vector<4x256xf32> to vector<1x256xf32>
    %1916 = vector.broadcast %1914 : vector<4x1xf32> to vector<4x256xf32>
    %1917 = vector.broadcast %1915 : vector<1x256xf32> to vector<4x256xf32>
    %1918 = arith.mulf %1916, %1917 : vector<4x256xf32>
    %1919 = arith.addf %1913, %1918 : vector<4x256xf32>
    %1920 = vector.extract_strided_slice %1901 {offsets = [0, 3], sizes = [4, 1], strides = [1, 1]} : vector<4x4xf32> to vector<4x1xf32>
    %1921 = vector.extract_strided_slice %1899 {offsets = [3, 0], sizes = [1, 256], strides = [1, 1]} : vector<4x256xf32> to vector<1x256xf32>
    %1922 = vector.broadcast %1920 : vector<4x1xf32> to vector<4x256xf32>
    %1923 = vector.broadcast %1921 : vector<1x256xf32> to vector<4x256xf32>
    %1924 = arith.mulf %1922, %1923 : vector<4x256xf32>
    %1925 = arith.addf %1919, %1924 : vector<4x256xf32>
    %cst_114 = arith.constant 0.000000e+00 : f32
    %1926 = vector.broadcast %cst_114 : f32 to vector<4x256xf32>
    %1927 = arith.maximumf %1925, %1926 : vector<4x256xf32>
    %c1_115 = arith.constant 1 : index
    %c0_116 = arith.constant 0 : index
    %c0_117 = arith.constant 0 : index
    %c0_118 = arith.constant 0 : index
    %1928 = vector.load %arg5[%c1_115, %c0_116, %c0_117, %c0_118] : memref<2x9x4x4xf32, #tpu.memory_space<vmem>>, vector<1x9x4x4xf32>
    %1929 = vector.shape_cast %1928 : vector<1x9x4x4xf32> to vector<9x4x4xf32>
    %c0_119 = arith.constant 0 : index
    %c6 = arith.constant 6 : index
    %1930 = vector.load %arg6[%c0_119, %c6] : memref<4x7xf32, #tpu.memory_space<vmem>>, vector<4x1xf32>
    %1931 = vector.shape_cast %1930 : vector<4x1xf32> to vector<4x1xf32>
    %1932 = vector.broadcast %1931 : vector<4x1xf32> to vector<4x256xf32>
    %cst_120 = arith.constant 0.000000e+00 : f32
    %1933 = vector.broadcast %cst_120 : f32 to vector<4x1xf32>
    %1934 = vector.extract_strided_slice %1927 {offsets = [0, 0], sizes = [4, 255], strides = [1, 1]} : vector<4x256xf32> to vector<4x255xf32>
    %1935 = tpu.concatenate %1933, %1934 in 1 : vector<4x1xf32>, vector<4x255xf32> -> vector<4x256xf32>
    %cst_121 = arith.constant 0.000000e+00 : f32
    %1936 = vector.shape_cast %18 : vector<1x256xi1> to vector<1x256xi1>
    %1937 = vector.broadcast %1936 : vector<1x256xi1> to vector<4x256xi1>
    %1938 = vector.broadcast %cst_121 : f32 to vector<4x256xf32>
    %1939 = arith.select %1937, %1938, %1935 : vector<4x256xi1>, vector<4x256xf32>
    %1940 = vector.extract_strided_slice %1927 {offsets = [0, 1], sizes = [4, 255], strides = [1, 1]} : vector<4x256xf32> to vector<4x255xf32>
    %cst_122 = arith.constant 0.000000e+00 : f32
    %1941 = vector.broadcast %cst_122 : f32 to vector<4x1xf32>
    %1942 = tpu.concatenate %1940, %1941 in 1 : vector<4x255xf32>, vector<4x1xf32> -> vector<4x256xf32>
    %cst_123 = arith.constant 0.000000e+00 : f32
    %1943 = vector.shape_cast %20 : vector<1x256xi1> to vector<1x256xi1>
    %1944 = vector.broadcast %1943 : vector<1x256xi1> to vector<4x256xi1>
    %1945 = vector.broadcast %cst_123 : f32 to vector<4x256xf32>
    %1946 = arith.select %1944, %1945, %1942 : vector<4x256xi1>, vector<4x256xf32>
    %cst_124 = arith.constant 0.000000e+00 : f32
    %1947 = vector.broadcast %cst_124 : f32 to vector<4x16xf32>
    %1948 = vector.extract_strided_slice %1939 {offsets = [0, 0], sizes = [4, 240], strides = [1, 1]} : vector<4x256xf32> to vector<4x240xf32>
    %1949 = tpu.concatenate %1947, %1948 in 1 : vector<4x16xf32>, vector<4x240xf32> -> vector<4x256xf32>
    %1950 = vector.extract_strided_slice %1929 {offsets = [0, 0, 0], sizes = [1, 4, 4], strides = [1, 1, 1]} : vector<9x4x4xf32> to vector<1x4x4xf32>
    %1951 = vector.shape_cast %1950 : vector<1x4x4xf32> to vector<4x4xf32>
    %1952 = vector.extract_strided_slice %1951 {offsets = [0, 0], sizes = [4, 1], strides = [1, 1]} : vector<4x4xf32> to vector<4x1xf32>
    %1953 = vector.extract_strided_slice %1949 {offsets = [0, 0], sizes = [1, 256], strides = [1, 1]} : vector<4x256xf32> to vector<1x256xf32>
    %1954 = vector.broadcast %1952 : vector<4x1xf32> to vector<4x256xf32>
    %1955 = vector.broadcast %1953 : vector<1x256xf32> to vector<4x256xf32>
    %1956 = arith.mulf %1954, %1955 : vector<4x256xf32>
    %1957 = arith.addf %1932, %1956 : vector<4x256xf32>
    %1958 = vector.extract_strided_slice %1951 {offsets = [0, 1], sizes = [4, 1], strides = [1, 1]} : vector<4x4xf32> to vector<4x1xf32>
    %1959 = vector.extract_strided_slice %1949 {offsets = [1, 0], sizes = [1, 256], strides = [1, 1]} : vector<4x256xf32> to vector<1x256xf32>
    %1960 = vector.broadcast %1958 : vector<4x1xf32> to vector<4x256xf32>
    %1961 = vector.broadcast %1959 : vector<1x256xf32> to vector<4x256xf32>
    %1962 = arith.mulf %1960, %1961 : vector<4x256xf32>
    %1963 = arith.addf %1957, %1962 : vector<4x256xf32>
    %1964 = vector.extract_strided_slice %1951 {offsets = [0, 2], sizes = [4, 1], strides = [1, 1]} : vector<4x4xf32> to vector<4x1xf32>
    %1965 = vector.extract_strided_slice %1949 {offsets = [2, 0], sizes = [1, 256], strides = [1, 1]} : vector<4x256xf32> to vector<1x256xf32>
    %1966 = vector.broadcast %1964 : vector<4x1xf32> to vector<4x256xf32>
    %1967 = vector.broadcast %1965 : vector<1x256xf32> to vector<4x256xf32>
    %1968 = arith.mulf %1966, %1967 : vector<4x256xf32>
    %1969 = arith.addf %1963, %1968 : vector<4x256xf32>
    %1970 = vector.extract_strided_slice %1951 {offsets = [0, 3], sizes = [4, 1], strides = [1, 1]} : vector<4x4xf32> to vector<4x1xf32>
    %1971 = vector.extract_strided_slice %1949 {offsets = [3, 0], sizes = [1, 256], strides = [1, 1]} : vector<4x256xf32> to vector<1x256xf32>
    %1972 = vector.broadcast %1970 : vector<4x1xf32> to vector<4x256xf32>
    %1973 = vector.broadcast %1971 : vector<1x256xf32> to vector<4x256xf32>
    %1974 = arith.mulf %1972, %1973 : vector<4x256xf32>
    %1975 = arith.addf %1969, %1974 : vector<4x256xf32>
    %cst_125 = arith.constant 0.000000e+00 : f32
    %1976 = vector.broadcast %cst_125 : f32 to vector<4x16xf32>
    %1977 = vector.extract_strided_slice %1927 {offsets = [0, 0], sizes = [4, 240], strides = [1, 1]} : vector<4x256xf32> to vector<4x240xf32>
    %1978 = tpu.concatenate %1976, %1977 in 1 : vector<4x16xf32>, vector<4x240xf32> -> vector<4x256xf32>
    %1979 = vector.extract_strided_slice %1929 {offsets = [1, 0, 0], sizes = [1, 4, 4], strides = [1, 1, 1]} : vector<9x4x4xf32> to vector<1x4x4xf32>
    %1980 = vector.shape_cast %1979 : vector<1x4x4xf32> to vector<4x4xf32>
    %1981 = vector.extract_strided_slice %1980 {offsets = [0, 0], sizes = [4, 1], strides = [1, 1]} : vector<4x4xf32> to vector<4x1xf32>
    %1982 = vector.extract_strided_slice %1978 {offsets = [0, 0], sizes = [1, 256], strides = [1, 1]} : vector<4x256xf32> to vector<1x256xf32>
    %1983 = vector.broadcast %1981 : vector<4x1xf32> to vector<4x256xf32>
    %1984 = vector.broadcast %1982 : vector<1x256xf32> to vector<4x256xf32>
    %1985 = arith.mulf %1983, %1984 : vector<4x256xf32>
    %1986 = arith.addf %1975, %1985 : vector<4x256xf32>
    %1987 = vector.extract_strided_slice %1980 {offsets = [0, 1], sizes = [4, 1], strides = [1, 1]} : vector<4x4xf32> to vector<4x1xf32>
    %1988 = vector.extract_strided_slice %1978 {offsets = [1, 0], sizes = [1, 256], strides = [1, 1]} : vector<4x256xf32> to vector<1x256xf32>
    %1989 = vector.broadcast %1987 : vector<4x1xf32> to vector<4x256xf32>
    %1990 = vector.broadcast %1988 : vector<1x256xf32> to vector<4x256xf32>
    %1991 = arith.mulf %1989, %1990 : vector<4x256xf32>
    %1992 = arith.addf %1986, %1991 : vector<4x256xf32>
    %1993 = vector.extract_strided_slice %1980 {offsets = [0, 2], sizes = [4, 1], strides = [1, 1]} : vector<4x4xf32> to vector<4x1xf32>
    %1994 = vector.extract_strided_slice %1978 {offsets = [2, 0], sizes = [1, 256], strides = [1, 1]} : vector<4x256xf32> to vector<1x256xf32>
    %1995 = vector.broadcast %1993 : vector<4x1xf32> to vector<4x256xf32>
    %1996 = vector.broadcast %1994 : vector<1x256xf32> to vector<4x256xf32>
    %1997 = arith.mulf %1995, %1996 : vector<4x256xf32>
    %1998 = arith.addf %1992, %1997 : vector<4x256xf32>
    %1999 = vector.extract_strided_slice %1980 {offsets = [0, 3], sizes = [4, 1], strides = [1, 1]} : vector<4x4xf32> to vector<4x1xf32>
    %2000 = vector.extract_strided_slice %1978 {offsets = [3, 0], sizes = [1, 256], strides = [1, 1]} : vector<4x256xf32> to vector<1x256xf32>
    %2001 = vector.broadcast %1999 : vector<4x1xf32> to vector<4x256xf32>
    %2002 = vector.broadcast %2000 : vector<1x256xf32> to vector<4x256xf32>
    %2003 = arith.mulf %2001, %2002 : vector<4x256xf32>
    %2004 = arith.addf %1998, %2003 : vector<4x256xf32>
    %cst_126 = arith.constant 0.000000e+00 : f32
    %2005 = vector.broadcast %cst_126 : f32 to vector<4x16xf32>
    %2006 = vector.extract_strided_slice %1946 {offsets = [0, 0], sizes = [4, 240], strides = [1, 1]} : vector<4x256xf32> to vector<4x240xf32>
    %2007 = tpu.concatenate %2005, %2006 in 1 : vector<4x16xf32>, vector<4x240xf32> -> vector<4x256xf32>
    %2008 = vector.extract_strided_slice %1929 {offsets = [2, 0, 0], sizes = [1, 4, 4], strides = [1, 1, 1]} : vector<9x4x4xf32> to vector<1x4x4xf32>
    %2009 = vector.shape_cast %2008 : vector<1x4x4xf32> to vector<4x4xf32>
    %2010 = vector.extract_strided_slice %2009 {offsets = [0, 0], sizes = [4, 1], strides = [1, 1]} : vector<4x4xf32> to vector<4x1xf32>
    %2011 = vector.extract_strided_slice %2007 {offsets = [0, 0], sizes = [1, 256], strides = [1, 1]} : vector<4x256xf32> to vector<1x256xf32>
    %2012 = vector.broadcast %2010 : vector<4x1xf32> to vector<4x256xf32>
    %2013 = vector.broadcast %2011 : vector<1x256xf32> to vector<4x256xf32>
    %2014 = arith.mulf %2012, %2013 : vector<4x256xf32>
    %2015 = arith.addf %2004, %2014 : vector<4x256xf32>
    %2016 = vector.extract_strided_slice %2009 {offsets = [0, 1], sizes = [4, 1], strides = [1, 1]} : vector<4x4xf32> to vector<4x1xf32>
    %2017 = vector.extract_strided_slice %2007 {offsets = [1, 0], sizes = [1, 256], strides = [1, 1]} : vector<4x256xf32> to vector<1x256xf32>
    %2018 = vector.broadcast %2016 : vector<4x1xf32> to vector<4x256xf32>
    %2019 = vector.broadcast %2017 : vector<1x256xf32> to vector<4x256xf32>
    %2020 = arith.mulf %2018, %2019 : vector<4x256xf32>
    %2021 = arith.addf %2015, %2020 : vector<4x256xf32>
    %2022 = vector.extract_strided_slice %2009 {offsets = [0, 2], sizes = [4, 1], strides = [1, 1]} : vector<4x4xf32> to vector<4x1xf32>
    %2023 = vector.extract_strided_slice %2007 {offsets = [2, 0], sizes = [1, 256], strides = [1, 1]} : vector<4x256xf32> to vector<1x256xf32>
    %2024 = vector.broadcast %2022 : vector<4x1xf32> to vector<4x256xf32>
    %2025 = vector.broadcast %2023 : vector<1x256xf32> to vector<4x256xf32>
    %2026 = arith.mulf %2024, %2025 : vector<4x256xf32>
    %2027 = arith.addf %2021, %2026 : vector<4x256xf32>
    %2028 = vector.extract_strided_slice %2009 {offsets = [0, 3], sizes = [4, 1], strides = [1, 1]} : vector<4x4xf32> to vector<4x1xf32>
    %2029 = vector.extract_strided_slice %2007 {offsets = [3, 0], sizes = [1, 256], strides = [1, 1]} : vector<4x256xf32> to vector<1x256xf32>
    %2030 = vector.broadcast %2028 : vector<4x1xf32> to vector<4x256xf32>
    %2031 = vector.broadcast %2029 : vector<1x256xf32> to vector<4x256xf32>
    %2032 = arith.mulf %2030, %2031 : vector<4x256xf32>
    %2033 = arith.addf %2027, %2032 : vector<4x256xf32>
    %2034 = vector.extract_strided_slice %1929 {offsets = [3, 0, 0], sizes = [1, 4, 4], strides = [1, 1, 1]} : vector<9x4x4xf32> to vector<1x4x4xf32>
    %2035 = vector.shape_cast %2034 : vector<1x4x4xf32> to vector<4x4xf32>
    %2036 = vector.extract_strided_slice %2035 {offsets = [0, 0], sizes = [4, 1], strides = [1, 1]} : vector<4x4xf32> to vector<4x1xf32>
    %2037 = vector.extract_strided_slice %1939 {offsets = [0, 0], sizes = [1, 256], strides = [1, 1]} : vector<4x256xf32> to vector<1x256xf32>
    %2038 = vector.broadcast %2036 : vector<4x1xf32> to vector<4x256xf32>
    %2039 = vector.broadcast %2037 : vector<1x256xf32> to vector<4x256xf32>
    %2040 = arith.mulf %2038, %2039 : vector<4x256xf32>
    %2041 = arith.addf %2033, %2040 : vector<4x256xf32>
    %2042 = vector.extract_strided_slice %2035 {offsets = [0, 1], sizes = [4, 1], strides = [1, 1]} : vector<4x4xf32> to vector<4x1xf32>
    %2043 = vector.extract_strided_slice %1939 {offsets = [1, 0], sizes = [1, 256], strides = [1, 1]} : vector<4x256xf32> to vector<1x256xf32>
    %2044 = vector.broadcast %2042 : vector<4x1xf32> to vector<4x256xf32>
    %2045 = vector.broadcast %2043 : vector<1x256xf32> to vector<4x256xf32>
    %2046 = arith.mulf %2044, %2045 : vector<4x256xf32>
    %2047 = arith.addf %2041, %2046 : vector<4x256xf32>
    %2048 = vector.extract_strided_slice %2035 {offsets = [0, 2], sizes = [4, 1], strides = [1, 1]} : vector<4x4xf32> to vector<4x1xf32>
    %2049 = vector.extract_strided_slice %1939 {offsets = [2, 0], sizes = [1, 256], strides = [1, 1]} : vector<4x256xf32> to vector<1x256xf32>
    %2050 = vector.broadcast %2048 : vector<4x1xf32> to vector<4x256xf32>
    %2051 = vector.broadcast %2049 : vector<1x256xf32> to vector<4x256xf32>
    %2052 = arith.mulf %2050, %2051 : vector<4x256xf32>
    %2053 = arith.addf %2047, %2052 : vector<4x256xf32>
    %2054 = vector.extract_strided_slice %2035 {offsets = [0, 3], sizes = [4, 1], strides = [1, 1]} : vector<4x4xf32> to vector<4x1xf32>
    %2055 = vector.extract_strided_slice %1939 {offsets = [3, 0], sizes = [1, 256], strides = [1, 1]} : vector<4x256xf32> to vector<1x256xf32>
    %2056 = vector.broadcast %2054 : vector<4x1xf32> to vector<4x256xf32>
    %2057 = vector.broadcast %2055 : vector<1x256xf32> to vector<4x256xf32>
    %2058 = arith.mulf %2056, %2057 : vector<4x256xf32>
    %2059 = arith.addf %2053, %2058 : vector<4x256xf32>
    %2060 = vector.extract_strided_slice %1929 {offsets = [4, 0, 0], sizes = [1, 4, 4], strides = [1, 1, 1]} : vector<9x4x4xf32> to vector<1x4x4xf32>
    %2061 = vector.shape_cast %2060 : vector<1x4x4xf32> to vector<4x4xf32>
    %2062 = vector.extract_strided_slice %2061 {offsets = [0, 0], sizes = [4, 1], strides = [1, 1]} : vector<4x4xf32> to vector<4x1xf32>
    %2063 = vector.extract_strided_slice %1927 {offsets = [0, 0], sizes = [1, 256], strides = [1, 1]} : vector<4x256xf32> to vector<1x256xf32>
    %2064 = vector.broadcast %2062 : vector<4x1xf32> to vector<4x256xf32>
    %2065 = vector.broadcast %2063 : vector<1x256xf32> to vector<4x256xf32>
    %2066 = arith.mulf %2064, %2065 : vector<4x256xf32>
    %2067 = arith.addf %2059, %2066 : vector<4x256xf32>
    %2068 = vector.extract_strided_slice %2061 {offsets = [0, 1], sizes = [4, 1], strides = [1, 1]} : vector<4x4xf32> to vector<4x1xf32>
    %2069 = vector.extract_strided_slice %1927 {offsets = [1, 0], sizes = [1, 256], strides = [1, 1]} : vector<4x256xf32> to vector<1x256xf32>
    %2070 = vector.broadcast %2068 : vector<4x1xf32> to vector<4x256xf32>
    %2071 = vector.broadcast %2069 : vector<1x256xf32> to vector<4x256xf32>
    %2072 = arith.mulf %2070, %2071 : vector<4x256xf32>
    %2073 = arith.addf %2067, %2072 : vector<4x256xf32>
    %2074 = vector.extract_strided_slice %2061 {offsets = [0, 2], sizes = [4, 1], strides = [1, 1]} : vector<4x4xf32> to vector<4x1xf32>
    %2075 = vector.extract_strided_slice %1927 {offsets = [2, 0], sizes = [1, 256], strides = [1, 1]} : vector<4x256xf32> to vector<1x256xf32>
    %2076 = vector.broadcast %2074 : vector<4x1xf32> to vector<4x256xf32>
    %2077 = vector.broadcast %2075 : vector<1x256xf32> to vector<4x256xf32>
    %2078 = arith.mulf %2076, %2077 : vector<4x256xf32>
    %2079 = arith.addf %2073, %2078 : vector<4x256xf32>
    %2080 = vector.extract_strided_slice %2061 {offsets = [0, 3], sizes = [4, 1], strides = [1, 1]} : vector<4x4xf32> to vector<4x1xf32>
    %2081 = vector.extract_strided_slice %1927 {offsets = [3, 0], sizes = [1, 256], strides = [1, 1]} : vector<4x256xf32> to vector<1x256xf32>
    %2082 = vector.broadcast %2080 : vector<4x1xf32> to vector<4x256xf32>
    %2083 = vector.broadcast %2081 : vector<1x256xf32> to vector<4x256xf32>
    %2084 = arith.mulf %2082, %2083 : vector<4x256xf32>
    %2085 = arith.addf %2079, %2084 : vector<4x256xf32>
    %2086 = vector.extract_strided_slice %1929 {offsets = [5, 0, 0], sizes = [1, 4, 4], strides = [1, 1, 1]} : vector<9x4x4xf32> to vector<1x4x4xf32>
    %2087 = vector.shape_cast %2086 : vector<1x4x4xf32> to vector<4x4xf32>
    %2088 = vector.extract_strided_slice %2087 {offsets = [0, 0], sizes = [4, 1], strides = [1, 1]} : vector<4x4xf32> to vector<4x1xf32>
    %2089 = vector.extract_strided_slice %1946 {offsets = [0, 0], sizes = [1, 256], strides = [1, 1]} : vector<4x256xf32> to vector<1x256xf32>
    %2090 = vector.broadcast %2088 : vector<4x1xf32> to vector<4x256xf32>
    %2091 = vector.broadcast %2089 : vector<1x256xf32> to vector<4x256xf32>
    %2092 = arith.mulf %2090, %2091 : vector<4x256xf32>
    %2093 = arith.addf %2085, %2092 : vector<4x256xf32>
    %2094 = vector.extract_strided_slice %2087 {offsets = [0, 1], sizes = [4, 1], strides = [1, 1]} : vector<4x4xf32> to vector<4x1xf32>
    %2095 = vector.extract_strided_slice %1946 {offsets = [1, 0], sizes = [1, 256], strides = [1, 1]} : vector<4x256xf32> to vector<1x256xf32>
    %2096 = vector.broadcast %2094 : vector<4x1xf32> to vector<4x256xf32>
    %2097 = vector.broadcast %2095 : vector<1x256xf32> to vector<4x256xf32>
    %2098 = arith.mulf %2096, %2097 : vector<4x256xf32>
    %2099 = arith.addf %2093, %2098 : vector<4x256xf32>
    %2100 = vector.extract_strided_slice %2087 {offsets = [0, 2], sizes = [4, 1], strides = [1, 1]} : vector<4x4xf32> to vector<4x1xf32>
    %2101 = vector.extract_strided_slice %1946 {offsets = [2, 0], sizes = [1, 256], strides = [1, 1]} : vector<4x256xf32> to vector<1x256xf32>
    %2102 = vector.broadcast %2100 : vector<4x1xf32> to vector<4x256xf32>
    %2103 = vector.broadcast %2101 : vector<1x256xf32> to vector<4x256xf32>
    %2104 = arith.mulf %2102, %2103 : vector<4x256xf32>
    %2105 = arith.addf %2099, %2104 : vector<4x256xf32>
    %2106 = vector.extract_strided_slice %2087 {offsets = [0, 3], sizes = [4, 1], strides = [1, 1]} : vector<4x4xf32> to vector<4x1xf32>
    %2107 = vector.extract_strided_slice %1946 {offsets = [3, 0], sizes = [1, 256], strides = [1, 1]} : vector<4x256xf32> to vector<1x256xf32>
    %2108 = vector.broadcast %2106 : vector<4x1xf32> to vector<4x256xf32>
    %2109 = vector.broadcast %2107 : vector<1x256xf32> to vector<4x256xf32>
    %2110 = arith.mulf %2108, %2109 : vector<4x256xf32>
    %2111 = arith.addf %2105, %2110 : vector<4x256xf32>
    %2112 = vector.extract_strided_slice %1939 {offsets = [0, 16], sizes = [4, 240], strides = [1, 1]} : vector<4x256xf32> to vector<4x240xf32>
    %cst_127 = arith.constant 0.000000e+00 : f32
    %2113 = vector.broadcast %cst_127 : f32 to vector<4x16xf32>
    %2114 = tpu.concatenate %2112, %2113 in 1 : vector<4x240xf32>, vector<4x16xf32> -> vector<4x256xf32>
    %2115 = vector.extract_strided_slice %1929 {offsets = [6, 0, 0], sizes = [1, 4, 4], strides = [1, 1, 1]} : vector<9x4x4xf32> to vector<1x4x4xf32>
    %2116 = vector.shape_cast %2115 : vector<1x4x4xf32> to vector<4x4xf32>
    %2117 = vector.extract_strided_slice %2116 {offsets = [0, 0], sizes = [4, 1], strides = [1, 1]} : vector<4x4xf32> to vector<4x1xf32>
    %2118 = vector.extract_strided_slice %2114 {offsets = [0, 0], sizes = [1, 256], strides = [1, 1]} : vector<4x256xf32> to vector<1x256xf32>
    %2119 = vector.broadcast %2117 : vector<4x1xf32> to vector<4x256xf32>
    %2120 = vector.broadcast %2118 : vector<1x256xf32> to vector<4x256xf32>
    %2121 = arith.mulf %2119, %2120 : vector<4x256xf32>
    %2122 = arith.addf %2111, %2121 : vector<4x256xf32>
    %2123 = vector.extract_strided_slice %2116 {offsets = [0, 1], sizes = [4, 1], strides = [1, 1]} : vector<4x4xf32> to vector<4x1xf32>
    %2124 = vector.extract_strided_slice %2114 {offsets = [1, 0], sizes = [1, 256], strides = [1, 1]} : vector<4x256xf32> to vector<1x256xf32>
    %2125 = vector.broadcast %2123 : vector<4x1xf32> to vector<4x256xf32>
    %2126 = vector.broadcast %2124 : vector<1x256xf32> to vector<4x256xf32>
    %2127 = arith.mulf %2125, %2126 : vector<4x256xf32>
    %2128 = arith.addf %2122, %2127 : vector<4x256xf32>
    %2129 = vector.extract_strided_slice %2116 {offsets = [0, 2], sizes = [4, 1], strides = [1, 1]} : vector<4x4xf32> to vector<4x1xf32>
    %2130 = vector.extract_strided_slice %2114 {offsets = [2, 0], sizes = [1, 256], strides = [1, 1]} : vector<4x256xf32> to vector<1x256xf32>
    %2131 = vector.broadcast %2129 : vector<4x1xf32> to vector<4x256xf32>
    %2132 = vector.broadcast %2130 : vector<1x256xf32> to vector<4x256xf32>
    %2133 = arith.mulf %2131, %2132 : vector<4x256xf32>
    %2134 = arith.addf %2128, %2133 : vector<4x256xf32>
    %2135 = vector.extract_strided_slice %2116 {offsets = [0, 3], sizes = [4, 1], strides = [1, 1]} : vector<4x4xf32> to vector<4x1xf32>
    %2136 = vector.extract_strided_slice %2114 {offsets = [3, 0], sizes = [1, 256], strides = [1, 1]} : vector<4x256xf32> to vector<1x256xf32>
    %2137 = vector.broadcast %2135 : vector<4x1xf32> to vector<4x256xf32>
    %2138 = vector.broadcast %2136 : vector<1x256xf32> to vector<4x256xf32>
    %2139 = arith.mulf %2137, %2138 : vector<4x256xf32>
    %2140 = arith.addf %2134, %2139 : vector<4x256xf32>
    %2141 = vector.extract_strided_slice %1927 {offsets = [0, 16], sizes = [4, 240], strides = [1, 1]} : vector<4x256xf32> to vector<4x240xf32>
    %cst_128 = arith.constant 0.000000e+00 : f32
    %2142 = vector.broadcast %cst_128 : f32 to vector<4x16xf32>
    %2143 = tpu.concatenate %2141, %2142 in 1 : vector<4x240xf32>, vector<4x16xf32> -> vector<4x256xf32>
    %2144 = vector.extract_strided_slice %1929 {offsets = [7, 0, 0], sizes = [1, 4, 4], strides = [1, 1, 1]} : vector<9x4x4xf32> to vector<1x4x4xf32>
    %2145 = vector.shape_cast %2144 : vector<1x4x4xf32> to vector<4x4xf32>
    %2146 = vector.extract_strided_slice %2145 {offsets = [0, 0], sizes = [4, 1], strides = [1, 1]} : vector<4x4xf32> to vector<4x1xf32>
    %2147 = vector.extract_strided_slice %2143 {offsets = [0, 0], sizes = [1, 256], strides = [1, 1]} : vector<4x256xf32> to vector<1x256xf32>
    %2148 = vector.broadcast %2146 : vector<4x1xf32> to vector<4x256xf32>
    %2149 = vector.broadcast %2147 : vector<1x256xf32> to vector<4x256xf32>
    %2150 = arith.mulf %2148, %2149 : vector<4x256xf32>
    %2151 = arith.addf %2140, %2150 : vector<4x256xf32>
    %2152 = vector.extract_strided_slice %2145 {offsets = [0, 1], sizes = [4, 1], strides = [1, 1]} : vector<4x4xf32> to vector<4x1xf32>
    %2153 = vector.extract_strided_slice %2143 {offsets = [1, 0], sizes = [1, 256], strides = [1, 1]} : vector<4x256xf32> to vector<1x256xf32>
    %2154 = vector.broadcast %2152 : vector<4x1xf32> to vector<4x256xf32>
    %2155 = vector.broadcast %2153 : vector<1x256xf32> to vector<4x256xf32>
    %2156 = arith.mulf %2154, %2155 : vector<4x256xf32>
    %2157 = arith.addf %2151, %2156 : vector<4x256xf32>
    %2158 = vector.extract_strided_slice %2145 {offsets = [0, 2], sizes = [4, 1], strides = [1, 1]} : vector<4x4xf32> to vector<4x1xf32>
    %2159 = vector.extract_strided_slice %2143 {offsets = [2, 0], sizes = [1, 256], strides = [1, 1]} : vector<4x256xf32> to vector<1x256xf32>
    %2160 = vector.broadcast %2158 : vector<4x1xf32> to vector<4x256xf32>
    %2161 = vector.broadcast %2159 : vector<1x256xf32> to vector<4x256xf32>
    %2162 = arith.mulf %2160, %2161 : vector<4x256xf32>
    %2163 = arith.addf %2157, %2162 : vector<4x256xf32>
    %2164 = vector.extract_strided_slice %2145 {offsets = [0, 3], sizes = [4, 1], strides = [1, 1]} : vector<4x4xf32> to vector<4x1xf32>
    %2165 = vector.extract_strided_slice %2143 {offsets = [3, 0], sizes = [1, 256], strides = [1, 1]} : vector<4x256xf32> to vector<1x256xf32>
    %2166 = vector.broadcast %2164 : vector<4x1xf32> to vector<4x256xf32>
    %2167 = vector.broadcast %2165 : vector<1x256xf32> to vector<4x256xf32>
    %2168 = arith.mulf %2166, %2167 : vector<4x256xf32>
    %2169 = arith.addf %2163, %2168 : vector<4x256xf32>
    %2170 = vector.extract_strided_slice %1946 {offsets = [0, 16], sizes = [4, 240], strides = [1, 1]} : vector<4x256xf32> to vector<4x240xf32>
    %cst_129 = arith.constant 0.000000e+00 : f32
    %2171 = vector.broadcast %cst_129 : f32 to vector<4x16xf32>
    %2172 = tpu.concatenate %2170, %2171 in 1 : vector<4x240xf32>, vector<4x16xf32> -> vector<4x256xf32>
    %2173 = vector.extract_strided_slice %1929 {offsets = [8, 0, 0], sizes = [1, 4, 4], strides = [1, 1, 1]} : vector<9x4x4xf32> to vector<1x4x4xf32>
    %2174 = vector.shape_cast %2173 : vector<1x4x4xf32> to vector<4x4xf32>
    %2175 = vector.extract_strided_slice %2174 {offsets = [0, 0], sizes = [4, 1], strides = [1, 1]} : vector<4x4xf32> to vector<4x1xf32>
    %2176 = vector.extract_strided_slice %2172 {offsets = [0, 0], sizes = [1, 256], strides = [1, 1]} : vector<4x256xf32> to vector<1x256xf32>
    %2177 = vector.broadcast %2175 : vector<4x1xf32> to vector<4x256xf32>
    %2178 = vector.broadcast %2176 : vector<1x256xf32> to vector<4x256xf32>
    %2179 = arith.mulf %2177, %2178 : vector<4x256xf32>
    %2180 = arith.addf %2169, %2179 : vector<4x256xf32>
    %2181 = vector.extract_strided_slice %2174 {offsets = [0, 1], sizes = [4, 1], strides = [1, 1]} : vector<4x4xf32> to vector<4x1xf32>
    %2182 = vector.extract_strided_slice %2172 {offsets = [1, 0], sizes = [1, 256], strides = [1, 1]} : vector<4x256xf32> to vector<1x256xf32>
    %2183 = vector.broadcast %2181 : vector<4x1xf32> to vector<4x256xf32>
    %2184 = vector.broadcast %2182 : vector<1x256xf32> to vector<4x256xf32>
    %2185 = arith.mulf %2183, %2184 : vector<4x256xf32>
    %2186 = arith.addf %2180, %2185 : vector<4x256xf32>
    %2187 = vector.extract_strided_slice %2174 {offsets = [0, 2], sizes = [4, 1], strides = [1, 1]} : vector<4x4xf32> to vector<4x1xf32>
    %2188 = vector.extract_strided_slice %2172 {offsets = [2, 0], sizes = [1, 256], strides = [1, 1]} : vector<4x256xf32> to vector<1x256xf32>
    %2189 = vector.broadcast %2187 : vector<4x1xf32> to vector<4x256xf32>
    %2190 = vector.broadcast %2188 : vector<1x256xf32> to vector<4x256xf32>
    %2191 = arith.mulf %2189, %2190 : vector<4x256xf32>
    %2192 = arith.addf %2186, %2191 : vector<4x256xf32>
    %2193 = vector.extract_strided_slice %2174 {offsets = [0, 3], sizes = [4, 1], strides = [1, 1]} : vector<4x4xf32> to vector<4x1xf32>
    %2194 = vector.extract_strided_slice %2172 {offsets = [3, 0], sizes = [1, 256], strides = [1, 1]} : vector<4x256xf32> to vector<1x256xf32>
    %2195 = vector.broadcast %2193 : vector<4x1xf32> to vector<4x256xf32>
    %2196 = vector.broadcast %2194 : vector<1x256xf32> to vector<4x256xf32>
    %2197 = arith.mulf %2195, %2196 : vector<4x256xf32>
    %2198 = arith.addf %2192, %2197 : vector<4x256xf32>
    %cst_130 = arith.constant 0.000000e+00 : f32
    %2199 = vector.broadcast %cst_130 : f32 to vector<4x256xf32>
    %2200 = arith.maximumf %2198, %2199 : vector<4x256xf32>
    %c0_131 = arith.constant 0 : index
    %c0_132 = arith.constant 0 : index
    %c0_133 = arith.constant 0 : index
    %2201 = vector.load %arg7[%c0_131, %c0_132, %c0_133] : memref<1x4x256xf32, #tpu.memory_space<vmem>>, vector<1x4x256xf32>
    %2202 = vector.shape_cast %2201 : vector<1x4x256xf32> to vector<4x256xf32>
    %2203 = vector.shape_cast %2200 : vector<4x256xf32> to vector<1x4x256xf32>
    tpu.vector_store %arg7[%c0_131, %c0_132, %c0_133], %2203 {strides = array<i32>} : memref<1x4x256xf32, #tpu.memory_space<vmem>>, vector<1x4x256xf32>,
    return
  }
  func.func @transform_0(%arg0: i32) -> (i32, i32, i32) {
    %c0_i32 = arith.constant 0 : i32
    %c0_i32_0 = arith.constant 0 : i32
    %c0_i32_1 = arith.constant 0 : i32
    return %arg0, %c0_i32, %c0_i32_0 : i32, i32, i32
  }
  func.func @transform_1(%arg0: i32) -> (i32, i32, i32) {
    %c0_i32 = arith.constant 0 : i32
    %c0_i32_0 = arith.constant 0 : i32
    %c0_i32_1 = arith.constant 0 : i32
    %c0_i32_2 = arith.constant 0 : i32
    return %c0_i32, %c0_i32_0, %c0_i32_1 : i32, i32, i32
  }
  func.func @transform_2(%arg0: i32) -> (i32, i32, i32, i32) {
    %c0_i32 = arith.constant 0 : i32
    %c0_i32_0 = arith.constant 0 : i32
    %c0_i32_1 = arith.constant 0 : i32
    %c0_i32_2 = arith.constant 0 : i32
    %c0_i32_3 = arith.constant 0 : i32
    return %c0_i32, %c0_i32_0, %c0_i32_1, %c0_i32_2 : i32, i32, i32, i32
  }
  func.func @transform_3(%arg0: i32) -> (i32, i32, i32, i32) {
    %c0_i32 = arith.constant 0 : i32
    %c0_i32_0 = arith.constant 0 : i32
    %c0_i32_1 = arith.constant 0 : i32
    %c0_i32_2 = arith.constant 0 : i32
    %c0_i32_3 = arith.constant 0 : i32
    return %c0_i32, %c0_i32_0, %c0_i32_1, %c0_i32_2 : i32, i32, i32, i32
  }
  func.func @transform_4(%arg0: i32) -> (i32, i32, i32, i32) {
    %c0_i32 = arith.constant 0 : i32
    %c0_i32_0 = arith.constant 0 : i32
    %c0_i32_1 = arith.constant 0 : i32
    %c0_i32_2 = arith.constant 0 : i32
    %c0_i32_3 = arith.constant 0 : i32
    return %c0_i32, %c0_i32_0, %c0_i32_1, %c0_i32_2 : i32, i32, i32, i32
  }
  func.func @transform_5(%arg0: i32) -> (i32, i32) {
    %c0_i32 = arith.constant 0 : i32
    %c0_i32_0 = arith.constant 0 : i32
    %c0_i32_1 = arith.constant 0 : i32
    return %c0_i32, %c0_i32_0 : i32, i32
  }
  func.func @transform_6(%arg0: i32) -> (i32, i32, i32) {
    %c0_i32 = arith.constant 0 : i32
    %c0_i32_0 = arith.constant 0 : i32
    %c0_i32_1 = arith.constant 0 : i32
    return %arg0, %c0_i32, %c0_i32_0 : i32, i32, i32
  }
}

</mosaic_0001>

<llo_original>
// kernel: inference_module_forward.1
$region0: #{inference_module_forward.1}
  #allocation0 [shape = 'u32[]', space=smem, size = 0x4, offset = 0x4, fixed_abs, tag = 'smem constant byte address 0x4 - core index']
  #allocation1 [shape = 'u32[144,128]{1,0:T(1,128)}', space=vmem, size = 0x12000, scoped, tag = 'internal scratch']
  %s0 = inlined_call_operand.vmem [shape: f32[2,4,256], index: 0, kind: input, shape index: {}]
  %s1 = inlined_call_operand.vmem [shape: f32[9,4,4], index: 1, kind: input, shape index: {}]
  %s2 = inlined_call_operand.vmem [shape: f32[3,9,4,4], index: 2, kind: input, shape index: {}]
  %s3 = inlined_call_operand.vmem [shape: f32[2,9,4,4], index: 3, kind: input, shape index: {}]
  %s4 = inlined_call_operand.vmem [shape: f32[2,9,4,4], index: 4, kind: input, shape index: {}]
  %s5 = inlined_call_operand.vmem [shape: f32[4,7], index: 5, kind: input, shape index: {}]
  %s6 = inlined_call_operand.vmem [shape: f32[2,4,256], index: 6, kind: output, shape index: {}]
  %s7 = sld [smem:[#allocation0]]
  $region57: #{inference_module_forward.1} parent=0
    _
  %s9 = ssub.s32 1, %s7
  %s10 = scalar_select 0, %s9, %s7
  loop: start=0, step=1, limit=4
  $region2: #{inference_module_forward.1} parent=0 // loop_pre_header
    _
  $region3: #{inference_module_forward.1} parent=0 // loop_header
    %s12 = sphi 0, %s16
    %p13 = scmp.ge.s32.totalorder %s12, 4
    %s22 = sphi 0, %s24
    %s25 = sphi 0, %s22
    %s26 = sphi 0, %s25
    %s42 = sphi 0, %s26
    %s46 = sphi 0, %s46
    %s48 = sphi 0, %s46
    %s49 = sphi 0, %s48
    %s63 = sphi 0, %s49
    %s67 = sphi 0, %s67
    %s69 = sphi 0, %s67
    %s70 = sphi 0, %s69
    %s84 = sphi 0, %s70
    %s88 = sphi 0, %s88
    %s90 = sphi 0, %s88
    %s91 = sphi 0, %s90
    %s105 = sphi 0, %s91
    %s109 = sphi 0, %s109
    %s111 = sphi 0, %s109
    %s112 = sphi 0, %s111
    %s126 = sphi 0, %s112
    %s130 = sphi 0, %s130
    %s132 = sphi 0, %s130
    %s133 = sphi 0, %s132
    %s147 = sphi 0, %s133
    %s153 = sphi 0, %s155
    %s156 = sphi 0, %s153
    %s157 = sphi 0, %s156
    %s173 = sphi 0, %s157
  $region4: #{inference_module_forward.1} parent=0 // loop_header_branch
    %15 = sbr.rel (%p13) target = $region8
  $region5: #{inference_module_forward.1} parent=0 // loop_body
    %s17 = ssub.s32 %s12, 1
    %s18 = ssub.s32 %s12, 2
    %s19 = sadd.s32 %s12, 1
    %s20 = ssub.s32 %s12, %s19
    %p21 = scmp.eq.s32.totalorder %s20, 0
    %s23 = sadd.s32 %s22, 1
    %s24 = scalar_select %p21, %s22, %s23
    %p27 = pneg %p21
    %p28 = scmp.eq.s32.totalorder %s12, 1
    %p29 = por %p27, %p28
    %p30 = scmp.ne.s32.totalorder %s22, %s25
    %p31 = scmp.eq.s32.totalorder %s12, 0
    %p32 = por %p30, %p31
    %p33 = scmp.ne.s32.totalorder %s22, %s25
    %p34 = scmp.eq.s32.totalorder %s17, 1
    %p35 = por %p33, %p34
    %p36 = scmp.ne.s32.totalorder %s25, %s26
    %p37 = scmp.eq.s32.totalorder %s17, 0
    %p38 = por %p36, %p37
    %p39 = scmp.ne.s32.totalorder %s25, %s26
    %p40 = scmp.eq.s32.totalorder %s18, 1
    %p41 = por %p39, %p40
    %p43 = scmp.ne.s32.totalorder %s26, %s42
    %p44 = scmp.eq.s32.totalorder %s18, 0
    %p45 = por %p43, %p44
    %s47 = sadd.s32 %s46, 1
    %p50 = scmp.eq.s32.totalorder %s12, 1
    %p51 = scmp.ne.s32.totalorder %s46, %s48
    %p52 = scmp.eq.s32.totalorder %s12, 0
    %p53 = por %p51, %p52
    %p54 = scmp.ne.s32.totalorder %s46, %s48
    %p55 = scmp.eq.s32.totalorder %s17, 1
    %p56 = por %p54, %p55
    %p57 = scmp.ne.s32.totalorder %s48, %s49
    %p58 = scmp.eq.s32.totalorder %s17, 0
    %p59 = por %p57, %p58
    %p60 = scmp.ne.s32.totalorder %s48, %s49
    %p61 = scmp.eq.s32.totalorder %s18, 1
    %p62 = por %p60, %p61
    %p64 = scmp.ne.s32.totalorder %s49, %s63
    %p65 = scmp.eq.s32.totalorder %s18, 0
    %p66 = por %p64, %p65
    %s68 = sadd.s32 %s67, 1
    %p71 = scmp.eq.s32.totalorder %s12, 1
    %p72 = scmp.ne.s32.totalorder %s67, %s69
    %p73 = scmp.eq.s32.totalorder %s12, 0
    %p74 = por %p72, %p73
    %p75 = scmp.ne.s32.totalorder %s67, %s69
    %p76 = scmp.eq.s32.totalorder %s17, 1
    %p77 = por %p75, %p76
    %p78 = scmp.ne.s32.totalorder %s69, %s70
    %p79 = scmp.eq.s32.totalorder %s17, 0
    %p80 = por %p78, %p79
    %p81 = scmp.ne.s32.totalorder %s69, %s70
    %p82 = scmp.eq.s32.totalorder %s18, 1
    %p83 = por %p81, %p82
    %p85 = scmp.ne.s32.totalorder %s70, %s84
    %p86 = scmp.eq.s32.totalorder %s18, 0
    %p87 = por %p85, %p86
    %s89 = sadd.s32 %s88, 1
    %p92 = scmp.eq.s32.totalorder %s12, 1
    %p93 = scmp.ne.s32.totalorder %s88, %s90
    %p94 = scmp.eq.s32.totalorder %s12, 0
    %p95 = por %p93, %p94
    %p96 = scmp.ne.s32.totalorder %s88, %s90
    %p97 = scmp.eq.s32.totalorder %s17, 1
    %p98 = por %p96, %p97
    %p99 = scmp.ne.s32.totalorder %s90, %s91
    %p100 = scmp.eq.s32.totalorder %s17, 0
    %p101 = por %p99, %p100
    %p102 = scmp.ne.s32.totalorder %s90, %s91
    %p103 = scmp.eq.s32.totalorder %s18, 1
    %p104 = por %p102, %p103
    %p106 = scmp.ne.s32.totalorder %s91, %s105
    %p107 = scmp.eq.s32.totalorder %s18, 0
    %p108 = por %p106, %p107
    %s110 = sadd.s32 %s109, 1
    %p113 = scmp.eq.s32.totalorder %s12, 1
    %p114 = scmp.ne.s32.totalorder %s109, %s111
    %p115 = scmp.eq.s32.totalorder %s12, 0
    %p116 = por %p114, %p115
    %p117 = scmp.ne.s32.totalorder %s109, %s111
    %p118 = scmp.eq.s32.totalorder %s17, 1
    %p119 = por %p117, %p118
    %p120 = scmp.ne.s32.totalorder %s111, %s112
    %p121 = scmp.eq.s32.totalorder %s17, 0
    %p122 = por %p120, %p121
    %p123 = scmp.ne.s32.totalorder %s111, %s112
    %p124 = scmp.eq.s32.totalorder %s18, 1
    %p125 = por %p123, %p124
    %p127 = scmp.ne.s32.totalorder %s112, %s126
    %p128 = scmp.eq.s32.totalorder %s18, 0
    %p129 = por %p127, %p128
    %s131 = sadd.s32 %s130, 1
    %p134 = scmp.eq.s32.totalorder %s12, 1
    %p135 = scmp.ne.s32.totalorder %s130, %s132
    %p136 = scmp.eq.s32.totalorder %s12, 0
    %p137 = por %p135, %p136
    %p138 = scmp.ne.s32.totalorder %s130, %s132
    %p139 = scmp.eq.s32.totalorder %s17, 1
    %p140 = por %p138, %p139
    %p141 = scmp.ne.s32.totalorder %s132, %s133
    %p142 = scmp.eq.s32.totalorder %s17, 0
    %p143 = por %p141, %p142
    %p144 = scmp.ne.s32.totalorder %s132, %s133
    %p145 = scmp.eq.s32.totalorder %s18, 1
    %p146 = por %p144, %p145
    %p148 = scmp.ne.s32.totalorder %s133, %s147
    %p149 = scmp.eq.s32.totalorder %s18, 0
    %p150 = por %p148, %p149
    %s151 = ssub.s32 %s12, %s19
    %p152 = scmp.eq.s32.totalorder %s151, 0
    %s154 = sadd.s32 %s153, 1
    %s155 = scalar_select %p152, %s153, %s154
    %p158 = pneg %p152
    %p159 = scmp.eq.s32.totalorder %s12, 1
    %p160 = por %p158, %p159
    %p161 = scmp.ne.s32.totalorder %s153, %s156
    %p162 = scmp.eq.s32.totalorder %s12, 0
    %p163 = por %p161, %p162
    %p164 = scmp.ne.s32.totalorder %s153, %s156
    %p165 = scmp.eq.s32.totalorder %s17, 1
    %p166 = por %p164, %p165
    %p167 = scmp.ne.s32.totalorder %s156, %s157
    %p168 = scmp.eq.s32.totalorder %s17, 0
    %p169 = por %p167, %p168
    %p170 = scmp.ne.s32.totalorder %s156, %s157
    %p171 = scmp.eq.s32.totalorder %s18, 1
    %p172 = por %p170, %p171
    %p174 = scmp.ne.s32.totalorder %s157, %s173
    %p175 = scmp.eq.s32.totalorder %s18, 0
    %p176 = por %p174, %p175
    %p177 = scmp.le.s32.totalorder 1, %s12
    %p178 = scmp.lt.s32.totalorder %s12, 3
    %p179 = pnand %p177, %p178
    %p180 = pneg %p179
    // Predicated region
    $region9: #{inference_module_forward.1} parent=5 // pred_check
      _
    $region10: #{inference_module_forward.1} parent=5 // pred_check_branch
      %182 = sbr.rel (%p179) target = $region12
    $region11: #{inference_module_forward.1} parent=5 // pred_region
      %s183 = ssub.s32 %s12, 1
      // Predicated region
      $region13: #{inference_module_forward.1} parent=11 // pred_check
        %p184 = pneg %p59
      $region14: #{inference_module_forward.1} parent=11 // pred_check_branch
        %186 = sbr.rel (%p184) target = $region16
      $region15: #{inference_module_forward.1} parent=11 // pred_region
        _
      $region16: #{inference_module_forward.1} parent=11 // pred_fallthru
        _
      // Predicated region
      $region17: #{inference_module_forward.1} parent=11 // pred_check
        %p187 = pneg %p80
      $region18: #{inference_module_forward.1} parent=11 // pred_check_branch
        %189 = sbr.rel (%p187) target = $region20
      $region19: #{inference_module_forward.1} parent=11 // pred_region
        _
      $region20: #{inference_module_forward.1} parent=11 // pred_fallthru
        _
      // Predicated region
      $region21: #{inference_module_forward.1} parent=11 // pred_check
        %p190 = pneg %p101
      $region22: #{inference_module_forward.1} parent=11 // pred_check_branch
        %192 = sbr.rel (%p190) target = $region24
      $region23: #{inference_module_forward.1} parent=11 // pred_region
        _
      $region24: #{inference_module_forward.1} parent=11 // pred_fallthru
        _
      // Predicated region
      $region25: #{inference_module_forward.1} parent=11 // pred_check
        %p193 = pneg %p122
      $region26: #{inference_module_forward.1} parent=11 // pred_check_branch
        %195 = sbr.rel (%p193) target = $region28
      $region27: #{inference_module_forward.1} parent=11 // pred_region
        _
      $region28: #{inference_module_forward.1} parent=11 // pred_fallthru
        _
      // Predicated region
      $region29: #{inference_module_forward.1} parent=11 // pred_check
        %p196 = pneg %p143
      $region30: #{inference_module_forward.1} parent=11 // pred_check_branch
        %198 = sbr.rel (%p196) target = $region32
      $region31: #{inference_module_forward.1} parent=11 // pred_region
        _
      $region32: #{inference_module_forward.1} parent=11 // pred_fallthru
        _
    $region12: #{inference_module_forward.1} parent=5 // pred_fallthru
      _
    %p199 = scmp.lt.s32.totalorder %s12, 2
    // Predicated region
    $region33: #{inference_module_forward.1} parent=5 // pred_check
      %p200 = pneg %p199
    $region34: #{inference_module_forward.1} parent=5 // pred_check_branch
      %202 = sbr.rel (%p200) target = $region36
    $region35: #{inference_module_forward.1} parent=5 // pred_region
      // Predicated region
      $region37: #{inference_module_forward.1} parent=35 // pred_check
        %p203 = pneg %p32
      $region38: #{inference_module_forward.1} parent=35 // pred_check_branch
        %205 = sbr.rel (%p203) target = $region40
      $region39: #{inference_module_forward.1} parent=35 // pred_region
        %p206 = scmp.lt.s32.totalorder %s12, 1
        %s207 = scalar_select %p206, %s12, 1
        %s208 = smul.addr %s207, 2
        %s209 = smul.addr %s208, 4
        %s210 = scalar_lea.vmem %s0, %s209
      $region40: #{inference_module_forward.1} parent=35 // pred_fallthru
        _
    $region36: #{inference_module_forward.1} parent=5 // pred_fallthru
      _
    %p211 = scmp.le.s32.totalorder 1, %s12
    %p212 = scmp.lt.s32.totalorder %s12, 3
    %p213 = pnand %p211, %p212
    %p214 = pneg %p213
    // Predicated region
    $region41: #{inference_module_forward.1} parent=5 // pred_check
      _
    $region42: #{inference_module_forward.1} parent=5 // pred_check_branch
      %216 = sbr.rel (%p213) target = $region44
    $region43: #{inference_module_forward.1} parent=5 // pred_region
      %s217 = ssub.s32 %s12, 1
      %p218 = scmp.lt.s32.totalorder %s17, 1
      %s219 = scalar_select %p218, %s17, 1
      %s220 = smul.addr %s219, 2
      %s221 = smul.addr %s220, 4
      %s222 = scalar_lea.vmem %s0, %s221
      %p223 = pneg %p38
      %p224 = pneg %p35
      %p225 = pneg %p59
      %p226 = pneg %p56
      %p227 = pneg %p80
      %p228 = pneg %p77
      %p229 = pneg %p101
      %p230 = pneg %p98
      %p231 = pneg %p122
      %p232 = pneg %p119
      %p233 = pneg %p143
      %p234 = pneg %p140
      %p235 = pneg %p169
      %p236 = pneg %p166
      %p237 = scmp.lt.s32.totalorder %s17, 1
      %s238 = scalar_select %p237, %s17, 1
      %s239 = smul.addr %s238, 2
      %s240 = smul.addr %s239, 4
      %s241 = scalar_lea.vmem %s6, %s240
      %p242 = scmp.lt.s32.totalorder %s17, 1
      %s243 = scalar_select %p242, %s17, 1
      %s244 = smul.addr %s243, 2
      %s245 = smul.addr %s244, 4
      %s246 = scalar_lea.vmem %s0, %s245
      %p247 = scmp.lt.s32.totalorder %s17, 1
      %s248 = scalar_select %p247, %s17, 1
      %s249 = smul.addr %s248, 2
      %s250 = smul.addr %s249, 4
      %s251 = scalar_lea.vmem %s6, %s250
      %v252 = vlaneseq
      %v253 = vand.u32 %v252, 127
      %v254 = vadd.s32 %v253, 128
      %vm255 = vcmp.lt.s32.totalorder %v253, 0
      %v256 = vsub.s32 0, %v253
      %v257 = vsel %vm255, %v256, %v253
      %v258 = vshrl.u32 %v257, 4
      %v259 = vand.u32 %v257, 15
      %v260 = vsub.s32 0, %v259
      %v261 = vsel %vm255, %v260, %v259
      %vm262 = vcmp.lt.s32.totalorder %v254, 0
      %v263 = vsub.s32 0, %v254
      %v264 = vsel %vm262, %v263, %v254
      %v265 = vshrl.u32 %v264, 4
      %v266 = vand.u32 %v264, 15
      %v267 = vsub.s32 0, %v266
      %v268 = vsel %vm262, %v267, %v266
      %vm269 = vcmp.ne.s32.totalorder %v261, 0
      %vm270 = vcmp.ne.s32.totalorder %v268, 0
      %vm271 = vcmp.lt.s32.totalorder %v261, 0
      %vm272 = vcmp.lt.s32.totalorder %v268, 0
      %vm273 = vmand %vm271, %vm269
      %vm274 = vmand %vm272, %vm270
      %v275 = vadd.s32 %v261, 16
      %v276 = vadd.s32 %v268, 16
      %v277 = vsel %vm273, %v275, %v261
      %v278 = vsel %vm274, %v276, %v268
      %vm279 = vcmp.eq.s32.totalorder %v277, 0
      %vm280 = vcmp.eq.s32.totalorder %v278, 0
      %vm281 = vcmp.eq.s32.totalorder %v277, 15
      %vm282 = vcmp.eq.s32.totalorder %v278, 15
      %v283 = vld [vmem:[%s246] sm:$0xff]
      %v284 = vld [vmem:[%s1] sm:$0xf]
      %v285 = vld [vmem:[%s1 + $0x4] sm:$0xf]
      %v286 = vld [vmem:[%s1 + $0x8] sm:$0xf]
      %v287 = vld [vmem:[%s1 + $0xc] sm:$0xf]
      %v288 = vld [vmem:[%s1 + $0x10] sm:$0xf]
      %v289 = vld [vmem:[%s1 + $0x14] sm:$0xf]
      %v290 = vld [vmem:[%s1 + $0x18] sm:$0xf]
      %v291 = vld [vmem:[%s1 + $0x1c] sm:$0xf]
      %v292 = vld [vmem:[%s1 + $0x20] sm:$0xf]
      %v293 = vld [vmem:[%s5] sm:$0xf]
      %295 = vset.pattern.permute.xlu0 0
      %296 = vperm.xlu0 %295, %v293
      %v297 = vpop.permute.xlu0 %296
      %v300 = vcombine.high %v283, %v283
      %301 = vrot.lane.b32.xlu0 %v283, 1
      %v302 = vpop.permute.xlu0 %301
      %303 = vrot.lane.b32.xlu0 %v300, 1
      %v304 = vpop.permute.xlu0 %303
      %vm305 = vcmask 7168
      %v306 = vsel %vm305, %v302, %v304
      %v309 = vsel %vm305, 0.0, %v302
      %v310 = vsel %vm279, 1, 0
      %v311 = vsel %vm280, 1, 0
      %vm312 = vcmp.eq.s32.totalorder %v310, 1
      %vm313 = vcmp.eq.s32.totalorder %v311, 1
      %v314 = vsel %vm312, 0.0, %v309
      %v315 = vsel %vm313, 0.0, %v306
      %316 = vrot.lane.b32.xlu0 %v283, 127
      %v317 = vpop.permute.xlu0 %316
      %318 = vrot.lane.b32.xlu0 %v300, 127
      %v319 = vpop.permute.xlu0 %318
      %vm320 = vcmask 1039360
      %v321 = vsel %vm320, %v317, %v319
      %v324 = vsel %vm320, %v319, 0.0
      %v325 = vsel %vm281, 1, 0
      %v326 = vsel %vm282, 1, 0
      %vm327 = vcmp.eq.s32.totalorder %v325, 1
      %vm328 = vcmp.eq.s32.totalorder %v326, 1
      %v329 = vsel %vm327, 0.0, %v321
      %v330 = vsel %vm328, 0.0, %v324
      %333 = vrot.lane.b32.xlu0 %v314, 16
      %v334 = vpop.permute.xlu0 %333
      %335 = vrot.lane.b32.xlu0 %v315, 16
      %v336 = vpop.permute.xlu0 %335
      %vm337 = vcmask 130048
      %v338 = vsel %vm337, %v334, %v336
      %v341 = vsel %vm337, 0.0, %v334
      %343 = vset.pattern.permute.xlu0 0
      %344 = vperm.xlu0 %343, %v284
      %v345 = vpop.permute.xlu0 %344
      %v347 = vlaneseq
      %v348 = vshrl.u32 %v347, 7
      %v349 = vsub.s32 0, %v348
      %v350 = vrot.slane %v341, %v349
      %v351 = vlaneseq
      %v352 = vshrl.u32 %v351, 7
      %v353 = vsub.s32 0, %v352
      %v354 = vrot.slane %v338, %v353
      %v355 = vmul.f32 %v345, %v350
      %v356 = vmul.f32 %v345, %v354
      %v357 = vadd.f32 %v297, %v355
      %v358 = vadd.f32 %v297, %v356
      %359 = vset.pattern.permute.xlu0 1
      %360 = vperm.xlu0 %359, %v284
      %v361 = vpop.permute.xlu0 %360
      %v363 = vlaneseq
      %v364 = vshrl.u32 %v363, 7
      %v365 = vsub.s32 1, %v364
      %v366 = vrot.slane %v341, %v365
      %v367 = vlaneseq
      %v368 = vshrl.u32 %v367, 7
      %v369 = vsub.s32 1, %v368
      %v370 = vrot.slane %v338, %v369
      %v371 = vmul.f32 %v361, %v366
      %v372 = vmul.f32 %v361, %v370
      %v373 = vadd.f32 %v357, %v371
      %v374 = vadd.f32 %v358, %v372
      %375 = vset.pattern.permute.xlu0 2
      %376 = vperm.xlu0 %375, %v284
      %v377 = vpop.permute.xlu0 %376
      %v379 = vlaneseq
      %v380 = vshrl.u32 %v379, 7
      %v381 = vsub.s32 2, %v380
      %v382 = vrot.slane %v341, %v381
      %v383 = vlaneseq
      %v384 = vshrl.u32 %v383, 7
      %v385 = vsub.s32 2, %v384
      %v386 = vrot.slane %v338, %v385
      %v387 = vmul.f32 %v377, %v382
      %v388 = vmul.f32 %v377, %v386
      %v389 = vadd.f32 %v373, %v387
      %v390 = vadd.f32 %v374, %v388
      %391 = vset.pattern.permute.xlu0 3
      %392 = vperm.xlu0 %391, %v284
      %v393 = vpop.permute.xlu0 %392
      %v395 = vlaneseq
      %v396 = vshrl.u32 %v395, 7
      %v397 = vsub.s32 3, %v396
      %v398 = vrot.slane %v341, %v397
      %v399 = vlaneseq
      %v400 = vshrl.u32 %v399, 7
      %v401 = vsub.s32 3, %v400
      %v402 = vrot.slane %v338, %v401
      %v403 = vmul.f32 %v393, %v398
      %v404 = vmul.f32 %v393, %v402
      %v405 = vadd.f32 %v389, %v403
      %v406 = vadd.f32 %v390, %v404
      %407 = vrot.lane.b32.xlu0 %v283, 16
      %v408 = vpop.permute.xlu0 %407
      %409 = vrot.lane.b32.xlu0 %v300, 16
      %v410 = vpop.permute.xlu0 %409
      %v411 = vsel %vm337, %v408, %v410
      %v414 = vsel %vm337, 0.0, %v408
      %416 = vset.pattern.permute.xlu0 0
      %417 = vperm.xlu0 %416, %v285
      %v418 = vpop.permute.xlu0 %417
      %v420 = vlaneseq
      %v421 = vshrl.u32 %v420, 7
      %v422 = vsub.s32 0, %v421
      %v423 = vrot.slane %v414, %v422
      %v424 = vlaneseq
      %v425 = vshrl.u32 %v424, 7
      %v426 = vsub.s32 0, %v425
      %v427 = vrot.slane %v411, %v426
      %v428 = vmul.f32 %v418, %v423
      %v429 = vmul.f32 %v418, %v427
      %v430 = vadd.f32 %v405, %v428
      %v431 = vadd.f32 %v406, %v429
      %432 = vset.pattern.permute.xlu0 1
      %433 = vperm.xlu0 %432, %v285
      %v434 = vpop.permute.xlu0 %433
      %v436 = vlaneseq
      %v437 = vshrl.u32 %v436, 7
      %v438 = vsub.s32 1, %v437
      %v439 = vrot.slane %v414, %v438
      %v440 = vlaneseq
      %v441 = vshrl.u32 %v440, 7
      %v442 = vsub.s32 1, %v441
      %v443 = vrot.slane %v411, %v442
      %v444 = vmul.f32 %v434, %v439
      %v445 = vmul.f32 %v434, %v443
      %v446 = vadd.f32 %v430, %v444
      %v447 = vadd.f32 %v431, %v445
      %448 = vset.pattern.permute.xlu0 2
      %449 = vperm.xlu0 %448, %v285
      %v450 = vpop.permute.xlu0 %449
      %v452 = vlaneseq
      %v453 = vshrl.u32 %v452, 7
      %v454 = vsub.s32 2, %v453
      %v455 = vrot.slane %v414, %v454
      %v456 = vlaneseq
      %v457 = vshrl.u32 %v456, 7
      %v458 = vsub.s32 2, %v457
      %v459 = vrot.slane %v411, %v458
      %v460 = vmul.f32 %v450, %v455
      %v461 = vmul.f32 %v450, %v459
      %v462 = vadd.f32 %v446, %v460
      %v463 = vadd.f32 %v447, %v461
      %464 = vset.pattern.permute.xlu0 3
      %465 = vperm.xlu0 %464, %v285
      %v466 = vpop.permute.xlu0 %465
      %v468 = vlaneseq
      %v469 = vshrl.u32 %v468, 7
      %v470 = vsub.s32 3, %v469
      %v471 = vrot.slane %v414, %v470
      %v472 = vlaneseq
      %v473 = vshrl.u32 %v472, 7
      %v474 = vsub.s32 3, %v473
      %v475 = vrot.slane %v411, %v474
      %v476 = vmul.f32 %v466, %v471
      %v477 = vmul.f32 %v466, %v475
      %v478 = vadd.f32 %v462, %v476
      %v479 = vadd.f32 %v463, %v477
      %482 = vrot.lane.b32.xlu0 %v329, 16
      %v483 = vpop.permute.xlu0 %482
      %484 = vrot.lane.b32.xlu0 %v330, 16
      %v485 = vpop.permute.xlu0 %484
      %v486 = vsel %vm337, %v483, %v485
      %v489 = vsel %vm337, 0.0, %v483
      %491 = vset.pattern.permute.xlu0 0
      %492 = vperm.xlu0 %491, %v286
      %v493 = vpop.permute.xlu0 %492
      %v495 = vlaneseq
      %v496 = vshrl.u32 %v495, 7
      %v497 = vsub.s32 0, %v496
      %v498 = vrot.slane %v489, %v497
      %v499 = vlaneseq
      %v500 = vshrl.u32 %v499, 7
      %v501 = vsub.s32 0, %v500
      %v502 = vrot.slane %v486, %v501
      %v503 = vmul.f32 %v493, %v498
      %v504 = vmul.f32 %v493, %v502
      %v505 = vadd.f32 %v478, %v503
      %v506 = vadd.f32 %v479, %v504
      %507 = vset.pattern.permute.xlu0 1
      %508 = vperm.xlu0 %507, %v286
      %v509 = vpop.permute.xlu0 %508
      %v511 = vlaneseq
      %v512 = vshrl.u32 %v511, 7
      %v513 = vsub.s32 1, %v512
      %v514 = vrot.slane %v489, %v513
      %v515 = vlaneseq
      %v516 = vshrl.u32 %v515, 7
      %v517 = vsub.s32 1, %v516
      %v518 = vrot.slane %v486, %v517
      %v519 = vmul.f32 %v509, %v514
      %v520 = vmul.f32 %v509, %v518
      %v521 = vadd.f32 %v505, %v519
      %v522 = vadd.f32 %v506, %v520
      %523 = vset.pattern.permute.xlu0 2
      %524 = vperm.xlu0 %523, %v286
      %v525 = vpop.permute.xlu0 %524
      %v527 = vlaneseq
      %v528 = vshrl.u32 %v527, 7
      %v529 = vsub.s32 2, %v528
      %v530 = vrot.slane %v489, %v529
      %v531 = vlaneseq
      %v532 = vshrl.u32 %v531, 7
      %v533 = vsub.s32 2, %v532
      %v534 = vrot.slane %v486, %v533
      %v535 = vmul.f32 %v525, %v530
      %v536 = vmul.f32 %v525, %v534
      %v537 = vadd.f32 %v521, %v535
      %v538 = vadd.f32 %v522, %v536
      %539 = vset.pattern.permute.xlu0 3
      %540 = vperm.xlu0 %539, %v286
      %v541 = vpop.permute.xlu0 %540
      %v543 = vlaneseq
      %v544 = vshrl.u32 %v543, 7
      %v545 = vsub.s32 3, %v544
      %v546 = vrot.slane %v489, %v545
      %v547 = vlaneseq
      %v548 = vshrl.u32 %v547, 7
      %v549 = vsub.s32 3, %v548
      %v550 = vrot.slane %v486, %v549
      %v551 = vmul.f32 %v541, %v546
      %v552 = vmul.f32 %v541, %v550
      %v553 = vadd.f32 %v537, %v551
      %v554 = vadd.f32 %v538, %v552
      %556 = vset.pattern.permute.xlu0 0
      %557 = vperm.xlu0 %556, %v287
      %v558 = vpop.permute.xlu0 %557
      %v560 = vlaneseq
      %v561 = vshrl.u32 %v560, 7
      %v562 = vsub.s32 0, %v561
      %v563 = vrot.slane %v314, %v562
      %v564 = vlaneseq
      %v565 = vshrl.u32 %v564, 7
      %v566 = vsub.s32 0, %v565
      %v567 = vrot.slane %v315, %v566
      %v568 = vmul.f32 %v558, %v563
      %v569 = vmul.f32 %v558, %v567
      %v570 = vadd.f32 %v553, %v568
      %v571 = vadd.f32 %v554, %v569
      %572 = vset.pattern.permute.xlu0 1
      %573 = vperm.xlu0 %572, %v287
      %v574 = vpop.permute.xlu0 %573
      %v576 = vlaneseq
      %v577 = vshrl.u32 %v576, 7
      %v578 = vsub.s32 1, %v577
      %v579 = vrot.slane %v314, %v578
      %v580 = vlaneseq
      %v581 = vshrl.u32 %v580, 7
      %v582 = vsub.s32 1, %v581
      %v583 = vrot.slane %v315, %v582
      %v584 = vmul.f32 %v574, %v579
      %v585 = vmul.f32 %v574, %v583
      %v586 = vadd.f32 %v570, %v584
      %v587 = vadd.f32 %v571, %v585
      %588 = vset.pattern.permute.xlu0 2
      %589 = vperm.xlu0 %588, %v287
      %v590 = vpop.permute.xlu0 %589
      %v592 = vlaneseq
      %v593 = vshrl.u32 %v592, 7
      %v594 = vsub.s32 2, %v593
      %v595 = vrot.slane %v314, %v594
      %v596 = vlaneseq
      %v597 = vshrl.u32 %v596, 7
      %v598 = vsub.s32 2, %v597
      %v599 = vrot.slane %v315, %v598
      %v600 = vmul.f32 %v590, %v595
      %v601 = vmul.f32 %v590, %v599
      %v602 = vadd.f32 %v586, %v600
      %v603 = vadd.f32 %v587, %v601
      %604 = vset.pattern.permute.xlu0 3
      %605 = vperm.xlu0 %604, %v287
      %v606 = vpop.permute.xlu0 %605
      %v608 = vlaneseq
      %v609 = vshrl.u32 %v608, 7
      %v610 = vsub.s32 3, %v609
      %v611 = vrot.slane %v314, %v610
      %v612 = vlaneseq
      %v613 = vshrl.u32 %v612, 7
      %v614 = vsub.s32 3, %v613
      %v615 = vrot.slane %v315, %v614
      %v616 = vmul.f32 %v606, %v611
      %v617 = vmul.f32 %v606, %v615
      %v618 = vadd.f32 %v602, %v616
      %v619 = vadd.f32 %v603, %v617
      %621 = vset.pattern.permute.xlu0 0
      %622 = vperm.xlu0 %621, %v288
      %v623 = vpop.permute.xlu0 %622
      %v625 = vlaneseq
      %v626 = vshrl.u32 %v625, 7
      %v627 = vsub.s32 0, %v626
      %v628 = vrot.slane %v283, %v627
      %v629 = vlaneseq
      %v630 = vshrl.u32 %v629, 7
      %v631 = vsub.s32 4, %v630
      %v632 = vrot.slane %v283, %v631
      %v635 = vlaneseq
      %v636 = vshrl.u32 %v635, 7
      %v637 = vsub.s32 0, %v636
      %v638 = vrot.slane %v628, %v637
      %v639 = vlaneseq
      %v640 = vshrl.u32 %v639, 7
      %v641 = vsub.s32 0, %v640
      %v642 = vrot.slane %v632, %v641
      %v643 = vmul.f32 %v623, %v638
      %v644 = vmul.f32 %v623, %v642
      %v645 = vadd.f32 %v618, %v643
      %v646 = vadd.f32 %v619, %v644
      %647 = vset.pattern.permute.xlu0 1
      %648 = vperm.xlu0 %647, %v288
      %v649 = vpop.permute.xlu0 %648
      %v651 = vlaneseq
      %v652 = vshrl.u32 %v651, 7
      %v653 = vsub.s32 1, %v652
      %v654 = vrot.slane %v283, %v653
      %v655 = vlaneseq
      %v656 = vshrl.u32 %v655, 7
      %v657 = vsub.s32 5, %v656
      %v658 = vrot.slane %v283, %v657
      %v661 = vlaneseq
      %v662 = vshrl.u32 %v661, 7
      %v663 = vsub.s32 1, %v662
      %v664 = vrot.slane %v654, %v663
      %v665 = vlaneseq
      %v666 = vshrl.u32 %v665, 7
      %v667 = vsub.s32 1, %v666
      %v668 = vrot.slane %v658, %v667
      %v669 = vmul.f32 %v649, %v664
      %v670 = vmul.f32 %v649, %v668
      %v671 = vadd.f32 %v645, %v669
      %v672 = vadd.f32 %v646, %v670
      %673 = vset.pattern.permute.xlu0 2
      %674 = vperm.xlu0 %673, %v288
      %v675 = vpop.permute.xlu0 %674
      %v677 = vlaneseq
      %v678 = vshrl.u32 %v677, 7
      %v679 = vsub.s32 2, %v678
      %v680 = vrot.slane %v283, %v679
      %v681 = vlaneseq
      %v682 = vshrl.u32 %v681, 7
      %v683 = vsub.s32 6, %v682
      %v684 = vrot.slane %v283, %v683
      %v687 = vlaneseq
      %v688 = vshrl.u32 %v687, 7
      %v689 = vsub.s32 2, %v688
      %v690 = vrot.slane %v680, %v689
      %v691 = vlaneseq
      %v692 = vshrl.u32 %v691, 7
      %v693 = vsub.s32 2, %v692
      %v694 = vrot.slane %v684, %v693
      %v695 = vmul.f32 %v675, %v690
      %v696 = vmul.f32 %v675, %v694
      %v697 = vadd.f32 %v671, %v695
      %v698 = vadd.f32 %v672, %v696
      %699 = vset.pattern.permute.xlu0 3
      %700 = vperm.xlu0 %699, %v288
      %v701 = vpop.permute.xlu0 %700
      %v703 = vlaneseq
      %v704 = vshrl.u32 %v703, 7
      %v705 = vsub.s32 3, %v704
      %v706 = vrot.slane %v283, %v705
      %v707 = vlaneseq
      %v708 = vshrl.u32 %v707, 7
      %v709 = vsub.s32 7, %v708
      %v710 = vrot.slane %v283, %v709
      %v713 = vlaneseq
      %v714 = vshrl.u32 %v713, 7
      %v715 = vsub.s32 3, %v714
      %v716 = vrot.slane %v706, %v715
      %v717 = vlaneseq
      %v718 = vshrl.u32 %v717, 7
      %v719 = vsub.s32 3, %v718
      %v720 = vrot.slane %v710, %v719
      %v721 = vmul.f32 %v701, %v716
      %v722 = vmul.f32 %v701, %v720
      %v723 = vadd.f32 %v697, %v721
      %v724 = vadd.f32 %v698, %v722
      %726 = vset.pattern.permute.xlu0 0
      %727 = vperm.xlu0 %726, %v289
      %v728 = vpop.permute.xlu0 %727
      %v730 = vlaneseq
      %v731 = vshrl.u32 %v730, 7
      %v732 = vsub.s32 0, %v731
      %v733 = vrot.slane %v329, %v732
      %v734 = vlaneseq
      %v735 = vshrl.u32 %v734, 7
      %v736 = vsub.s32 0, %v735
      %v737 = vrot.slane %v330, %v736
      %v738 = vmul.f32 %v728, %v733
      %v739 = vmul.f32 %v728, %v737
      %v740 = vadd.f32 %v723, %v738
      %v741 = vadd.f32 %v724, %v739
      %742 = vset.pattern.permute.xlu0 1
      %743 = vperm.xlu0 %742, %v289
      %v744 = vpop.permute.xlu0 %743
      %v746 = vlaneseq
      %v747 = vshrl.u32 %v746, 7
      %v748 = vsub.s32 1, %v747
      %v749 = vrot.slane %v329, %v748
      %v750 = vlaneseq
      %v751 = vshrl.u32 %v750, 7
      %v752 = vsub.s32 1, %v751
      %v753 = vrot.slane %v330, %v752
      %v754 = vmul.f32 %v744, %v749
      %v755 = vmul.f32 %v744, %v753
      %v756 = vadd.f32 %v740, %v754
      %v757 = vadd.f32 %v741, %v755
      %758 = vset.pattern.permute.xlu0 2
      %759 = vperm.xlu0 %758, %v289
      %v760 = vpop.permute.xlu0 %759
      %v762 = vlaneseq
      %v763 = vshrl.u32 %v762, 7
      %v764 = vsub.s32 2, %v763
      %v765 = vrot.slane %v329, %v764
      %v766 = vlaneseq
      %v767 = vshrl.u32 %v766, 7
      %v768 = vsub.s32 2, %v767
      %v769 = vrot.slane %v330, %v768
      %v770 = vmul.f32 %v760, %v765
      %v771 = vmul.f32 %v760, %v769
      %v772 = vadd.f32 %v756, %v770
      %v773 = vadd.f32 %v757, %v771
      %774 = vset.pattern.permute.xlu0 3
      %775 = vperm.xlu0 %774, %v289
      %v776 = vpop.permute.xlu0 %775
      %v778 = vlaneseq
      %v779 = vshrl.u32 %v778, 7
      %v780 = vsub.s32 3, %v779
      %v781 = vrot.slane %v329, %v780
      %v782 = vlaneseq
      %v783 = vshrl.u32 %v782, 7
      %v784 = vsub.s32 3, %v783
      %v785 = vrot.slane %v330, %v784
      %v786 = vmul.f32 %v776, %v781
      %v787 = vmul.f32 %v776, %v785
      %v788 = vadd.f32 %v772, %v786
      %v789 = vadd.f32 %v773, %v787
      %790 = vrot.lane.b32.xlu0 %v314, 112
      %v791 = vpop.permute.xlu0 %790
      %792 = vrot.lane.b32.xlu0 %v315, 112
      %v793 = vpop.permute.xlu0 %792
      %vm794 = vcmask 916480
      %v795 = vsel %vm794, %v791, %v793
      %v798 = vsel %vm794, %v793, 0.0
      %800 = vset.pattern.permute.xlu0 0
      %801 = vperm.xlu0 %800, %v290
      %v802 = vpop.permute.xlu0 %801
      %v804 = vlaneseq
      %v805 = vshrl.u32 %v804, 7
      %v806 = vsub.s32 0, %v805
      %v807 = vrot.slane %v795, %v806
      %v808 = vlaneseq
      %v809 = vshrl.u32 %v808, 7
      %v810 = vsub.s32 0, %v809
      %v811 = vrot.slane %v798, %v810
      %v812 = vmul.f32 %v802, %v807
      %v813 = vmul.f32 %v802, %v811
      %v814 = vadd.f32 %v788, %v812
      %v815 = vadd.f32 %v789, %v813
      %816 = vset.pattern.permute.xlu0 1
      %817 = vperm.xlu0 %816, %v290
      %v818 = vpop.permute.xlu0 %817
      %v820 = vlaneseq
      %v821 = vshrl.u32 %v820, 7
      %v822 = vsub.s32 1, %v821
      %v823 = vrot.slane %v795, %v822
      %v824 = vlaneseq
      %v825 = vshrl.u32 %v824, 7
      %v826 = vsub.s32 1, %v825
      %v827 = vrot.slane %v798, %v826
      %v828 = vmul.f32 %v818, %v823
      %v829 = vmul.f32 %v818, %v827
      %v830 = vadd.f32 %v814, %v828
      %v831 = vadd.f32 %v815, %v829
      %832 = vset.pattern.permute.xlu0 2
      %833 = vperm.xlu0 %832, %v290
      %v834 = vpop.permute.xlu0 %833
      %v836 = vlaneseq
      %v837 = vshrl.u32 %v836, 7
      %v838 = vsub.s32 2, %v837
      %v839 = vrot.slane %v795, %v838
      %v840 = vlaneseq
      %v841 = vshrl.u32 %v840, 7
      %v842 = vsub.s32 2, %v841
      %v843 = vrot.slane %v798, %v842
      %v844 = vmul.f32 %v834, %v839
      %v845 = vmul.f32 %v834, %v843
      %v846 = vadd.f32 %v830, %v844
      %v847 = vadd.f32 %v831, %v845
      %848 = vset.pattern.permute.xlu0 3
      %849 = vperm.xlu0 %848, %v290
      %v850 = vpop.permute.xlu0 %849
      %v852 = vlaneseq
      %v853 = vshrl.u32 %v852, 7
      %v854 = vsub.s32 3, %v853
      %v855 = vrot.slane %v795, %v854
      %v856 = vlaneseq
      %v857 = vshrl.u32 %v856, 7
      %v858 = vsub.s32 3, %v857
      %v859 = vrot.slane %v798, %v858
      %v860 = vmul.f32 %v850, %v855
      %v861 = vmul.f32 %v850, %v859
      %v862 = vadd.f32 %v846, %v860
      %v863 = vadd.f32 %v847, %v861
      %864 = vrot.lane.b32.xlu0 %v283, 112
      %v865 = vpop.permute.xlu0 %864
      %866 = vrot.lane.b32.xlu0 %v300, 112
      %v867 = vpop.permute.xlu0 %866
      %v868 = vsel %vm794, %v865, %v867
      %v871 = vsel %vm794, %v867, 0.0
      %873 = vset.pattern.permute.xlu0 0
      %874 = vperm.xlu0 %873, %v291
      %v875 = vpop.permute.xlu0 %874
      %v877 = vlaneseq
      %v878 = vshrl.u32 %v877, 7
      %v879 = vsub.s32 0, %v878
      %v880 = vrot.slane %v868, %v879
      %v881 = vlaneseq
      %v882 = vshrl.u32 %v881, 7
      %v883 = vsub.s32 0, %v882
      %v884 = vrot.slane %v871, %v883
      %v885 = vmul.f32 %v875, %v880
      %v886 = vmul.f32 %v875, %v884
      %v887 = vadd.f32 %v862, %v885
      %v888 = vadd.f32 %v863, %v886
      %889 = vset.pattern.permute.xlu0 1
      %890 = vperm.xlu0 %889, %v291
      %v891 = vpop.permute.xlu0 %890
      %v893 = vlaneseq
      %v894 = vshrl.u32 %v893, 7
      %v895 = vsub.s32 1, %v894
      %v896 = vrot.slane %v868, %v895
      %v897 = vlaneseq
      %v898 = vshrl.u32 %v897, 7
      %v899 = vsub.s32 1, %v898
      %v900 = vrot.slane %v871, %v899
      %v901 = vmul.f32 %v891, %v896
      %v902 = vmul.f32 %v891, %v900
      %v903 = vadd.f32 %v887, %v901
      %v904 = vadd.f32 %v888, %v902
      %905 = vset.pattern.permute.xlu0 2
      %906 = vperm.xlu0 %905, %v291
      %v907 = vpop.permute.xlu0 %906
      %v909 = vlaneseq
      %v910 = vshrl.u32 %v909, 7
      %v911 = vsub.s32 2, %v910
      %v912 = vrot.slane %v868, %v911
      %v913 = vlaneseq
      %v914 = vshrl.u32 %v913, 7
      %v915 = vsub.s32 2, %v914
      %v916 = vrot.slane %v871, %v915
      %v917 = vmul.f32 %v907, %v912
      %v918 = vmul.f32 %v907, %v916
      %v919 = vadd.f32 %v903, %v917
      %v920 = vadd.f32 %v904, %v918
      %921 = vset.pattern.permute.xlu0 3
      %922 = vperm.xlu0 %921, %v291
      %v923 = vpop.permute.xlu0 %922
      %v925 = vlaneseq
      %v926 = vshrl.u32 %v925, 7
      %v927 = vsub.s32 3, %v926
      %v928 = vrot.slane %v868, %v927
      %v929 = vlaneseq
      %v930 = vshrl.u32 %v929, 7
      %v931 = vsub.s32 3, %v930
      %v932 = vrot.slane %v871, %v931
      %v933 = vmul.f32 %v923, %v928
      %v934 = vmul.f32 %v923, %v932
      %v935 = vadd.f32 %v919, %v933
      %v936 = vadd.f32 %v920, %v934
      %937 = vrot.lane.b32.xlu0 %v329, 112
      %v938 = vpop.permute.xlu0 %937
      %939 = vrot.lane.b32.xlu0 %v330, 112
      %v940 = vpop.permute.xlu0 %939
      %v941 = vsel %vm794, %v938, %v940
      %v944 = vsel %vm794, %v940, 0.0
      %946 = vset.pattern.permute.xlu0 0
      %947 = vperm.xlu0 %946, %v292
      %v948 = vpop.permute.xlu0 %947
      %v950 = vlaneseq
      %v951 = vshrl.u32 %v950, 7
      %v952 = vsub.s32 0, %v951
      %v953 = vrot.slane %v941, %v952
      %v954 = vlaneseq
      %v955 = vshrl.u32 %v954, 7
      %v956 = vsub.s32 0, %v955
      %v957 = vrot.slane %v944, %v956
      %v958 = vmul.f32 %v948, %v953
      %v959 = vmul.f32 %v948, %v957
      %v960 = vadd.f32 %v935, %v958
      %v961 = vadd.f32 %v936, %v959
      %962 = vset.pattern.permute.xlu0 1
      %963 = vperm.xlu0 %962, %v292
      %v964 = vpop.permute.xlu0 %963
      %v966 = vlaneseq
      %v967 = vshrl.u32 %v966, 7
      %v968 = vsub.s32 1, %v967
      %v969 = vrot.slane %v941, %v968
      %v970 = vlaneseq
      %v971 = vshrl.u32 %v970, 7
      %v972 = vsub.s32 1, %v971
      %v973 = vrot.slane %v944, %v972
      %v974 = vmul.f32 %v964, %v969
      %v975 = vmul.f32 %v964, %v973
      %v976 = vadd.f32 %v960, %v974
      %v977 = vadd.f32 %v961, %v975
      %978 = vset.pattern.permute.xlu0 2
      %979 = vperm.xlu0 %978, %v292
      %v980 = vpop.permute.xlu0 %979
      %v982 = vlaneseq
      %v983 = vshrl.u32 %v982, 7
      %v984 = vsub.s32 2, %v983
      %v985 = vrot.slane %v941, %v984
      %v986 = vlaneseq
      %v987 = vshrl.u32 %v986, 7
      %v988 = vsub.s32 2, %v987
      %v989 = vrot.slane %v944, %v988
      %v990 = vmul.f32 %v980, %v985
      %v991 = vmul.f32 %v980, %v989
      %v992 = vadd.f32 %v976, %v990
      %v993 = vadd.f32 %v977, %v991
      %994 = vset.pattern.permute.xlu0 3
      %995 = vperm.xlu0 %994, %v292
      %v996 = vpop.permute.xlu0 %995
      %v998 = vlaneseq
      %v999 = vshrl.u32 %v998, 7
      %v1000 = vsub.s32 3, %v999
      %v1001 = vrot.slane %v941, %v1000
      %v1002 = vlaneseq
      %v1003 = vshrl.u32 %v1002, 7
      %v1004 = vsub.s32 3, %v1003
      %v1005 = vrot.slane %v944, %v1004
      %v1006 = vmul.f32 %v996, %v1001
      %v1007 = vmul.f32 %v996, %v1005
      %v1008 = vadd.f32 %v992, %v1006
      %v1009 = vadd.f32 %v993, %v1007
      %v1010 = vmax.f32 %v1008, 0.0
      %v1011 = vmax.f32 %v1009, 0.0
      %v1012 = vld [vmem:[%s2] sm:$0xf]
      %v1013 = vld [vmem:[%s2 + $0x4] sm:$0xf]
      %v1014 = vld [vmem:[%s2 + $0x8] sm:$0xf]
      %v1015 = vld [vmem:[%s2 + $0xc] sm:$0xf]
      %v1016 = vld [vmem:[%s2 + $0x10] sm:$0xf]
      %v1017 = vld [vmem:[%s2 + $0x14] sm:$0xf]
      %v1018 = vld [vmem:[%s2 + $0x18] sm:$0xf]
      %v1019 = vld [vmem:[%s2 + $0x1c] sm:$0xf]
      %v1020 = vld [vmem:[%s2 + $0x20] sm:$0xf]
      %v1021 = vld [vmem:[%s5] sm:$0xf]
      %1023 = vset.pattern.permute.xlu0 1
      %1024 = vperm.xlu0 %1023, %v1021
      %v1025 = vpop.permute.xlu0 %1024
      %1029 = vrot.lane.b32.xlu0 %v1010, 1
      %v1030 = vpop.permute.xlu0 %1029
      %1031 = vrot.lane.b32.xlu0 %v1011, 1
      %v1032 = vpop.permute.xlu0 %1031
      %v1033 = vsel %vm305, %v1030, %v1032
      %v1036 = vsel %vm305, 0.0, %v1030
      %v1037 = vsel %vm312, 0.0, %v1036
      %v1038 = vsel %vm313, 0.0, %v1033
      %1039 = vrot.lane.b32.xlu0 %v1010, 127
      %v1040 = vpop.permute.xlu0 %1039
      %1041 = vrot.lane.b32.xlu0 %v1011, 127
      %v1042 = vpop.permute.xlu0 %1041
      %v1043 = vsel %vm320, %v1040, %v1042
      %v1046 = vsel %vm320, %v1042, 0.0
      %v1047 = vsel %vm327, 0.0, %v1043
      %v1048 = vsel %vm328, 0.0, %v1046
      %1051 = vrot.lane.b32.xlu0 %v1037, 16
      %v1052 = vpop.permute.xlu0 %1051
      %1053 = vrot.lane.b32.xlu0 %v1038, 16
      %v1054 = vpop.permute.xlu0 %1053
      %v1055 = vsel %vm337, %v1052, %v1054
      %v1058 = vsel %vm337, 0.0, %v1052
      %1060 = vset.pattern.permute.xlu0 0
      %1061 = vperm.xlu0 %1060, %v1012
      %v1062 = vpop.permute.xlu0 %1061
      %v1064 = vlaneseq
      %v1065 = vshrl.u32 %v1064, 7
      %v1066 = vsub.s32 0, %v1065
      %v1067 = vrot.slane %v1058, %v1066
      %v1068 = vlaneseq
      %v1069 = vshrl.u32 %v1068, 7
      %v1070 = vsub.s32 0, %v1069
      %v1071 = vrot.slane %v1055, %v1070
      %v1072 = vmul.f32 %v1062, %v1067
      %v1073 = vmul.f32 %v1062, %v1071
      %v1074 = vadd.f32 %v1025, %v1072
      %v1075 = vadd.f32 %v1025, %v1073
      %1076 = vset.pattern.permute.xlu0 1
      %1077 = vperm.xlu0 %1076, %v1012
      %v1078 = vpop.permute.xlu0 %1077
      %v1080 = vlaneseq
      %v1081 = vshrl.u32 %v1080, 7
      %v1082 = vsub.s32 1, %v1081
      %v1083 = vrot.slane %v1058, %v1082
      %v1084 = vlaneseq
      %v1085 = vshrl.u32 %v1084, 7
      %v1086 = vsub.s32 1, %v1085
      %v1087 = vrot.slane %v1055, %v1086
      %v1088 = vmul.f32 %v1078, %v1083
      %v1089 = vmul.f32 %v1078, %v1087
      %v1090 = vadd.f32 %v1074, %v1088
      %v1091 = vadd.f32 %v1075, %v1089
      %1092 = vset.pattern.permute.xlu0 2
      %1093 = vperm.xlu0 %1092, %v1012
      %v1094 = vpop.permute.xlu0 %1093
      %v1096 = vlaneseq
      %v1097 = vshrl.u32 %v1096, 7
      %v1098 = vsub.s32 2, %v1097
      %v1099 = vrot.slane %v1058, %v1098
      %v1100 = vlaneseq
      %v1101 = vshrl.u32 %v1100, 7
      %v1102 = vsub.s32 2, %v1101
      %v1103 = vrot.slane %v1055, %v1102
      %v1104 = vmul.f32 %v1094, %v1099
      %v1105 = vmul.f32 %v1094, %v1103
      %v1106 = vadd.f32 %v1090, %v1104
      %v1107 = vadd.f32 %v1091, %v1105
      %1108 = vset.pattern.permute.xlu0 3
      %1109 = vperm.xlu0 %1108, %v1012
      %v1110 = vpop.permute.xlu0 %1109
      %v1112 = vlaneseq
      %v1113 = vshrl.u32 %v1112, 7
      %v1114 = vsub.s32 3, %v1113
      %v1115 = vrot.slane %v1058, %v1114
      %v1116 = vlaneseq
      %v1117 = vshrl.u32 %v1116, 7
      %v1118 = vsub.s32 3, %v1117
      %v1119 = vrot.slane %v1055, %v1118
      %v1120 = vmul.f32 %v1110, %v1115
      %v1121 = vmul.f32 %v1110, %v1119
      %v1122 = vadd.f32 %v1106, %v1120
      %v1123 = vadd.f32 %v1107, %v1121
      %1124 = vrot.lane.b32.xlu0 %v1010, 16
      %v1125 = vpop.permute.xlu0 %1124
      %1126 = vrot.lane.b32.xlu0 %v1011, 16
      %v1127 = vpop.permute.xlu0 %1126
      %v1128 = vsel %vm337, %v1125, %v1127
      %v1131 = vsel %vm337, 0.0, %v1125
      %1133 = vset.pattern.permute.xlu0 0
      %1134 = vperm.xlu0 %1133, %v1013
      %v1135 = vpop.permute.xlu0 %1134
      %v1137 = vlaneseq
      %v1138 = vshrl.u32 %v1137, 7
      %v1139 = vsub.s32 0, %v1138
      %v1140 = vrot.slane %v1131, %v1139
      %v1141 = vlaneseq
      %v1142 = vshrl.u32 %v1141, 7
      %v1143 = vsub.s32 0, %v1142
      %v1144 = vrot.slane %v1128, %v1143
      %v1145 = vmul.f32 %v1135, %v1140
      %v1146 = vmul.f32 %v1135, %v1144
      %v1147 = vadd.f32 %v1122, %v1145
      %v1148 = vadd.f32 %v1123, %v1146
      %1149 = vset.pattern.permute.xlu0 1
      %1150 = vperm.xlu0 %1149, %v1013
      %v1151 = vpop.permute.xlu0 %1150
      %v1153 = vlaneseq
      %v1154 = vshrl.u32 %v1153, 7
      %v1155 = vsub.s32 1, %v1154
      %v1156 = vrot.slane %v1131, %v1155
      %v1157 = vlaneseq
      %v1158 = vshrl.u32 %v1157, 7
      %v1159 = vsub.s32 1, %v1158
      %v1160 = vrot.slane %v1128, %v1159
      %v1161 = vmul.f32 %v1151, %v1156
      %v1162 = vmul.f32 %v1151, %v1160
      %v1163 = vadd.f32 %v1147, %v1161
      %v1164 = vadd.f32 %v1148, %v1162
      %1165 = vset.pattern.permute.xlu0 2
      %1166 = vperm.xlu0 %1165, %v1013
      %v1167 = vpop.permute.xlu0 %1166
      %v1169 = vlaneseq
      %v1170 = vshrl.u32 %v1169, 7
      %v1171 = vsub.s32 2, %v1170
      %v1172 = vrot.slane %v1131, %v1171
      %v1173 = vlaneseq
      %v1174 = vshrl.u32 %v1173, 7
      %v1175 = vsub.s32 2, %v1174
      %v1176 = vrot.slane %v1128, %v1175
      %v1177 = vmul.f32 %v1167, %v1172
      %v1178 = vmul.f32 %v1167, %v1176
      %v1179 = vadd.f32 %v1163, %v1177
      %v1180 = vadd.f32 %v1164, %v1178
      %1181 = vset.pattern.permute.xlu0 3
      %1182 = vperm.xlu0 %1181, %v1013
      %v1183 = vpop.permute.xlu0 %1182
      %v1185 = vlaneseq
      %v1186 = vshrl.u32 %v1185, 7
      %v1187 = vsub.s32 3, %v1186
      %v1188 = vrot.slane %v1131, %v1187
      %v1189 = vlaneseq
      %v1190 = vshrl.u32 %v1189, 7
      %v1191 = vsub.s32 3, %v1190
      %v1192 = vrot.slane %v1128, %v1191
      %v1193 = vmul.f32 %v1183, %v1188
      %v1194 = vmul.f32 %v1183, %v1192
      %v1195 = vadd.f32 %v1179, %v1193
      %v1196 = vadd.f32 %v1180, %v1194
      %1199 = vrot.lane.b32.xlu0 %v1047, 16
      %v1200 = vpop.permute.xlu0 %1199
      %1201 = vrot.lane.b32.xlu0 %v1048, 16
      %v1202 = vpop.permute.xlu0 %1201
      %v1203 = vsel %vm337, %v1200, %v1202
      %v1206 = vsel %vm337, 0.0, %v1200
      %1208 = vset.pattern.permute.xlu0 0
      %1209 = vperm.xlu0 %1208, %v1014
      %v1210 = vpop.permute.xlu0 %1209
      %v1212 = vlaneseq
      %v1213 = vshrl.u32 %v1212, 7
      %v1214 = vsub.s32 0, %v1213
      %v1215 = vrot.slane %v1206, %v1214
      %v1216 = vlaneseq
      %v1217 = vshrl.u32 %v1216, 7
      %v1218 = vsub.s32 0, %v1217
      %v1219 = vrot.slane %v1203, %v1218
      %v1220 = vmul.f32 %v1210, %v1215
      %v1221 = vmul.f32 %v1210, %v1219
      %v1222 = vadd.f32 %v1195, %v1220
      %v1223 = vadd.f32 %v1196, %v1221
      %1224 = vset.pattern.permute.xlu0 1
      %1225 = vperm.xlu0 %1224, %v1014
      %v1226 = vpop.permute.xlu0 %1225
      %v1228 = vlaneseq
      %v1229 = vshrl.u32 %v1228, 7
      %v1230 = vsub.s32 1, %v1229
      %v1231 = vrot.slane %v1206, %v1230
      %v1232 = vlaneseq
      %v1233 = vshrl.u32 %v1232, 7
      %v1234 = vsub.s32 1, %v1233
      %v1235 = vrot.slane %v1203, %v1234
      %v1236 = vmul.f32 %v1226, %v1231
      %v1237 = vmul.f32 %v1226, %v1235
      %v1238 = vadd.f32 %v1222, %v1236
      %v1239 = vadd.f32 %v1223, %v1237
      %1240 = vset.pattern.permute.xlu0 2
      %1241 = vperm.xlu0 %1240, %v1014
      %v1242 = vpop.permute.xlu0 %1241
      %v1244 = vlaneseq
      %v1245 = vshrl.u32 %v1244, 7
      %v1246 = vsub.s32 2, %v1245
      %v1247 = vrot.slane %v1206, %v1246
      %v1248 = vlaneseq
      %v1249 = vshrl.u32 %v1248, 7
      %v1250 = vsub.s32 2, %v1249
      %v1251 = vrot.slane %v1203, %v1250
      %v1252 = vmul.f32 %v1242, %v1247
      %v1253 = vmul.f32 %v1242, %v1251
      %v1254 = vadd.f32 %v1238, %v1252
      %v1255 = vadd.f32 %v1239, %v1253
      %1256 = vset.pattern.permute.xlu0 3
      %1257 = vperm.xlu0 %1256, %v1014
      %v1258 = vpop.permute.xlu0 %1257
      %v1260 = vlaneseq
      %v1261 = vshrl.u32 %v1260, 7
      %v1262 = vsub.s32 3, %v1261
      %v1263 = vrot.slane %v1206, %v1262
      %v1264 = vlaneseq
      %v1265 = vshrl.u32 %v1264, 7
      %v1266 = vsub.s32 3, %v1265
      %v1267 = vrot.slane %v1203, %v1266
      %v1268 = vmul.f32 %v1258, %v1263
      %v1269 = vmul.f32 %v1258, %v1267
      %v1270 = vadd.f32 %v1254, %v1268
      %v1271 = vadd.f32 %v1255, %v1269
      %1273 = vset.pattern.permute.xlu0 0
      %1274 = vperm.xlu0 %1273, %v1015
      %v1275 = vpop.permute.xlu0 %1274
      %v1277 = vlaneseq
      %v1278 = vshrl.u32 %v1277, 7
      %v1279 = vsub.s32 0, %v1278
      %v1280 = vrot.slane %v1037, %v1279
      %v1281 = vlaneseq
      %v1282 = vshrl.u32 %v1281, 7
      %v1283 = vsub.s32 0, %v1282
      %v1284 = vrot.slane %v1038, %v1283
      %v1285 = vmul.f32 %v1275, %v1280
      %v1286 = vmul.f32 %v1275, %v1284
      %v1287 = vadd.f32 %v1270, %v1285
      %v1288 = vadd.f32 %v1271, %v1286
      %1289 = vset.pattern.permute.xlu0 1
      %1290 = vperm.xlu0 %1289, %v1015
      %v1291 = vpop.permute.xlu0 %1290
      %v1293 = vlaneseq
      %v1294 = vshrl.u32 %v1293, 7
      %v1295 = vsub.s32 1, %v1294
      %v1296 = vrot.slane %v1037, %v1295
      %v1297 = vlaneseq
      %v1298 = vshrl.u32 %v1297, 7
      %v1299 = vsub.s32 1, %v1298
      %v1300 = vrot.slane %v1038, %v1299
      %v1301 = vmul.f32 %v1291, %v1296
      %v1302 = vmul.f32 %v1291, %v1300
      %v1303 = vadd.f32 %v1287, %v1301
      %v1304 = vadd.f32 %v1288, %v1302
      %1305 = vset.pattern.permute.xlu0 2
      %1306 = vperm.xlu0 %1305, %v1015
      %v1307 = vpop.permute.xlu0 %1306
      %v1309 = vlaneseq
      %v1310 = vshrl.u32 %v1309, 7
      %v1311 = vsub.s32 2, %v1310
      %v1312 = vrot.slane %v1037, %v1311
      %v1313 = vlaneseq
      %v1314 = vshrl.u32 %v1313, 7
      %v1315 = vsub.s32 2, %v1314
      %v1316 = vrot.slane %v1038, %v1315
      %v1317 = vmul.f32 %v1307, %v1312
      %v1318 = vmul.f32 %v1307, %v1316
      %v1319 = vadd.f32 %v1303, %v1317
      %v1320 = vadd.f32 %v1304, %v1318
      %1321 = vset.pattern.permute.xlu0 3
      %1322 = vperm.xlu0 %1321, %v1015
      %v1323 = vpop.permute.xlu0 %1322
      %v1325 = vlaneseq
      %v1326 = vshrl.u32 %v1325, 7
      %v1327 = vsub.s32 3, %v1326
      %v1328 = vrot.slane %v1037, %v1327
      %v1329 = vlaneseq
      %v1330 = vshrl.u32 %v1329, 7
      %v1331 = vsub.s32 3, %v1330
      %v1332 = vrot.slane %v1038, %v1331
      %v1333 = vmul.f32 %v1323, %v1328
      %v1334 = vmul.f32 %v1323, %v1332
      %v1335 = vadd.f32 %v1319, %v1333
      %v1336 = vadd.f32 %v1320, %v1334
      %1338 = vset.pattern.permute.xlu0 0
      %1339 = vperm.xlu0 %1338, %v1016
      %v1340 = vpop.permute.xlu0 %1339
      %v1342 = vlaneseq
      %v1343 = vshrl.u32 %v1342, 7
      %v1344 = vsub.s32 0, %v1343
      %v1345 = vrot.slane %v1010, %v1344
      %v1346 = vlaneseq
      %v1347 = vshrl.u32 %v1346, 7
      %v1348 = vsub.s32 0, %v1347
      %v1349 = vrot.slane %v1011, %v1348
      %v1350 = vmul.f32 %v1340, %v1345
      %v1351 = vmul.f32 %v1340, %v1349
      %v1352 = vadd.f32 %v1335, %v1350
      %v1353 = vadd.f32 %v1336, %v1351
      %1354 = vset.pattern.permute.xlu0 1
      %1355 = vperm.xlu0 %1354, %v1016
      %v1356 = vpop.permute.xlu0 %1355
      %v1358 = vlaneseq
      %v1359 = vshrl.u32 %v1358, 7
      %v1360 = vsub.s32 1, %v1359
      %v1361 = vrot.slane %v1010, %v1360
      %v1362 = vlaneseq
      %v1363 = vshrl.u32 %v1362, 7
      %v1364 = vsub.s32 1, %v1363
      %v1365 = vrot.slane %v1011, %v1364
      %v1366 = vmul.f32 %v1356, %v1361
      %v1367 = vmul.f32 %v1356, %v1365
      %v1368 = vadd.f32 %v1352, %v1366
      %v1369 = vadd.f32 %v1353, %v1367
      %1370 = vset.pattern.permute.xlu0 2
      %1371 = vperm.xlu0 %1370, %v1016
      %v1372 = vpop.permute.xlu0 %1371
      %v1374 = vlaneseq
      %v1375 = vshrl.u32 %v1374, 7
      %v1376 = vsub.s32 2, %v1375
      %v1377 = vrot.slane %v1010, %v1376
      %v1378 = vlaneseq
      %v1379 = vshrl.u32 %v1378, 7
      %v1380 = vsub.s32 2, %v1379
      %v1381 = vrot.slane %v1011, %v1380
      %v1382 = vmul.f32 %v1372, %v1377
      %v1383 = vmul.f32 %v1372, %v1381
      %v1384 = vadd.f32 %v1368, %v1382
      %v1385 = vadd.f32 %v1369, %v1383
      %1386 = vset.pattern.permute.xlu0 3
      %1387 = vperm.xlu0 %1386, %v1016
      %v1388 = vpop.permute.xlu0 %1387
      %v1390 = vlaneseq
      %v1391 = vshrl.u32 %v1390, 7
      %v1392 = vsub.s32 3, %v1391
      %v1393 = vrot.slane %v1010, %v1392
      %v1394 = vlaneseq
      %v1395 = vshrl.u32 %v1394, 7
      %v1396 = vsub.s32 3, %v1395
      %v1397 = vrot.slane %v1011, %v1396
      %v1398 = vmul.f32 %v1388, %v1393
      %v1399 = vmul.f32 %v1388, %v1397
      %v1400 = vadd.f32 %v1384, %v1398
      %v1401 = vadd.f32 %v1385, %v1399
      %1403 = vset.pattern.permute.xlu0 0
      %1404 = vperm.xlu0 %1403, %v1017
      %v1405 = vpop.permute.xlu0 %1404
      %v1407 = vlaneseq
      %v1408 = vshrl.u32 %v1407, 7
      %v1409 = vsub.s32 0, %v1408
      %v1410 = vrot.slane %v1047, %v1409
      %v1411 = vlaneseq
      %v1412 = vshrl.u32 %v1411, 7
      %v1413 = vsub.s32 0, %v1412
      %v1414 = vrot.slane %v1048, %v1413
      %v1415 = vmul.f32 %v1405, %v1410
      %v1416 = vmul.f32 %v1405, %v1414
      %v1417 = vadd.f32 %v1400, %v1415
      %v1418 = vadd.f32 %v1401, %v1416
      %1419 = vset.pattern.permute.xlu0 1
      %1420 = vperm.xlu0 %1419, %v1017
      %v1421 = vpop.permute.xlu0 %1420
      %v1423 = vlaneseq
      %v1424 = vshrl.u32 %v1423, 7
      %v1425 = vsub.s32 1, %v1424
      %v1426 = vrot.slane %v1047, %v1425
      %v1427 = vlaneseq
      %v1428 = vshrl.u32 %v1427, 7
      %v1429 = vsub.s32 1, %v1428
      %v1430 = vrot.slane %v1048, %v1429
      %v1431 = vmul.f32 %v1421, %v1426
      %v1432 = vmul.f32 %v1421, %v1430
      %v1433 = vadd.f32 %v1417, %v1431
      %v1434 = vadd.f32 %v1418, %v1432
      %1435 = vset.pattern.permute.xlu0 2
      %1436 = vperm.xlu0 %1435, %v1017
      %v1437 = vpop.permute.xlu0 %1436
      %v1439 = vlaneseq
      %v1440 = vshrl.u32 %v1439, 7
      %v1441 = vsub.s32 2, %v1440
      %v1442 = vrot.slane %v1047, %v1441
      %v1443 = vlaneseq
      %v1444 = vshrl.u32 %v1443, 7
      %v1445 = vsub.s32 2, %v1444
      %v1446 = vrot.slane %v1048, %v1445
      %v1447 = vmul.f32 %v1437, %v1442
      %v1448 = vmul.f32 %v1437, %v1446
      %v1449 = vadd.f32 %v1433, %v1447
      %v1450 = vadd.f32 %v1434, %v1448
      %1451 = vset.pattern.permute.xlu0 3
      %1452 = vperm.xlu0 %1451, %v1017
      %v1453 = vpop.permute.xlu0 %1452
      %v1455 = vlaneseq
      %v1456 = vshrl.u32 %v1455, 7
      %v1457 = vsub.s32 3, %v1456
      %v1458 = vrot.slane %v1047, %v1457
      %v1459 = vlaneseq
      %v1460 = vshrl.u32 %v1459, 7
      %v1461 = vsub.s32 3, %v1460
      %v1462 = vrot.slane %v1048, %v1461
      %v1463 = vmul.f32 %v1453, %v1458
      %v1464 = vmul.f32 %v1453, %v1462
      %v1465 = vadd.f32 %v1449, %v1463
      %v1466 = vadd.f32 %v1450, %v1464
      %1467 = vrot.lane.b32.xlu0 %v1037, 112
      %v1468 = vpop.permute.xlu0 %1467
      %1469 = vrot.lane.b32.xlu0 %v1038, 112
      %v1470 = vpop.permute.xlu0 %1469
      %v1471 = vsel %vm794, %v1468, %v1470
      %v1474 = vsel %vm794, %v1470, 0.0
      %1476 = vset.pattern.permute.xlu0 0
      %1477 = vperm.xlu0 %1476, %v1018
      %v1478 = vpop.permute.xlu0 %1477
      %v1480 = vlaneseq
      %v1481 = vshrl.u32 %v1480, 7
      %v1482 = vsub.s32 0, %v1481
      %v1483 = vrot.slane %v1471, %v1482
      %v1484 = vlaneseq
      %v1485 = vshrl.u32 %v1484, 7
      %v1486 = vsub.s32 0, %v1485
      %v1487 = vrot.slane %v1474, %v1486
      %v1488 = vmul.f32 %v1478, %v1483
      %v1489 = vmul.f32 %v1478, %v1487
      %v1490 = vadd.f32 %v1465, %v1488
      %v1491 = vadd.f32 %v1466, %v1489
      %1492 = vset.pattern.permute.xlu0 1
      %1493 = vperm.xlu0 %1492, %v1018
      %v1494 = vpop.permute.xlu0 %1493
      %v1496 = vlaneseq
      %v1497 = vshrl.u32 %v1496, 7
      %v1498 = vsub.s32 1, %v1497
      %v1499 = vrot.slane %v1471, %v1498
      %v1500 = vlaneseq
      %v1501 = vshrl.u32 %v1500, 7
      %v1502 = vsub.s32 1, %v1501
      %v1503 = vrot.slane %v1474, %v1502
      %v1504 = vmul.f32 %v1494, %v1499
      %v1505 = vmul.f32 %v1494, %v1503
      %v1506 = vadd.f32 %v1490, %v1504
      %v1507 = vadd.f32 %v1491, %v1505
      %1508 = vset.pattern.permute.xlu0 2
      %1509 = vperm.xlu0 %1508, %v1018
      %v1510 = vpop.permute.xlu0 %1509
      %v1512 = vlaneseq
      %v1513 = vshrl.u32 %v1512, 7
      %v1514 = vsub.s32 2, %v1513
      %v1515 = vrot.slane %v1471, %v1514
      %v1516 = vlaneseq
      %v1517 = vshrl.u32 %v1516, 7
      %v1518 = vsub.s32 2, %v1517
      %v1519 = vrot.slane %v1474, %v1518
      %v1520 = vmul.f32 %v1510, %v1515
      %v1521 = vmul.f32 %v1510, %v1519
      %v1522 = vadd.f32 %v1506, %v1520
      %v1523 = vadd.f32 %v1507, %v1521
      %1524 = vset.pattern.permute.xlu0 3
      %1525 = vperm.xlu0 %1524, %v1018
      %v1526 = vpop.permute.xlu0 %1525
      %v1528 = vlaneseq
      %v1529 = vshrl.u32 %v1528, 7
      %v1530 = vsub.s32 3, %v1529
      %v1531 = vrot.slane %v1471, %v1530
      %v1532 = vlaneseq
      %v1533 = vshrl.u32 %v1532, 7
      %v1534 = vsub.s32 3, %v1533
      %v1535 = vrot.slane %v1474, %v1534
      %v1536 = vmul.f32 %v1526, %v1531
      %v1537 = vmul.f32 %v1526, %v1535
      %v1538 = vadd.f32 %v1522, %v1536
      %v1539 = vadd.f32 %v1523, %v1537
      %1540 = vrot.lane.b32.xlu0 %v1010, 112
      %v1541 = vpop.permute.xlu0 %1540
      %1542 = vrot.lane.b32.xlu0 %v1011, 112
      %v1543 = vpop.permute.xlu0 %1542
      %v1544 = vsel %vm794, %v1541, %v1543
      %v1547 = vsel %vm794, %v1543, 0.0
      %1549 = vset.pattern.permute.xlu0 0
      %1550 = vperm.xlu0 %1549, %v1019
      %v1551 = vpop.permute.xlu0 %1550
      %v1553 = vlaneseq
      %v1554 = vshrl.u32 %v1553, 7
      %v1555 = vsub.s32 0, %v1554
      %v1556 = vrot.slane %v1544, %v1555
      %v1557 = vlaneseq
      %v1558 = vshrl.u32 %v1557, 7
      %v1559 = vsub.s32 0, %v1558
      %v1560 = vrot.slane %v1547, %v1559
      %v1561 = vmul.f32 %v1551, %v1556
      %v1562 = vmul.f32 %v1551, %v1560
      %v1563 = vadd.f32 %v1538, %v1561
      %v1564 = vadd.f32 %v1539, %v1562
      %1565 = vset.pattern.permute.xlu0 1
      %1566 = vperm.xlu0 %1565, %v1019
      %v1567 = vpop.permute.xlu0 %1566
      %v1569 = vlaneseq
      %v1570 = vshrl.u32 %v1569, 7
      %v1571 = vsub.s32 1, %v1570
      %v1572 = vrot.slane %v1544, %v1571
      %v1573 = vlaneseq
      %v1574 = vshrl.u32 %v1573, 7
      %v1575 = vsub.s32 1, %v1574
      %v1576 = vrot.slane %v1547, %v1575
      %v1577 = vmul.f32 %v1567, %v1572
      %v1578 = vmul.f32 %v1567, %v1576
      %v1579 = vadd.f32 %v1563, %v1577
      %v1580 = vadd.f32 %v1564, %v1578
      %1581 = vset.pattern.permute.xlu0 2
      %1582 = vperm.xlu0 %1581, %v1019
      %v1583 = vpop.permute.xlu0 %1582
      %v1585 = vlaneseq
      %v1586 = vshrl.u32 %v1585, 7
      %v1587 = vsub.s32 2, %v1586
      %v1588 = vrot.slane %v1544, %v1587
      %v1589 = vlaneseq
      %v1590 = vshrl.u32 %v1589, 7
      %v1591 = vsub.s32 2, %v1590
      %v1592 = vrot.slane %v1547, %v1591
      %v1593 = vmul.f32 %v1583, %v1588
      %v1594 = vmul.f32 %v1583, %v1592
      %v1595 = vadd.f32 %v1579, %v1593
      %v1596 = vadd.f32 %v1580, %v1594
      %1597 = vset.pattern.permute.xlu0 3
      %1598 = vperm.xlu0 %1597, %v1019
      %v1599 = vpop.permute.xlu0 %1598
      %v1601 = vlaneseq
      %v1602 = vshrl.u32 %v1601, 7
      %v1603 = vsub.s32 3, %v1602
      %v1604 = vrot.slane %v1544, %v1603
      %v1605 = vlaneseq
      %v1606 = vshrl.u32 %v1605, 7
      %v1607 = vsub.s32 3, %v1606
      %v1608 = vrot.slane %v1547, %v1607
      %v1609 = vmul.f32 %v1599, %v1604
      %v1610 = vmul.f32 %v1599, %v1608
      %v1611 = vadd.f32 %v1595, %v1609
      %v1612 = vadd.f32 %v1596, %v1610
      %1613 = vrot.lane.b32.xlu0 %v1047, 112
      %v1614 = vpop.permute.xlu0 %1613
      %1615 = vrot.lane.b32.xlu0 %v1048, 112
      %v1616 = vpop.permute.xlu0 %1615
      %v1617 = vsel %vm794, %v1614, %v1616
      %v1620 = vsel %vm794, %v1616, 0.0
      %1622 = vset.pattern.permute.xlu0 0
      %1623 = vperm.xlu0 %1622, %v1020
      %v1624 = vpop.permute.xlu0 %1623
      %v1626 = vlaneseq
      %v1627 = vshrl.u32 %v1626, 7
      %v1628 = vsub.s32 0, %v1627
      %v1629 = vrot.slane %v1617, %v1628
      %v1630 = vlaneseq
      %v1631 = vshrl.u32 %v1630, 7
      %v1632 = vsub.s32 0, %v1631
      %v1633 = vrot.slane %v1620, %v1632
      %v1634 = vmul.f32 %v1624, %v1629
      %v1635 = vmul.f32 %v1624, %v1633
      %v1636 = vadd.f32 %v1611, %v1634
      %v1637 = vadd.f32 %v1612, %v1635
      %1638 = vset.pattern.permute.xlu0 1
      %1639 = vperm.xlu0 %1638, %v1020
      %v1640 = vpop.permute.xlu0 %1639
      %v1642 = vlaneseq
      %v1643 = vshrl.u32 %v1642, 7
      %v1644 = vsub.s32 1, %v1643
      %v1645 = vrot.slane %v1617, %v1644
      %v1646 = vlaneseq
      %v1647 = vshrl.u32 %v1646, 7
      %v1648 = vsub.s32 1, %v1647
      %v1649 = vrot.slane %v1620, %v1648
      %v1650 = vmul.f32 %v1640, %v1645
      %v1651 = vmul.f32 %v1640, %v1649
      %v1652 = vadd.f32 %v1636, %v1650
      %v1653 = vadd.f32 %v1637, %v1651
      %1654 = vset.pattern.permute.xlu0 2
      %1655 = vperm.xlu0 %1654, %v1020
      %v1656 = vpop.permute.xlu0 %1655
      %v1658 = vlaneseq
      %v1659 = vshrl.u32 %v1658, 7
      %v1660 = vsub.s32 2, %v1659
      %v1661 = vrot.slane %v1617, %v1660
      %v1662 = vlaneseq
      %v1663 = vshrl.u32 %v1662, 7
      %v1664 = vsub.s32 2, %v1663
      %v1665 = vrot.slane %v1620, %v1664
      %v1666 = vmul.f32 %v1656, %v1661
      %v1667 = vmul.f32 %v1656, %v1665
      %v1668 = vadd.f32 %v1652, %v1666
      %v1669 = vadd.f32 %v1653, %v1667
      %1670 = vset.pattern.permute.xlu0 3
      %1671 = vperm.xlu0 %1670, %v1020
      %v1672 = vpop.permute.xlu0 %1671
      %v1674 = vlaneseq
      %v1675 = vshrl.u32 %v1674, 7
      %v1676 = vsub.s32 3, %v1675
      %v1677 = vrot.slane %v1617, %v1676
      %v1678 = vlaneseq
      %v1679 = vshrl.u32 %v1678, 7
      %v1680 = vsub.s32 3, %v1679
      %v1681 = vrot.slane %v1620, %v1680
      %v1682 = vmul.f32 %v1672, %v1677
      %v1683 = vmul.f32 %v1672, %v1681
      %v1684 = vadd.f32 %v1668, %v1682
      %v1685 = vadd.f32 %v1669, %v1683
      %v1686 = vmax.f32 %v1684, 0.0
      %v1687 = vmax.f32 %v1685, 0.0
      %s1688 = scalar_lea.vmem %s2, 36
      %v1689 = vld [vmem:[%s1688] sm:$0xf]
      %v1690 = vld [vmem:[%s1688 + $0x4] sm:$0xf]
      %v1691 = vld [vmem:[%s1688 + $0x8] sm:$0xf]
      %v1692 = vld [vmem:[%s1688 + $0xc] sm:$0xf]
      %v1693 = vld [vmem:[%s1688 + $0x10] sm:$0xf]
      %v1694 = vld [vmem:[%s1688 + $0x14] sm:$0xf]
      %v1695 = vld [vmem:[%s1688 + $0x18] sm:$0xf]
      %v1696 = vld [vmem:[%s1688 + $0x1c] sm:$0xf]
      %v1697 = vld [vmem:[%s1688 + $0x20] sm:$0xf]
      %1698 = vset.pattern.permute.xlu0 2
      %1699 = vperm.xlu0 %1698, %v1021
      %v1700 = vpop.permute.xlu0 %1699
      %1704 = vrot.lane.b32.xlu0 %v1686, 1
      %v1705 = vpop.permute.xlu0 %1704
      %1706 = vrot.lane.b32.xlu0 %v1687, 1
      %v1707 = vpop.permute.xlu0 %1706
      %v1708 = vsel %vm305, %v1705, %v1707
      %v1711 = vsel %vm305, 0.0, %v1705
      %v1712 = vsel %vm312, 0.0, %v1711
      %v1713 = vsel %vm313, 0.0, %v1708
      %1714 = vrot.lane.b32.xlu0 %v1686, 127
      %v1715 = vpop.permute.xlu0 %1714
      %1716 = vrot.lane.b32.xlu0 %v1687, 127
      %v1717 = vpop.permute.xlu0 %1716
      %v1718 = vsel %vm320, %v1715, %v1717
      %v1721 = vsel %vm320, %v1717, 0.0
      %v1722 = vsel %vm327, 0.0, %v1718
      %v1723 = vsel %vm328, 0.0, %v1721
      %1726 = vrot.lane.b32.xlu0 %v1712, 16
      %v1727 = vpop.permute.xlu0 %1726
      %1728 = vrot.lane.b32.xlu0 %v1713, 16
      %v1729 = vpop.permute.xlu0 %1728
      %v1730 = vsel %vm337, %v1727, %v1729
      %v1733 = vsel %vm337, 0.0, %v1727
      %1735 = vset.pattern.permute.xlu0 0
      %1736 = vperm.xlu0 %1735, %v1689
      %v1737 = vpop.permute.xlu0 %1736
      %v1739 = vlaneseq
      %v1740 = vshrl.u32 %v1739, 7
      %v1741 = vsub.s32 0, %v1740
      %v1742 = vrot.slane %v1733, %v1741
      %v1743 = vlaneseq
      %v1744 = vshrl.u32 %v1743, 7
      %v1745 = vsub.s32 0, %v1744
      %v1746 = vrot.slane %v1730, %v1745
      %v1747 = vmul.f32 %v1737, %v1742
      %v1748 = vmul.f32 %v1737, %v1746
      %v1749 = vadd.f32 %v1700, %v1747
      %v1750 = vadd.f32 %v1700, %v1748
      %1751 = vset.pattern.permute.xlu0 1
      %1752 = vperm.xlu0 %1751, %v1689
      %v1753 = vpop.permute.xlu0 %1752
      %v1755 = vlaneseq
      %v1756 = vshrl.u32 %v1755, 7
      %v1757 = vsub.s32 1, %v1756
      %v1758 = vrot.slane %v1733, %v1757
      %v1759 = vlaneseq
      %v1760 = vshrl.u32 %v1759, 7
      %v1761 = vsub.s32 1, %v1760
      %v1762 = vrot.slane %v1730, %v1761
      %v1763 = vmul.f32 %v1753, %v1758
      %v1764 = vmul.f32 %v1753, %v1762
      %v1765 = vadd.f32 %v1749, %v1763
      %v1766 = vadd.f32 %v1750, %v1764
      %1767 = vset.pattern.permute.xlu0 2
      %1768 = vperm.xlu0 %1767, %v1689
      %v1769 = vpop.permute.xlu0 %1768
      %v1771 = vlaneseq
      %v1772 = vshrl.u32 %v1771, 7
      %v1773 = vsub.s32 2, %v1772
      %v1774 = vrot.slane %v1733, %v1773
      %v1775 = vlaneseq
      %v1776 = vshrl.u32 %v1775, 7
      %v1777 = vsub.s32 2, %v1776
      %v1778 = vrot.slane %v1730, %v1777
      %v1779 = vmul.f32 %v1769, %v1774
      %v1780 = vmul.f32 %v1769, %v1778
      %v1781 = vadd.f32 %v1765, %v1779
      %v1782 = vadd.f32 %v1766, %v1780
      %1783 = vset.pattern.permute.xlu0 3
      %1784 = vperm.xlu0 %1783, %v1689
      %v1785 = vpop.permute.xlu0 %1784
      %v1787 = vlaneseq
      %v1788 = vshrl.u32 %v1787, 7
      %v1789 = vsub.s32 3, %v1788
      %v1790 = vrot.slane %v1733, %v1789
      %v1791 = vlaneseq
      %v1792 = vshrl.u32 %v1791, 7
      %v1793 = vsub.s32 3, %v1792
      %v1794 = vrot.slane %v1730, %v1793
      %v1795 = vmul.f32 %v1785, %v1790
      %v1796 = vmul.f32 %v1785, %v1794
      %v1797 = vadd.f32 %v1781, %v1795
      %v1798 = vadd.f32 %v1782, %v1796
      %1799 = vrot.lane.b32.xlu0 %v1686, 16
      %v1800 = vpop.permute.xlu0 %1799
      %1801 = vrot.lane.b32.xlu0 %v1687, 16
      %v1802 = vpop.permute.xlu0 %1801
      %v1803 = vsel %vm337, %v1800, %v1802
      %v1806 = vsel %vm337, 0.0, %v1800
      %1808 = vset.pattern.permute.xlu0 0
      %1809 = vperm.xlu0 %1808, %v1690
      %v1810 = vpop.permute.xlu0 %1809
      %v1812 = vlaneseq
      %v1813 = vshrl.u32 %v1812, 7
      %v1814 = vsub.s32 0, %v1813
      %v1815 = vrot.slane %v1806, %v1814
      %v1816 = vlaneseq
      %v1817 = vshrl.u32 %v1816, 7
      %v1818 = vsub.s32 0, %v1817
      %v1819 = vrot.slane %v1803, %v1818
      %v1820 = vmul.f32 %v1810, %v1815
      %v1821 = vmul.f32 %v1810, %v1819
      %v1822 = vadd.f32 %v1797, %v1820
      %v1823 = vadd.f32 %v1798, %v1821
      %1824 = vset.pattern.permute.xlu0 1
      %1825 = vperm.xlu0 %1824, %v1690
      %v1826 = vpop.permute.xlu0 %1825
      %v1828 = vlaneseq
      %v1829 = vshrl.u32 %v1828, 7
      %v1830 = vsub.s32 1, %v1829
      %v1831 = vrot.slane %v1806, %v1830
      %v1832 = vlaneseq
      %v1833 = vshrl.u32 %v1832, 7
      %v1834 = vsub.s32 1, %v1833
      %v1835 = vrot.slane %v1803, %v1834
      %v1836 = vmul.f32 %v1826, %v1831
      %v1837 = vmul.f32 %v1826, %v1835
      %v1838 = vadd.f32 %v1822, %v1836
      %v1839 = vadd.f32 %v1823, %v1837
      %1840 = vset.pattern.permute.xlu0 2
      %1841 = vperm.xlu0 %1840, %v1690
      %v1842 = vpop.permute.xlu0 %1841
      %v1844 = vlaneseq
      %v1845 = vshrl.u32 %v1844, 7
      %v1846 = vsub.s32 2, %v1845
      %v1847 = vrot.slane %v1806, %v1846
      %v1848 = vlaneseq
      %v1849 = vshrl.u32 %v1848, 7
      %v1850 = vsub.s32 2, %v1849
      %v1851 = vrot.slane %v1803, %v1850
      %v1852 = vmul.f32 %v1842, %v1847
      %v1853 = vmul.f32 %v1842, %v1851
      %v1854 = vadd.f32 %v1838, %v1852
      %v1855 = vadd.f32 %v1839, %v1853
      %1856 = vset.pattern.permute.xlu0 3
      %1857 = vperm.xlu0 %1856, %v1690
      %v1858 = vpop.permute.xlu0 %1857
      %v1860 = vlaneseq
      %v1861 = vshrl.u32 %v1860, 7
      %v1862 = vsub.s32 3, %v1861
      %v1863 = vrot.slane %v1806, %v1862
      %v1864 = vlaneseq
      %v1865 = vshrl.u32 %v1864, 7
      %v1866 = vsub.s32 3, %v1865
      %v1867 = vrot.slane %v1803, %v1866
      %v1868 = vmul.f32 %v1858, %v1863
      %v1869 = vmul.f32 %v1858, %v1867
      %v1870 = vadd.f32 %v1854, %v1868
      %v1871 = vadd.f32 %v1855, %v1869
      %1874 = vrot.lane.b32.xlu0 %v1722, 16
      %v1875 = vpop.permute.xlu0 %1874
      %1876 = vrot.lane.b32.xlu0 %v1723, 16
      %v1877 = vpop.permute.xlu0 %1876
      %v1878 = vsel %vm337, %v1875, %v1877
      %v1881 = vsel %vm337, 0.0, %v1875
      %1883 = vset.pattern.permute.xlu0 0
      %1884 = vperm.xlu0 %1883, %v1691
      %v1885 = vpop.permute.xlu0 %1884
      %v1887 = vlaneseq
      %v1888 = vshrl.u32 %v1887, 7
      %v1889 = vsub.s32 0, %v1888
      %v1890 = vrot.slane %v1881, %v1889
      %v1891 = vlaneseq
      %v1892 = vshrl.u32 %v1891, 7
      %v1893 = vsub.s32 0, %v1892
      %v1894 = vrot.slane %v1878, %v1893
      %v1895 = vmul.f32 %v1885, %v1890
      %v1896 = vmul.f32 %v1885, %v1894
      %v1897 = vadd.f32 %v1870, %v1895
      %v1898 = vadd.f32 %v1871, %v1896
      %1899 = vset.pattern.permute.xlu0 1
      %1900 = vperm.xlu0 %1899, %v1691
      %v1901 = vpop.permute.xlu0 %1900
      %v1903 = vlaneseq
      %v1904 = vshrl.u32 %v1903, 7
      %v1905 = vsub.s32 1, %v1904
      %v1906 = vrot.slane %v1881, %v1905
      %v1907 = vlaneseq
      %v1908 = vshrl.u32 %v1907, 7
      %v1909 = vsub.s32 1, %v1908
      %v1910 = vrot.slane %v1878, %v1909
      %v1911 = vmul.f32 %v1901, %v1906
      %v1912 = vmul.f32 %v1901, %v1910
      %v1913 = vadd.f32 %v1897, %v1911
      %v1914 = vadd.f32 %v1898, %v1912
      %1915 = vset.pattern.permute.xlu0 2
      %1916 = vperm.xlu0 %1915, %v1691
      %v1917 = vpop.permute.xlu0 %1916
      %v1919 = vlaneseq
      %v1920 = vshrl.u32 %v1919, 7
      %v1921 = vsub.s32 2, %v1920
      %v1922 = vrot.slane %v1881, %v1921
      %v1923 = vlaneseq
      %v1924 = vshrl.u32 %v1923, 7
      %v1925 = vsub.s32 2, %v1924
      %v1926 = vrot.slane %v1878, %v1925
      %v1927 = vmul.f32 %v1917, %v1922
      %v1928 = vmul.f32 %v1917, %v1926
      %v1929 = vadd.f32 %v1913, %v1927
      %v1930 = vadd.f32 %v1914, %v1928
      %1931 = vset.pattern.permute.xlu0 3
      %1932 = vperm.xlu0 %1931, %v1691
      %v1933 = vpop.permute.xlu0 %1932
      %v1935 = vlaneseq
      %v1936 = vshrl.u32 %v1935, 7
      %v1937 = vsub.s32 3, %v1936
      %v1938 = vrot.slane %v1881, %v1937
      %v1939 = vlaneseq
      %v1940 = vshrl.u32 %v1939, 7
      %v1941 = vsub.s32 3, %v1940
      %v1942 = vrot.slane %v1878, %v1941
      %v1943 = vmul.f32 %v1933, %v1938
      %v1944 = vmul.f32 %v1933, %v1942
      %v1945 = vadd.f32 %v1929, %v1943
      %v1946 = vadd.f32 %v1930, %v1944
      %1948 = vset.pattern.permute.xlu0 0
      %1949 = vperm.xlu0 %1948, %v1692
      %v1950 = vpop.permute.xlu0 %1949
      %v1952 = vlaneseq
      %v1953 = vshrl.u32 %v1952, 7
      %v1954 = vsub.s32 0, %v1953
      %v1955 = vrot.slane %v1712, %v1954
      %v1956 = vlaneseq
      %v1957 = vshrl.u32 %v1956, 7
      %v1958 = vsub.s32 0, %v1957
      %v1959 = vrot.slane %v1713, %v1958
      %v1960 = vmul.f32 %v1950, %v1955
      %v1961 = vmul.f32 %v1950, %v1959
      %v1962 = vadd.f32 %v1945, %v1960
      %v1963 = vadd.f32 %v1946, %v1961
      %1964 = vset.pattern.permute.xlu0 1
      %1965 = vperm.xlu0 %1964, %v1692
      %v1966 = vpop.permute.xlu0 %1965
      %v1968 = vlaneseq
      %v1969 = vshrl.u32 %v1968, 7
      %v1970 = vsub.s32 1, %v1969
      %v1971 = vrot.slane %v1712, %v1970
      %v1972 = vlaneseq
      %v1973 = vshrl.u32 %v1972, 7
      %v1974 = vsub.s32 1, %v1973
      %v1975 = vrot.slane %v1713, %v1974
      %v1976 = vmul.f32 %v1966, %v1971
      %v1977 = vmul.f32 %v1966, %v1975
      %v1978 = vadd.f32 %v1962, %v1976
      %v1979 = vadd.f32 %v1963, %v1977
      %1980 = vset.pattern.permute.xlu0 2
      %1981 = vperm.xlu0 %1980, %v1692
      %v1982 = vpop.permute.xlu0 %1981
      %v1984 = vlaneseq
      %v1985 = vshrl.u32 %v1984, 7
      %v1986 = vsub.s32 2, %v1985
      %v1987 = vrot.slane %v1712, %v1986
      %v1988 = vlaneseq
      %v1989 = vshrl.u32 %v1988, 7
      %v1990 = vsub.s32 2, %v1989
      %v1991 = vrot.slane %v1713, %v1990
      %v1992 = vmul.f32 %v1982, %v1987
      %v1993 = vmul.f32 %v1982, %v1991
      %v1994 = vadd.f32 %v1978, %v1992
      %v1995 = vadd.f32 %v1979, %v1993
      %1996 = vset.pattern.permute.xlu0 3
      %1997 = vperm.xlu0 %1996, %v1692
      %v1998 = vpop.permute.xlu0 %1997
      %v2000 = vlaneseq
      %v2001 = vshrl.u32 %v2000, 7
      %v2002 = vsub.s32 3, %v2001
      %v2003 = vrot.slane %v1712, %v2002
      %v2004 = vlaneseq
      %v2005 = vshrl.u32 %v2004, 7
      %v2006 = vsub.s32 3, %v2005
      %v2007 = vrot.slane %v1713, %v2006
      %v2008 = vmul.f32 %v1998, %v2003
      %v2009 = vmul.f32 %v1998, %v2007
      %v2010 = vadd.f32 %v1994, %v2008
      %v2011 = vadd.f32 %v1995, %v2009
      %2013 = vset.pattern.permute.xlu0 0
      %2014 = vperm.xlu0 %2013, %v1693
      %v2015 = vpop.permute.xlu0 %2014
      %v2017 = vlaneseq
      %v2018 = vshrl.u32 %v2017, 7
      %v2019 = vsub.s32 0, %v2018
      %v2020 = vrot.slane %v1686, %v2019
      %v2021 = vlaneseq
      %v2022 = vshrl.u32 %v2021, 7
      %v2023 = vsub.s32 0, %v2022
      %v2024 = vrot.slane %v1687, %v2023
      %v2025 = vmul.f32 %v2015, %v2020
      %v2026 = vmul.f32 %v2015, %v2024
      %v2027 = vadd.f32 %v2010, %v2025
      %v2028 = vadd.f32 %v2011, %v2026
      %2029 = vset.pattern.permute.xlu0 1
      %2030 = vperm.xlu0 %2029, %v1693
      %v2031 = vpop.permute.xlu0 %2030
      %v2033 = vlaneseq
      %v2034 = vshrl.u32 %v2033, 7
      %v2035 = vsub.s32 1, %v2034
      %v2036 = vrot.slane %v1686, %v2035
      %v2037 = vlaneseq
      %v2038 = vshrl.u32 %v2037, 7
      %v2039 = vsub.s32 1, %v2038
      %v2040 = vrot.slane %v1687, %v2039
      %v2041 = vmul.f32 %v2031, %v2036
      %v2042 = vmul.f32 %v2031, %v2040
      %v2043 = vadd.f32 %v2027, %v2041
      %v2044 = vadd.f32 %v2028, %v2042
      %2045 = vset.pattern.permute.xlu0 2
      %2046 = vperm.xlu0 %2045, %v1693
      %v2047 = vpop.permute.xlu0 %2046
      %v2049 = vlaneseq
      %v2050 = vshrl.u32 %v2049, 7
      %v2051 = vsub.s32 2, %v2050
      %v2052 = vrot.slane %v1686, %v2051
      %v2053 = vlaneseq
      %v2054 = vshrl.u32 %v2053, 7
      %v2055 = vsub.s32 2, %v2054
      %v2056 = vrot.slane %v1687, %v2055
      %v2057 = vmul.f32 %v2047, %v2052
      %v2058 = vmul.f32 %v2047, %v2056
      %v2059 = vadd.f32 %v2043, %v2057
      %v2060 = vadd.f32 %v2044, %v2058
      %2061 = vset.pattern.permute.xlu0 3
      %2062 = vperm.xlu0 %2061, %v1693
      %v2063 = vpop.permute.xlu0 %2062
      %v2065 = vlaneseq
      %v2066 = vshrl.u32 %v2065, 7
      %v2067 = vsub.s32 3, %v2066
      %v2068 = vrot.slane %v1686, %v2067
      %v2069 = vlaneseq
      %v2070 = vshrl.u32 %v2069, 7
      %v2071 = vsub.s32 3, %v2070
      %v2072 = vrot.slane %v1687, %v2071
      %v2073 = vmul.f32 %v2063, %v2068
      %v2074 = vmul.f32 %v2063, %v2072
      %v2075 = vadd.f32 %v2059, %v2073
      %v2076 = vadd.f32 %v2060, %v2074
      %2078 = vset.pattern.permute.xlu0 0
      %2079 = vperm.xlu0 %2078, %v1694
      %v2080 = vpop.permute.xlu0 %2079
      %v2082 = vlaneseq
      %v2083 = vshrl.u32 %v2082, 7
      %v2084 = vsub.s32 0, %v2083
      %v2085 = vrot.slane %v1722, %v2084
      %v2086 = vlaneseq
      %v2087 = vshrl.u32 %v2086, 7
      %v2088 = vsub.s32 0, %v2087
      %v2089 = vrot.slane %v1723, %v2088
      %v2090 = vmul.f32 %v2080, %v2085
      %v2091 = vmul.f32 %v2080, %v2089
      %v2092 = vadd.f32 %v2075, %v2090
      %v2093 = vadd.f32 %v2076, %v2091
      %2094 = vset.pattern.permute.xlu0 1
      %2095 = vperm.xlu0 %2094, %v1694
      %v2096 = vpop.permute.xlu0 %2095
      %v2098 = vlaneseq
      %v2099 = vshrl.u32 %v2098, 7
      %v2100 = vsub.s32 1, %v2099
      %v2101 = vrot.slane %v1722, %v2100
      %v2102 = vlaneseq
      %v2103 = vshrl.u32 %v2102, 7
      %v2104 = vsub.s32 1, %v2103
      %v2105 = vrot.slane %v1723, %v2104
      %v2106 = vmul.f32 %v2096, %v2101
      %v2107 = vmul.f32 %v2096, %v2105
      %v2108 = vadd.f32 %v2092, %v2106
      %v2109 = vadd.f32 %v2093, %v2107
      %2110 = vset.pattern.permute.xlu0 2
      %2111 = vperm.xlu0 %2110, %v1694
      %v2112 = vpop.permute.xlu0 %2111
      %v2114 = vlaneseq
      %v2115 = vshrl.u32 %v2114, 7
      %v2116 = vsub.s32 2, %v2115
      %v2117 = vrot.slane %v1722, %v2116
      %v2118 = vlaneseq
      %v2119 = vshrl.u32 %v2118, 7
      %v2120 = vsub.s32 2, %v2119
      %v2121 = vrot.slane %v1723, %v2120
      %v2122 = vmul.f32 %v2112, %v2117
      %v2123 = vmul.f32 %v2112, %v2121
      %v2124 = vadd.f32 %v2108, %v2122
      %v2125 = vadd.f32 %v2109, %v2123
      %2126 = vset.pattern.permute.xlu0 3
      %2127 = vperm.xlu0 %2126, %v1694
      %v2128 = vpop.permute.xlu0 %2127
      %v2130 = vlaneseq
      %v2131 = vshrl.u32 %v2130, 7
      %v2132 = vsub.s32 3, %v2131
      %v2133 = vrot.slane %v1722, %v2132
      %v2134 = vlaneseq
      %v2135 = vshrl.u32 %v2134, 7
      %v2136 = vsub.s32 3, %v2135
      %v2137 = vrot.slane %v1723, %v2136
      %v2138 = vmul.f32 %v2128, %v2133
      %v2139 = vmul.f32 %v2128, %v2137
      %v2140 = vadd.f32 %v2124, %v2138
      %v2141 = vadd.f32 %v2125, %v2139
      %2142 = vrot.lane.b32.xlu0 %v1712, 112
      %v2143 = vpop.permute.xlu0 %2142
      %2144 = vrot.lane.b32.xlu0 %v1713, 112
      %v2145 = vpop.permute.xlu0 %2144
      %v2146 = vsel %vm794, %v2143, %v2145
      %v2149 = vsel %vm794, %v2145, 0.0
      %2151 = vset.pattern.permute.xlu0 0
      %2152 = vperm.xlu0 %2151, %v1695
      %v2153 = vpop.permute.xlu0 %2152
      %v2155 = vlaneseq
      %v2156 = vshrl.u32 %v2155, 7
      %v2157 = vsub.s32 0, %v2156
      %v2158 = vrot.slane %v2146, %v2157
      %v2159 = vlaneseq
      %v2160 = vshrl.u32 %v2159, 7
      %v2161 = vsub.s32 0, %v2160
      %v2162 = vrot.slane %v2149, %v2161
      %v2163 = vmul.f32 %v2153, %v2158
      %v2164 = vmul.f32 %v2153, %v2162
      %v2165 = vadd.f32 %v2140, %v2163
      %v2166 = vadd.f32 %v2141, %v2164
      %2167 = vset.pattern.permute.xlu0 1
      %2168 = vperm.xlu0 %2167, %v1695
      %v2169 = vpop.permute.xlu0 %2168
      %v2171 = vlaneseq
      %v2172 = vshrl.u32 %v2171, 7
      %v2173 = vsub.s32 1, %v2172
      %v2174 = vrot.slane %v2146, %v2173
      %v2175 = vlaneseq
      %v2176 = vshrl.u32 %v2175, 7
      %v2177 = vsub.s32 1, %v2176
      %v2178 = vrot.slane %v2149, %v2177
      %v2179 = vmul.f32 %v2169, %v2174
      %v2180 = vmul.f32 %v2169, %v2178
      %v2181 = vadd.f32 %v2165, %v2179
      %v2182 = vadd.f32 %v2166, %v2180
      %2183 = vset.pattern.permute.xlu0 2
      %2184 = vperm.xlu0 %2183, %v1695
      %v2185 = vpop.permute.xlu0 %2184
      %v2187 = vlaneseq
      %v2188 = vshrl.u32 %v2187, 7
      %v2189 = vsub.s32 2, %v2188
      %v2190 = vrot.slane %v2146, %v2189
      %v2191 = vlaneseq
      %v2192 = vshrl.u32 %v2191, 7
      %v2193 = vsub.s32 2, %v2192
      %v2194 = vrot.slane %v2149, %v2193
      %v2195 = vmul.f32 %v2185, %v2190
      %v2196 = vmul.f32 %v2185, %v2194
      %v2197 = vadd.f32 %v2181, %v2195
      %v2198 = vadd.f32 %v2182, %v2196
      %2199 = vset.pattern.permute.xlu0 3
      %2200 = vperm.xlu0 %2199, %v1695
      %v2201 = vpop.permute.xlu0 %2200
      %v2203 = vlaneseq
      %v2204 = vshrl.u32 %v2203, 7
      %v2205 = vsub.s32 3, %v2204
      %v2206 = vrot.slane %v2146, %v2205
      %v2207 = vlaneseq
      %v2208 = vshrl.u32 %v2207, 7
      %v2209 = vsub.s32 3, %v2208
      %v2210 = vrot.slane %v2149, %v2209
      %v2211 = vmul.f32 %v2201, %v2206
      %v2212 = vmul.f32 %v2201, %v2210
      %v2213 = vadd.f32 %v2197, %v2211
      %v2214 = vadd.f32 %v2198, %v2212
      %2215 = vrot.lane.b32.xlu0 %v1686, 112
      %v2216 = vpop.permute.xlu0 %2215
      %2217 = vrot.lane.b32.xlu0 %v1687, 112
      %v2218 = vpop.permute.xlu0 %2217
      %v2219 = vsel %vm794, %v2216, %v2218
      %v2222 = vsel %vm794, %v2218, 0.0
      %2224 = vset.pattern.permute.xlu0 0
      %2225 = vperm.xlu0 %2224, %v1696
      %v2226 = vpop.permute.xlu0 %2225
      %v2228 = vlaneseq
      %v2229 = vshrl.u32 %v2228, 7
      %v2230 = vsub.s32 0, %v2229
      %v2231 = vrot.slane %v2219, %v2230
      %v2232 = vlaneseq
      %v2233 = vshrl.u32 %v2232, 7
      %v2234 = vsub.s32 0, %v2233
      %v2235 = vrot.slane %v2222, %v2234
      %v2236 = vmul.f32 %v2226, %v2231
      %v2237 = vmul.f32 %v2226, %v2235
      %v2238 = vadd.f32 %v2213, %v2236
      %v2239 = vadd.f32 %v2214, %v2237
      %2240 = vset.pattern.permute.xlu0 1
      %2241 = vperm.xlu0 %2240, %v1696
      %v2242 = vpop.permute.xlu0 %2241
      %v2244 = vlaneseq
      %v2245 = vshrl.u32 %v2244, 7
      %v2246 = vsub.s32 1, %v2245
      %v2247 = vrot.slane %v2219, %v2246
      %v2248 = vlaneseq
      %v2249 = vshrl.u32 %v2248, 7
      %v2250 = vsub.s32 1, %v2249
      %v2251 = vrot.slane %v2222, %v2250
      %v2252 = vmul.f32 %v2242, %v2247
      %v2253 = vmul.f32 %v2242, %v2251
      %v2254 = vadd.f32 %v2238, %v2252
      %v2255 = vadd.f32 %v2239, %v2253
      %2256 = vset.pattern.permute.xlu0 2
      %2257 = vperm.xlu0 %2256, %v1696
      %v2258 = vpop.permute.xlu0 %2257
      %v2260 = vlaneseq
      %v2261 = vshrl.u32 %v2260, 7
      %v2262 = vsub.s32 2, %v2261
      %v2263 = vrot.slane %v2219, %v2262
      %v2264 = vlaneseq
      %v2265 = vshrl.u32 %v2264, 7
      %v2266 = vsub.s32 2, %v2265
      %v2267 = vrot.slane %v2222, %v2266
      %v2268 = vmul.f32 %v2258, %v2263
      %v2269 = vmul.f32 %v2258, %v2267
      %v2270 = vadd.f32 %v2254, %v2268
      %v2271 = vadd.f32 %v2255, %v2269
      %2272 = vset.pattern.permute.xlu0 3
      %2273 = vperm.xlu0 %2272, %v1696
      %v2274 = vpop.permute.xlu0 %2273
      %v2276 = vlaneseq
      %v2277 = vshrl.u32 %v2276, 7
      %v2278 = vsub.s32 3, %v2277
      %v2279 = vrot.slane %v2219, %v2278
      %v2280 = vlaneseq
      %v2281 = vshrl.u32 %v2280, 7
      %v2282 = vsub.s32 3, %v2281
      %v2283 = vrot.slane %v2222, %v2282
      %v2284 = vmul.f32 %v2274, %v2279
      %v2285 = vmul.f32 %v2274, %v2283
      %v2286 = vadd.f32 %v2270, %v2284
      %v2287 = vadd.f32 %v2271, %v2285
      %2288 = vrot.lane.b32.xlu0 %v1722, 112
      %v2289 = vpop.permute.xlu0 %2288
      %2290 = vrot.lane.b32.xlu0 %v1723, 112
      %v2291 = vpop.permute.xlu0 %2290
      %v2292 = vsel %vm794, %v2289, %v2291
      %v2295 = vsel %vm794, %v2291, 0.0
      %2297 = vset.pattern.permute.xlu0 0
      %2298 = vperm.xlu0 %2297, %v1697
      %v2299 = vpop.permute.xlu0 %2298
      %v2301 = vlaneseq
      %v2302 = vshrl.u32 %v2301, 7
      %v2303 = vsub.s32 0, %v2302
      %v2304 = vrot.slane %v2292, %v2303
      %v2305 = vlaneseq
      %v2306 = vshrl.u32 %v2305, 7
      %v2307 = vsub.s32 0, %v2306
      %v2308 = vrot.slane %v2295, %v2307
      %v2309 = vmul.f32 %v2299, %v2304
      %v2310 = vmul.f32 %v2299, %v2308
      %v2311 = vadd.f32 %v2286, %v2309
      %v2312 = vadd.f32 %v2287, %v2310
      %2313 = vset.pattern.permute.xlu0 1
      %2314 = vperm.xlu0 %2313, %v1697
      %v2315 = vpop.permute.xlu0 %2314
      %v2317 = vlaneseq
      %v2318 = vshrl.u32 %v2317, 7
      %v2319 = vsub.s32 1, %v2318
      %v2320 = vrot.slane %v2292, %v2319
      %v2321 = vlaneseq
      %v2322 = vshrl.u32 %v2321, 7
      %v2323 = vsub.s32 1, %v2322
      %v2324 = vrot.slane %v2295, %v2323
      %v2325 = vmul.f32 %v2315, %v2320
      %v2326 = vmul.f32 %v2315, %v2324
      %v2327 = vadd.f32 %v2311, %v2325
      %v2328 = vadd.f32 %v2312, %v2326
      %2329 = vset.pattern.permute.xlu0 2
      %2330 = vperm.xlu0 %2329, %v1697
      %v2331 = vpop.permute.xlu0 %2330
      %v2333 = vlaneseq
      %v2334 = vshrl.u32 %v2333, 7
      %v2335 = vsub.s32 2, %v2334
      %v2336 = vrot.slane %v2292, %v2335
      %v2337 = vlaneseq
      %v2338 = vshrl.u32 %v2337, 7
      %v2339 = vsub.s32 2, %v2338
      %v2340 = vrot.slane %v2295, %v2339
      %v2341 = vmul.f32 %v2331, %v2336
      %v2342 = vmul.f32 %v2331, %v2340
      %v2343 = vadd.f32 %v2327, %v2341
      %v2344 = vadd.f32 %v2328, %v2342
      %2345 = vset.pattern.permute.xlu0 3
      %2346 = vperm.xlu0 %2345, %v1697
      %v2347 = vpop.permute.xlu0 %2346
      %v2349 = vlaneseq
      %v2350 = vshrl.u32 %v2349, 7
      %v2351 = vsub.s32 3, %v2350
      %v2352 = vrot.slane %v2292, %v2351
      %v2353 = vlaneseq
      %v2354 = vshrl.u32 %v2353, 7
      %v2355 = vsub.s32 3, %v2354
      %v2356 = vrot.slane %v2295, %v2355
      %v2357 = vmul.f32 %v2347, %v2352
      %v2358 = vmul.f32 %v2347, %v2356
      %v2359 = vadd.f32 %v2343, %v2357
      %v2360 = vadd.f32 %v2344, %v2358
      %v2361 = vmax.f32 %v2359, 0.0
      %v2362 = vmax.f32 %v2360, 0.0
      %s2363 = scalar_lea.vmem %s2, 72
      %v2364 = vld [vmem:[%s2363] sm:$0xf]
      %v2365 = vld [vmem:[%s2363 + $0x4] sm:$0xf]
      %v2366 = vld [vmem:[%s2363 + $0x8] sm:$0xf]
      %v2367 = vld [vmem:[%s2363 + $0xc] sm:$0xf]
      %v2368 = vld [vmem:[%s2363 + $0x10] sm:$0xf]
      %v2369 = vld [vmem:[%s2363 + $0x14] sm:$0xf]
      %v2370 = vld [vmem:[%s2363 + $0x18] sm:$0xf]
      %v2371 = vld [vmem:[%s2363 + $0x1c] sm:$0xf]
      %v2372 = vld [vmem:[%s2363 + $0x20] sm:$0xf]
      %2373 = vset.pattern.permute.xlu0 3
      %2374 = vperm.xlu0 %2373, %v1021
      %v2375 = vpop.permute.xlu0 %2374
      %2379 = vrot.lane.b32.xlu0 %v2361, 1
      %v2380 = vpop.permute.xlu0 %2379
      %2381 = vrot.lane.b32.xlu0 %v2362, 1
      %v2382 = vpop.permute.xlu0 %2381
      %v2383 = vsel %vm305, %v2380, %v2382
      %v2386 = vsel %vm305, 0.0, %v2380
      %v2387 = vsel %vm312, 0.0, %v2386
      %v2388 = vsel %vm313, 0.0, %v2383
      %2389 = vrot.lane.b32.xlu0 %v2361, 127
      %v2390 = vpop.permute.xlu0 %2389
      %2391 = vrot.lane.b32.xlu0 %v2362, 127
      %v2392 = vpop.permute.xlu0 %2391
      %v2393 = vsel %vm320, %v2390, %v2392
      %v2396 = vsel %vm320, %v2392, 0.0
      %v2397 = vsel %vm327, 0.0, %v2393
      %v2398 = vsel %vm328, 0.0, %v2396
      %2401 = vrot.lane.b32.xlu0 %v2387, 16
      %v2402 = vpop.permute.xlu0 %2401
      %2403 = vrot.lane.b32.xlu0 %v2388, 16
      %v2404 = vpop.permute.xlu0 %2403
      %v2405 = vsel %vm337, %v2402, %v2404
      %v2408 = vsel %vm337, 0.0, %v2402
      %2410 = vset.pattern.permute.xlu0 0
      %2411 = vperm.xlu0 %2410, %v2364
      %v2412 = vpop.permute.xlu0 %2411
      %v2414 = vlaneseq
      %v2415 = vshrl.u32 %v2414, 7
      %v2416 = vsub.s32 0, %v2415
      %v2417 = vrot.slane %v2408, %v2416
      %v2418 = vlaneseq
      %v2419 = vshrl.u32 %v2418, 7
      %v2420 = vsub.s32 0, %v2419
      %v2421 = vrot.slane %v2405, %v2420
      %v2422 = vmul.f32 %v2412, %v2417
      %v2423 = vmul.f32 %v2412, %v2421
      %v2424 = vadd.f32 %v2375, %v2422
      %v2425 = vadd.f32 %v2375, %v2423
      %2426 = vset.pattern.permute.xlu0 1
      %2427 = vperm.xlu0 %2426, %v2364
      %v2428 = vpop.permute.xlu0 %2427
      %v2430 = vlaneseq
      %v2431 = vshrl.u32 %v2430, 7
      %v2432 = vsub.s32 1, %v2431
      %v2433 = vrot.slane %v2408, %v2432
      %v2434 = vlaneseq
      %v2435 = vshrl.u32 %v2434, 7
      %v2436 = vsub.s32 1, %v2435
      %v2437 = vrot.slane %v2405, %v2436
      %v2438 = vmul.f32 %v2428, %v2433
      %v2439 = vmul.f32 %v2428, %v2437
      %v2440 = vadd.f32 %v2424, %v2438
      %v2441 = vadd.f32 %v2425, %v2439
      %2442 = vset.pattern.permute.xlu0 2
      %2443 = vperm.xlu0 %2442, %v2364
      %v2444 = vpop.permute.xlu0 %2443
      %v2446 = vlaneseq
      %v2447 = vshrl.u32 %v2446, 7
      %v2448 = vsub.s32 2, %v2447
      %v2449 = vrot.slane %v2408, %v2448
      %v2450 = vlaneseq
      %v2451 = vshrl.u32 %v2450, 7
      %v2452 = vsub.s32 2, %v2451
      %v2453 = vrot.slane %v2405, %v2452
      %v2454 = vmul.f32 %v2444, %v2449
      %v2455 = vmul.f32 %v2444, %v2453
      %v2456 = vadd.f32 %v2440, %v2454
      %v2457 = vadd.f32 %v2441, %v2455
      %2458 = vset.pattern.permute.xlu0 3
      %2459 = vperm.xlu0 %2458, %v2364
      %v2460 = vpop.permute.xlu0 %2459
      %v2462 = vlaneseq
      %v2463 = vshrl.u32 %v2462, 7
      %v2464 = vsub.s32 3, %v2463
      %v2465 = vrot.slane %v2408, %v2464
      %v2466 = vlaneseq
      %v2467 = vshrl.u32 %v2466, 7
      %v2468 = vsub.s32 3, %v2467
      %v2469 = vrot.slane %v2405, %v2468
      %v2470 = vmul.f32 %v2460, %v2465
      %v2471 = vmul.f32 %v2460, %v2469
      %v2472 = vadd.f32 %v2456, %v2470
      %v2473 = vadd.f32 %v2457, %v2471
      %2474 = vrot.lane.b32.xlu0 %v2361, 16
      %v2475 = vpop.permute.xlu0 %2474
      %2476 = vrot.lane.b32.xlu0 %v2362, 16
      %v2477 = vpop.permute.xlu0 %2476
      %v2478 = vsel %vm337, %v2475, %v2477
      %v2481 = vsel %vm337, 0.0, %v2475
      %2483 = vset.pattern.permute.xlu0 0
      %2484 = vperm.xlu0 %2483, %v2365
      %v2485 = vpop.permute.xlu0 %2484
      %v2487 = vlaneseq
      %v2488 = vshrl.u32 %v2487, 7
      %v2489 = vsub.s32 0, %v2488
      %v2490 = vrot.slane %v2481, %v2489
      %v2491 = vlaneseq
      %v2492 = vshrl.u32 %v2491, 7
      %v2493 = vsub.s32 0, %v2492
      %v2494 = vrot.slane %v2478, %v2493
      %v2495 = vmul.f32 %v2485, %v2490
      %v2496 = vmul.f32 %v2485, %v2494
      %v2497 = vadd.f32 %v2472, %v2495
      %v2498 = vadd.f32 %v2473, %v2496
      %2499 = vset.pattern.permute.xlu0 1
      %2500 = vperm.xlu0 %2499, %v2365
      %v2501 = vpop.permute.xlu0 %2500
      %v2503 = vlaneseq
      %v2504 = vshrl.u32 %v2503, 7
      %v2505 = vsub.s32 1, %v2504
      %v2506 = vrot.slane %v2481, %v2505
      %v2507 = vlaneseq
      %v2508 = vshrl.u32 %v2507, 7
      %v2509 = vsub.s32 1, %v2508
      %v2510 = vrot.slane %v2478, %v2509
      %v2511 = vmul.f32 %v2501, %v2506
      %v2512 = vmul.f32 %v2501, %v2510
      %v2513 = vadd.f32 %v2497, %v2511
      %v2514 = vadd.f32 %v2498, %v2512
      %2515 = vset.pattern.permute.xlu0 2
      %2516 = vperm.xlu0 %2515, %v2365
      %v2517 = vpop.permute.xlu0 %2516
      %v2519 = vlaneseq
      %v2520 = vshrl.u32 %v2519, 7
      %v2521 = vsub.s32 2, %v2520
      %v2522 = vrot.slane %v2481, %v2521
      %v2523 = vlaneseq
      %v2524 = vshrl.u32 %v2523, 7
      %v2525 = vsub.s32 2, %v2524
      %v2526 = vrot.slane %v2478, %v2525
      %v2527 = vmul.f32 %v2517, %v2522
      %v2528 = vmul.f32 %v2517, %v2526
      %v2529 = vadd.f32 %v2513, %v2527
      %v2530 = vadd.f32 %v2514, %v2528
      %2531 = vset.pattern.permute.xlu0 3
      %2532 = vperm.xlu0 %2531, %v2365
      %v2533 = vpop.permute.xlu0 %2532
      %v2535 = vlaneseq
      %v2536 = vshrl.u32 %v2535, 7
      %v2537 = vsub.s32 3, %v2536
      %v2538 = vrot.slane %v2481, %v2537
      %v2539 = vlaneseq
      %v2540 = vshrl.u32 %v2539, 7
      %v2541 = vsub.s32 3, %v2540
      %v2542 = vrot.slane %v2478, %v2541
      %v2543 = vmul.f32 %v2533, %v2538
      %v2544 = vmul.f32 %v2533, %v2542
      %v2545 = vadd.f32 %v2529, %v2543
      %v2546 = vadd.f32 %v2530, %v2544
      %2549 = vrot.lane.b32.xlu0 %v2397, 16
      %v2550 = vpop.permute.xlu0 %2549
      %2551 = vrot.lane.b32.xlu0 %v2398, 16
      %v2552 = vpop.permute.xlu0 %2551
      %v2553 = vsel %vm337, %v2550, %v2552
      %v2556 = vsel %vm337, 0.0, %v2550
      %2558 = vset.pattern.permute.xlu0 0
      %2559 = vperm.xlu0 %2558, %v2366
      %v2560 = vpop.permute.xlu0 %2559
      %v2562 = vlaneseq
      %v2563 = vshrl.u32 %v2562, 7
      %v2564 = vsub.s32 0, %v2563
      %v2565 = vrot.slane %v2556, %v2564
      %v2566 = vlaneseq
      %v2567 = vshrl.u32 %v2566, 7
      %v2568 = vsub.s32 0, %v2567
      %v2569 = vrot.slane %v2553, %v2568
      %v2570 = vmul.f32 %v2560, %v2565
      %v2571 = vmul.f32 %v2560, %v2569
      %v2572 = vadd.f32 %v2545, %v2570
      %v2573 = vadd.f32 %v2546, %v2571
      %2574 = vset.pattern.permute.xlu0 1
      %2575 = vperm.xlu0 %2574, %v2366
      %v2576 = vpop.permute.xlu0 %2575
      %v2578 = vlaneseq
      %v2579 = vshrl.u32 %v2578, 7
      %v2580 = vsub.s32 1, %v2579
      %v2581 = vrot.slane %v2556, %v2580
      %v2582 = vlaneseq
      %v2583 = vshrl.u32 %v2582, 7
      %v2584 = vsub.s32 1, %v2583
      %v2585 = vrot.slane %v2553, %v2584
      %v2586 = vmul.f32 %v2576, %v2581
      %v2587 = vmul.f32 %v2576, %v2585
      %v2588 = vadd.f32 %v2572, %v2586
      %v2589 = vadd.f32 %v2573, %v2587
      %2590 = vset.pattern.permute.xlu0 2
      %2591 = vperm.xlu0 %2590, %v2366
      %v2592 = vpop.permute.xlu0 %2591
      %v2594 = vlaneseq
      %v2595 = vshrl.u32 %v2594, 7
      %v2596 = vsub.s32 2, %v2595
      %v2597 = vrot.slane %v2556, %v2596
      %v2598 = vlaneseq
      %v2599 = vshrl.u32 %v2598, 7
      %v2600 = vsub.s32 2, %v2599
      %v2601 = vrot.slane %v2553, %v2600
      %v2602 = vmul.f32 %v2592, %v2597
      %v2603 = vmul.f32 %v2592, %v2601
      %v2604 = vadd.f32 %v2588, %v2602
      %v2605 = vadd.f32 %v2589, %v2603
      %2606 = vset.pattern.permute.xlu0 3
      %2607 = vperm.xlu0 %2606, %v2366
      %v2608 = vpop.permute.xlu0 %2607
      %v2610 = vlaneseq
      %v2611 = vshrl.u32 %v2610, 7
      %v2612 = vsub.s32 3, %v2611
      %v2613 = vrot.slane %v2556, %v2612
      %v2614 = vlaneseq
      %v2615 = vshrl.u32 %v2614, 7
      %v2616 = vsub.s32 3, %v2615
      %v2617 = vrot.slane %v2553, %v2616
      %v2618 = vmul.f32 %v2608, %v2613
      %v2619 = vmul.f32 %v2608, %v2617
      %v2620 = vadd.f32 %v2604, %v2618
      %v2621 = vadd.f32 %v2605, %v2619
      %2623 = vset.pattern.permute.xlu0 0
      %2624 = vperm.xlu0 %2623, %v2367
      %v2625 = vpop.permute.xlu0 %2624
      %v2627 = vlaneseq
      %v2628 = vshrl.u32 %v2627, 7
      %v2629 = vsub.s32 0, %v2628
      %v2630 = vrot.slane %v2387, %v2629
      %v2631 = vlaneseq
      %v2632 = vshrl.u32 %v2631, 7
      %v2633 = vsub.s32 0, %v2632
      %v2634 = vrot.slane %v2388, %v2633
      %v2635 = vmul.f32 %v2625, %v2630
      %v2636 = vmul.f32 %v2625, %v2634
      %v2637 = vadd.f32 %v2620, %v2635
      %v2638 = vadd.f32 %v2621, %v2636
      %2639 = vset.pattern.permute.xlu0 1
      %2640 = vperm.xlu0 %2639, %v2367
      %v2641 = vpop.permute.xlu0 %2640
      %v2643 = vlaneseq
      %v2644 = vshrl.u32 %v2643, 7
      %v2645 = vsub.s32 1, %v2644
      %v2646 = vrot.slane %v2387, %v2645
      %v2647 = vlaneseq
      %v2648 = vshrl.u32 %v2647, 7
      %v2649 = vsub.s32 1, %v2648
      %v2650 = vrot.slane %v2388, %v2649
      %v2651 = vmul.f32 %v2641, %v2646
      %v2652 = vmul.f32 %v2641, %v2650
      %v2653 = vadd.f32 %v2637, %v2651
      %v2654 = vadd.f32 %v2638, %v2652
      %2655 = vset.pattern.permute.xlu0 2
      %2656 = vperm.xlu0 %2655, %v2367
      %v2657 = vpop.permute.xlu0 %2656
      %v2659 = vlaneseq
      %v2660 = vshrl.u32 %v2659, 7
      %v2661 = vsub.s32 2, %v2660
      %v2662 = vrot.slane %v2387, %v2661
      %v2663 = vlaneseq
      %v2664 = vshrl.u32 %v2663, 7
      %v2665 = vsub.s32 2, %v2664
      %v2666 = vrot.slane %v2388, %v2665
      %v2667 = vmul.f32 %v2657, %v2662
      %v2668 = vmul.f32 %v2657, %v2666
      %v2669 = vadd.f32 %v2653, %v2667
      %v2670 = vadd.f32 %v2654, %v2668
      %2671 = vset.pattern.permute.xlu0 3
      %2672 = vperm.xlu0 %2671, %v2367
      %v2673 = vpop.permute.xlu0 %2672
      %v2675 = vlaneseq
      %v2676 = vshrl.u32 %v2675, 7
      %v2677 = vsub.s32 3, %v2676
      %v2678 = vrot.slane %v2387, %v2677
      %v2679 = vlaneseq
      %v2680 = vshrl.u32 %v2679, 7
      %v2681 = vsub.s32 3, %v2680
      %v2682 = vrot.slane %v2388, %v2681
      %v2683 = vmul.f32 %v2673, %v2678
      %v2684 = vmul.f32 %v2673, %v2682
      %v2685 = vadd.f32 %v2669, %v2683
      %v2686 = vadd.f32 %v2670, %v2684
      %2688 = vset.pattern.permute.xlu0 0
      %2689 = vperm.xlu0 %2688, %v2368
      %v2690 = vpop.permute.xlu0 %2689
      %v2692 = vlaneseq
      %v2693 = vshrl.u32 %v2692, 7
      %v2694 = vsub.s32 0, %v2693
      %v2695 = vrot.slane %v2361, %v2694
      %v2696 = vlaneseq
      %v2697 = vshrl.u32 %v2696, 7
      %v2698 = vsub.s32 0, %v2697
      %v2699 = vrot.slane %v2362, %v2698
      %v2700 = vmul.f32 %v2690, %v2695
      %v2701 = vmul.f32 %v2690, %v2699
      %v2702 = vadd.f32 %v2685, %v2700
      %v2703 = vadd.f32 %v2686, %v2701
      %2704 = vset.pattern.permute.xlu0 1
      %2705 = vperm.xlu0 %2704, %v2368
      %v2706 = vpop.permute.xlu0 %2705
      %v2708 = vlaneseq
      %v2709 = vshrl.u32 %v2708, 7
      %v2710 = vsub.s32 1, %v2709
      %v2711 = vrot.slane %v2361, %v2710
      %v2712 = vlaneseq
      %v2713 = vshrl.u32 %v2712, 7
      %v2714 = vsub.s32 1, %v2713
      %v2715 = vrot.slane %v2362, %v2714
      %v2716 = vmul.f32 %v2706, %v2711
      %v2717 = vmul.f32 %v2706, %v2715
      %v2718 = vadd.f32 %v2702, %v2716
      %v2719 = vadd.f32 %v2703, %v2717
      %2720 = vset.pattern.permute.xlu0 2
      %2721 = vperm.xlu0 %2720, %v2368
      %v2722 = vpop.permute.xlu0 %2721
      %v2724 = vlaneseq
      %v2725 = vshrl.u32 %v2724, 7
      %v2726 = vsub.s32 2, %v2725
      %v2727 = vrot.slane %v2361, %v2726
      %v2728 = vlaneseq
      %v2729 = vshrl.u32 %v2728, 7
      %v2730 = vsub.s32 2, %v2729
      %v2731 = vrot.slane %v2362, %v2730
      %v2732 = vmul.f32 %v2722, %v2727
      %v2733 = vmul.f32 %v2722, %v2731
      %v2734 = vadd.f32 %v2718, %v2732
      %v2735 = vadd.f32 %v2719, %v2733
      %2736 = vset.pattern.permute.xlu0 3
      %2737 = vperm.xlu0 %2736, %v2368
      %v2738 = vpop.permute.xlu0 %2737
      %v2740 = vlaneseq
      %v2741 = vshrl.u32 %v2740, 7
      %v2742 = vsub.s32 3, %v2741
      %v2743 = vrot.slane %v2361, %v2742
      %v2744 = vlaneseq
      %v2745 = vshrl.u32 %v2744, 7
      %v2746 = vsub.s32 3, %v2745
      %v2747 = vrot.slane %v2362, %v2746
      %v2748 = vmul.f32 %v2738, %v2743
      %v2749 = vmul.f32 %v2738, %v2747
      %v2750 = vadd.f32 %v2734, %v2748
      %v2751 = vadd.f32 %v2735, %v2749
      %2753 = vset.pattern.permute.xlu0 0
      %2754 = vperm.xlu0 %2753, %v2369
      %v2755 = vpop.permute.xlu0 %2754
      %v2757 = vlaneseq
      %v2758 = vshrl.u32 %v2757, 7
      %v2759 = vsub.s32 0, %v2758
      %v2760 = vrot.slane %v2397, %v2759
      %v2761 = vlaneseq
      %v2762 = vshrl.u32 %v2761, 7
      %v2763 = vsub.s32 0, %v2762
      %v2764 = vrot.slane %v2398, %v2763
      %v2765 = vmul.f32 %v2755, %v2760
      %v2766 = vmul.f32 %v2755, %v2764
      %v2767 = vadd.f32 %v2750, %v2765
      %v2768 = vadd.f32 %v2751, %v2766
      %2769 = vset.pattern.permute.xlu0 1
      %2770 = vperm.xlu0 %2769, %v2369
      %v2771 = vpop.permute.xlu0 %2770
      %v2773 = vlaneseq
      %v2774 = vshrl.u32 %v2773, 7
      %v2775 = vsub.s32 1, %v2774
      %v2776 = vrot.slane %v2397, %v2775
      %v2777 = vlaneseq
      %v2778 = vshrl.u32 %v2777, 7
      %v2779 = vsub.s32 1, %v2778
      %v2780 = vrot.slane %v2398, %v2779
      %v2781 = vmul.f32 %v2771, %v2776
      %v2782 = vmul.f32 %v2771, %v2780
      %v2783 = vadd.f32 %v2767, %v2781
      %v2784 = vadd.f32 %v2768, %v2782
      %2785 = vset.pattern.permute.xlu0 2
      %2786 = vperm.xlu0 %2785, %v2369
      %v2787 = vpop.permute.xlu0 %2786
      %v2789 = vlaneseq
      %v2790 = vshrl.u32 %v2789, 7
      %v2791 = vsub.s32 2, %v2790
      %v2792 = vrot.slane %v2397, %v2791
      %v2793 = vlaneseq
      %v2794 = vshrl.u32 %v2793, 7
      %v2795 = vsub.s32 2, %v2794
      %v2796 = vrot.slane %v2398, %v2795
      %v2797 = vmul.f32 %v2787, %v2792
      %v2798 = vmul.f32 %v2787, %v2796
      %v2799 = vadd.f32 %v2783, %v2797
      %v2800 = vadd.f32 %v2784, %v2798
      %2801 = vset.pattern.permute.xlu0 3
      %2802 = vperm.xlu0 %2801, %v2369
      %v2803 = vpop.permute.xlu0 %2802
      %v2805 = vlaneseq
      %v2806 = vshrl.u32 %v2805, 7
      %v2807 = vsub.s32 3, %v2806
      %v2808 = vrot.slane %v2397, %v2807
      %v2809 = vlaneseq
      %v2810 = vshrl.u32 %v2809, 7
      %v2811 = vsub.s32 3, %v2810
      %v2812 = vrot.slane %v2398, %v2811
      %v2813 = vmul.f32 %v2803, %v2808
      %v2814 = vmul.f32 %v2803, %v2812
      %v2815 = vadd.f32 %v2799, %v2813
      %v2816 = vadd.f32 %v2800, %v2814
      %2817 = vrot.lane.b32.xlu0 %v2387, 112
      %v2818 = vpop.permute.xlu0 %2817
      %2819 = vrot.lane.b32.xlu0 %v2388, 112
      %v2820 = vpop.permute.xlu0 %2819
      %v2821 = vsel %vm794, %v2818, %v2820
      %v2824 = vsel %vm794, %v2820, 0.0
      %2826 = vset.pattern.permute.xlu0 0
      %2827 = vperm.xlu0 %2826, %v2370
      %v2828 = vpop.permute.xlu0 %2827
      %v2830 = vlaneseq
      %v2831 = vshrl.u32 %v2830, 7
      %v2832 = vsub.s32 0, %v2831
      %v2833 = vrot.slane %v2821, %v2832
      %v2834 = vlaneseq
      %v2835 = vshrl.u32 %v2834, 7
      %v2836 = vsub.s32 0, %v2835
      %v2837 = vrot.slane %v2824, %v2836
      %v2838 = vmul.f32 %v2828, %v2833
      %v2839 = vmul.f32 %v2828, %v2837
      %v2840 = vadd.f32 %v2815, %v2838
      %v2841 = vadd.f32 %v2816, %v2839
      %2842 = vset.pattern.permute.xlu0 1
      %2843 = vperm.xlu0 %2842, %v2370
      %v2844 = vpop.permute.xlu0 %2843
      %v2846 = vlaneseq
      %v2847 = vshrl.u32 %v2846, 7
      %v2848 = vsub.s32 1, %v2847
      %v2849 = vrot.slane %v2821, %v2848
      %v2850 = vlaneseq
      %v2851 = vshrl.u32 %v2850, 7
      %v2852 = vsub.s32 1, %v2851
      %v2853 = vrot.slane %v2824, %v2852
      %v2854 = vmul.f32 %v2844, %v2849
      %v2855 = vmul.f32 %v2844, %v2853
      %v2856 = vadd.f32 %v2840, %v2854
      %v2857 = vadd.f32 %v2841, %v2855
      %2858 = vset.pattern.permute.xlu0 2
      %2859 = vperm.xlu0 %2858, %v2370
      %v2860 = vpop.permute.xlu0 %2859
      %v2862 = vlaneseq
      %v2863 = vshrl.u32 %v2862, 7
      %v2864 = vsub.s32 2, %v2863
      %v2865 = vrot.slane %v2821, %v2864
      %v2866 = vlaneseq
      %v2867 = vshrl.u32 %v2866, 7
      %v2868 = vsub.s32 2, %v2867
      %v2869 = vrot.slane %v2824, %v2868
      %v2870 = vmul.f32 %v2860, %v2865
      %v2871 = vmul.f32 %v2860, %v2869
      %v2872 = vadd.f32 %v2856, %v2870
      %v2873 = vadd.f32 %v2857, %v2871
      %2874 = vset.pattern.permute.xlu0 3
      %2875 = vperm.xlu0 %2874, %v2370
      %v2876 = vpop.permute.xlu0 %2875
      %v2878 = vlaneseq
      %v2879 = vshrl.u32 %v2878, 7
      %v2880 = vsub.s32 3, %v2879
      %v2881 = vrot.slane %v2821, %v2880
      %v2882 = vlaneseq
      %v2883 = vshrl.u32 %v2882, 7
      %v2884 = vsub.s32 3, %v2883
      %v2885 = vrot.slane %v2824, %v2884
      %v2886 = vmul.f32 %v2876, %v2881
      %v2887 = vmul.f32 %v2876, %v2885
      %v2888 = vadd.f32 %v2872, %v2886
      %v2889 = vadd.f32 %v2873, %v2887
      %2890 = vrot.lane.b32.xlu0 %v2361, 112
      %v2891 = vpop.permute.xlu0 %2890
      %2892 = vrot.lane.b32.xlu0 %v2362, 112
      %v2893 = vpop.permute.xlu0 %2892
      %v2894 = vsel %vm794, %v2891, %v2893
      %v2897 = vsel %vm794, %v2893, 0.0
      %2899 = vset.pattern.permute.xlu0 0
      %2900 = vperm.xlu0 %2899, %v2371
      %v2901 = vpop.permute.xlu0 %2900
      %v2903 = vlaneseq
      %v2904 = vshrl.u32 %v2903, 7
      %v2905 = vsub.s32 0, %v2904
      %v2906 = vrot.slane %v2894, %v2905
      %v2907 = vlaneseq
      %v2908 = vshrl.u32 %v2907, 7
      %v2909 = vsub.s32 0, %v2908
      %v2910 = vrot.slane %v2897, %v2909
      %v2911 = vmul.f32 %v2901, %v2906
      %v2912 = vmul.f32 %v2901, %v2910
      %v2913 = vadd.f32 %v2888, %v2911
      %v2914 = vadd.f32 %v2889, %v2912
      %2915 = vset.pattern.permute.xlu0 1
      %2916 = vperm.xlu0 %2915, %v2371
      %v2917 = vpop.permute.xlu0 %2916
      %v2919 = vlaneseq
      %v2920 = vshrl.u32 %v2919, 7
      %v2921 = vsub.s32 1, %v2920
      %v2922 = vrot.slane %v2894, %v2921
      %v2923 = vlaneseq
      %v2924 = vshrl.u32 %v2923, 7
      %v2925 = vsub.s32 1, %v2924
      %v2926 = vrot.slane %v2897, %v2925
      %v2927 = vmul.f32 %v2917, %v2922
      %v2928 = vmul.f32 %v2917, %v2926
      %v2929 = vadd.f32 %v2913, %v2927
      %v2930 = vadd.f32 %v2914, %v2928
      %2931 = vset.pattern.permute.xlu0 2
      %2932 = vperm.xlu0 %2931, %v2371
      %v2933 = vpop.permute.xlu0 %2932
      %v2935 = vlaneseq
      %v2936 = vshrl.u32 %v2935, 7
      %v2937 = vsub.s32 2, %v2936
      %v2938 = vrot.slane %v2894, %v2937
      %v2939 = vlaneseq
      %v2940 = vshrl.u32 %v2939, 7
      %v2941 = vsub.s32 2, %v2940
      %v2942 = vrot.slane %v2897, %v2941
      %v2943 = vmul.f32 %v2933, %v2938
      %v2944 = vmul.f32 %v2933, %v2942
      %v2945 = vadd.f32 %v2929, %v2943
      %v2946 = vadd.f32 %v2930, %v2944
      %2947 = vset.pattern.permute.xlu0 3
      %2948 = vperm.xlu0 %2947, %v2371
      %v2949 = vpop.permute.xlu0 %2948
      %v2951 = vlaneseq
      %v2952 = vshrl.u32 %v2951, 7
      %v2953 = vsub.s32 3, %v2952
      %v2954 = vrot.slane %v2894, %v2953
      %v2955 = vlaneseq
      %v2956 = vshrl.u32 %v2955, 7
      %v2957 = vsub.s32 3, %v2956
      %v2958 = vrot.slane %v2897, %v2957
      %v2959 = vmul.f32 %v2949, %v2954
      %v2960 = vmul.f32 %v2949, %v2958
      %v2961 = vadd.f32 %v2945, %v2959
      %v2962 = vadd.f32 %v2946, %v2960
      %2963 = vrot.lane.b32.xlu0 %v2397, 112
      %v2964 = vpop.permute.xlu0 %2963
      %2965 = vrot.lane.b32.xlu0 %v2398, 112
      %v2966 = vpop.permute.xlu0 %2965
      %v2967 = vsel %vm794, %v2964, %v2966
      %v2970 = vsel %vm794, %v2966, 0.0
      %2972 = vset.pattern.permute.xlu0 0
      %2973 = vperm.xlu0 %2972, %v2372
      %v2974 = vpop.permute.xlu0 %2973
      %v2976 = vlaneseq
      %v2977 = vshrl.u32 %v2976, 7
      %v2978 = vsub.s32 0, %v2977
      %v2979 = vrot.slane %v2967, %v2978
      %v2980 = vlaneseq
      %v2981 = vshrl.u32 %v2980, 7
      %v2982 = vsub.s32 0, %v2981
      %v2983 = vrot.slane %v2970, %v2982
      %v2984 = vmul.f32 %v2974, %v2979
      %v2985 = vmul.f32 %v2974, %v2983
      %v2986 = vadd.f32 %v2961, %v2984
      %v2987 = vadd.f32 %v2962, %v2985
      %2988 = vset.pattern.permute.xlu0 1
      %2989 = vperm.xlu0 %2988, %v2372
      %v2990 = vpop.permute.xlu0 %2989
      %v2992 = vlaneseq
      %v2993 = vshrl.u32 %v2992, 7
      %v2994 = vsub.s32 1, %v2993
      %v2995 = vrot.slane %v2967, %v2994
      %v2996 = vlaneseq
      %v2997 = vshrl.u32 %v2996, 7
      %v2998 = vsub.s32 1, %v2997
      %v2999 = vrot.slane %v2970, %v2998
      %v3000 = vmul.f32 %v2990, %v2995
      %v3001 = vmul.f32 %v2990, %v2999
      %v3002 = vadd.f32 %v2986, %v3000
      %v3003 = vadd.f32 %v2987, %v3001
      %3004 = vset.pattern.permute.xlu0 2
      %3005 = vperm.xlu0 %3004, %v2372
      %v3006 = vpop.permute.xlu0 %3005
      %v3008 = vlaneseq
      %v3009 = vshrl.u32 %v3008, 7
      %v3010 = vsub.s32 2, %v3009
      %v3011 = vrot.slane %v2967, %v3010
      %v3012 = vlaneseq
      %v3013 = vshrl.u32 %v3012, 7
      %v3014 = vsub.s32 2, %v3013
      %v3015 = vrot.slane %v2970, %v3014
      %v3016 = vmul.f32 %v3006, %v3011
      %v3017 = vmul.f32 %v3006, %v3015
      %v3018 = vadd.f32 %v3002, %v3016
      %v3019 = vadd.f32 %v3003, %v3017
      %3020 = vset.pattern.permute.xlu0 3
      %3021 = vperm.xlu0 %3020, %v2372
      %v3022 = vpop.permute.xlu0 %3021
      %v3024 = vlaneseq
      %v3025 = vshrl.u32 %v3024, 7
      %v3026 = vsub.s32 3, %v3025
      %v3027 = vrot.slane %v2967, %v3026
      %v3028 = vlaneseq
      %v3029 = vshrl.u32 %v3028, 7
      %v3030 = vsub.s32 3, %v3029
      %v3031 = vrot.slane %v2970, %v3030
      %v3032 = vmul.f32 %v3022, %v3027
      %v3033 = vmul.f32 %v3022, %v3031
      %v3034 = vadd.f32 %v3018, %v3032
      %v3035 = vadd.f32 %v3019, %v3033
      %v3036 = vmax.f32 %v3034, 0.0
      %v3037 = vmax.f32 %v3035, 0.0
      %v3038 = vld [vmem:[%s3] sm:$0xf]
      %v3039 = vld [vmem:[%s3 + $0x4] sm:$0xf]
      %v3040 = vld [vmem:[%s3 + $0x8] sm:$0xf]
      %v3041 = vld [vmem:[%s3 + $0xc] sm:$0xf]
      %v3042 = vld [vmem:[%s3 + $0x10] sm:$0xf]
      %v3043 = vld [vmem:[%s3 + $0x14] sm:$0xf]
      %v3044 = vld [vmem:[%s3 + $0x18] sm:$0xf]
      %v3045 = vld [vmem:[%s3 + $0x1c] sm:$0xf]
      %v3046 = vld [vmem:[%s3 + $0x20] sm:$0xf]
      %s3047 = scalar_lea.vmem %s3, 36
      %v3048 = vld [vmem:[%s3047] sm:$0xf]
      %v3049 = vld [vmem:[%s3047 + $0x4] sm:$0xf]
      %v3050 = vld [vmem:[%s3047 + $0x8] sm:$0xf]
      %v3051 = vld [vmem:[%s3047 + $0xc] sm:$0xf]
      %v3052 = vld [vmem:[%s3047 + $0x10] sm:$0xf]
      %v3053 = vld [vmem:[%s3047 + $0x14] sm:$0xf]
      %v3054 = vld [vmem:[%s3047 + $0x18] sm:$0xf]
      %v3055 = vld [vmem:[%s3047 + $0x1c] sm:$0xf]
      %v3056 = vld [vmem:[%s3047 + $0x20] sm:$0xf]
      %3057 = vset.pattern.permute.xlu0 4
      %3058 = vperm.xlu0 %3057, %v1021
      %v3059 = vpop.permute.xlu0 %3058
      %3063 = vrot.lane.b32.xlu0 %v3036, 1
      %v3064 = vpop.permute.xlu0 %3063
      %3065 = vrot.lane.b32.xlu0 %v3037, 1
      %v3066 = vpop.permute.xlu0 %3065
      %v3067 = vsel %vm305, %v3064, %v3066
      %v3070 = vsel %vm305, 0.0, %v3064
      %v3071 = vsel %vm312, 0.0, %v3070
      %v3072 = vsel %vm313, 0.0, %v3067
      %3073 = vrot.lane.b32.xlu0 %v3036, 127
      %v3074 = vpop.permute.xlu0 %3073
      %3075 = vrot.lane.b32.xlu0 %v3037, 127
      %v3076 = vpop.permute.xlu0 %3075
      %v3077 = vsel %vm320, %v3074, %v3076
      %v3080 = vsel %vm320, %v3076, 0.0
      %v3081 = vsel %vm327, 0.0, %v3077
      %v3082 = vsel %vm328, 0.0, %v3080
      %3085 = vrot.lane.b32.xlu0 %v3071, 16
      %v3086 = vpop.permute.xlu0 %3085
      %3087 = vrot.lane.b32.xlu0 %v3072, 16
      %v3088 = vpop.permute.xlu0 %3087
      %v3089 = vsel %vm337, %v3086, %v3088
      %v3092 = vsel %vm337, 0.0, %v3086
      %3094 = vset.pattern.permute.xlu0 0
      %3095 = vperm.xlu0 %3094, %v3038
      %v3096 = vpop.permute.xlu0 %3095
      %v3098 = vlaneseq
      %v3099 = vshrl.u32 %v3098, 7
      %v3100 = vsub.s32 0, %v3099
      %v3101 = vrot.slane %v3092, %v3100
      %v3102 = vlaneseq
      %v3103 = vshrl.u32 %v3102, 7
      %v3104 = vsub.s32 0, %v3103
      %v3105 = vrot.slane %v3089, %v3104
      %v3106 = vmul.f32 %v3096, %v3101
      %v3107 = vmul.f32 %v3096, %v3105
      %v3108 = vadd.f32 %v3059, %v3106
      %v3109 = vadd.f32 %v3059, %v3107
      %3110 = vset.pattern.permute.xlu0 1
      %3111 = vperm.xlu0 %3110, %v3038
      %v3112 = vpop.permute.xlu0 %3111
      %v3114 = vlaneseq
      %v3115 = vshrl.u32 %v3114, 7
      %v3116 = vsub.s32 1, %v3115
      %v3117 = vrot.slane %v3092, %v3116
      %v3118 = vlaneseq
      %v3119 = vshrl.u32 %v3118, 7
      %v3120 = vsub.s32 1, %v3119
      %v3121 = vrot.slane %v3089, %v3120
      %v3122 = vmul.f32 %v3112, %v3117
      %v3123 = vmul.f32 %v3112, %v3121
      %v3124 = vadd.f32 %v3108, %v3122
      %v3125 = vadd.f32 %v3109, %v3123
      %3126 = vset.pattern.permute.xlu0 2
      %3127 = vperm.xlu0 %3126, %v3038
      %v3128 = vpop.permute.xlu0 %3127
      %v3130 = vlaneseq
      %v3131 = vshrl.u32 %v3130, 7
      %v3132 = vsub.s32 2, %v3131
      %v3133 = vrot.slane %v3092, %v3132
      %v3134 = vlaneseq
      %v3135 = vshrl.u32 %v3134, 7
      %v3136 = vsub.s32 2, %v3135
      %v3137 = vrot.slane %v3089, %v3136
      %v3138 = vmul.f32 %v3128, %v3133
      %v3139 = vmul.f32 %v3128, %v3137
      %v3140 = vadd.f32 %v3124, %v3138
      %v3141 = vadd.f32 %v3125, %v3139
      %3142 = vset.pattern.permute.xlu0 3
      %3143 = vperm.xlu0 %3142, %v3038
      %v3144 = vpop.permute.xlu0 %3143
      %v3146 = vlaneseq
      %v3147 = vshrl.u32 %v3146, 7
      %v3148 = vsub.s32 3, %v3147
      %v3149 = vrot.slane %v3092, %v3148
      %v3150 = vlaneseq
      %v3151 = vshrl.u32 %v3150, 7
      %v3152 = vsub.s32 3, %v3151
      %v3153 = vrot.slane %v3089, %v3152
      %v3154 = vmul.f32 %v3144, %v3149
      %v3155 = vmul.f32 %v3144, %v3153
      %v3156 = vadd.f32 %v3140, %v3154
      %v3157 = vadd.f32 %v3141, %v3155
      %3158 = vrot.lane.b32.xlu0 %v3036, 16
      %v3159 = vpop.permute.xlu0 %3158
      %3160 = vrot.lane.b32.xlu0 %v3037, 16
      %v3161 = vpop.permute.xlu0 %3160
      %v3162 = vsel %vm337, %v3159, %v3161
      %v3165 = vsel %vm337, 0.0, %v3159
      %3167 = vset.pattern.permute.xlu0 0
      %3168 = vperm.xlu0 %3167, %v3039
      %v3169 = vpop.permute.xlu0 %3168
      %v3171 = vlaneseq
      %v3172 = vshrl.u32 %v3171, 7
      %v3173 = vsub.s32 0, %v3172
      %v3174 = vrot.slane %v3165, %v3173
      %v3175 = vlaneseq
      %v3176 = vshrl.u32 %v3175, 7
      %v3177 = vsub.s32 0, %v3176
      %v3178 = vrot.slane %v3162, %v3177
      %v3179 = vmul.f32 %v3169, %v3174
      %v3180 = vmul.f32 %v3169, %v3178
      %v3181 = vadd.f32 %v3156, %v3179
      %v3182 = vadd.f32 %v3157, %v3180
      %3183 = vset.pattern.permute.xlu0 1
      %3184 = vperm.xlu0 %3183, %v3039
      %v3185 = vpop.permute.xlu0 %3184
      %v3187 = vlaneseq
      %v3188 = vshrl.u32 %v3187, 7
      %v3189 = vsub.s32 1, %v3188
      %v3190 = vrot.slane %v3165, %v3189
      %v3191 = vlaneseq
      %v3192 = vshrl.u32 %v3191, 7
      %v3193 = vsub.s32 1, %v3192
      %v3194 = vrot.slane %v3162, %v3193
      %v3195 = vmul.f32 %v3185, %v3190
      %v3196 = vmul.f32 %v3185, %v3194
      %v3197 = vadd.f32 %v3181, %v3195
      %v3198 = vadd.f32 %v3182, %v3196
      %3199 = vset.pattern.permute.xlu0 2
      %3200 = vperm.xlu0 %3199, %v3039
      %v3201 = vpop.permute.xlu0 %3200
      %v3203 = vlaneseq
      %v3204 = vshrl.u32 %v3203, 7
      %v3205 = vsub.s32 2, %v3204
      %v3206 = vrot.slane %v3165, %v3205
      %v3207 = vlaneseq
      %v3208 = vshrl.u32 %v3207, 7
      %v3209 = vsub.s32 2, %v3208
      %v3210 = vrot.slane %v3162, %v3209
      %v3211 = vmul.f32 %v3201, %v3206
      %v3212 = vmul.f32 %v3201, %v3210
      %v3213 = vadd.f32 %v3197, %v3211
      %v3214 = vadd.f32 %v3198, %v3212
      %3215 = vset.pattern.permute.xlu0 3
      %3216 = vperm.xlu0 %3215, %v3039
      %v3217 = vpop.permute.xlu0 %3216
      %v3219 = vlaneseq
      %v3220 = vshrl.u32 %v3219, 7
      %v3221 = vsub.s32 3, %v3220
      %v3222 = vrot.slane %v3165, %v3221
      %v3223 = vlaneseq
      %v3224 = vshrl.u32 %v3223, 7
      %v3225 = vsub.s32 3, %v3224
      %v3226 = vrot.slane %v3162, %v3225
      %v3227 = vmul.f32 %v3217, %v3222
      %v3228 = vmul.f32 %v3217, %v3226
      %v3229 = vadd.f32 %v3213, %v3227
      %v3230 = vadd.f32 %v3214, %v3228
      %3233 = vrot.lane.b32.xlu0 %v3081, 16
      %v3234 = vpop.permute.xlu0 %3233
      %3235 = vrot.lane.b32.xlu0 %v3082, 16
      %v3236 = vpop.permute.xlu0 %3235
      %v3237 = vsel %vm337, %v3234, %v3236
      %v3240 = vsel %vm337, 0.0, %v3234
      %3242 = vset.pattern.permute.xlu0 0
      %3243 = vperm.xlu0 %3242, %v3040
      %v3244 = vpop.permute.xlu0 %3243
      %v3246 = vlaneseq
      %v3247 = vshrl.u32 %v3246, 7
      %v3248 = vsub.s32 0, %v3247
      %v3249 = vrot.slane %v3240, %v3248
      %v3250 = vlaneseq
      %v3251 = vshrl.u32 %v3250, 7
      %v3252 = vsub.s32 0, %v3251
      %v3253 = vrot.slane %v3237, %v3252
      %v3254 = vmul.f32 %v3244, %v3249
      %v3255 = vmul.f32 %v3244, %v3253
      %v3256 = vadd.f32 %v3229, %v3254
      %v3257 = vadd.f32 %v3230, %v3255
      %3258 = vset.pattern.permute.xlu0 1
      %3259 = vperm.xlu0 %3258, %v3040
      %v3260 = vpop.permute.xlu0 %3259
      %v3262 = vlaneseq
      %v3263 = vshrl.u32 %v3262, 7
      %v3264 = vsub.s32 1, %v3263
      %v3265 = vrot.slane %v3240, %v3264
      %v3266 = vlaneseq
      %v3267 = vshrl.u32 %v3266, 7
      %v3268 = vsub.s32 1, %v3267
      %v3269 = vrot.slane %v3237, %v3268
      %v3270 = vmul.f32 %v3260, %v3265
      %v3271 = vmul.f32 %v3260, %v3269
      %v3272 = vadd.f32 %v3256, %v3270
      %v3273 = vadd.f32 %v3257, %v3271
      %3274 = vset.pattern.permute.xlu0 2
      %3275 = vperm.xlu0 %3274, %v3040
      %v3276 = vpop.permute.xlu0 %3275
      %v3278 = vlaneseq
      %v3279 = vshrl.u32 %v3278, 7
      %v3280 = vsub.s32 2, %v3279
      %v3281 = vrot.slane %v3240, %v3280
      %v3282 = vlaneseq
      %v3283 = vshrl.u32 %v3282, 7
      %v3284 = vsub.s32 2, %v3283
      %v3285 = vrot.slane %v3237, %v3284
      %v3286 = vmul.f32 %v3276, %v3281
      %v3287 = vmul.f32 %v3276, %v3285
      %v3288 = vadd.f32 %v3272, %v3286
      %v3289 = vadd.f32 %v3273, %v3287
      %3290 = vset.pattern.permute.xlu0 3
      %3291 = vperm.xlu0 %3290, %v3040
      %v3292 = vpop.permute.xlu0 %3291
      %v3294 = vlaneseq
      %v3295 = vshrl.u32 %v3294, 7
      %v3296 = vsub.s32 3, %v3295
      %v3297 = vrot.slane %v3240, %v3296
      %v3298 = vlaneseq
      %v3299 = vshrl.u32 %v3298, 7
      %v3300 = vsub.s32 3, %v3299
      %v3301 = vrot.slane %v3237, %v3300
      %v3302 = vmul.f32 %v3292, %v3297
      %v3303 = vmul.f32 %v3292, %v3301
      %v3304 = vadd.f32 %v3288, %v3302
      %v3305 = vadd.f32 %v3289, %v3303
      %3307 = vset.pattern.permute.xlu0 0
      %3308 = vperm.xlu0 %3307, %v3041
      %v3309 = vpop.permute.xlu0 %3308
      %v3311 = vlaneseq
      %v3312 = vshrl.u32 %v3311, 7
      %v3313 = vsub.s32 0, %v3312
      %v3314 = vrot.slane %v3071, %v3313
      %v3315 = vlaneseq
      %v3316 = vshrl.u32 %v3315, 7
      %v3317 = vsub.s32 0, %v3316
      %v3318 = vrot.slane %v3072, %v3317
      %v3319 = vmul.f32 %v3309, %v3314
      %v3320 = vmul.f32 %v3309, %v3318
      %v3321 = vadd.f32 %v3304, %v3319
      %v3322 = vadd.f32 %v3305, %v3320
      %3323 = vset.pattern.permute.xlu0 1
      %3324 = vperm.xlu0 %3323, %v3041
      %v3325 = vpop.permute.xlu0 %3324
      %v3327 = vlaneseq
      %v3328 = vshrl.u32 %v3327, 7
      %v3329 = vsub.s32 1, %v3328
      %v3330 = vrot.slane %v3071, %v3329
      %v3331 = vlaneseq
      %v3332 = vshrl.u32 %v3331, 7
      %v3333 = vsub.s32 1, %v3332
      %v3334 = vrot.slane %v3072, %v3333
      %v3335 = vmul.f32 %v3325, %v3330
      %v3336 = vmul.f32 %v3325, %v3334
      %v3337 = vadd.f32 %v3321, %v3335
      %v3338 = vadd.f32 %v3322, %v3336
      %3339 = vset.pattern.permute.xlu0 2
      %3340 = vperm.xlu0 %3339, %v3041
      %v3341 = vpop.permute.xlu0 %3340
      %v3343 = vlaneseq
      %v3344 = vshrl.u32 %v3343, 7
      %v3345 = vsub.s32 2, %v3344
      %v3346 = vrot.slane %v3071, %v3345
      %v3347 = vlaneseq
      %v3348 = vshrl.u32 %v3347, 7
      %v3349 = vsub.s32 2, %v3348
      %v3350 = vrot.slane %v3072, %v3349
      %v3351 = vmul.f32 %v3341, %v3346
      %v3352 = vmul.f32 %v3341, %v3350
      %v3353 = vadd.f32 %v3337, %v3351
      %v3354 = vadd.f32 %v3338, %v3352
      %3355 = vset.pattern.permute.xlu0 3
      %3356 = vperm.xlu0 %3355, %v3041
      %v3357 = vpop.permute.xlu0 %3356
      %v3359 = vlaneseq
      %v3360 = vshrl.u32 %v3359, 7
      %v3361 = vsub.s32 3, %v3360
      %v3362 = vrot.slane %v3071, %v3361
      %v3363 = vlaneseq
      %v3364 = vshrl.u32 %v3363, 7
      %v3365 = vsub.s32 3, %v3364
      %v3366 = vrot.slane %v3072, %v3365
      %v3367 = vmul.f32 %v3357, %v3362
      %v3368 = vmul.f32 %v3357, %v3366
      %v3369 = vadd.f32 %v3353, %v3367
      %v3370 = vadd.f32 %v3354, %v3368
      %3372 = vset.pattern.permute.xlu0 0
      %3373 = vperm.xlu0 %3372, %v3042
      %v3374 = vpop.permute.xlu0 %3373
      %v3376 = vlaneseq
      %v3377 = vshrl.u32 %v3376, 7
      %v3378 = vsub.s32 0, %v3377
      %v3379 = vrot.slane %v3036, %v3378
      %v3380 = vlaneseq
      %v3381 = vshrl.u32 %v3380, 7
      %v3382 = vsub.s32 0, %v3381
      %v3383 = vrot.slane %v3037, %v3382
      %v3384 = vmul.f32 %v3374, %v3379
      %v3385 = vmul.f32 %v3374, %v3383
      %v3386 = vadd.f32 %v3369, %v3384
      %v3387 = vadd.f32 %v3370, %v3385
      %3388 = vset.pattern.permute.xlu0 1
      %3389 = vperm.xlu0 %3388, %v3042
      %v3390 = vpop.permute.xlu0 %3389
      %v3392 = vlaneseq
      %v3393 = vshrl.u32 %v3392, 7
      %v3394 = vsub.s32 1, %v3393
      %v3395 = vrot.slane %v3036, %v3394
      %v3396 = vlaneseq
      %v3397 = vshrl.u32 %v3396, 7
      %v3398 = vsub.s32 1, %v3397
      %v3399 = vrot.slane %v3037, %v3398
      %v3400 = vmul.f32 %v3390, %v3395
      %v3401 = vmul.f32 %v3390, %v3399
      %v3402 = vadd.f32 %v3386, %v3400
      %v3403 = vadd.f32 %v3387, %v3401
      %3404 = vset.pattern.permute.xlu0 2
      %3405 = vperm.xlu0 %3404, %v3042
      %v3406 = vpop.permute.xlu0 %3405
      %v3408 = vlaneseq
      %v3409 = vshrl.u32 %v3408, 7
      %v3410 = vsub.s32 2, %v3409
      %v3411 = vrot.slane %v3036, %v3410
      %v3412 = vlaneseq
      %v3413 = vshrl.u32 %v3412, 7
      %v3414 = vsub.s32 2, %v3413
      %v3415 = vrot.slane %v3037, %v3414
      %v3416 = vmul.f32 %v3406, %v3411
      %v3417 = vmul.f32 %v3406, %v3415
      %v3418 = vadd.f32 %v3402, %v3416
      %v3419 = vadd.f32 %v3403, %v3417
      %3420 = vset.pattern.permute.xlu0 3
      %3421 = vperm.xlu0 %3420, %v3042
      %v3422 = vpop.permute.xlu0 %3421
      %v3424 = vlaneseq
      %v3425 = vshrl.u32 %v3424, 7
      %v3426 = vsub.s32 3, %v3425
      %v3427 = vrot.slane %v3036, %v3426
      %v3428 = vlaneseq
      %v3429 = vshrl.u32 %v3428, 7
      %v3430 = vsub.s32 3, %v3429
      %v3431 = vrot.slane %v3037, %v3430
      %v3432 = vmul.f32 %v3422, %v3427
      %v3433 = vmul.f32 %v3422, %v3431
      %v3434 = vadd.f32 %v3418, %v3432
      %v3435 = vadd.f32 %v3419, %v3433
      %3437 = vset.pattern.permute.xlu0 0
      %3438 = vperm.xlu0 %3437, %v3043
      %v3439 = vpop.permute.xlu0 %3438
      %v3441 = vlaneseq
      %v3442 = vshrl.u32 %v3441, 7
      %v3443 = vsub.s32 0, %v3442
      %v3444 = vrot.slane %v3081, %v3443
      %v3445 = vlaneseq
      %v3446 = vshrl.u32 %v3445, 7
      %v3447 = vsub.s32 0, %v3446
      %v3448 = vrot.slane %v3082, %v3447
      %v3449 = vmul.f32 %v3439, %v3444
      %v3450 = vmul.f32 %v3439, %v3448
      %v3451 = vadd.f32 %v3434, %v3449
      %v3452 = vadd.f32 %v3435, %v3450
      %3453 = vset.pattern.permute.xlu0 1
      %3454 = vperm.xlu0 %3453, %v3043
      %v3455 = vpop.permute.xlu0 %3454
      %v3457 = vlaneseq
      %v3458 = vshrl.u32 %v3457, 7
      %v3459 = vsub.s32 1, %v3458
      %v3460 = vrot.slane %v3081, %v3459
      %v3461 = vlaneseq
      %v3462 = vshrl.u32 %v3461, 7
      %v3463 = vsub.s32 1, %v3462
      %v3464 = vrot.slane %v3082, %v3463
      %v3465 = vmul.f32 %v3455, %v3460
      %v3466 = vmul.f32 %v3455, %v3464
      %v3467 = vadd.f32 %v3451, %v3465
      %v3468 = vadd.f32 %v3452, %v3466
      %3469 = vset.pattern.permute.xlu0 2
      %3470 = vperm.xlu0 %3469, %v3043
      %v3471 = vpop.permute.xlu0 %3470
      %v3473 = vlaneseq
      %v3474 = vshrl.u32 %v3473, 7
      %v3475 = vsub.s32 2, %v3474
      %v3476 = vrot.slane %v3081, %v3475
      %v3477 = vlaneseq
      %v3478 = vshrl.u32 %v3477, 7
      %v3479 = vsub.s32 2, %v3478
      %v3480 = vrot.slane %v3082, %v3479
      %v3481 = vmul.f32 %v3471, %v3476
      %v3482 = vmul.f32 %v3471, %v3480
      %v3483 = vadd.f32 %v3467, %v3481
      %v3484 = vadd.f32 %v3468, %v3482
      %3485 = vset.pattern.permute.xlu0 3
      %3486 = vperm.xlu0 %3485, %v3043
      %v3487 = vpop.permute.xlu0 %3486
      %v3489 = vlaneseq
      %v3490 = vshrl.u32 %v3489, 7
      %v3491 = vsub.s32 3, %v3490
      %v3492 = vrot.slane %v3081, %v3491
      %v3493 = vlaneseq
      %v3494 = vshrl.u32 %v3493, 7
      %v3495 = vsub.s32 3, %v3494
      %v3496 = vrot.slane %v3082, %v3495
      %v3497 = vmul.f32 %v3487, %v3492
      %v3498 = vmul.f32 %v3487, %v3496
      %v3499 = vadd.f32 %v3483, %v3497
      %v3500 = vadd.f32 %v3484, %v3498
      %3501 = vrot.lane.b32.xlu0 %v3071, 112
      %v3502 = vpop.permute.xlu0 %3501
      %3503 = vrot.lane.b32.xlu0 %v3072, 112
      %v3504 = vpop.permute.xlu0 %3503
      %v3505 = vsel %vm794, %v3502, %v3504
      %v3508 = vsel %vm794, %v3504, 0.0
      %3510 = vset.pattern.permute.xlu0 0
      %3511 = vperm.xlu0 %3510, %v3044
      %v3512 = vpop.permute.xlu0 %3511
      %v3514 = vlaneseq
      %v3515 = vshrl.u32 %v3514, 7
      %v3516 = vsub.s32 0, %v3515
      %v3517 = vrot.slane %v3505, %v3516
      %v3518 = vlaneseq
      %v3519 = vshrl.u32 %v3518, 7
      %v3520 = vsub.s32 0, %v3519
      %v3521 = vrot.slane %v3508, %v3520
      %v3522 = vmul.f32 %v3512, %v3517
      %v3523 = vmul.f32 %v3512, %v3521
      %v3524 = vadd.f32 %v3499, %v3522
      %v3525 = vadd.f32 %v3500, %v3523
      %3526 = vset.pattern.permute.xlu0 1
      %3527 = vperm.xlu0 %3526, %v3044
      %v3528 = vpop.permute.xlu0 %3527
      %v3530 = vlaneseq
      %v3531 = vshrl.u32 %v3530, 7
      %v3532 = vsub.s32 1, %v3531
      %v3533 = vrot.slane %v3505, %v3532
      %v3534 = vlaneseq
      %v3535 = vshrl.u32 %v3534, 7
      %v3536 = vsub.s32 1, %v3535
      %v3537 = vrot.slane %v3508, %v3536
      %v3538 = vmul.f32 %v3528, %v3533
      %v3539 = vmul.f32 %v3528, %v3537
      %v3540 = vadd.f32 %v3524, %v3538
      %v3541 = vadd.f32 %v3525, %v3539
      %3542 = vset.pattern.permute.xlu0 2
      %3543 = vperm.xlu0 %3542, %v3044
      %v3544 = vpop.permute.xlu0 %3543
      %v3546 = vlaneseq
      %v3547 = vshrl.u32 %v3546, 7
      %v3548 = vsub.s32 2, %v3547
      %v3549 = vrot.slane %v3505, %v3548
      %v3550 = vlaneseq
      %v3551 = vshrl.u32 %v3550, 7
      %v3552 = vsub.s32 2, %v3551
      %v3553 = vrot.slane %v3508, %v3552
      %v3554 = vmul.f32 %v3544, %v3549
      %v3555 = vmul.f32 %v3544, %v3553
      %v3556 = vadd.f32 %v3540, %v3554
      %v3557 = vadd.f32 %v3541, %v3555
      %3558 = vset.pattern.permute.xlu0 3
      %3559 = vperm.xlu0 %3558, %v3044
      %v3560 = vpop.permute.xlu0 %3559
      %v3562 = vlaneseq
      %v3563 = vshrl.u32 %v3562, 7
      %v3564 = vsub.s32 3, %v3563
      %v3565 = vrot.slane %v3505, %v3564
      %v3566 = vlaneseq
      %v3567 = vshrl.u32 %v3566, 7
      %v3568 = vsub.s32 3, %v3567
      %v3569 = vrot.slane %v3508, %v3568
      %v3570 = vmul.f32 %v3560, %v3565
      %v3571 = vmul.f32 %v3560, %v3569
      %v3572 = vadd.f32 %v3556, %v3570
      %v3573 = vadd.f32 %v3557, %v3571
      %3574 = vrot.lane.b32.xlu0 %v3036, 112
      %v3575 = vpop.permute.xlu0 %3574
      %3576 = vrot.lane.b32.xlu0 %v3037, 112
      %v3577 = vpop.permute.xlu0 %3576
      %v3578 = vsel %vm794, %v3575, %v3577
      %v3581 = vsel %vm794, %v3577, 0.0
      %3583 = vset.pattern.permute.xlu0 0
      %3584 = vperm.xlu0 %3583, %v3045
      %v3585 = vpop.permute.xlu0 %3584
      %v3587 = vlaneseq
      %v3588 = vshrl.u32 %v3587, 7
      %v3589 = vsub.s32 0, %v3588
      %v3590 = vrot.slane %v3578, %v3589
      %v3591 = vlaneseq
      %v3592 = vshrl.u32 %v3591, 7
      %v3593 = vsub.s32 0, %v3592
      %v3594 = vrot.slane %v3581, %v3593
      %v3595 = vmul.f32 %v3585, %v3590
      %v3596 = vmul.f32 %v3585, %v3594
      %v3597 = vadd.f32 %v3572, %v3595
      %v3598 = vadd.f32 %v3573, %v3596
      %3599 = vset.pattern.permute.xlu0 1
      %3600 = vperm.xlu0 %3599, %v3045
      %v3601 = vpop.permute.xlu0 %3600
      %v3603 = vlaneseq
      %v3604 = vshrl.u32 %v3603, 7
      %v3605 = vsub.s32 1, %v3604
      %v3606 = vrot.slane %v3578, %v3605
      %v3607 = vlaneseq
      %v3608 = vshrl.u32 %v3607, 7
      %v3609 = vsub.s32 1, %v3608
      %v3610 = vrot.slane %v3581, %v3609
      %v3611 = vmul.f32 %v3601, %v3606
      %v3612 = vmul.f32 %v3601, %v3610
      %v3613 = vadd.f32 %v3597, %v3611
      %v3614 = vadd.f32 %v3598, %v3612
      %3615 = vset.pattern.permute.xlu0 2
      %3616 = vperm.xlu0 %3615, %v3045
      %v3617 = vpop.permute.xlu0 %3616
      %v3619 = vlaneseq
      %v3620 = vshrl.u32 %v3619, 7
      %v3621 = vsub.s32 2, %v3620
      %v3622 = vrot.slane %v3578, %v3621
      %v3623 = vlaneseq
      %v3624 = vshrl.u32 %v3623, 7
      %v3625 = vsub.s32 2, %v3624
      %v3626 = vrot.slane %v3581, %v3625
      %v3627 = vmul.f32 %v3617, %v3622
      %v3628 = vmul.f32 %v3617, %v3626
      %v3629 = vadd.f32 %v3613, %v3627
      %v3630 = vadd.f32 %v3614, %v3628
      %3631 = vset.pattern.permute.xlu0 3
      %3632 = vperm.xlu0 %3631, %v3045
      %v3633 = vpop.permute.xlu0 %3632
      %v3635 = vlaneseq
      %v3636 = vshrl.u32 %v3635, 7
      %v3637 = vsub.s32 3, %v3636
      %v3638 = vrot.slane %v3578, %v3637
      %v3639 = vlaneseq
      %v3640 = vshrl.u32 %v3639, 7
      %v3641 = vsub.s32 3, %v3640
      %v3642 = vrot.slane %v3581, %v3641
      %v3643 = vmul.f32 %v3633, %v3638
      %v3644 = vmul.f32 %v3633, %v3642
      %v3645 = vadd.f32 %v3629, %v3643
      %v3646 = vadd.f32 %v3630, %v3644
      %3647 = vrot.lane.b32.xlu0 %v3081, 112
      %v3648 = vpop.permute.xlu0 %3647
      %3649 = vrot.lane.b32.xlu0 %v3082, 112
      %v3650 = vpop.permute.xlu0 %3649
      %v3651 = vsel %vm794, %v3648, %v3650
      %v3654 = vsel %vm794, %v3650, 0.0
      %3656 = vset.pattern.permute.xlu0 0
      %3657 = vperm.xlu0 %3656, %v3046
      %v3658 = vpop.permute.xlu0 %3657
      %v3660 = vlaneseq
      %v3661 = vshrl.u32 %v3660, 7
      %v3662 = vsub.s32 0, %v3661
      %v3663 = vrot.slane %v3651, %v3662
      %v3664 = vlaneseq
      %v3665 = vshrl.u32 %v3664, 7
      %v3666 = vsub.s32 0, %v3665
      %v3667 = vrot.slane %v3654, %v3666
      %v3668 = vmul.f32 %v3658, %v3663
      %v3669 = vmul.f32 %v3658, %v3667
      %v3670 = vadd.f32 %v3645, %v3668
      %v3671 = vadd.f32 %v3646, %v3669
      %3672 = vset.pattern.permute.xlu0 1
      %3673 = vperm.xlu0 %3672, %v3046
      %v3674 = vpop.permute.xlu0 %3673
      %v3676 = vlaneseq
      %v3677 = vshrl.u32 %v3676, 7
      %v3678 = vsub.s32 1, %v3677
      %v3679 = vrot.slane %v3651, %v3678
      %v3680 = vlaneseq
      %v3681 = vshrl.u32 %v3680, 7
      %v3682 = vsub.s32 1, %v3681
      %v3683 = vrot.slane %v3654, %v3682
      %v3684 = vmul.f32 %v3674, %v3679
      %v3685 = vmul.f32 %v3674, %v3683
      %v3686 = vadd.f32 %v3670, %v3684
      %v3687 = vadd.f32 %v3671, %v3685
      %3688 = vset.pattern.permute.xlu0 2
      %3689 = vperm.xlu0 %3688, %v3046
      %v3690 = vpop.permute.xlu0 %3689
      %v3692 = vlaneseq
      %v3693 = vshrl.u32 %v3692, 7
      %v3694 = vsub.s32 2, %v3693
      %v3695 = vrot.slane %v3651, %v3694
      %v3696 = vlaneseq
      %v3697 = vshrl.u32 %v3696, 7
      %v3698 = vsub.s32 2, %v3697
      %v3699 = vrot.slane %v3654, %v3698
      %v3700 = vmul.f32 %v3690, %v3695
      %v3701 = vmul.f32 %v3690, %v3699
      %v3702 = vadd.f32 %v3686, %v3700
      %v3703 = vadd.f32 %v3687, %v3701
      %3704 = vset.pattern.permute.xlu0 3
      %3705 = vperm.xlu0 %3704, %v3046
      %v3706 = vpop.permute.xlu0 %3705
      %v3708 = vlaneseq
      %v3709 = vshrl.u32 %v3708, 7
      %v3710 = vsub.s32 3, %v3709
      %v3711 = vrot.slane %v3651, %v3710
      %v3712 = vlaneseq
      %v3713 = vshrl.u32 %v3712, 7
      %v3714 = vsub.s32 3, %v3713
      %v3715 = vrot.slane %v3654, %v3714
      %v3716 = vmul.f32 %v3706, %v3711
      %v3717 = vmul.f32 %v3706, %v3715
      %v3718 = vadd.f32 %v3702, %v3716
      %v3719 = vadd.f32 %v3703, %v3717
      %3721 = vset.pattern.permute.xlu0 0
      %3722 = vperm.xlu0 %3721, %v3048
      %v3723 = vpop.permute.xlu0 %3722
      %v3725 = vmul.f32 %v3723, %v1067
      %v3726 = vmul.f32 %v3723, %v1071
      %v3727 = vadd.f32 %v3718, %v3725
      %v3728 = vadd.f32 %v3719, %v3726
      %3729 = vset.pattern.permute.xlu0 1
      %3730 = vperm.xlu0 %3729, %v3048
      %v3731 = vpop.permute.xlu0 %3730
      %v3733 = vmul.f32 %v3731, %v1083
      %v3734 = vmul.f32 %v3731, %v1087
      %v3735 = vadd.f32 %v3727, %v3733
      %v3736 = vadd.f32 %v3728, %v3734
      %3737 = vset.pattern.permute.xlu0 2
      %3738 = vperm.xlu0 %3737, %v3048
      %v3739 = vpop.permute.xlu0 %3738
      %v3741 = vmul.f32 %v3739, %v1099
      %v3742 = vmul.f32 %v3739, %v1103
      %v3743 = vadd.f32 %v3735, %v3741
      %v3744 = vadd.f32 %v3736, %v3742
      %3745 = vset.pattern.permute.xlu0 3
      %3746 = vperm.xlu0 %3745, %v3048
      %v3747 = vpop.permute.xlu0 %3746
      %v3749 = vmul.f32 %v3747, %v1115
      %v3750 = vmul.f32 %v3747, %v1119
      %v3751 = vadd.f32 %v3743, %v3749
      %v3752 = vadd.f32 %v3744, %v3750
      %3754 = vset.pattern.permute.xlu0 0
      %3755 = vperm.xlu0 %3754, %v3049
      %v3756 = vpop.permute.xlu0 %3755
      %v3758 = vmul.f32 %v3756, %v1140
      %v3759 = vmul.f32 %v3756, %v1144
      %v3760 = vadd.f32 %v3751, %v3758
      %v3761 = vadd.f32 %v3752, %v3759
      %3762 = vset.pattern.permute.xlu0 1
      %3763 = vperm.xlu0 %3762, %v3049
      %v3764 = vpop.permute.xlu0 %3763
      %v3766 = vmul.f32 %v3764, %v1156
      %v3767 = vmul.f32 %v3764, %v1160
      %v3768 = vadd.f32 %v3760, %v3766
      %v3769 = vadd.f32 %v3761, %v3767
      %3770 = vset.pattern.permute.xlu0 2
      %3771 = vperm.xlu0 %3770, %v3049
      %v3772 = vpop.permute.xlu0 %3771
      %v3774 = vmul.f32 %v3772, %v1172
      %v3775 = vmul.f32 %v3772, %v1176
      %v3776 = vadd.f32 %v3768, %v3774
      %v3777 = vadd.f32 %v3769, %v3775
      %3778 = vset.pattern.permute.xlu0 3
      %3779 = vperm.xlu0 %3778, %v3049
      %v3780 = vpop.permute.xlu0 %3779
      %v3782 = vmul.f32 %v3780, %v1188
      %v3783 = vmul.f32 %v3780, %v1192
      %v3784 = vadd.f32 %v3776, %v3782
      %v3785 = vadd.f32 %v3777, %v3783
      %3787 = vset.pattern.permute.xlu0 0
      %3788 = vperm.xlu0 %3787, %v3050
      %v3789 = vpop.permute.xlu0 %3788
      %v3791 = vmul.f32 %v3789, %v1215
      %v3792 = vmul.f32 %v3789, %v1219
      %v3793 = vadd.f32 %v3784, %v3791
      %v3794 = vadd.f32 %v3785, %v3792
      %3795 = vset.pattern.permute.xlu0 1
      %3796 = vperm.xlu0 %3795, %v3050
      %v3797 = vpop.permute.xlu0 %3796
      %v3799 = vmul.f32 %v3797, %v1231
      %v3800 = vmul.f32 %v3797, %v1235
      %v3801 = vadd.f32 %v3793, %v3799
      %v3802 = vadd.f32 %v3794, %v3800
      %3803 = vset.pattern.permute.xlu0 2
      %3804 = vperm.xlu0 %3803, %v3050
      %v3805 = vpop.permute.xlu0 %3804
      %v3807 = vmul.f32 %v3805, %v1247
      %v3808 = vmul.f32 %v3805, %v1251
      %v3809 = vadd.f32 %v3801, %v3807
      %v3810 = vadd.f32 %v3802, %v3808
      %3811 = vset.pattern.permute.xlu0 3
      %3812 = vperm.xlu0 %3811, %v3050
      %v3813 = vpop.permute.xlu0 %3812
      %v3815 = vmul.f32 %v3813, %v1263
      %v3816 = vmul.f32 %v3813, %v1267
      %v3817 = vadd.f32 %v3809, %v3815
      %v3818 = vadd.f32 %v3810, %v3816
      %3820 = vset.pattern.permute.xlu0 0
      %3821 = vperm.xlu0 %3820, %v3051
      %v3822 = vpop.permute.xlu0 %3821
      %v3824 = vmul.f32 %v3822, %v1280
      %v3825 = vmul.f32 %v3822, %v1284
      %v3826 = vadd.f32 %v3817, %v3824
      %v3827 = vadd.f32 %v3818, %v3825
      %3828 = vset.pattern.permute.xlu0 1
      %3829 = vperm.xlu0 %3828, %v3051
      %v3830 = vpop.permute.xlu0 %3829
      %v3832 = vmul.f32 %v3830, %v1296
      %v3833 = vmul.f32 %v3830, %v1300
      %v3834 = vadd.f32 %v3826, %v3832
      %v3835 = vadd.f32 %v3827, %v3833
      %3836 = vset.pattern.permute.xlu0 2
      %3837 = vperm.xlu0 %3836, %v3051
      %v3838 = vpop.permute.xlu0 %3837
      %v3840 = vmul.f32 %v3838, %v1312
      %v3841 = vmul.f32 %v3838, %v1316
      %v3842 = vadd.f32 %v3834, %v3840
      %v3843 = vadd.f32 %v3835, %v3841
      %3844 = vset.pattern.permute.xlu0 3
      %3845 = vperm.xlu0 %3844, %v3051
      %v3846 = vpop.permute.xlu0 %3845
      %v3848 = vmul.f32 %v3846, %v1328
      %v3849 = vmul.f32 %v3846, %v1332
      %v3850 = vadd.f32 %v3842, %v3848
      %v3851 = vadd.f32 %v3843, %v3849
      %3853 = vset.pattern.permute.xlu0 0
      %3854 = vperm.xlu0 %3853, %v3052
      %v3855 = vpop.permute.xlu0 %3854
      %v3857 = vmul.f32 %v3855, %v1345
      %v3858 = vmul.f32 %v3855, %v1349
      %v3859 = vadd.f32 %v3850, %v3857
      %v3860 = vadd.f32 %v3851, %v3858
      %3861 = vset.pattern.permute.xlu0 1
      %3862 = vperm.xlu0 %3861, %v3052
      %v3863 = vpop.permute.xlu0 %3862
      %v3865 = vmul.f32 %v3863, %v1361
      %v3866 = vmul.f32 %v3863, %v1365
      %v3867 = vadd.f32 %v3859, %v3865
      %v3868 = vadd.f32 %v3860, %v3866
      %3869 = vset.pattern.permute.xlu0 2
      %3870 = vperm.xlu0 %3869, %v3052
      %v3871 = vpop.permute.xlu0 %3870
      %v3873 = vmul.f32 %v3871, %v1377
      %v3874 = vmul.f32 %v3871, %v1381
      %v3875 = vadd.f32 %v3867, %v3873
      %v3876 = vadd.f32 %v3868, %v3874
      %3877 = vset.pattern.permute.xlu0 3
      %3878 = vperm.xlu0 %3877, %v3052
      %v3879 = vpop.permute.xlu0 %3878
      %v3881 = vmul.f32 %v3879, %v1393
      %v3882 = vmul.f32 %v3879, %v1397
      %v3883 = vadd.f32 %v3875, %v3881
      %v3884 = vadd.f32 %v3876, %v3882
      %3886 = vset.pattern.permute.xlu0 0
      %3887 = vperm.xlu0 %3886, %v3053
      %v3888 = vpop.permute.xlu0 %3887
      %v3890 = vmul.f32 %v3888, %v1410
      %v3891 = vmul.f32 %v3888, %v1414
      %v3892 = vadd.f32 %v3883, %v3890
      %v3893 = vadd.f32 %v3884, %v3891
      %3894 = vset.pattern.permute.xlu0 1
      %3895 = vperm.xlu0 %3894, %v3053
      %v3896 = vpop.permute.xlu0 %3895
      %v3898 = vmul.f32 %v3896, %v1426
      %v3899 = vmul.f32 %v3896, %v1430
      %v3900 = vadd.f32 %v3892, %v3898
      %v3901 = vadd.f32 %v3893, %v3899
      %3902 = vset.pattern.permute.xlu0 2
      %3903 = vperm.xlu0 %3902, %v3053
      %v3904 = vpop.permute.xlu0 %3903
      %v3906 = vmul.f32 %v3904, %v1442
      %v3907 = vmul.f32 %v3904, %v1446
      %v3908 = vadd.f32 %v3900, %v3906
      %v3909 = vadd.f32 %v3901, %v3907
      %3910 = vset.pattern.permute.xlu0 3
      %3911 = vperm.xlu0 %3910, %v3053
      %v3912 = vpop.permute.xlu0 %3911
      %v3914 = vmul.f32 %v3912, %v1458
      %v3915 = vmul.f32 %v3912, %v1462
      %v3916 = vadd.f32 %v3908, %v3914
      %v3917 = vadd.f32 %v3909, %v3915
      %3919 = vset.pattern.permute.xlu0 0
      %3920 = vperm.xlu0 %3919, %v3054
      %v3921 = vpop.permute.xlu0 %3920
      %v3923 = vmul.f32 %v3921, %v1483
      %v3924 = vmul.f32 %v3921, %v1487
      %v3925 = vadd.f32 %v3916, %v3923
      %v3926 = vadd.f32 %v3917, %v3924
      %3927 = vset.pattern.permute.xlu0 1
      %3928 = vperm.xlu0 %3927, %v3054
      %v3929 = vpop.permute.xlu0 %3928
      %v3931 = vmul.f32 %v3929, %v1499
      %v3932 = vmul.f32 %v3929, %v1503
      %v3933 = vadd.f32 %v3925, %v3931
      %v3934 = vadd.f32 %v3926, %v3932
      %3935 = vset.pattern.permute.xlu0 2
      %3936 = vperm.xlu0 %3935, %v3054
      %v3937 = vpop.permute.xlu0 %3936
      %v3939 = vmul.f32 %v3937, %v1515
      %v3940 = vmul.f32 %v3937, %v1519
      %v3941 = vadd.f32 %v3933, %v3939
      %v3942 = vadd.f32 %v3934, %v3940
      %3943 = vset.pattern.permute.xlu0 3
      %3944 = vperm.xlu0 %3943, %v3054
      %v3945 = vpop.permute.xlu0 %3944
      %v3947 = vmul.f32 %v3945, %v1531
      %v3948 = vmul.f32 %v3945, %v1535
      %v3949 = vadd.f32 %v3941, %v3947
      %v3950 = vadd.f32 %v3942, %v3948
      %3952 = vset.pattern.permute.xlu0 0
      %3953 = vperm.xlu0 %3952, %v3055
      %v3954 = vpop.permute.xlu0 %3953
      %v3956 = vmul.f32 %v3954, %v1556
      %v3957 = vmul.f32 %v3954, %v1560
      %v3958 = vadd.f32 %v3949, %v3956
      %v3959 = vadd.f32 %v3950, %v3957
      %3960 = vset.pattern.permute.xlu0 1
      %3961 = vperm.xlu0 %3960, %v3055
      %v3962 = vpop.permute.xlu0 %3961
      %v3964 = vmul.f32 %v3962, %v1572
      %v3965 = vmul.f32 %v3962, %v1576
      %v3966 = vadd.f32 %v3958, %v3964
      %v3967 = vadd.f32 %v3959, %v3965
      %3968 = vset.pattern.permute.xlu0 2
      %3969 = vperm.xlu0 %3968, %v3055
      %v3970 = vpop.permute.xlu0 %3969
      %v3972 = vmul.f32 %v3970, %v1588
      %v3973 = vmul.f32 %v3970, %v1592
      %v3974 = vadd.f32 %v3966, %v3972
      %v3975 = vadd.f32 %v3967, %v3973
      %3976 = vset.pattern.permute.xlu0 3
      %3977 = vperm.xlu0 %3976, %v3055
      %v3978 = vpop.permute.xlu0 %3977
      %v3980 = vmul.f32 %v3978, %v1604
      %v3981 = vmul.f32 %v3978, %v1608
      %v3982 = vadd.f32 %v3974, %v3980
      %v3983 = vadd.f32 %v3975, %v3981
      %3985 = vset.pattern.permute.xlu0 0
      %3986 = vperm.xlu0 %3985, %v3056
      %v3987 = vpop.permute.xlu0 %3986
      %v3989 = vmul.f32 %v3987, %v1629
      %v3990 = vmul.f32 %v3987, %v1633
      %v3991 = vadd.f32 %v3982, %v3989
      %v3992 = vadd.f32 %v3983, %v3990
      %3993 = vset.pattern.permute.xlu0 1
      %3994 = vperm.xlu0 %3993, %v3056
      %v3995 = vpop.permute.xlu0 %3994
      %v3997 = vmul.f32 %v3995, %v1645
      %v3998 = vmul.f32 %v3995, %v1649
      %v3999 = vadd.f32 %v3991, %v3997
      %v4000 = vadd.f32 %v3992, %v3998
      %4001 = vset.pattern.permute.xlu0 2
      %4002 = vperm.xlu0 %4001, %v3056
      %v4003 = vpop.permute.xlu0 %4002
      %v4005 = vmul.f32 %v4003, %v1661
      %v4006 = vmul.f32 %v4003, %v1665
      %v4007 = vadd.f32 %v3999, %v4005
      %v4008 = vadd.f32 %v4000, %v4006
      %4009 = vset.pattern.permute.xlu0 3
      %4010 = vperm.xlu0 %4009, %v3056
      %v4011 = vpop.permute.xlu0 %4010
      %v4013 = vmul.f32 %v4011, %v1677
      %v4014 = vmul.f32 %v4011, %v1681
      %v4015 = vadd.f32 %v4007, %v4013
      %v4016 = vadd.f32 %v4008, %v4014
      %v4017 = vmax.f32 %v4015, 0.0
      %v4018 = vmax.f32 %v4016, 0.0
      %v4019 = vld [vmem:[%s4] sm:$0xf]
      %v4020 = vld [vmem:[%s4 + $0x4] sm:$0xf]
      %v4021 = vld [vmem:[%s4 + $0x8] sm:$0xf]
      %v4022 = vld [vmem:[%s4 + $0xc] sm:$0xf]
      %v4023 = vld [vmem:[%s4 + $0x10] sm:$0xf]
      %v4024 = vld [vmem:[%s4 + $0x14] sm:$0xf]
      %v4025 = vld [vmem:[%s4 + $0x18] sm:$0xf]
      %v4026 = vld [vmem:[%s4 + $0x1c] sm:$0xf]
      %v4027 = vld [vmem:[%s4 + $0x20] sm:$0xf]
      %4028 = vset.pattern.permute.xlu0 5
      %4029 = vperm.xlu0 %4028, %v1021
      %v4030 = vpop.permute.xlu0 %4029
      %4034 = vrot.lane.b32.xlu0 %v4017, 1
      %v4035 = vpop.permute.xlu0 %4034
      %4036 = vrot.lane.b32.xlu0 %v4018, 1
      %v4037 = vpop.permute.xlu0 %4036
      %v4038 = vsel %vm305, %v4035, %v4037
      %v4041 = vsel %vm305, 0.0, %v4035
      %v4042 = vsel %vm312, 0.0, %v4041
      %v4043 = vsel %vm313, 0.0, %v4038
      %4044 = vrot.lane.b32.xlu0 %v4017, 127
      %v4045 = vpop.permute.xlu0 %4044
      %4046 = vrot.lane.b32.xlu0 %v4018, 127
      %v4047 = vpop.permute.xlu0 %4046
      %v4048 = vsel %vm320, %v4045, %v4047
      %v4051 = vsel %vm320, %v4047, 0.0
      %v4052 = vsel %vm327, 0.0, %v4048
      %v4053 = vsel %vm328, 0.0, %v4051
      %4056 = vrot.lane.b32.xlu0 %v4042, 16
      %v4057 = vpop.permute.xlu0 %4056
      %4058 = vrot.lane.b32.xlu0 %v4043, 16
      %v4059 = vpop.permute.xlu0 %4058
      %v4060 = vsel %vm337, %v4057, %v4059
      %v4063 = vsel %vm337, 0.0, %v4057
      %4065 = vset.pattern.permute.xlu0 0
      %4066 = vperm.xlu0 %4065, %v4019
      %v4067 = vpop.permute.xlu0 %4066
      %v4069 = vlaneseq
      %v4070 = vshrl.u32 %v4069, 7
      %v4071 = vsub.s32 0, %v4070
      %v4072 = vrot.slane %v4063, %v4071
      %v4073 = vlaneseq
      %v4074 = vshrl.u32 %v4073, 7
      %v4075 = vsub.s32 0, %v4074
      %v4076 = vrot.slane %v4060, %v4075
      %v4077 = vmul.f32 %v4067, %v4072
      %v4078 = vmul.f32 %v4067, %v4076
      %v4079 = vadd.f32 %v4030, %v4077
      %v4080 = vadd.f32 %v4030, %v4078
      %4081 = vset.pattern.permute.xlu0 1
      %4082 = vperm.xlu0 %4081, %v4019
      %v4083 = vpop.permute.xlu0 %4082
      %v4085 = vlaneseq
      %v4086 = vshrl.u32 %v4085, 7
      %v4087 = vsub.s32 1, %v4086
      %v4088 = vrot.slane %v4063, %v4087
      %v4089 = vlaneseq
      %v4090 = vshrl.u32 %v4089, 7
      %v4091 = vsub.s32 1, %v4090
      %v4092 = vrot.slane %v4060, %v4091
      %v4093 = vmul.f32 %v4083, %v4088
      %v4094 = vmul.f32 %v4083, %v4092
      %v4095 = vadd.f32 %v4079, %v4093
      %v4096 = vadd.f32 %v4080, %v4094
      %4097 = vset.pattern.permute.xlu0 2
      %4098 = vperm.xlu0 %4097, %v4019
      %v4099 = vpop.permute.xlu0 %4098
      %v4101 = vlaneseq
      %v4102 = vshrl.u32 %v4101, 7
      %v4103 = vsub.s32 2, %v4102
      %v4104 = vrot.slane %v4063, %v4103
      %v4105 = vlaneseq
      %v4106 = vshrl.u32 %v4105, 7
      %v4107 = vsub.s32 2, %v4106
      %v4108 = vrot.slane %v4060, %v4107
      %v4109 = vmul.f32 %v4099, %v4104
      %v4110 = vmul.f32 %v4099, %v4108
      %v4111 = vadd.f32 %v4095, %v4109
      %v4112 = vadd.f32 %v4096, %v4110
      %4113 = vset.pattern.permute.xlu0 3
      %4114 = vperm.xlu0 %4113, %v4019
      %v4115 = vpop.permute.xlu0 %4114
      %v4117 = vlaneseq
      %v4118 = vshrl.u32 %v4117, 7
      %v4119 = vsub.s32 3, %v4118
      %v4120 = vrot.slane %v4063, %v4119
      %v4121 = vlaneseq
      %v4122 = vshrl.u32 %v4121, 7
      %v4123 = vsub.s32 3, %v4122
      %v4124 = vrot.slane %v4060, %v4123
      %v4125 = vmul.f32 %v4115, %v4120
      %v4126 = vmul.f32 %v4115, %v4124
      %v4127 = vadd.f32 %v4111, %v4125
      %v4128 = vadd.f32 %v4112, %v4126
      %4129 = vrot.lane.b32.xlu0 %v4017, 16
      %v4130 = vpop.permute.xlu0 %4129
      %4131 = vrot.lane.b32.xlu0 %v4018, 16
      %v4132 = vpop.permute.xlu0 %4131
      %v4133 = vsel %vm337, %v4130, %v4132
      %v4136 = vsel %vm337, 0.0, %v4130
      %4138 = vset.pattern.permute.xlu0 0
      %4139 = vperm.xlu0 %4138, %v4020
      %v4140 = vpop.permute.xlu0 %4139
      %v4142 = vlaneseq
      %v4143 = vshrl.u32 %v4142, 7
      %v4144 = vsub.s32 0, %v4143
      %v4145 = vrot.slane %v4136, %v4144
      %v4146 = vlaneseq
      %v4147 = vshrl.u32 %v4146, 7
      %v4148 = vsub.s32 0, %v4147
      %v4149 = vrot.slane %v4133, %v4148
      %v4150 = vmul.f32 %v4140, %v4145
      %v4151 = vmul.f32 %v4140, %v4149
      %v4152 = vadd.f32 %v4127, %v4150
      %v4153 = vadd.f32 %v4128, %v4151
      %4154 = vset.pattern.permute.xlu0 1
      %4155 = vperm.xlu0 %4154, %v4020
      %v4156 = vpop.permute.xlu0 %4155
      %v4158 = vlaneseq
      %v4159 = vshrl.u32 %v4158, 7
      %v4160 = vsub.s32 1, %v4159
      %v4161 = vrot.slane %v4136, %v4160
      %v4162 = vlaneseq
      %v4163 = vshrl.u32 %v4162, 7
      %v4164 = vsub.s32 1, %v4163
      %v4165 = vrot.slane %v4133, %v4164
      %v4166 = vmul.f32 %v4156, %v4161
      %v4167 = vmul.f32 %v4156, %v4165
      %v4168 = vadd.f32 %v4152, %v4166
      %v4169 = vadd.f32 %v4153, %v4167
      %4170 = vset.pattern.permute.xlu0 2
      %4171 = vperm.xlu0 %4170, %v4020
      %v4172 = vpop.permute.xlu0 %4171
      %v4174 = vlaneseq
      %v4175 = vshrl.u32 %v4174, 7
      %v4176 = vsub.s32 2, %v4175
      %v4177 = vrot.slane %v4136, %v4176
      %v4178 = vlaneseq
      %v4179 = vshrl.u32 %v4178, 7
      %v4180 = vsub.s32 2, %v4179
      %v4181 = vrot.slane %v4133, %v4180
      %v4182 = vmul.f32 %v4172, %v4177
      %v4183 = vmul.f32 %v4172, %v4181
      %v4184 = vadd.f32 %v4168, %v4182
      %v4185 = vadd.f32 %v4169, %v4183
      %4186 = vset.pattern.permute.xlu0 3
      %4187 = vperm.xlu0 %4186, %v4020
      %v4188 = vpop.permute.xlu0 %4187
      %v4190 = vlaneseq
      %v4191 = vshrl.u32 %v4190, 7
      %v4192 = vsub.s32 3, %v4191
      %v4193 = vrot.slane %v4136, %v4192
      %v4194 = vlaneseq
      %v4195 = vshrl.u32 %v4194, 7
      %v4196 = vsub.s32 3, %v4195
      %v4197 = vrot.slane %v4133, %v4196
      %v4198 = vmul.f32 %v4188, %v4193
      %v4199 = vmul.f32 %v4188, %v4197
      %v4200 = vadd.f32 %v4184, %v4198
      %v4201 = vadd.f32 %v4185, %v4199
      %4204 = vrot.lane.b32.xlu0 %v4052, 16
      %v4205 = vpop.permute.xlu0 %4204
      %4206 = vrot.lane.b32.xlu0 %v4053, 16
      %v4207 = vpop.permute.xlu0 %4206
      %v4208 = vsel %vm337, %v4205, %v4207
      %v4211 = vsel %vm337, 0.0, %v4205
      %4213 = vset.pattern.permute.xlu0 0
      %4214 = vperm.xlu0 %4213, %v4021
      %v4215 = vpop.permute.xlu0 %4214
      %v4217 = vlaneseq
      %v4218 = vshrl.u32 %v4217, 7
      %v4219 = vsub.s32 0, %v4218
      %v4220 = vrot.slane %v4211, %v4219
      %v4221 = vlaneseq
      %v4222 = vshrl.u32 %v4221, 7
      %v4223 = vsub.s32 0, %v4222
      %v4224 = vrot.slane %v4208, %v4223
      %v4225 = vmul.f32 %v4215, %v4220
      %v4226 = vmul.f32 %v4215, %v4224
      %v4227 = vadd.f32 %v4200, %v4225
      %v4228 = vadd.f32 %v4201, %v4226
      %4229 = vset.pattern.permute.xlu0 1
      %4230 = vperm.xlu0 %4229, %v4021
      %v4231 = vpop.permute.xlu0 %4230
      %v4233 = vlaneseq
      %v4234 = vshrl.u32 %v4233, 7
      %v4235 = vsub.s32 1, %v4234
      %v4236 = vrot.slane %v4211, %v4235
      %v4237 = vlaneseq
      %v4238 = vshrl.u32 %v4237, 7
      %v4239 = vsub.s32 1, %v4238
      %v4240 = vrot.slane %v4208, %v4239
      %v4241 = vmul.f32 %v4231, %v4236
      %v4242 = vmul.f32 %v4231, %v4240
      %v4243 = vadd.f32 %v4227, %v4241
      %v4244 = vadd.f32 %v4228, %v4242
      %4245 = vset.pattern.permute.xlu0 2
      %4246 = vperm.xlu0 %4245, %v4021
      %v4247 = vpop.permute.xlu0 %4246
      %v4249 = vlaneseq
      %v4250 = vshrl.u32 %v4249, 7
      %v4251 = vsub.s32 2, %v4250
      %v4252 = vrot.slane %v4211, %v4251
      %v4253 = vlaneseq
      %v4254 = vshrl.u32 %v4253, 7
      %v4255 = vsub.s32 2, %v4254
      %v4256 = vrot.slane %v4208, %v4255
      %v4257 = vmul.f32 %v4247, %v4252
      %v4258 = vmul.f32 %v4247, %v4256
      %v4259 = vadd.f32 %v4243, %v4257
      %v4260 = vadd.f32 %v4244, %v4258
      %4261 = vset.pattern.permute.xlu0 3
      %4262 = vperm.xlu0 %4261, %v4021
      %v4263 = vpop.permute.xlu0 %4262
      %v4265 = vlaneseq
      %v4266 = vshrl.u32 %v4265, 7
      %v4267 = vsub.s32 3, %v4266
      %v4268 = vrot.slane %v4211, %v4267
      %v4269 = vlaneseq
      %v4270 = vshrl.u32 %v4269, 7
      %v4271 = vsub.s32 3, %v4270
      %v4272 = vrot.slane %v4208, %v4271
      %v4273 = vmul.f32 %v4263, %v4268
      %v4274 = vmul.f32 %v4263, %v4272
      %v4275 = vadd.f32 %v4259, %v4273
      %v4276 = vadd.f32 %v4260, %v4274
      %4278 = vset.pattern.permute.xlu0 0
      %4279 = vperm.xlu0 %4278, %v4022
      %v4280 = vpop.permute.xlu0 %4279
      %v4282 = vlaneseq
      %v4283 = vshrl.u32 %v4282, 7
      %v4284 = vsub.s32 0, %v4283
      %v4285 = vrot.slane %v4042, %v4284
      %v4286 = vlaneseq
      %v4287 = vshrl.u32 %v4286, 7
      %v4288 = vsub.s32 0, %v4287
      %v4289 = vrot.slane %v4043, %v4288
      %v4290 = vmul.f32 %v4280, %v4285
      %v4291 = vmul.f32 %v4280, %v4289
      %v4292 = vadd.f32 %v4275, %v4290
      %v4293 = vadd.f32 %v4276, %v4291
      %4294 = vset.pattern.permute.xlu0 1
      %4295 = vperm.xlu0 %4294, %v4022
      %v4296 = vpop.permute.xlu0 %4295
      %v4298 = vlaneseq
      %v4299 = vshrl.u32 %v4298, 7
      %v4300 = vsub.s32 1, %v4299
      %v4301 = vrot.slane %v4042, %v4300
      %v4302 = vlaneseq
      %v4303 = vshrl.u32 %v4302, 7
      %v4304 = vsub.s32 1, %v4303
      %v4305 = vrot.slane %v4043, %v4304
      %v4306 = vmul.f32 %v4296, %v4301
      %v4307 = vmul.f32 %v4296, %v4305
      %v4308 = vadd.f32 %v4292, %v4306
      %v4309 = vadd.f32 %v4293, %v4307
      %4310 = vset.pattern.permute.xlu0 2
      %4311 = vperm.xlu0 %4310, %v4022
      %v4312 = vpop.permute.xlu0 %4311
      %v4314 = vlaneseq
      %v4315 = vshrl.u32 %v4314, 7
      %v4316 = vsub.s32 2, %v4315
      %v4317 = vrot.slane %v4042, %v4316
      %v4318 = vlaneseq
      %v4319 = vshrl.u32 %v4318, 7
      %v4320 = vsub.s32 2, %v4319
      %v4321 = vrot.slane %v4043, %v4320
      %v4322 = vmul.f32 %v4312, %v4317
      %v4323 = vmul.f32 %v4312, %v4321
      %v4324 = vadd.f32 %v4308, %v4322
      %v4325 = vadd.f32 %v4309, %v4323
      %4326 = vset.pattern.permute.xlu0 3
      %4327 = vperm.xlu0 %4326, %v4022
      %v4328 = vpop.permute.xlu0 %4327
      %v4330 = vlaneseq
      %v4331 = vshrl.u32 %v4330, 7
      %v4332 = vsub.s32 3, %v4331
      %v4333 = vrot.slane %v4042, %v4332
      %v4334 = vlaneseq
      %v4335 = vshrl.u32 %v4334, 7
      %v4336 = vsub.s32 3, %v4335
      %v4337 = vrot.slane %v4043, %v4336
      %v4338 = vmul.f32 %v4328, %v4333
      %v4339 = vmul.f32 %v4328, %v4337
      %v4340 = vadd.f32 %v4324, %v4338
      %v4341 = vadd.f32 %v4325, %v4339
      %4343 = vset.pattern.permute.xlu0 0
      %4344 = vperm.xlu0 %4343, %v4023
      %v4345 = vpop.permute.xlu0 %4344
      %v4347 = vlaneseq
      %v4348 = vshrl.u32 %v4347, 7
      %v4349 = vsub.s32 0, %v4348
      %v4350 = vrot.slane %v4017, %v4349
      %v4351 = vlaneseq
      %v4352 = vshrl.u32 %v4351, 7
      %v4353 = vsub.s32 0, %v4352
      %v4354 = vrot.slane %v4018, %v4353
      %v4355 = vmul.f32 %v4345, %v4350
      %v4356 = vmul.f32 %v4345, %v4354
      %v4357 = vadd.f32 %v4340, %v4355
      %v4358 = vadd.f32 %v4341, %v4356
      %4359 = vset.pattern.permute.xlu0 1
      %4360 = vperm.xlu0 %4359, %v4023
      %v4361 = vpop.permute.xlu0 %4360
      %v4363 = vlaneseq
      %v4364 = vshrl.u32 %v4363, 7
      %v4365 = vsub.s32 1, %v4364
      %v4366 = vrot.slane %v4017, %v4365
      %v4367 = vlaneseq
      %v4368 = vshrl.u32 %v4367, 7
      %v4369 = vsub.s32 1, %v4368
      %v4370 = vrot.slane %v4018, %v4369
      %v4371 = vmul.f32 %v4361, %v4366
      %v4372 = vmul.f32 %v4361, %v4370
      %v4373 = vadd.f32 %v4357, %v4371
      %v4374 = vadd.f32 %v4358, %v4372
      %4375 = vset.pattern.permute.xlu0 2
      %4376 = vperm.xlu0 %4375, %v4023
      %v4377 = vpop.permute.xlu0 %4376
      %v4379 = vlaneseq
      %v4380 = vshrl.u32 %v4379, 7
      %v4381 = vsub.s32 2, %v4380
      %v4382 = vrot.slane %v4017, %v4381
      %v4383 = vlaneseq
      %v4384 = vshrl.u32 %v4383, 7
      %v4385 = vsub.s32 2, %v4384
      %v4386 = vrot.slane %v4018, %v4385
      %v4387 = vmul.f32 %v4377, %v4382
      %v4388 = vmul.f32 %v4377, %v4386
      %v4389 = vadd.f32 %v4373, %v4387
      %v4390 = vadd.f32 %v4374, %v4388
      %4391 = vset.pattern.permute.xlu0 3
      %4392 = vperm.xlu0 %4391, %v4023
      %v4393 = vpop.permute.xlu0 %4392
      %v4395 = vlaneseq
      %v4396 = vshrl.u32 %v4395, 7
      %v4397 = vsub.s32 3, %v4396
      %v4398 = vrot.slane %v4017, %v4397
      %v4399 = vlaneseq
      %v4400 = vshrl.u32 %v4399, 7
      %v4401 = vsub.s32 3, %v4400
      %v4402 = vrot.slane %v4018, %v4401
      %v4403 = vmul.f32 %v4393, %v4398
      %v4404 = vmul.f32 %v4393, %v4402
      %v4405 = vadd.f32 %v4389, %v4403
      %v4406 = vadd.f32 %v4390, %v4404
      %4408 = vset.pattern.permute.xlu0 0
      %4409 = vperm.xlu0 %4408, %v4024
      %v4410 = vpop.permute.xlu0 %4409
      %v4412 = vlaneseq
      %v4413 = vshrl.u32 %v4412, 7
      %v4414 = vsub.s32 0, %v4413
      %v4415 = vrot.slane %v4052, %v4414
      %v4416 = vlaneseq
      %v4417 = vshrl.u32 %v4416, 7
      %v4418 = vsub.s32 0, %v4417
      %v4419 = vrot.slane %v4053, %v4418
      %v4420 = vmul.f32 %v4410, %v4415
      %v4421 = vmul.f32 %v4410, %v4419
      %v4422 = vadd.f32 %v4405, %v4420
      %v4423 = vadd.f32 %v4406, %v4421
      %4424 = vset.pattern.permute.xlu0 1
      %4425 = vperm.xlu0 %4424, %v4024
      %v4426 = vpop.permute.xlu0 %4425
      %v4428 = vlaneseq
      %v4429 = vshrl.u32 %v4428, 7
      %v4430 = vsub.s32 1, %v4429
      %v4431 = vrot.slane %v4052, %v4430
      %v4432 = vlaneseq
      %v4433 = vshrl.u32 %v4432, 7
      %v4434 = vsub.s32 1, %v4433
      %v4435 = vrot.slane %v4053, %v4434
      %v4436 = vmul.f32 %v4426, %v4431
      %v4437 = vmul.f32 %v4426, %v4435
      %v4438 = vadd.f32 %v4422, %v4436
      %v4439 = vadd.f32 %v4423, %v4437
      %4440 = vset.pattern.permute.xlu0 2
      %4441 = vperm.xlu0 %4440, %v4024
      %v4442 = vpop.permute.xlu0 %4441
      %v4444 = vlaneseq
      %v4445 = vshrl.u32 %v4444, 7
      %v4446 = vsub.s32 2, %v4445
      %v4447 = vrot.slane %v4052, %v4446
      %v4448 = vlaneseq
      %v4449 = vshrl.u32 %v4448, 7
      %v4450 = vsub.s32 2, %v4449
      %v4451 = vrot.slane %v4053, %v4450
      %v4452 = vmul.f32 %v4442, %v4447
      %v4453 = vmul.f32 %v4442, %v4451
      %v4454 = vadd.f32 %v4438, %v4452
      %v4455 = vadd.f32 %v4439, %v4453
      %4456 = vset.pattern.permute.xlu0 3
      %4457 = vperm.xlu0 %4456, %v4024
      %v4458 = vpop.permute.xlu0 %4457
      %v4460 = vlaneseq
      %v4461 = vshrl.u32 %v4460, 7
      %v4462 = vsub.s32 3, %v4461
      %v4463 = vrot.slane %v4052, %v4462
      %v4464 = vlaneseq
      %v4465 = vshrl.u32 %v4464, 7
      %v4466 = vsub.s32 3, %v4465
      %v4467 = vrot.slane %v4053, %v4466
      %v4468 = vmul.f32 %v4458, %v4463
      %v4469 = vmul.f32 %v4458, %v4467
      %v4470 = vadd.f32 %v4454, %v4468
      %v4471 = vadd.f32 %v4455, %v4469
      %4472 = vrot.lane.b32.xlu0 %v4042, 112
      %v4473 = vpop.permute.xlu0 %4472
      %4474 = vrot.lane.b32.xlu0 %v4043, 112
      %v4475 = vpop.permute.xlu0 %4474
      %v4476 = vsel %vm794, %v4473, %v4475
      %v4479 = vsel %vm794, %v4475, 0.0
      %4481 = vset.pattern.permute.xlu0 0
      %4482 = vperm.xlu0 %4481, %v4025
      %v4483 = vpop.permute.xlu0 %4482
      %v4485 = vlaneseq
      %v4486 = vshrl.u32 %v4485, 7
      %v4487 = vsub.s32 0, %v4486
      %v4488 = vrot.slane %v4476, %v4487
      %v4489 = vlaneseq
      %v4490 = vshrl.u32 %v4489, 7
      %v4491 = vsub.s32 0, %v4490
      %v4492 = vrot.slane %v4479, %v4491
      %v4493 = vmul.f32 %v4483, %v4488
      %v4494 = vmul.f32 %v4483, %v4492
      %v4495 = vadd.f32 %v4470, %v4493
      %v4496 = vadd.f32 %v4471, %v4494
      %4497 = vset.pattern.permute.xlu0 1
      %4498 = vperm.xlu0 %4497, %v4025
      %v4499 = vpop.permute.xlu0 %4498
      %v4501 = vlaneseq
      %v4502 = vshrl.u32 %v4501, 7
      %v4503 = vsub.s32 1, %v4502
      %v4504 = vrot.slane %v4476, %v4503
      %v4505 = vlaneseq
      %v4506 = vshrl.u32 %v4505, 7
      %v4507 = vsub.s32 1, %v4506
      %v4508 = vrot.slane %v4479, %v4507
      %v4509 = vmul.f32 %v4499, %v4504
      %v4510 = vmul.f32 %v4499, %v4508
      %v4511 = vadd.f32 %v4495, %v4509
      %v4512 = vadd.f32 %v4496, %v4510
      %4513 = vset.pattern.permute.xlu0 2
      %4514 = vperm.xlu0 %4513, %v4025
      %v4515 = vpop.permute.xlu0 %4514
      %v4517 = vlaneseq
      %v4518 = vshrl.u32 %v4517, 7
      %v4519 = vsub.s32 2, %v4518
      %v4520 = vrot.slane %v4476, %v4519
      %v4521 = vlaneseq
      %v4522 = vshrl.u32 %v4521, 7
      %v4523 = vsub.s32 2, %v4522
      %v4524 = vrot.slane %v4479, %v4523
      %v4525 = vmul.f32 %v4515, %v4520
      %v4526 = vmul.f32 %v4515, %v4524
      %v4527 = vadd.f32 %v4511, %v4525
      %v4528 = vadd.f32 %v4512, %v4526
      %4529 = vset.pattern.permute.xlu0 3
      %4530 = vperm.xlu0 %4529, %v4025
      %v4531 = vpop.permute.xlu0 %4530
      %v4533 = vlaneseq
      %v4534 = vshrl.u32 %v4533, 7
      %v4535 = vsub.s32 3, %v4534
      %v4536 = vrot.slane %v4476, %v4535
      %v4537 = vlaneseq
      %v4538 = vshrl.u32 %v4537, 7
      %v4539 = vsub.s32 3, %v4538
      %v4540 = vrot.slane %v4479, %v4539
      %v4541 = vmul.f32 %v4531, %v4536
      %v4542 = vmul.f32 %v4531, %v4540
      %v4543 = vadd.f32 %v4527, %v4541
      %v4544 = vadd.f32 %v4528, %v4542
      %4545 = vrot.lane.b32.xlu0 %v4017, 112
      %v4546 = vpop.permute.xlu0 %4545
      %4547 = vrot.lane.b32.xlu0 %v4018, 112
      %v4548 = vpop.permute.xlu0 %4547
      %v4549 = vsel %vm794, %v4546, %v4548
      %v4552 = vsel %vm794, %v4548, 0.0
      %4554 = vset.pattern.permute.xlu0 0
      %4555 = vperm.xlu0 %4554, %v4026
      %v4556 = vpop.permute.xlu0 %4555
      %v4558 = vlaneseq
      %v4559 = vshrl.u32 %v4558, 7
      %v4560 = vsub.s32 0, %v4559
      %v4561 = vrot.slane %v4549, %v4560
      %v4562 = vlaneseq
      %v4563 = vshrl.u32 %v4562, 7
      %v4564 = vsub.s32 0, %v4563
      %v4565 = vrot.slane %v4552, %v4564
      %v4566 = vmul.f32 %v4556, %v4561
      %v4567 = vmul.f32 %v4556, %v4565
      %v4568 = vadd.f32 %v4543, %v4566
      %v4569 = vadd.f32 %v4544, %v4567
      %4570 = vset.pattern.permute.xlu0 1
      %4571 = vperm.xlu0 %4570, %v4026
      %v4572 = vpop.permute.xlu0 %4571
      %v4574 = vlaneseq
      %v4575 = vshrl.u32 %v4574, 7
      %v4576 = vsub.s32 1, %v4575
      %v4577 = vrot.slane %v4549, %v4576
      %v4578 = vlaneseq
      %v4579 = vshrl.u32 %v4578, 7
      %v4580 = vsub.s32 1, %v4579
      %v4581 = vrot.slane %v4552, %v4580
      %v4582 = vmul.f32 %v4572, %v4577
      %v4583 = vmul.f32 %v4572, %v4581
      %v4584 = vadd.f32 %v4568, %v4582
      %v4585 = vadd.f32 %v4569, %v4583
      %4586 = vset.pattern.permute.xlu0 2
      %4587 = vperm.xlu0 %4586, %v4026
      %v4588 = vpop.permute.xlu0 %4587
      %v4590 = vlaneseq
      %v4591 = vshrl.u32 %v4590, 7
      %v4592 = vsub.s32 2, %v4591
      %v4593 = vrot.slane %v4549, %v4592
      %v4594 = vlaneseq
      %v4595 = vshrl.u32 %v4594, 7
      %v4596 = vsub.s32 2, %v4595
      %v4597 = vrot.slane %v4552, %v4596
      %v4598 = vmul.f32 %v4588, %v4593
      %v4599 = vmul.f32 %v4588, %v4597
      %v4600 = vadd.f32 %v4584, %v4598
      %v4601 = vadd.f32 %v4585, %v4599
      %4602 = vset.pattern.permute.xlu0 3
      %4603 = vperm.xlu0 %4602, %v4026
      %v4604 = vpop.permute.xlu0 %4603
      %v4606 = vlaneseq
      %v4607 = vshrl.u32 %v4606, 7
      %v4608 = vsub.s32 3, %v4607
      %v4609 = vrot.slane %v4549, %v4608
      %v4610 = vlaneseq
      %v4611 = vshrl.u32 %v4610, 7
      %v4612 = vsub.s32 3, %v4611
      %v4613 = vrot.slane %v4552, %v4612
      %v4614 = vmul.f32 %v4604, %v4609
      %v4615 = vmul.f32 %v4604, %v4613
      %v4616 = vadd.f32 %v4600, %v4614
      %v4617 = vadd.f32 %v4601, %v4615
      %4618 = vrot.lane.b32.xlu0 %v4052, 112
      %v4619 = vpop.permute.xlu0 %4618
      %4620 = vrot.lane.b32.xlu0 %v4053, 112
      %v4621 = vpop.permute.xlu0 %4620
      %v4622 = vsel %vm794, %v4619, %v4621
      %v4625 = vsel %vm794, %v4621, 0.0
      %4627 = vset.pattern.permute.xlu0 0
      %4628 = vperm.xlu0 %4627, %v4027
      %v4629 = vpop.permute.xlu0 %4628
      %v4631 = vlaneseq
      %v4632 = vshrl.u32 %v4631, 7
      %v4633 = vsub.s32 0, %v4632
      %v4634 = vrot.slane %v4622, %v4633
      %v4635 = vlaneseq
      %v4636 = vshrl.u32 %v4635, 7
      %v4637 = vsub.s32 0, %v4636
      %v4638 = vrot.slane %v4625, %v4637
      %v4639 = vmul.f32 %v4629, %v4634
      %v4640 = vmul.f32 %v4629, %v4638
      %v4641 = vadd.f32 %v4616, %v4639
      %v4642 = vadd.f32 %v4617, %v4640
      %4643 = vset.pattern.permute.xlu0 1
      %4644 = vperm.xlu0 %4643, %v4027
      %v4645 = vpop.permute.xlu0 %4644
      %v4647 = vlaneseq
      %v4648 = vshrl.u32 %v4647, 7
      %v4649 = vsub.s32 1, %v4648
      %v4650 = vrot.slane %v4622, %v4649
      %v4651 = vlaneseq
      %v4652 = vshrl.u32 %v4651, 7
      %v4653 = vsub.s32 1, %v4652
      %v4654 = vrot.slane %v4625, %v4653
      %v4655 = vmul.f32 %v4645, %v4650
      %v4656 = vmul.f32 %v4645, %v4654
      %v4657 = vadd.f32 %v4641, %v4655
      %v4658 = vadd.f32 %v4642, %v4656
      %4659 = vset.pattern.permute.xlu0 2
      %4660 = vperm.xlu0 %4659, %v4027
      %v4661 = vpop.permute.xlu0 %4660
      %v4663 = vlaneseq
      %v4664 = vshrl.u32 %v4663, 7
      %v4665 = vsub.s32 2, %v4664
      %v4666 = vrot.slane %v4622, %v4665
      %v4667 = vlaneseq
      %v4668 = vshrl.u32 %v4667, 7
      %v4669 = vsub.s32 2, %v4668
      %v4670 = vrot.slane %v4625, %v4669
      %v4671 = vmul.f32 %v4661, %v4666
      %v4672 = vmul.f32 %v4661, %v4670
      %v4673 = vadd.f32 %v4657, %v4671
      %v4674 = vadd.f32 %v4658, %v4672
      %4675 = vset.pattern.permute.xlu0 3
      %4676 = vperm.xlu0 %4675, %v4027
      %v4677 = vpop.permute.xlu0 %4676
      %v4679 = vlaneseq
      %v4680 = vshrl.u32 %v4679, 7
      %v4681 = vsub.s32 3, %v4680
      %v4682 = vrot.slane %v4622, %v4681
      %v4683 = vlaneseq
      %v4684 = vshrl.u32 %v4683, 7
      %v4685 = vsub.s32 3, %v4684
      %v4686 = vrot.slane %v4625, %v4685
      %v4687 = vmul.f32 %v4677, %v4682
      %v4688 = vmul.f32 %v4677, %v4686
      %v4689 = vadd.f32 %v4673, %v4687
      %v4690 = vadd.f32 %v4674, %v4688
      %v4691 = vmax.f32 %v4689, 0.0
      %v4692 = vmax.f32 %v4690, 0.0
      %s4693 = scalar_lea.vmem %s4, 36
      %v4694 = vld [vmem:[%s4693] sm:$0xf]
      %v4695 = vld [vmem:[%s4693 + $0x4] sm:$0xf]
      %v4696 = vld [vmem:[%s4693 + $0x8] sm:$0xf]
      %v4697 = vld [vmem:[%s4693 + $0xc] sm:$0xf]
      %v4698 = vld [vmem:[%s4693 + $0x10] sm:$0xf]
      %v4699 = vld [vmem:[%s4693 + $0x14] sm:$0xf]
      %v4700 = vld [vmem:[%s4693 + $0x18] sm:$0xf]
      %v4701 = vld [vmem:[%s4693 + $0x1c] sm:$0xf]
      %v4702 = vld [vmem:[%s4693 + $0x20] sm:$0xf]
      %4703 = vset.pattern.permute.xlu0 6
      %4704 = vperm.xlu0 %4703, %v1021
      %v4705 = vpop.permute.xlu0 %4704
      %4709 = vrot.lane.b32.xlu0 %v4691, 1
      %v4710 = vpop.permute.xlu0 %4709
      %4711 = vrot.lane.b32.xlu0 %v4692, 1
      %v4712 = vpop.permute.xlu0 %4711
      %v4713 = vsel %vm305, %v4710, %v4712
      %v4716 = vsel %vm305, 0.0, %v4710
      %v4717 = vsel %vm312, 0.0, %v4716
      %v4718 = vsel %vm313, 0.0, %v4713
      %4719 = vrot.lane.b32.xlu0 %v4691, 127
      %v4720 = vpop.permute.xlu0 %4719
      %4721 = vrot.lane.b32.xlu0 %v4692, 127
      %v4722 = vpop.permute.xlu0 %4721
      %v4723 = vsel %vm320, %v4720, %v4722
      %v4726 = vsel %vm320, %v4722, 0.0
      %v4727 = vsel %vm327, 0.0, %v4723
      %v4728 = vsel %vm328, 0.0, %v4726
      %4731 = vrot.lane.b32.xlu0 %v4717, 16
      %v4732 = vpop.permute.xlu0 %4731
      %4733 = vrot.lane.b32.xlu0 %v4718, 16
      %v4734 = vpop.permute.xlu0 %4733
      %v4735 = vsel %vm337, %v4732, %v4734
      %v4738 = vsel %vm337, 0.0, %v4732
      %4740 = vset.pattern.permute.xlu0 0
      %4741 = vperm.xlu0 %4740, %v4694
      %v4742 = vpop.permute.xlu0 %4741
      %v4744 = vlaneseq
      %v4745 = vshrl.u32 %v4744, 7
      %v4746 = vsub.s32 0, %v4745
      %v4747 = vrot.slane %v4738, %v4746
      %v4748 = vlaneseq
      %v4749 = vshrl.u32 %v4748, 7
      %v4750 = vsub.s32 0, %v4749
      %v4751 = vrot.slane %v4735, %v4750
      %v4752 = vmul.f32 %v4742, %v4747
      %v4753 = vmul.f32 %v4742, %v4751
      %v4754 = vadd.f32 %v4705, %v4752
      %v4755 = vadd.f32 %v4705, %v4753
      %4756 = vset.pattern.permute.xlu0 1
      %4757 = vperm.xlu0 %4756, %v4694
      %v4758 = vpop.permute.xlu0 %4757
      %v4760 = vlaneseq
      %v4761 = vshrl.u32 %v4760, 7
      %v4762 = vsub.s32 1, %v4761
      %v4763 = vrot.slane %v4738, %v4762
      %v4764 = vlaneseq
      %v4765 = vshrl.u32 %v4764, 7
      %v4766 = vsub.s32 1, %v4765
      %v4767 = vrot.slane %v4735, %v4766
      %v4768 = vmul.f32 %v4758, %v4763
      %v4769 = vmul.f32 %v4758, %v4767
      %v4770 = vadd.f32 %v4754, %v4768
      %v4771 = vadd.f32 %v4755, %v4769
      %4772 = vset.pattern.permute.xlu0 2
      %4773 = vperm.xlu0 %4772, %v4694
      %v4774 = vpop.permute.xlu0 %4773
      %v4776 = vlaneseq
      %v4777 = vshrl.u32 %v4776, 7
      %v4778 = vsub.s32 2, %v4777
      %v4779 = vrot.slane %v4738, %v4778
      %v4780 = vlaneseq
      %v4781 = vshrl.u32 %v4780, 7
      %v4782 = vsub.s32 2, %v4781
      %v4783 = vrot.slane %v4735, %v4782
      %v4784 = vmul.f32 %v4774, %v4779
      %v4785 = vmul.f32 %v4774, %v4783
      %v4786 = vadd.f32 %v4770, %v4784
      %v4787 = vadd.f32 %v4771, %v4785
      %4788 = vset.pattern.permute.xlu0 3
      %4789 = vperm.xlu0 %4788, %v4694
      %v4790 = vpop.permute.xlu0 %4789
      %v4792 = vlaneseq
      %v4793 = vshrl.u32 %v4792, 7
      %v4794 = vsub.s32 3, %v4793
      %v4795 = vrot.slane %v4738, %v4794
      %v4796 = vlaneseq
      %v4797 = vshrl.u32 %v4796, 7
      %v4798 = vsub.s32 3, %v4797
      %v4799 = vrot.slane %v4735, %v4798
      %v4800 = vmul.f32 %v4790, %v4795
      %v4801 = vmul.f32 %v4790, %v4799
      %v4802 = vadd.f32 %v4786, %v4800
      %v4803 = vadd.f32 %v4787, %v4801
      %4804 = vrot.lane.b32.xlu0 %v4691, 16
      %v4805 = vpop.permute.xlu0 %4804
      %4806 = vrot.lane.b32.xlu0 %v4692, 16
      %v4807 = vpop.permute.xlu0 %4806
      %v4808 = vsel %vm337, %v4805, %v4807
      %v4811 = vsel %vm337, 0.0, %v4805
      %4813 = vset.pattern.permute.xlu0 0
      %4814 = vperm.xlu0 %4813, %v4695
      %v4815 = vpop.permute.xlu0 %4814
      %v4817 = vlaneseq
      %v4818 = vshrl.u32 %v4817, 7
      %v4819 = vsub.s32 0, %v4818
      %v4820 = vrot.slane %v4811, %v4819
      %v4821 = vlaneseq
      %v4822 = vshrl.u32 %v4821, 7
      %v4823 = vsub.s32 0, %v4822
      %v4824 = vrot.slane %v4808, %v4823
      %v4825 = vmul.f32 %v4815, %v4820
      %v4826 = vmul.f32 %v4815, %v4824
      %v4827 = vadd.f32 %v4802, %v4825
      %v4828 = vadd.f32 %v4803, %v4826
      %4829 = vset.pattern.permute.xlu0 1
      %4830 = vperm.xlu0 %4829, %v4695
      %v4831 = vpop.permute.xlu0 %4830
      %v4833 = vlaneseq
      %v4834 = vshrl.u32 %v4833, 7
      %v4835 = vsub.s32 1, %v4834
      %v4836 = vrot.slane %v4811, %v4835
      %v4837 = vlaneseq
      %v4838 = vshrl.u32 %v4837, 7
      %v4839 = vsub.s32 1, %v4838
      %v4840 = vrot.slane %v4808, %v4839
      %v4841 = vmul.f32 %v4831, %v4836
      %v4842 = vmul.f32 %v4831, %v4840
      %v4843 = vadd.f32 %v4827, %v4841
      %v4844 = vadd.f32 %v4828, %v4842
      %4845 = vset.pattern.permute.xlu0 2
      %4846 = vperm.xlu0 %4845, %v4695
      %v4847 = vpop.permute.xlu0 %4846
      %v4849 = vlaneseq
      %v4850 = vshrl.u32 %v4849, 7
      %v4851 = vsub.s32 2, %v4850
      %v4852 = vrot.slane %v4811, %v4851
      %v4853 = vlaneseq
      %v4854 = vshrl.u32 %v4853, 7
      %v4855 = vsub.s32 2, %v4854
      %v4856 = vrot.slane %v4808, %v4855
      %v4857 = vmul.f32 %v4847, %v4852
      %v4858 = vmul.f32 %v4847, %v4856
      %v4859 = vadd.f32 %v4843, %v4857
      %v4860 = vadd.f32 %v4844, %v4858
      %4861 = vset.pattern.permute.xlu0 3
      %4862 = vperm.xlu0 %4861, %v4695
      %v4863 = vpop.permute.xlu0 %4862
      %v4865 = vlaneseq
      %v4866 = vshrl.u32 %v4865, 7
      %v4867 = vsub.s32 3, %v4866
      %v4868 = vrot.slane %v4811, %v4867
      %v4869 = vlaneseq
      %v4870 = vshrl.u32 %v4869, 7
      %v4871 = vsub.s32 3, %v4870
      %v4872 = vrot.slane %v4808, %v4871
      %v4873 = vmul.f32 %v4863, %v4868
      %v4874 = vmul.f32 %v4863, %v4872
      %v4875 = vadd.f32 %v4859, %v4873
      %v4876 = vadd.f32 %v4860, %v4874
      %4879 = vrot.lane.b32.xlu0 %v4727, 16
      %v4880 = vpop.permute.xlu0 %4879
      %4881 = vrot.lane.b32.xlu0 %v4728, 16
      %v4882 = vpop.permute.xlu0 %4881
      %v4883 = vsel %vm337, %v4880, %v4882
      %v4886 = vsel %vm337, 0.0, %v4880
      %4888 = vset.pattern.permute.xlu0 0
      %4889 = vperm.xlu0 %4888, %v4696
      %v4890 = vpop.permute.xlu0 %4889
      %v4892 = vlaneseq
      %v4893 = vshrl.u32 %v4892, 7
      %v4894 = vsub.s32 0, %v4893
      %v4895 = vrot.slane %v4886, %v4894
      %v4896 = vlaneseq
      %v4897 = vshrl.u32 %v4896, 7
      %v4898 = vsub.s32 0, %v4897
      %v4899 = vrot.slane %v4883, %v4898
      %v4900 = vmul.f32 %v4890, %v4895
      %v4901 = vmul.f32 %v4890, %v4899
      %v4902 = vadd.f32 %v4875, %v4900
      %v4903 = vadd.f32 %v4876, %v4901
      %4904 = vset.pattern.permute.xlu0 1
      %4905 = vperm.xlu0 %4904, %v4696
      %v4906 = vpop.permute.xlu0 %4905
      %v4908 = vlaneseq
      %v4909 = vshrl.u32 %v4908, 7
      %v4910 = vsub.s32 1, %v4909
      %v4911 = vrot.slane %v4886, %v4910
      %v4912 = vlaneseq
      %v4913 = vshrl.u32 %v4912, 7
      %v4914 = vsub.s32 1, %v4913
      %v4915 = vrot.slane %v4883, %v4914
      %v4916 = vmul.f32 %v4906, %v4911
      %v4917 = vmul.f32 %v4906, %v4915
      %v4918 = vadd.f32 %v4902, %v4916
      %v4919 = vadd.f32 %v4903, %v4917
      %4920 = vset.pattern.permute.xlu0 2
      %4921 = vperm.xlu0 %4920, %v4696
      %v4922 = vpop.permute.xlu0 %4921
      %v4924 = vlaneseq
      %v4925 = vshrl.u32 %v4924, 7
      %v4926 = vsub.s32 2, %v4925
      %v4927 = vrot.slane %v4886, %v4926
      %v4928 = vlaneseq
      %v4929 = vshrl.u32 %v4928, 7
      %v4930 = vsub.s32 2, %v4929
      %v4931 = vrot.slane %v4883, %v4930
      %v4932 = vmul.f32 %v4922, %v4927
      %v4933 = vmul.f32 %v4922, %v4931
      %v4934 = vadd.f32 %v4918, %v4932
      %v4935 = vadd.f32 %v4919, %v4933
      %4936 = vset.pattern.permute.xlu0 3
      %4937 = vperm.xlu0 %4936, %v4696
      %v4938 = vpop.permute.xlu0 %4937
      %v4940 = vlaneseq
      %v4941 = vshrl.u32 %v4940, 7
      %v4942 = vsub.s32 3, %v4941
      %v4943 = vrot.slane %v4886, %v4942
      %v4944 = vlaneseq
      %v4945 = vshrl.u32 %v4944, 7
      %v4946 = vsub.s32 3, %v4945
      %v4947 = vrot.slane %v4883, %v4946
      %v4948 = vmul.f32 %v4938, %v4943
      %v4949 = vmul.f32 %v4938, %v4947
      %v4950 = vadd.f32 %v4934, %v4948
      %v4951 = vadd.f32 %v4935, %v4949
      %4953 = vset.pattern.permute.xlu0 0
      %4954 = vperm.xlu0 %4953, %v4697
      %v4955 = vpop.permute.xlu0 %4954
      %v4957 = vlaneseq
      %v4958 = vshrl.u32 %v4957, 7
      %v4959 = vsub.s32 0, %v4958
      %v4960 = vrot.slane %v4717, %v4959
      %v4961 = vlaneseq
      %v4962 = vshrl.u32 %v4961, 7
      %v4963 = vsub.s32 0, %v4962
      %v4964 = vrot.slane %v4718, %v4963
      %v4965 = vmul.f32 %v4955, %v4960
      %v4966 = vmul.f32 %v4955, %v4964
      %v4967 = vadd.f32 %v4950, %v4965
      %v4968 = vadd.f32 %v4951, %v4966
      %4969 = vset.pattern.permute.xlu0 1
      %4970 = vperm.xlu0 %4969, %v4697
      %v4971 = vpop.permute.xlu0 %4970
      %v4973 = vlaneseq
      %v4974 = vshrl.u32 %v4973, 7
      %v4975 = vsub.s32 1, %v4974
      %v4976 = vrot.slane %v4717, %v4975
      %v4977 = vlaneseq
      %v4978 = vshrl.u32 %v4977, 7
      %v4979 = vsub.s32 1, %v4978
      %v4980 = vrot.slane %v4718, %v4979
      %v4981 = vmul.f32 %v4971, %v4976
      %v4982 = vmul.f32 %v4971, %v4980
      %v4983 = vadd.f32 %v4967, %v4981
      %v4984 = vadd.f32 %v4968, %v4982
      %4985 = vset.pattern.permute.xlu0 2
      %4986 = vperm.xlu0 %4985, %v4697
      %v4987 = vpop.permute.xlu0 %4986
      %v4989 = vlaneseq
      %v4990 = vshrl.u32 %v4989, 7
      %v4991 = vsub.s32 2, %v4990
      %v4992 = vrot.slane %v4717, %v4991
      %v4993 = vlaneseq
      %v4994 = vshrl.u32 %v4993, 7
      %v4995 = vsub.s32 2, %v4994
      %v4996 = vrot.slane %v4718, %v4995
      %v4997 = vmul.f32 %v4987, %v4992
      %v4998 = vmul.f32 %v4987, %v4996
      %v4999 = vadd.f32 %v4983, %v4997
      %v5000 = vadd.f32 %v4984, %v4998
      %5001 = vset.pattern.permute.xlu0 3
      %5002 = vperm.xlu0 %5001, %v4697
      %v5003 = vpop.permute.xlu0 %5002
      %v5005 = vlaneseq
      %v5006 = vshrl.u32 %v5005, 7
      %v5007 = vsub.s32 3, %v5006
      %v5008 = vrot.slane %v4717, %v5007
      %v5009 = vlaneseq
      %v5010 = vshrl.u32 %v5009, 7
      %v5011 = vsub.s32 3, %v5010
      %v5012 = vrot.slane %v4718, %v5011
      %v5013 = vmul.f32 %v5003, %v5008
      %v5014 = vmul.f32 %v5003, %v5012
      %v5015 = vadd.f32 %v4999, %v5013
      %v5016 = vadd.f32 %v5000, %v5014
      %5018 = vset.pattern.permute.xlu0 0
      %5019 = vperm.xlu0 %5018, %v4698
      %v5020 = vpop.permute.xlu0 %5019
      %v5022 = vlaneseq
      %v5023 = vshrl.u32 %v5022, 7
      %v5024 = vsub.s32 0, %v5023
      %v5025 = vrot.slane %v4691, %v5024
      %v5026 = vlaneseq
      %v5027 = vshrl.u32 %v5026, 7
      %v5028 = vsub.s32 0, %v5027
      %v5029 = vrot.slane %v4692, %v5028
      %v5030 = vmul.f32 %v5020, %v5025
      %v5031 = vmul.f32 %v5020, %v5029
      %v5032 = vadd.f32 %v5015, %v5030
      %v5033 = vadd.f32 %v5016, %v5031
      %5034 = vset.pattern.permute.xlu0 1
      %5035 = vperm.xlu0 %5034, %v4698
      %v5036 = vpop.permute.xlu0 %5035
      %v5038 = vlaneseq
      %v5039 = vshrl.u32 %v5038, 7
      %v5040 = vsub.s32 1, %v5039
      %v5041 = vrot.slane %v4691, %v5040
      %v5042 = vlaneseq
      %v5043 = vshrl.u32 %v5042, 7
      %v5044 = vsub.s32 1, %v5043
      %v5045 = vrot.slane %v4692, %v5044
      %v5046 = vmul.f32 %v5036, %v5041
      %v5047 = vmul.f32 %v5036, %v5045
      %v5048 = vadd.f32 %v5032, %v5046
      %v5049 = vadd.f32 %v5033, %v5047
      %5050 = vset.pattern.permute.xlu0 2
      %5051 = vperm.xlu0 %5050, %v4698
      %v5052 = vpop.permute.xlu0 %5051
      %v5054 = vlaneseq
      %v5055 = vshrl.u32 %v5054, 7
      %v5056 = vsub.s32 2, %v5055
      %v5057 = vrot.slane %v4691, %v5056
      %v5058 = vlaneseq
      %v5059 = vshrl.u32 %v5058, 7
      %v5060 = vsub.s32 2, %v5059
      %v5061 = vrot.slane %v4692, %v5060
      %v5062 = vmul.f32 %v5052, %v5057
      %v5063 = vmul.f32 %v5052, %v5061
      %v5064 = vadd.f32 %v5048, %v5062
      %v5065 = vadd.f32 %v5049, %v5063
      %5066 = vset.pattern.permute.xlu0 3
      %5067 = vperm.xlu0 %5066, %v4698
      %v5068 = vpop.permute.xlu0 %5067
      %v5070 = vlaneseq
      %v5071 = vshrl.u32 %v5070, 7
      %v5072 = vsub.s32 3, %v5071
      %v5073 = vrot.slane %v4691, %v5072
      %v5074 = vlaneseq
      %v5075 = vshrl.u32 %v5074, 7
      %v5076 = vsub.s32 3, %v5075
      %v5077 = vrot.slane %v4692, %v5076
      %v5078 = vmul.f32 %v5068, %v5073
      %v5079 = vmul.f32 %v5068, %v5077
      %v5080 = vadd.f32 %v5064, %v5078
      %v5081 = vadd.f32 %v5065, %v5079
      %5083 = vset.pattern.permute.xlu0 0
      %5084 = vperm.xlu0 %5083, %v4699
      %v5085 = vpop.permute.xlu0 %5084
      %v5087 = vlaneseq
      %v5088 = vshrl.u32 %v5087, 7
      %v5089 = vsub.s32 0, %v5088
      %v5090 = vrot.slane %v4727, %v5089
      %v5091 = vlaneseq
      %v5092 = vshrl.u32 %v5091, 7
      %v5093 = vsub.s32 0, %v5092
      %v5094 = vrot.slane %v4728, %v5093
      %v5095 = vmul.f32 %v5085, %v5090
      %v5096 = vmul.f32 %v5085, %v5094
      %v5097 = vadd.f32 %v5080, %v5095
      %v5098 = vadd.f32 %v5081, %v5096
      %5099 = vset.pattern.permute.xlu0 1
      %5100 = vperm.xlu0 %5099, %v4699
      %v5101 = vpop.permute.xlu0 %5100
      %v5103 = vlaneseq
      %v5104 = vshrl.u32 %v5103, 7
      %v5105 = vsub.s32 1, %v5104
      %v5106 = vrot.slane %v4727, %v5105
      %v5107 = vlaneseq
      %v5108 = vshrl.u32 %v5107, 7
      %v5109 = vsub.s32 1, %v5108
      %v5110 = vrot.slane %v4728, %v5109
      %v5111 = vmul.f32 %v5101, %v5106
      %v5112 = vmul.f32 %v5101, %v5110
      %v5113 = vadd.f32 %v5097, %v5111
      %v5114 = vadd.f32 %v5098, %v5112
      %5115 = vset.pattern.permute.xlu0 2
      %5116 = vperm.xlu0 %5115, %v4699
      %v5117 = vpop.permute.xlu0 %5116
      %v5119 = vlaneseq
      %v5120 = vshrl.u32 %v5119, 7
      %v5121 = vsub.s32 2, %v5120
      %v5122 = vrot.slane %v4727, %v5121
      %v5123 = vlaneseq
      %v5124 = vshrl.u32 %v5123, 7
      %v5125 = vsub.s32 2, %v5124
      %v5126 = vrot.slane %v4728, %v5125
      %v5127 = vmul.f32 %v5117, %v5122
      %v5128 = vmul.f32 %v5117, %v5126
      %v5129 = vadd.f32 %v5113, %v5127
      %v5130 = vadd.f32 %v5114, %v5128
      %5131 = vset.pattern.permute.xlu0 3
      %5132 = vperm.xlu0 %5131, %v4699
      %v5133 = vpop.permute.xlu0 %5132
      %v5135 = vlaneseq
      %v5136 = vshrl.u32 %v5135, 7
      %v5137 = vsub.s32 3, %v5136
      %v5138 = vrot.slane %v4727, %v5137
      %v5139 = vlaneseq
      %v5140 = vshrl.u32 %v5139, 7
      %v5141 = vsub.s32 3, %v5140
      %v5142 = vrot.slane %v4728, %v5141
      %v5143 = vmul.f32 %v5133, %v5138
      %v5144 = vmul.f32 %v5133, %v5142
      %v5145 = vadd.f32 %v5129, %v5143
      %v5146 = vadd.f32 %v5130, %v5144
      %5147 = vrot.lane.b32.xlu0 %v4717, 112
      %v5148 = vpop.permute.xlu0 %5147
      %5149 = vrot.lane.b32.xlu0 %v4718, 112
      %v5150 = vpop.permute.xlu0 %5149
      %v5151 = vsel %vm794, %v5148, %v5150
      %v5154 = vsel %vm794, %v5150, 0.0
      %5156 = vset.pattern.permute.xlu0 0
      %5157 = vperm.xlu0 %5156, %v4700
      %v5158 = vpop.permute.xlu0 %5157
      %v5160 = vlaneseq
      %v5161 = vshrl.u32 %v5160, 7
      %v5162 = vsub.s32 0, %v5161
      %v5163 = vrot.slane %v5151, %v5162
      %v5164 = vlaneseq
      %v5165 = vshrl.u32 %v5164, 7
      %v5166 = vsub.s32 0, %v5165
      %v5167 = vrot.slane %v5154, %v5166
      %v5168 = vmul.f32 %v5158, %v5163
      %v5169 = vmul.f32 %v5158, %v5167
      %v5170 = vadd.f32 %v5145, %v5168
      %v5171 = vadd.f32 %v5146, %v5169
      %5172 = vset.pattern.permute.xlu0 1
      %5173 = vperm.xlu0 %5172, %v4700
      %v5174 = vpop.permute.xlu0 %5173
      %v5176 = vlaneseq
      %v5177 = vshrl.u32 %v5176, 7
      %v5178 = vsub.s32 1, %v5177
      %v5179 = vrot.slane %v5151, %v5178
      %v5180 = vlaneseq
      %v5181 = vshrl.u32 %v5180, 7
      %v5182 = vsub.s32 1, %v5181
      %v5183 = vrot.slane %v5154, %v5182
      %v5184 = vmul.f32 %v5174, %v5179
      %v5185 = vmul.f32 %v5174, %v5183
      %v5186 = vadd.f32 %v5170, %v5184
      %v5187 = vadd.f32 %v5171, %v5185
      %5188 = vset.pattern.permute.xlu0 2
      %5189 = vperm.xlu0 %5188, %v4700
      %v5190 = vpop.permute.xlu0 %5189
      %v5192 = vlaneseq
      %v5193 = vshrl.u32 %v5192, 7
      %v5194 = vsub.s32 2, %v5193
      %v5195 = vrot.slane %v5151, %v5194
      %v5196 = vlaneseq
      %v5197 = vshrl.u32 %v5196, 7
      %v5198 = vsub.s32 2, %v5197
      %v5199 = vrot.slane %v5154, %v5198
      %v5200 = vmul.f32 %v5190, %v5195
      %v5201 = vmul.f32 %v5190, %v5199
      %v5202 = vadd.f32 %v5186, %v5200
      %v5203 = vadd.f32 %v5187, %v5201
      %5204 = vset.pattern.permute.xlu0 3
      %5205 = vperm.xlu0 %5204, %v4700
      %v5206 = vpop.permute.xlu0 %5205
      %v5208 = vlaneseq
      %v5209 = vshrl.u32 %v5208, 7
      %v5210 = vsub.s32 3, %v5209
      %v5211 = vrot.slane %v5151, %v5210
      %v5212 = vlaneseq
      %v5213 = vshrl.u32 %v5212, 7
      %v5214 = vsub.s32 3, %v5213
      %v5215 = vrot.slane %v5154, %v5214
      %v5216 = vmul.f32 %v5206, %v5211
      %v5217 = vmul.f32 %v5206, %v5215
      %v5218 = vadd.f32 %v5202, %v5216
      %v5219 = vadd.f32 %v5203, %v5217
      %5220 = vrot.lane.b32.xlu0 %v4691, 112
      %v5221 = vpop.permute.xlu0 %5220
      %5222 = vrot.lane.b32.xlu0 %v4692, 112
      %v5223 = vpop.permute.xlu0 %5222
      %v5224 = vsel %vm794, %v5221, %v5223
      %v5227 = vsel %vm794, %v5223, 0.0
      %5229 = vset.pattern.permute.xlu0 0
      %5230 = vperm.xlu0 %5229, %v4701
      %v5231 = vpop.permute.xlu0 %5230
      %v5233 = vlaneseq
      %v5234 = vshrl.u32 %v5233, 7
      %v5235 = vsub.s32 0, %v5234
      %v5236 = vrot.slane %v5224, %v5235
      %v5237 = vlaneseq
      %v5238 = vshrl.u32 %v5237, 7
      %v5239 = vsub.s32 0, %v5238
      %v5240 = vrot.slane %v5227, %v5239
      %v5241 = vmul.f32 %v5231, %v5236
      %v5242 = vmul.f32 %v5231, %v5240
      %v5243 = vadd.f32 %v5218, %v5241
      %v5244 = vadd.f32 %v5219, %v5242
      %5245 = vset.pattern.permute.xlu0 1
      %5246 = vperm.xlu0 %5245, %v4701
      %v5247 = vpop.permute.xlu0 %5246
      %v5249 = vlaneseq
      %v5250 = vshrl.u32 %v5249, 7
      %v5251 = vsub.s32 1, %v5250
      %v5252 = vrot.slane %v5224, %v5251
      %v5253 = vlaneseq
      %v5254 = vshrl.u32 %v5253, 7
      %v5255 = vsub.s32 1, %v5254
      %v5256 = vrot.slane %v5227, %v5255
      %v5257 = vmul.f32 %v5247, %v5252
      %v5258 = vmul.f32 %v5247, %v5256
      %v5259 = vadd.f32 %v5243, %v5257
      %v5260 = vadd.f32 %v5244, %v5258
      %5261 = vset.pattern.permute.xlu0 2
      %5262 = vperm.xlu0 %5261, %v4701
      %v5263 = vpop.permute.xlu0 %5262
      %v5265 = vlaneseq
      %v5266 = vshrl.u32 %v5265, 7
      %v5267 = vsub.s32 2, %v5266
      %v5268 = vrot.slane %v5224, %v5267
      %v5269 = vlaneseq
      %v5270 = vshrl.u32 %v5269, 7
      %v5271 = vsub.s32 2, %v5270
      %v5272 = vrot.slane %v5227, %v5271
      %v5273 = vmul.f32 %v5263, %v5268
      %v5274 = vmul.f32 %v5263, %v5272
      %v5275 = vadd.f32 %v5259, %v5273
      %v5276 = vadd.f32 %v5260, %v5274
      %5277 = vset.pattern.permute.xlu0 3
      %5278 = vperm.xlu0 %5277, %v4701
      %v5279 = vpop.permute.xlu0 %5278
      %v5281 = vlaneseq
      %v5282 = vshrl.u32 %v5281, 7
      %v5283 = vsub.s32 3, %v5282
      %v5284 = vrot.slane %v5224, %v5283
      %v5285 = vlaneseq
      %v5286 = vshrl.u32 %v5285, 7
      %v5287 = vsub.s32 3, %v5286
      %v5288 = vrot.slane %v5227, %v5287
      %v5289 = vmul.f32 %v5279, %v5284
      %v5290 = vmul.f32 %v5279, %v5288
      %v5291 = vadd.f32 %v5275, %v5289
      %v5292 = vadd.f32 %v5276, %v5290
      %5293 = vrot.lane.b32.xlu0 %v4727, 112
      %v5294 = vpop.permute.xlu0 %5293
      %5295 = vrot.lane.b32.xlu0 %v4728, 112
      %v5296 = vpop.permute.xlu0 %5295
      %v5297 = vsel %vm794, %v5294, %v5296
      %v5300 = vsel %vm794, %v5296, 0.0
      %5302 = vset.pattern.permute.xlu0 0
      %5303 = vperm.xlu0 %5302, %v4702
      %v5304 = vpop.permute.xlu0 %5303
      %v5306 = vlaneseq
      %v5307 = vshrl.u32 %v5306, 7
      %v5308 = vsub.s32 0, %v5307
      %v5309 = vrot.slane %v5297, %v5308
      %v5310 = vlaneseq
      %v5311 = vshrl.u32 %v5310, 7
      %v5312 = vsub.s32 0, %v5311
      %v5313 = vrot.slane %v5300, %v5312
      %v5314 = vmul.f32 %v5304, %v5309
      %v5315 = vmul.f32 %v5304, %v5313
      %v5316 = vadd.f32 %v5291, %v5314
      %v5317 = vadd.f32 %v5292, %v5315
      %5318 = vset.pattern.permute.xlu0 1
      %5319 = vperm.xlu0 %5318, %v4702
      %v5320 = vpop.permute.xlu0 %5319
      %v5322 = vlaneseq
      %v5323 = vshrl.u32 %v5322, 7
      %v5324 = vsub.s32 1, %v5323
      %v5325 = vrot.slane %v5297, %v5324
      %v5326 = vlaneseq
      %v5327 = vshrl.u32 %v5326, 7
      %v5328 = vsub.s32 1, %v5327
      %v5329 = vrot.slane %v5300, %v5328
      %v5330 = vmul.f32 %v5320, %v5325
      %v5331 = vmul.f32 %v5320, %v5329
      %v5332 = vadd.f32 %v5316, %v5330
      %v5333 = vadd.f32 %v5317, %v5331
      %5334 = vset.pattern.permute.xlu0 2
      %5335 = vperm.xlu0 %5334, %v4702
      %v5336 = vpop.permute.xlu0 %5335
      %v5338 = vlaneseq
      %v5339 = vshrl.u32 %v5338, 7
      %v5340 = vsub.s32 2, %v5339
      %v5341 = vrot.slane %v5297, %v5340
      %v5342 = vlaneseq
      %v5343 = vshrl.u32 %v5342, 7
      %v5344 = vsub.s32 2, %v5343
      %v5345 = vrot.slane %v5300, %v5344
      %v5346 = vmul.f32 %v5336, %v5341
      %v5347 = vmul.f32 %v5336, %v5345
      %v5348 = vadd.f32 %v5332, %v5346
      %v5349 = vadd.f32 %v5333, %v5347
      %5350 = vset.pattern.permute.xlu0 3
      %5351 = vperm.xlu0 %5350, %v4702
      %v5352 = vpop.permute.xlu0 %5351
      %v5354 = vlaneseq
      %v5355 = vshrl.u32 %v5354, 7
      %v5356 = vsub.s32 3, %v5355
      %v5357 = vrot.slane %v5297, %v5356
      %v5358 = vlaneseq
      %v5359 = vshrl.u32 %v5358, 7
      %v5360 = vsub.s32 3, %v5359
      %v5361 = vrot.slane %v5300, %v5360
      %v5362 = vmul.f32 %v5352, %v5357
      %v5363 = vmul.f32 %v5352, %v5361
      %v5364 = vadd.f32 %v5348, %v5362
      %v5365 = vadd.f32 %v5349, %v5363
      %v5366 = vmax.f32 %v5364, 0.0
      %v5367 = vmax.f32 %v5365, 0.0
      %v5370 = vcombine.low %v5366, %v5367
      %5372 = vst [vmem:[%s251] sm:$0xff] %v5370
      %p5373 = scmp.lt.s32.totalorder %s17, 1
      %s5374 = scalar_select %p5373, %s17, 1
      %s5375 = smul.addr %s5374, 2
      %s5376 = smul.addr %s5375, 4
      %s5377 = scalar_lea.vmem %s6, %s5376
      // Predicated region
      $region45: #{inference_module_forward.1} parent=43 // pred_check
        %p5378 = pneg %p166
      $region46: #{inference_module_forward.1} parent=43 // pred_check_branch
        %5380 = sbr.rel (%p5378) target = $region48
      $region47: #{inference_module_forward.1} parent=43 // pred_region
        _
      $region48: #{inference_module_forward.1} parent=43 // pred_fallthru
        _
    $region44: #{inference_module_forward.1} parent=5 // pred_fallthru
      _
    %p5381 = scmp.le.s32.totalorder 2, %s12
    // Predicated region
    $region49: #{inference_module_forward.1} parent=5 // pred_check
      %p5382 = pneg %p5381
    $region50: #{inference_module_forward.1} parent=5 // pred_check_branch
      %5384 = sbr.rel (%p5382) target = $region52
    $region51: #{inference_module_forward.1} parent=5 // pred_region
      %s5385 = ssub.s32 %s12, 2
      // Predicated region
      $region53: #{inference_module_forward.1} parent=51 // pred_check
        %p5386 = pneg %p172
      $region54: #{inference_module_forward.1} parent=51 // pred_check_branch
        %5388 = sbr.rel (%p5386) target = $region56
      $region55: #{inference_module_forward.1} parent=51 // pred_region
        %p5389 = scmp.lt.s32.totalorder %s18, 1
        %s5390 = scalar_select %p5389, %s18, 1
        %s5391 = smul.addr %s5390, 2
        %s5392 = smul.addr %s5391, 4
        %s5393 = scalar_lea.vmem %s6, %s5392
      $region56: #{inference_module_forward.1} parent=51 // pred_fallthru
        _
    $region52: #{inference_module_forward.1} parent=5 // pred_fallthru
      _
  $region6: #{inference_module_forward.1} parent=0 // loop_footer
    %s16 = sadd.s32 1, %s12
  $region7: #{inference_module_forward.1} parent=0 // loop_footer_branch
    %11 = sbr.rel target = $region3
  $region8: #{inference_module_forward.1} parent=0 // loop_exit
    _

</llo_original>
